<compile_context>
chip_gen: v7x
topology: tpu7x:2x2x1
jax: 0.10.0
libtpu: 0.0.40
codegen_flags: <defaults>
</compile_context>

<pallas_src>
import functools
import math

import jax
import jax.numpy as jnp
from jax.experimental import pallas as pl
from jax.experimental.pallas import tpu as pltpu


# ----------------------------------------------------------------------------
# Fused kernel: conv1+bn+relu  ->  ONE matmul for (skip + conv2 + bn)  -> relu
# ----------------------------------------------------------------------------
def _make_fused_kernel(H, W, Cin, Cout, stride):
    Ho = (H + 2 - 3) // stride + 1
    Wo = (W + 2 - 3) // stride + 1
    Kx = 9 * Cin
    Kh = 9 * Cout

    def _fill_patches(pad_ref, patches_ref, col0, nch, rows, cols, s):
        # Store the 9 shifted taps of the zero-padded slab into contiguous
        # columns [col0, col0 + 9*nch) of the bf16 patches scratch, so both
        # matmuls consume a single wide-K operand resident in VMEM
        # (no 9-way lane concat, bounded vreg pressure, patch_x reused).
        for ky in range(3):
            for kx in range(3):
                if s == 1:
                    tap = pad_ref[ky:ky + rows, kx:kx + cols, :]
                else:
                    # Ref-side strided read (load unit does the decimation).
                    tap = pad_ref[pl.ds(ky, rows, stride=s),
                                  pl.ds(kx, cols, stride=s), :]
                c = col0 + (ky * 3 + kx) * nch
                patches_ref[:, c:c + nch] = tap.reshape(rows * cols, nch)

    def _zero_border(pad_ref, nrows, ncols, nch):
        # Only the 1-pixel halo ring; the interior is fully rewritten below.
        zr = jnp.zeros((1, ncols, nch), jnp.bfloat16)
        pad_ref[0:1, :, :] = zr
        pad_ref[nrows - 1:nrows, :, :] = zr
        zc = jnp.zeros((nrows, 1, nch), jnp.bfloat16)
        pad_ref[:, 0:1, :] = zc
        pad_ref[:, ncols - 1:ncols, :] = zc

    def kernel(x_ref, w1_ref, b1_ref, wc_ref, bc_ref, out_ref,
               xpad_ref, hpad_ref, patches_ref):
        _zero_border(xpad_ref, H + 2, W + 2, Cin)
        _zero_border(hpad_ref, Ho + 2, Wo + 2, Cout)

        # x interior (bf16 halo slab in VMEM; no HBM pad round-trip).
        xpad_ref[1:H + 1, 1:W + 1, :] = x_ref[0]

        # im2col of x -> patches[:, :Kx]
        _fill_patches(xpad_ref, patches_ref, 0, Cin, Ho, Wo, stride)

        # ---- conv1 + bn1 + relu (BN scale folded into w1, shift in b1) -----
        h = jnp.dot(patches_ref[:, 0:Kx], w1_ref[...],
                    preferred_element_type=jnp.float32)
        h = jnp.maximum(h + b1_ref[...], 0.0)                # (Ho*Wo, Cout) f32
        hpad_ref[1:Ho + 1, 1:Wo + 1, :] = (
            h.reshape(Ho, Wo, Cout).astype(jnp.bfloat16))

        # im2col of h -> patches[:, Kx:Kx+Kh]
        _fill_patches(hpad_ref, patches_ref, Kx, Cout, Ho, Wo, 1)

        # ---- fused (skip + conv2 + bn) matmul, K = 9*(Cin+Cout) -------------
        # wc = vstack([skip-conv (BN folded)  or  exact centre-tap identity,
        #              conv2     (BN folded)]),  bc = shift2 (+ shift_skip).
        y = jnp.dot(patches_ref[...], wc_ref[...],
                    preferred_element_type=jnp.float32)
        y = jnp.maximum(y + bc_ref[...], 0.0)                 # (Ho*Wo, Cout) f32
        out_ref[...] = y.reshape(1, Ho * Wo, Cout)            # unpadded channels

    return kernel, Ho, Wo


# ----------------------------------------------------------------------------
# Wrapper: BN folding, weight layout, combined skip+conv2 weight, pallas_call
# ----------------------------------------------------------------------------
def _fold_bn(gamma, beta, mean, var, eps=1e-5):
    scale = gamma / jnp.sqrt(var + eps)
    shift = beta - mean * scale
    return scale, shift


def _prep_conv(flat, cin, cout, scale, shift):
    # PyTorch OIHW (cout, cin, 3, 3) -> (ky, kx, cin, cout) -> (9*cin, cout);
    # BN scale folded into the weights; shift carried as a (1, cout) bias.
    w = flat.reshape(cout, cin, 3, 3)
    w = jnp.transpose(w, (2, 3, 1, 0)).reshape(9 * cin, cout)
    w = (w * scale[None, :]).astype(jnp.bfloat16)
    b = shift.astype(jnp.float32).reshape(1, cout)
    return w, b


def _padded_bytes(shape, dtype):
    # Rough VMEM footprint of one buffer: last two dims padded to the
    # (sublane, 128-lane) tile for the given dtype.
    itemsize = jnp.dtype(dtype).itemsize
    sub = 8 * (4 // itemsize)
    dims = (1, 1) + tuple(int(d) for d in shape)
    lead = math.prod(dims[:-2])
    return lead * (-(-dims[-2] // sub) * sub) * (-(-dims[-1] // 128) * 128) * itemsize


def hyper_residual_block_forward(x_nchw, hyper_w, bn_params, *, in_channels,
                                 out_channels, stride=1):
    cin, cout = in_channels, out_channels
    has_skip = cin != cout
    if not has_skip and stride != 1:
        raise ValueError("identity skip (in_channels == out_channels) requires "
                         "stride == 1")

    n1 = cin * cout * 9     # conv1
    n2 = cout * cout * 9    # conv2
    n3 = cin * cout * 9     # skip_conv

    s1, sh1 = _fold_bn(*bn_params["bn1"])
    s2, sh2 = _fold_bn(*bn_params["bn2"])
    w1, b1 = _prep_conv(hyper_w[:n1], cin, cout, s1, sh1)
    w2, b2 = _prep_conv(hyper_w[n1:n1 + n2], cout, cout, s2, sh2)

    if has_skip:
        ssk, shsk = _fold_bn(*bn_params["bn_skip"])
        wx, bx = _prep_conv(hyper_w[n1 + n2:n1 + n2 + n3], cin, cout, ssk, shsk)
    else:
        # Identity skip folded into the fused matmul: the centre tap of the x
        # im2col block IS x when stride==1, so an exact bf16 identity at rows
        # [4*cin, 5*cin) adds x with f32 accumulation (same precision as a
        # value-level f32 add of the bf16 input; no extra matmul or scratch).
        wx = (jnp.zeros((9 * cin, cout), jnp.float32)
              .at[4 * cin:5 * cin, :].set(jnp.eye(cin, cout, dtype=jnp.float32))
              .astype(jnp.bfloat16))
        bx = jnp.zeros((1, cout), jnp.float32)

    wc = jnp.concatenate([wx, w2], axis=0)            # (9*(cin+cout), cout) bf16
    bc = (b2 + bx).astype(jnp.float32)                # (1, cout) f32

    # x: NCHW f32 -> NHWC bf16 (halves the HBM read; MXU consumes bf16 anyway).
    x = jnp.transpose(x_nchw, (0, 2, 3, 1)).astype(jnp.bfloat16)
    N, H, W, _ = x.shape

    kernel, Ho, Wo = _make_fused_kernel(H, W, cin, cout, stride)

    in_specs = [
        pl.BlockSpec((1, H, W, cin), lambda n: (n, 0, 0, 0)),        # x (bf16)
        pl.BlockSpec((9 * cin, cout), lambda n: (0, 0)),             # w1
        pl.BlockSpec((1, cout), lambda n: (0, 0)),                   # shift1
        pl.BlockSpec((9 * (cin + cout), cout), lambda n: (0, 0)),    # wc
        pl.BlockSpec((1, cout), lambda n: (0, 0)),                   # shiftc
    ]
    args = (x, w1, b1, wc, bc)

    scratch_specs = [
        pltpu.VMEM((H + 2, W + 2, cin), jnp.bfloat16),      # zero-padded x slab
        pltpu.VMEM((Ho + 2, Wo + 2, cout), jnp.bfloat16),   # zero-padded h slab
        pltpu.VMEM((Ho * Wo, 9 * (cin + cout)), jnp.bfloat16),  # im2col patches
    ]

    # Explicit VMEM budget: scratch + double-buffered in/out blocks + headroom.
    block_bytes = (
        _padded_bytes((1, H, W, cin), jnp.bfloat16)
        + _padded_bytes((9 * cin, cout), jnp.bfloat16)
        + _padded_bytes((1, cout), jnp.float32)
        + _padded_bytes((9 * (cin + cout), cout), jnp.bfloat16)
        + _padded_bytes((1, cout), jnp.float32)
        + _padded_bytes((1, Ho * Wo, cout), jnp.float32))
    scratch_bytes = (
        _padded_bytes((H + 2, W + 2, cin), jnp.bfloat16)
        + _padded_bytes((Ho + 2, Wo + 2, cout), jnp.bfloat16)
        + _padded_bytes((Ho * Wo, 9 * (cin + cout)), jnp.bfloat16))
    vmem_limit = int(min(100 * 2**20,
                         max(8 * 2**20, 2 * (2 * block_bytes + scratch_bytes))))

    flops = 2 * N * Ho * Wo * (9 * cin * cout + 9 * (cin + cout) * cout)
    bytes_accessed = int(x.size * 2 + (w1.size + wc.size) * 2
                         + (b1.size + bc.size) * 4 + N * Ho * Wo * cout * 4)

    out = pl.pallas_call(
        kernel,
        out_shape=jax.ShapeDtypeStruct((N, Ho * Wo, cout), jnp.float32),
        grid=(N,),
        in_specs=in_specs,
        out_specs=pl.BlockSpec((1, Ho * Wo, cout), lambda n: (n, 0, 0)),
        scratch_shapes=scratch_specs,
        compiler_params=pltpu.CompilerParams(
            dimension_semantics=("parallel",),
            vmem_limit_bytes=vmem_limit),
        cost_estimate=pl.CostEstimate(
            flops=flops, transcendentals=0, bytes_accessed=bytes_accessed),
    )(*args)

    # Unpadded writeback; only a tiny reshape/transpose to NCHW remains here.
    out = out.reshape(N, Ho, Wo, cout)
    return jnp.transpose(out, (0, 3, 1, 2))                  # NHWC -> NCHW


# ----------------------------------------------------------------------------
# Pure-JAX f32 reference (correctness check)
# ----------------------------------------------------------------------------
def _ref_forward(x_nchw, hyper_w, bn_params, *, in_channels, out_channels,
                 stride=1):
    cin, cout = in_channels, out_channels
    n1 = cin * cout * 9
    n2 = cout * cout * 9

    def conv(x, wflat, ci, co, s):
        w = wflat.reshape(co, ci, 3, 3)
        return jax.lax.conv_general_dilated(
            x, w, (s, s), ((1, 1), (1, 1)),
            dimension_numbers=("NCHW", "OIHW", "NCHW"))

    def bn(x, params):
        gamma, beta, mean, var = params
        s = gamma / jnp.sqrt(var + 1e-5)
        return x * s[None, :, None, None] + (beta - mean * s)[None, :, None, None]

    if cin != cout:
        skip = bn(conv(x_nchw, hyper_w[n1 + n2:], cin, cout, stride),
                  bn_params["bn_skip"])
    else:
        skip = x_nchw
    h = jax.nn.relu(bn(conv(x_nchw, hyper_w[:n1], cin, cout, stride),
                       bn_params["bn1"]))
    return jax.nn.relu(bn(conv(h, hyper_w[n1:n1 + n2], cout, cout, 1),
                          bn_params["bn2"]) + skip)


# ----------------------------------------------------------------------------
def _run_case(key, N, cin, cout, H, W, stride):
    kx, kw, *kbn = jax.random.split(key, 2 + 12)
    x = jax.random.normal(kx, (N, cin, H, W), dtype=jnp.float32)

    n_hyper = cin * cout * 9 + cout * cout * 9 + (cin * cout * 9
                                                  if cin != cout else 0)
    hyper_w = 0.1 * jax.random.normal(kw, (n_hyper,), dtype=jnp.float32)

    def make_bn(k0, k1, k2, k3):
        gamma = 1.0 + 0.1 * jax.random.normal(k0, (cout,), jnp.float32)
        beta = 0.1 * jax.random.normal(k1, (cout,), jnp.float32)
        mean = 0.1 * jax.random.normal(k2, (cout,), jnp.float32)
        var = jnp.abs(1.0 + 0.1 * jax.random.normal(k3, (cout,), jnp.float32))
        return (gamma, beta, mean, var)

    bn_params = {
        "bn1": make_bn(*kbn[0:4]),
        "bn2": make_bn(*kbn[4:8]),
        "bn_skip": make_bn(*kbn[8:12]),
    }

    fwd = jax.jit(functools.partial(hyper_residual_block_forward,
                                    in_channels=cin, out_channels=cout,
                                    stride=stride))
    out = jax.block_until_ready(fwd(x, hyper_w, bn_params))
    ref = jax.block_until_ready(_ref_forward(x, hyper_w, bn_params,
                                             in_channels=cin,
                                             out_channels=cout, stride=stride))

    Ho = (H + 2 - 3) // stride + 1
    Wo = (W + 2 - 3) // stride + 1
    assert out.shape == (N, cout, Ho, Wo), out.shape
    err = float(jnp.max(jnp.abs(out - ref)))
    # Kernel quantizes x to bf16 and runs bf16 MXU matmuls (f32 accumulation)
    # against a pure-f32 reference.
    assert err < 5e-2, err
    return err


if __name__ == "__main__":
    key = jax.random.PRNGKey(0)
    k_a, k_b = jax.random.split(key)
    _run_case(k_a, N=2, cin=4, cout=8, H=16, W=16, stride=1)   # projection skip
    _run_case(k_b, N=2, cin=8, cout=8, H=16, W=16, stride=1)   # identity skip
    print("KERNEL_OK")
</pallas_src>

<mosaic_0001>
module attributes {stable_mosaic.version = 11 : i64} {
  func.func @kernel(%arg0: i32, %arg1: memref<1x16x16x4xbf16, #tpu.memory_space<vmem>>, %arg2: memref<36x8xbf16, #tpu.memory_space<vmem>>, %arg3: memref<1x8xf32, #tpu.memory_space<vmem>>, %arg4: memref<108x8xbf16, #tpu.memory_space<vmem>>, %arg5: memref<1x8xf32, #tpu.memory_space<vmem>>, %arg6: memref<1x256x8xf32, #tpu.memory_space<vmem>>, %arg7: memref<18x18x4xbf16, #tpu.memory_space<vmem>>, %arg8: memref<18x18x8xbf16, #tpu.memory_space<vmem>>, %arg9: memref<256x108xbf16, #tpu.memory_space<vmem>>) attributes {dimension_semantics = [#tpu.dimension_semantics<parallel>], iteration_bounds = array<i64: 2>, scalar_prefetch = 0 : i64, scratch_operands = 3 : i64, tpu.core_type = #tpu.core_type<tc>, window_params = [{transform_indices = @transform_0, window_bounds = array<i64: 1, 16, 16, 4>}, {pipeline_mode = #tpu.pipeline_mode<synchronous>, transform_indices = @transform_1, window_bounds = array<i64: 36, 8>}, {pipeline_mode = #tpu.pipeline_mode<synchronous>, transform_indices = @transform_2, window_bounds = array<i64: 1, 8>}, {pipeline_mode = #tpu.pipeline_mode<synchronous>, transform_indices = @transform_3, window_bounds = array<i64: 108, 8>}, {pipeline_mode = #tpu.pipeline_mode<synchronous>, transform_indices = @transform_4, window_bounds = array<i64: 1, 8>}, {transform_indices = @transform_5, window_bounds = array<i64: 1, 256, 8>}]} {
    %cst = arith.constant 0.000000e+00 : bf16
    %0 = vector.broadcast %cst : bf16 to vector<1x18x4xbf16>
    %c0 = arith.constant 0 : index
    %c0_0 = arith.constant 0 : index
    %c0_1 = arith.constant 0 : index
    %1 = vector.load %arg7[%c0, %c0_0, %c0_1] : memref<18x18x4xbf16, #tpu.memory_space<vmem>>, vector<1x18x4xbf16>
    tpu.vector_store %arg7[%c0, %c0_0, %c0_1], %0 {strides = array<i32>} : memref<18x18x4xbf16, #tpu.memory_space<vmem>>, vector<1x18x4xbf16>,
    %c17 = arith.constant 17 : index
    %c0_2 = arith.constant 0 : index
    %c0_3 = arith.constant 0 : index
    %2 = vector.load %arg7[%c17, %c0_2, %c0_3] : memref<18x18x4xbf16, #tpu.memory_space<vmem>>, vector<1x18x4xbf16>
    tpu.vector_store %arg7[%c17, %c0_2, %c0_3], %0 {strides = array<i32>} : memref<18x18x4xbf16, #tpu.memory_space<vmem>>, vector<1x18x4xbf16>,
    %cst_4 = arith.constant 0.000000e+00 : bf16
    %3 = vector.broadcast %cst_4 : bf16 to vector<18x1x4xbf16>
    %c0_5 = arith.constant 0 : index
    %c0_6 = arith.constant 0 : index
    %c0_7 = arith.constant 0 : index
    %4 = vector.load %arg7[%c0_5, %c0_6, %c0_7] : memref<18x18x4xbf16, #tpu.memory_space<vmem>>, vector<18x1x4xbf16>
    tpu.vector_store %arg7[%c0_5, %c0_6, %c0_7], %3 {strides = array<i32>} : memref<18x18x4xbf16, #tpu.memory_space<vmem>>, vector<18x1x4xbf16>,
    %c0_8 = arith.constant 0 : index
    %c17_9 = arith.constant 17 : index
    %c0_10 = arith.constant 0 : index
    %5 = vector.load %arg7[%c0_8, %c17_9, %c0_10] : memref<18x18x4xbf16, #tpu.memory_space<vmem>>, vector<18x1x4xbf16>
    tpu.vector_store %arg7[%c0_8, %c17_9, %c0_10], %3 {strides = array<i32>} : memref<18x18x4xbf16, #tpu.memory_space<vmem>>, vector<18x1x4xbf16>,
    %cst_11 = arith.constant 0.000000e+00 : bf16
    %6 = vector.broadcast %cst_11 : bf16 to vector<1x18x8xbf16>
    %c0_12 = arith.constant 0 : index
    %c0_13 = arith.constant 0 : index
    %c0_14 = arith.constant 0 : index
    %7 = vector.load %arg8[%c0_12, %c0_13, %c0_14] : memref<18x18x8xbf16, #tpu.memory_space<vmem>>, vector<1x18x8xbf16>
    tpu.vector_store %arg8[%c0_12, %c0_13, %c0_14], %6 {strides = array<i32>} : memref<18x18x8xbf16, #tpu.memory_space<vmem>>, vector<1x18x8xbf16>,
    %c17_15 = arith.constant 17 : index
    %c0_16 = arith.constant 0 : index
    %c0_17 = arith.constant 0 : index
    %8 = vector.load %arg8[%c17_15, %c0_16, %c0_17] : memref<18x18x8xbf16, #tpu.memory_space<vmem>>, vector<1x18x8xbf16>
    tpu.vector_store %arg8[%c17_15, %c0_16, %c0_17], %6 {strides = array<i32>} : memref<18x18x8xbf16, #tpu.memory_space<vmem>>, vector<1x18x8xbf16>,
    %cst_18 = arith.constant 0.000000e+00 : bf16
    %9 = vector.broadcast %cst_18 : bf16 to vector<18x1x8xbf16>
    %c0_19 = arith.constant 0 : index
    %c0_20 = arith.constant 0 : index
    %c0_21 = arith.constant 0 : index
    %10 = vector.load %arg8[%c0_19, %c0_20, %c0_21] : memref<18x18x8xbf16, #tpu.memory_space<vmem>>, vector<18x1x8xbf16>
    tpu.vector_store %arg8[%c0_19, %c0_20, %c0_21], %9 {strides = array<i32>} : memref<18x18x8xbf16, #tpu.memory_space<vmem>>, vector<18x1x8xbf16>,
    %c0_22 = arith.constant 0 : index
    %c17_23 = arith.constant 17 : index
    %c0_24 = arith.constant 0 : index
    %11 = vector.load %arg8[%c0_22, %c17_23, %c0_24] : memref<18x18x8xbf16, #tpu.memory_space<vmem>>, vector<18x1x8xbf16>
    tpu.vector_store %arg8[%c0_22, %c17_23, %c0_24], %9 {strides = array<i32>} : memref<18x18x8xbf16, #tpu.memory_space<vmem>>, vector<18x1x8xbf16>,
    %c0_25 = arith.constant 0 : index
    %c0_26 = arith.constant 0 : index
    %c0_27 = arith.constant 0 : index
    %c0_28 = arith.constant 0 : index
    %12 = vector.load %arg1[%c0_25, %c0_26, %c0_27, %c0_28] : memref<1x16x16x4xbf16, #tpu.memory_space<vmem>>, vector<1x16x16x4xbf16>
    %13 = vector.shape_cast %12 : vector<1x16x16x4xbf16> to vector<16x16x4xbf16>
    %c1 = arith.constant 1 : index
    %c1_29 = arith.constant 1 : index
    %c0_30 = arith.constant 0 : index
    %14 = vector.load %arg7[%c1, %c1_29, %c0_30] : memref<18x18x4xbf16, #tpu.memory_space<vmem>>, vector<16x16x4xbf16>
    tpu.vector_store %arg7[%c1, %c1_29, %c0_30], %13 {strides = array<i32>} : memref<18x18x4xbf16, #tpu.memory_space<vmem>>, vector<16x16x4xbf16>,
    %c0_31 = arith.constant 0 : index
    %c0_32 = arith.constant 0 : index
    %c0_33 = arith.constant 0 : index
    %15 = vector.load %arg7[%c0_31, %c0_32, %c0_33] : memref<18x18x4xbf16, #tpu.memory_space<vmem>>, vector<16x16x4xbf16>
    %16 = vector.shape_cast %15 : vector<16x16x4xbf16> to vector<256x4xbf16>
    %c0_34 = arith.constant 0 : index
    %c0_35 = arith.constant 0 : index
    %17 = vector.load %arg9[%c0_34, %c0_35] : memref<256x108xbf16, #tpu.memory_space<vmem>>, vector<256x4xbf16>
    tpu.vector_store %arg9[%c0_34, %c0_35], %16 {strides = array<i32>} : memref<256x108xbf16, #tpu.memory_space<vmem>>, vector<256x4xbf16>,
    %c0_36 = arith.constant 0 : index
    %c1_37 = arith.constant 1 : index
    %c0_38 = arith.constant 0 : index
    %18 = vector.load %arg7[%c0_36, %c1_37, %c0_38] : memref<18x18x4xbf16, #tpu.memory_space<vmem>>, vector<16x16x4xbf16>
    %19 = vector.shape_cast %18 : vector<16x16x4xbf16> to vector<256x4xbf16>
    %c0_39 = arith.constant 0 : index
    %c4 = arith.constant 4 : index
    %20 = vector.load %arg9[%c0_39, %c4] : memref<256x108xbf16, #tpu.memory_space<vmem>>, vector<256x4xbf16>
    tpu.vector_store %arg9[%c0_39, %c4], %19 {strides = array<i32>} : memref<256x108xbf16, #tpu.memory_space<vmem>>, vector<256x4xbf16>,
    %c0_40 = arith.constant 0 : index
    %c2 = arith.constant 2 : index
    %c0_41 = arith.constant 0 : index
    %21 = vector.load %arg7[%c0_40, %c2, %c0_41] : memref<18x18x4xbf16, #tpu.memory_space<vmem>>, vector<16x16x4xbf16>
    %22 = vector.shape_cast %21 : vector<16x16x4xbf16> to vector<256x4xbf16>
    %c0_42 = arith.constant 0 : index
    %c8 = arith.constant 8 : index
    %23 = vector.load %arg9[%c0_42, %c8] : memref<256x108xbf16, #tpu.memory_space<vmem>>, vector<256x4xbf16>
    tpu.vector_store %arg9[%c0_42, %c8], %22 {strides = array<i32>} : memref<256x108xbf16, #tpu.memory_space<vmem>>, vector<256x4xbf16>,
    %c1_43 = arith.constant 1 : index
    %c0_44 = arith.constant 0 : index
    %c0_45 = arith.constant 0 : index
    %24 = vector.load %arg7[%c1_43, %c0_44, %c0_45] : memref<18x18x4xbf16, #tpu.memory_space<vmem>>, vector<16x16x4xbf16>
    %25 = vector.shape_cast %24 : vector<16x16x4xbf16> to vector<256x4xbf16>
    %c0_46 = arith.constant 0 : index
    %c12 = arith.constant 12 : index
    %26 = vector.load %arg9[%c0_46, %c12] : memref<256x108xbf16, #tpu.memory_space<vmem>>, vector<256x4xbf16>
    tpu.vector_store %arg9[%c0_46, %c12], %25 {strides = array<i32>} : memref<256x108xbf16, #tpu.memory_space<vmem>>, vector<256x4xbf16>,
    %c1_47 = arith.constant 1 : index
    %c1_48 = arith.constant 1 : index
    %c0_49 = arith.constant 0 : index
    %27 = vector.load %arg7[%c1_47, %c1_48, %c0_49] : memref<18x18x4xbf16, #tpu.memory_space<vmem>>, vector<16x16x4xbf16>
    %28 = vector.shape_cast %27 : vector<16x16x4xbf16> to vector<256x4xbf16>
    %c0_50 = arith.constant 0 : index
    %c16 = arith.constant 16 : index
    %29 = vector.load %arg9[%c0_50, %c16] : memref<256x108xbf16, #tpu.memory_space<vmem>>, vector<256x4xbf16>
    tpu.vector_store %arg9[%c0_50, %c16], %28 {strides = array<i32>} : memref<256x108xbf16, #tpu.memory_space<vmem>>, vector<256x4xbf16>,
    %c1_51 = arith.constant 1 : index
    %c2_52 = arith.constant 2 : index
    %c0_53 = arith.constant 0 : index
    %30 = vector.load %arg7[%c1_51, %c2_52, %c0_53] : memref<18x18x4xbf16, #tpu.memory_space<vmem>>, vector<16x16x4xbf16>
    %31 = vector.shape_cast %30 : vector<16x16x4xbf16> to vector<256x4xbf16>
    %c0_54 = arith.constant 0 : index
    %c20 = arith.constant 20 : index
    %32 = vector.load %arg9[%c0_54, %c20] : memref<256x108xbf16, #tpu.memory_space<vmem>>, vector<256x4xbf16>
    tpu.vector_store %arg9[%c0_54, %c20], %31 {strides = array<i32>} : memref<256x108xbf16, #tpu.memory_space<vmem>>, vector<256x4xbf16>,
    %c2_55 = arith.constant 2 : index
    %c0_56 = arith.constant 0 : index
    %c0_57 = arith.constant 0 : index
    %33 = vector.load %arg7[%c2_55, %c0_56, %c0_57] : memref<18x18x4xbf16, #tpu.memory_space<vmem>>, vector<16x16x4xbf16>
    %34 = vector.shape_cast %33 : vector<16x16x4xbf16> to vector<256x4xbf16>
    %c0_58 = arith.constant 0 : index
    %c24 = arith.constant 24 : index
    %35 = vector.load %arg9[%c0_58, %c24] : memref<256x108xbf16, #tpu.memory_space<vmem>>, vector<256x4xbf16>
    tpu.vector_store %arg9[%c0_58, %c24], %34 {strides = array<i32>} : memref<256x108xbf16, #tpu.memory_space<vmem>>, vector<256x4xbf16>,
    %c2_59 = arith.constant 2 : index
    %c1_60 = arith.constant 1 : index
    %c0_61 = arith.constant 0 : index
    %36 = vector.load %arg7[%c2_59, %c1_60, %c0_61] : memref<18x18x4xbf16, #tpu.memory_space<vmem>>, vector<16x16x4xbf16>
    %37 = vector.shape_cast %36 : vector<16x16x4xbf16> to vector<256x4xbf16>
    %c0_62 = arith.constant 0 : index
    %c28 = arith.constant 28 : index
    %38 = vector.load %arg9[%c0_62, %c28] : memref<256x108xbf16, #tpu.memory_space<vmem>>, vector<256x4xbf16>
    tpu.vector_store %arg9[%c0_62, %c28], %37 {strides = array<i32>} : memref<256x108xbf16, #tpu.memory_space<vmem>>, vector<256x4xbf16>,
    %c2_63 = arith.constant 2 : index
    %c2_64 = arith.constant 2 : index
    %c0_65 = arith.constant 0 : index
    %39 = vector.load %arg7[%c2_63, %c2_64, %c0_65] : memref<18x18x4xbf16, #tpu.memory_space<vmem>>, vector<16x16x4xbf16>
    %40 = vector.shape_cast %39 : vector<16x16x4xbf16> to vector<256x4xbf16>
    %c0_66 = arith.constant 0 : index
    %c32 = arith.constant 32 : index
    %41 = vector.load %arg9[%c0_66, %c32] : memref<256x108xbf16, #tpu.memory_space<vmem>>, vector<256x4xbf16>
    tpu.vector_store %arg9[%c0_66, %c32], %40 {strides = array<i32>} : memref<256x108xbf16, #tpu.memory_space<vmem>>, vector<256x4xbf16>,
    %c0_67 = arith.constant 0 : index
    %c0_68 = arith.constant 0 : index
    %42 = vector.load %arg9[%c0_67, %c0_68] : memref<256x108xbf16, #tpu.memory_space<vmem>>, vector<256x36xbf16>
    %c0_69 = arith.constant 0 : index
    %c0_70 = arith.constant 0 : index
    %43 = vector.load %arg2[%c0_69, %c0_70] : memref<36x8xbf16, #tpu.memory_space<vmem>>, vector<36x8xbf16>
    %cst_71 = arith.constant dense<0.000000e+00> : vector<256x8xf32>
    %44 = tpu.matmul %42, %43, %cst_71 {dimension_numbers = #tpu.dot_dimension_numbers<[1], [0], [0], [1], [0, 0, 1, 1], [], []>} : vector<256x36xbf16>, vector<36x8xbf16>, vector<256x8xf32> -> vector<256x8xf32>
    %c0_72 = arith.constant 0 : index
    %c0_73 = arith.constant 0 : index
    %45 = vector.load %arg3[%c0_72, %c0_73] : memref<1x8xf32, #tpu.memory_space<vmem>>, vector<1x8xf32>
    %46 = vector.broadcast %45 : vector<1x8xf32> to vector<256x8xf32>
    %47 = arith.addf %44, %46 : vector<256x8xf32>
    %cst_74 = arith.constant 0.000000e+00 : f32
    %48 = vector.broadcast %cst_74 : f32 to vector<256x8xf32>
    %49 = arith.maximumf %47, %48 : vector<256x8xf32>
    %50 = vector.shape_cast %49 : vector<256x8xf32> to vector<16x16x8xf32>
    %51 = arith.truncf %50 : vector<16x16x8xf32> to vector<16x16x8xbf16>
    %c1_75 = arith.constant 1 : index
    %c1_76 = arith.constant 1 : index
    %c0_77 = arith.constant 0 : index
    %52 = vector.load %arg8[%c1_75, %c1_76, %c0_77] : memref<18x18x8xbf16, #tpu.memory_space<vmem>>, vector<16x16x8xbf16>
    tpu.vector_store %arg8[%c1_75, %c1_76, %c0_77], %51 {strides = array<i32>} : memref<18x18x8xbf16, #tpu.memory_space<vmem>>, vector<16x16x8xbf16>,
    %c0_78 = arith.constant 0 : index
    %c0_79 = arith.constant 0 : index
    %c0_80 = arith.constant 0 : index
    %53 = vector.load %arg8[%c0_78, %c0_79, %c0_80] : memref<18x18x8xbf16, #tpu.memory_space<vmem>>, vector<16x16x8xbf16>
    %54 = vector.shape_cast %53 : vector<16x16x8xbf16> to vector<256x8xbf16>
    %c0_81 = arith.constant 0 : index
    %c36 = arith.constant 36 : index
    %55 = vector.load %arg9[%c0_81, %c36] : memref<256x108xbf16, #tpu.memory_space<vmem>>, vector<256x8xbf16>
    tpu.vector_store %arg9[%c0_81, %c36], %54 {strides = array<i32>} : memref<256x108xbf16, #tpu.memory_space<vmem>>, vector<256x8xbf16>,
    %c0_82 = arith.constant 0 : index
    %c1_83 = arith.constant 1 : index
    %c0_84 = arith.constant 0 : index
    %56 = vector.load %arg8[%c0_82, %c1_83, %c0_84] : memref<18x18x8xbf16, #tpu.memory_space<vmem>>, vector<16x16x8xbf16>
    %57 = vector.shape_cast %56 : vector<16x16x8xbf16> to vector<256x8xbf16>
    %c0_85 = arith.constant 0 : index
    %c44 = arith.constant 44 : index
    %58 = vector.load %arg9[%c0_85, %c44] : memref<256x108xbf16, #tpu.memory_space<vmem>>, vector<256x8xbf16>
    tpu.vector_store %arg9[%c0_85, %c44], %57 {strides = array<i32>} : memref<256x108xbf16, #tpu.memory_space<vmem>>, vector<256x8xbf16>,
    %c0_86 = arith.constant 0 : index
    %c2_87 = arith.constant 2 : index
    %c0_88 = arith.constant 0 : index
    %59 = vector.load %arg8[%c0_86, %c2_87, %c0_88] : memref<18x18x8xbf16, #tpu.memory_space<vmem>>, vector<16x16x8xbf16>
    %60 = vector.shape_cast %59 : vector<16x16x8xbf16> to vector<256x8xbf16>
    %c0_89 = arith.constant 0 : index
    %c52 = arith.constant 52 : index
    %61 = vector.load %arg9[%c0_89, %c52] : memref<256x108xbf16, #tpu.memory_space<vmem>>, vector<256x8xbf16>
    tpu.vector_store %arg9[%c0_89, %c52], %60 {strides = array<i32>} : memref<256x108xbf16, #tpu.memory_space<vmem>>, vector<256x8xbf16>,
    %c1_90 = arith.constant 1 : index
    %c0_91 = arith.constant 0 : index
    %c0_92 = arith.constant 0 : index
    %62 = vector.load %arg8[%c1_90, %c0_91, %c0_92] : memref<18x18x8xbf16, #tpu.memory_space<vmem>>, vector<16x16x8xbf16>
    %63 = vector.shape_cast %62 : vector<16x16x8xbf16> to vector<256x8xbf16>
    %c0_93 = arith.constant 0 : index
    %c60 = arith.constant 60 : index
    %64 = vector.load %arg9[%c0_93, %c60] : memref<256x108xbf16, #tpu.memory_space<vmem>>, vector<256x8xbf16>
    tpu.vector_store %arg9[%c0_93, %c60], %63 {strides = array<i32>} : memref<256x108xbf16, #tpu.memory_space<vmem>>, vector<256x8xbf16>,
    %c1_94 = arith.constant 1 : index
    %c1_95 = arith.constant 1 : index
    %c0_96 = arith.constant 0 : index
    %65 = vector.load %arg8[%c1_94, %c1_95, %c0_96] : memref<18x18x8xbf16, #tpu.memory_space<vmem>>, vector<16x16x8xbf16>
    %66 = vector.shape_cast %65 : vector<16x16x8xbf16> to vector<256x8xbf16>
    %c0_97 = arith.constant 0 : index
    %c68 = arith.constant 68 : index
    %67 = vector.load %arg9[%c0_97, %c68] : memref<256x108xbf16, #tpu.memory_space<vmem>>, vector<256x8xbf16>
    tpu.vector_store %arg9[%c0_97, %c68], %66 {strides = array<i32>} : memref<256x108xbf16, #tpu.memory_space<vmem>>, vector<256x8xbf16>,
    %c1_98 = arith.constant 1 : index
    %c2_99 = arith.constant 2 : index
    %c0_100 = arith.constant 0 : index
    %68 = vector.load %arg8[%c1_98, %c2_99, %c0_100] : memref<18x18x8xbf16, #tpu.memory_space<vmem>>, vector<16x16x8xbf16>
    %69 = vector.shape_cast %68 : vector<16x16x8xbf16> to vector<256x8xbf16>
    %c0_101 = arith.constant 0 : index
    %c76 = arith.constant 76 : index
    %70 = vector.load %arg9[%c0_101, %c76] : memref<256x108xbf16, #tpu.memory_space<vmem>>, vector<256x8xbf16>
    tpu.vector_store %arg9[%c0_101, %c76], %69 {strides = array<i32>} : memref<256x108xbf16, #tpu.memory_space<vmem>>, vector<256x8xbf16>,
    %c2_102 = arith.constant 2 : index
    %c0_103 = arith.constant 0 : index
    %c0_104 = arith.constant 0 : index
    %71 = vector.load %arg8[%c2_102, %c0_103, %c0_104] : memref<18x18x8xbf16, #tpu.memory_space<vmem>>, vector<16x16x8xbf16>
    %72 = vector.shape_cast %71 : vector<16x16x8xbf16> to vector<256x8xbf16>
    %c0_105 = arith.constant 0 : index
    %c84 = arith.constant 84 : index
    %73 = vector.load %arg9[%c0_105, %c84] : memref<256x108xbf16, #tpu.memory_space<vmem>>, vector<256x8xbf16>
    tpu.vector_store %arg9[%c0_105, %c84], %72 {strides = array<i32>} : memref<256x108xbf16, #tpu.memory_space<vmem>>, vector<256x8xbf16>,
    %c2_106 = arith.constant 2 : index
    %c1_107 = arith.constant 1 : index
    %c0_108 = arith.constant 0 : index
    %74 = vector.load %arg8[%c2_106, %c1_107, %c0_108] : memref<18x18x8xbf16, #tpu.memory_space<vmem>>, vector<16x16x8xbf16>
    %75 = vector.shape_cast %74 : vector<16x16x8xbf16> to vector<256x8xbf16>
    %c0_109 = arith.constant 0 : index
    %c92 = arith.constant 92 : index
    %76 = vector.load %arg9[%c0_109, %c92] : memref<256x108xbf16, #tpu.memory_space<vmem>>, vector<256x8xbf16>
    tpu.vector_store %arg9[%c0_109, %c92], %75 {strides = array<i32>} : memref<256x108xbf16, #tpu.memory_space<vmem>>, vector<256x8xbf16>,
    %c2_110 = arith.constant 2 : index
    %c2_111 = arith.constant 2 : index
    %c0_112 = arith.constant 0 : index
    %77 = vector.load %arg8[%c2_110, %c2_111, %c0_112] : memref<18x18x8xbf16, #tpu.memory_space<vmem>>, vector<16x16x8xbf16>
    %78 = vector.shape_cast %77 : vector<16x16x8xbf16> to vector<256x8xbf16>
    %c0_113 = arith.constant 0 : index
    %c100 = arith.constant 100 : index
    %79 = vector.load %arg9[%c0_113, %c100] : memref<256x108xbf16, #tpu.memory_space<vmem>>, vector<256x8xbf16>
    tpu.vector_store %arg9[%c0_113, %c100], %78 {strides = array<i32>} : memref<256x108xbf16, #tpu.memory_space<vmem>>, vector<256x8xbf16>,
    %c0_114 = arith.constant 0 : index
    %c0_115 = arith.constant 0 : index
    %80 = vector.load %arg9[%c0_114, %c0_115] : memref<256x108xbf16, #tpu.memory_space<vmem>>, vector<256x108xbf16>
    %c0_116 = arith.constant 0 : index
    %c0_117 = arith.constant 0 : index
    %81 = vector.load %arg4[%c0_116, %c0_117] : memref<108x8xbf16, #tpu.memory_space<vmem>>, vector<108x8xbf16>
    %cst_118 = arith.constant dense<0.000000e+00> : vector<256x8xf32>
    %82 = tpu.matmul %80, %81, %cst_118 {dimension_numbers = #tpu.dot_dimension_numbers<[1], [0], [0], [1], [0, 0, 1, 1], [], []>} : vector<256x108xbf16>, vector<108x8xbf16>, vector<256x8xf32> -> vector<256x8xf32>
    %c0_119 = arith.constant 0 : index
    %c0_120 = arith.constant 0 : index
    %83 = vector.load %arg5[%c0_119, %c0_120] : memref<1x8xf32, #tpu.memory_space<vmem>>, vector<1x8xf32>
    %84 = vector.broadcast %83 : vector<1x8xf32> to vector<256x8xf32>
    %85 = arith.addf %82, %84 : vector<256x8xf32>
    %cst_121 = arith.constant 0.000000e+00 : f32
    %86 = vector.broadcast %cst_121 : f32 to vector<256x8xf32>
    %87 = arith.maximumf %85, %86 : vector<256x8xf32>
    %88 = vector.shape_cast %87 : vector<256x8xf32> to vector<1x256x8xf32>
    %c0_122 = arith.constant 0 : index
    %c0_123 = arith.constant 0 : index
    %c0_124 = arith.constant 0 : index
    %89 = vector.load %arg6[%c0_122, %c0_123, %c0_124] : memref<1x256x8xf32, #tpu.memory_space<vmem>>, vector<1x256x8xf32>
    tpu.vector_store %arg6[%c0_122, %c0_123, %c0_124], %88 {strides = array<i32>} : memref<1x256x8xf32, #tpu.memory_space<vmem>>, vector<1x256x8xf32>,
    return
  }
  func.func @transform_0(%arg0: i32) -> (i32, i32, i32, i32) {
    %c0_i32 = arith.constant 0 : i32
    %c0_i32_0 = arith.constant 0 : i32
    %c0_i32_1 = arith.constant 0 : i32
    %c0_i32_2 = arith.constant 0 : i32
    return %arg0, %c0_i32, %c0_i32_0, %c0_i32_1 : i32, i32, i32, i32
  }
  func.func @transform_1(%arg0: i32) -> (i32, i32) {
    %c0_i32 = arith.constant 0 : i32
    %c0_i32_0 = arith.constant 0 : i32
    %c0_i32_1 = arith.constant 0 : i32
    return %c0_i32, %c0_i32_0 : i32, i32
  }
  func.func @transform_2(%arg0: i32) -> (i32, i32) {
    %c0_i32 = arith.constant 0 : i32
    %c0_i32_0 = arith.constant 0 : i32
    %c0_i32_1 = arith.constant 0 : i32
    return %c0_i32, %c0_i32_0 : i32, i32
  }
  func.func @transform_3(%arg0: i32) -> (i32, i32) {
    %c0_i32 = arith.constant 0 : i32
    %c0_i32_0 = arith.constant 0 : i32
    %c0_i32_1 = arith.constant 0 : i32
    return %c0_i32, %c0_i32_0 : i32, i32
  }
  func.func @transform_4(%arg0: i32) -> (i32, i32) {
    %c0_i32 = arith.constant 0 : i32
    %c0_i32_0 = arith.constant 0 : i32
    %c0_i32_1 = arith.constant 0 : i32
    return %c0_i32, %c0_i32_0 : i32, i32
  }
  func.func @transform_5(%arg0: i32) -> (i32, i32, i32) {
    %c0_i32 = arith.constant 0 : i32
    %c0_i32_0 = arith.constant 0 : i32
    %c0_i32_1 = arith.constant 0 : i32
    return %arg0, %c0_i32, %c0_i32_0 : i32, i32, i32
  }
}

</mosaic_0001>

<llo_original>
// kernel: hyper_residual_block_forward.1
$region0: #{hyper_residual_block_forward.1}
  #allocation0 [shape = 'u32[]', space=smem, size = 0x4, offset = 0x4, fixed_abs, tag = 'smem constant byte address 0x4 - core index']
  #allocation1 [shape = 'u32[144,128]{1,0:T(1,128)}', space=vmem, size = 0x12000, scoped, tag = 'internal scratch']
  #allocation2 [shape = 'bf16[18,18,4]{2,1,0:T(8,128)(2,1)}', space=vmem, size = 0x1b000, scoped, tag = 'scratch operand']
  #allocation3 [shape = 'bf16[18,18,8]{2,1,0:T(8,128)(2,1)}', space=vmem, size = 0x1b000, scoped, tag = 'scratch operand']
  #allocation4 [shape = 'bf16[256,108]{1,0:T(16,128)(2,1)}', space=vmem, size = 0x10000, scoped, tag = 'scratch operand']
  %s0 = inlined_call_operand.vmem [shape: bf16[2,16,16,4], index: 0, kind: input, shape index: {}]
  %s1 = inlined_call_operand.vmem [shape: bf16[36,8], index: 1, kind: input, shape index: {}]
  %s2 = inlined_call_operand.vmem [shape: f32[1,8], index: 2, kind: input, shape index: {}]
  %s3 = inlined_call_operand.vmem [shape: bf16[108,8], index: 3, kind: input, shape index: {}]
  %s4 = inlined_call_operand.vmem [shape: f32[1,8], index: 4, kind: input, shape index: {}]
  %s5 = inlined_call_operand.vmem [shape: f32[2,256,8], index: 5, kind: output, shape index: {}]
  %s6 = sld [smem:[#allocation0]]
  $region53: #{hyper_residual_block_forward.1} parent=0
    _
  %s8 = ssub.s32 1, %s6
  %s9 = scalar_select 0, %s8, %s6
  loop: start=0, step=1, limit=4
  $region2: #{hyper_residual_block_forward.1} parent=0 // loop_pre_header
    _
  $region3: #{hyper_residual_block_forward.1} parent=0 // loop_header
    %s11 = sphi 0, %s15
    %p12 = scmp.ge.s32.totalorder %s11, 4
    %s21 = sphi 0, %s23
    %s24 = sphi 0, %s21
    %s25 = sphi 0, %s24
    %s41 = sphi 0, %s25
    %s45 = sphi 0, %s45
    %s47 = sphi 0, %s45
    %s48 = sphi 0, %s47
    %s62 = sphi 0, %s48
    %s66 = sphi 0, %s66
    %s68 = sphi 0, %s66
    %s69 = sphi 0, %s68
    %s83 = sphi 0, %s69
    %s87 = sphi 0, %s87
    %s89 = sphi 0, %s87
    %s90 = sphi 0, %s89
    %s104 = sphi 0, %s90
    %s108 = sphi 0, %s108
    %s110 = sphi 0, %s108
    %s111 = sphi 0, %s110
    %s125 = sphi 0, %s111
    %s131 = sphi 0, %s133
    %s134 = sphi 0, %s131
    %s135 = sphi 0, %s134
    %s151 = sphi 0, %s135
  $region4: #{hyper_residual_block_forward.1} parent=0 // loop_header_branch
    %14 = sbr.rel (%p12) target = $region8
  $region5: #{hyper_residual_block_forward.1} parent=0 // loop_body
    %s16 = ssub.s32 %s11, 1
    %s17 = ssub.s32 %s11, 2
    %s18 = sadd.s32 %s11, 1
    %s19 = ssub.s32 %s11, %s18
    %p20 = scmp.eq.s32.totalorder %s19, 0
    %s22 = sadd.s32 %s21, 1
    %s23 = scalar_select %p20, %s21, %s22
    %p26 = pneg %p20
    %p27 = scmp.eq.s32.totalorder %s11, 1
    %p28 = por %p26, %p27
    %p29 = scmp.ne.s32.totalorder %s21, %s24
    %p30 = scmp.eq.s32.totalorder %s11, 0
    %p31 = por %p29, %p30
    %p32 = scmp.ne.s32.totalorder %s21, %s24
    %p33 = scmp.eq.s32.totalorder %s16, 1
    %p34 = por %p32, %p33
    %p35 = scmp.ne.s32.totalorder %s24, %s25
    %p36 = scmp.eq.s32.totalorder %s16, 0
    %p37 = por %p35, %p36
    %p38 = scmp.ne.s32.totalorder %s24, %s25
    %p39 = scmp.eq.s32.totalorder %s17, 1
    %p40 = por %p38, %p39
    %p42 = scmp.ne.s32.totalorder %s25, %s41
    %p43 = scmp.eq.s32.totalorder %s17, 0
    %p44 = por %p42, %p43
    %s46 = sadd.s32 %s45, 1
    %p49 = scmp.eq.s32.totalorder %s11, 1
    %p50 = scmp.ne.s32.totalorder %s45, %s47
    %p51 = scmp.eq.s32.totalorder %s11, 0
    %p52 = por %p50, %p51
    %p53 = scmp.ne.s32.totalorder %s45, %s47
    %p54 = scmp.eq.s32.totalorder %s16, 1
    %p55 = por %p53, %p54
    %p56 = scmp.ne.s32.totalorder %s47, %s48
    %p57 = scmp.eq.s32.totalorder %s16, 0
    %p58 = por %p56, %p57
    %p59 = scmp.ne.s32.totalorder %s47, %s48
    %p60 = scmp.eq.s32.totalorder %s17, 1
    %p61 = por %p59, %p60
    %p63 = scmp.ne.s32.totalorder %s48, %s62
    %p64 = scmp.eq.s32.totalorder %s17, 0
    %p65 = por %p63, %p64
    %s67 = sadd.s32 %s66, 1
    %p70 = scmp.eq.s32.totalorder %s11, 1
    %p71 = scmp.ne.s32.totalorder %s66, %s68
    %p72 = scmp.eq.s32.totalorder %s11, 0
    %p73 = por %p71, %p72
    %p74 = scmp.ne.s32.totalorder %s66, %s68
    %p75 = scmp.eq.s32.totalorder %s16, 1
    %p76 = por %p74, %p75
    %p77 = scmp.ne.s32.totalorder %s68, %s69
    %p78 = scmp.eq.s32.totalorder %s16, 0
    %p79 = por %p77, %p78
    %p80 = scmp.ne.s32.totalorder %s68, %s69
    %p81 = scmp.eq.s32.totalorder %s17, 1
    %p82 = por %p80, %p81
    %p84 = scmp.ne.s32.totalorder %s69, %s83
    %p85 = scmp.eq.s32.totalorder %s17, 0
    %p86 = por %p84, %p85
    %s88 = sadd.s32 %s87, 1
    %p91 = scmp.eq.s32.totalorder %s11, 1
    %p92 = scmp.ne.s32.totalorder %s87, %s89
    %p93 = scmp.eq.s32.totalorder %s11, 0
    %p94 = por %p92, %p93
    %p95 = scmp.ne.s32.totalorder %s87, %s89
    %p96 = scmp.eq.s32.totalorder %s16, 1
    %p97 = por %p95, %p96
    %p98 = scmp.ne.s32.totalorder %s89, %s90
    %p99 = scmp.eq.s32.totalorder %s16, 0
    %p100 = por %p98, %p99
    %p101 = scmp.ne.s32.totalorder %s89, %s90
    %p102 = scmp.eq.s32.totalorder %s17, 1
    %p103 = por %p101, %p102
    %p105 = scmp.ne.s32.totalorder %s90, %s104
    %p106 = scmp.eq.s32.totalorder %s17, 0
    %p107 = por %p105, %p106
    %s109 = sadd.s32 %s108, 1
    %p112 = scmp.eq.s32.totalorder %s11, 1
    %p113 = scmp.ne.s32.totalorder %s108, %s110
    %p114 = scmp.eq.s32.totalorder %s11, 0
    %p115 = por %p113, %p114
    %p116 = scmp.ne.s32.totalorder %s108, %s110
    %p117 = scmp.eq.s32.totalorder %s16, 1
    %p118 = por %p116, %p117
    %p119 = scmp.ne.s32.totalorder %s110, %s111
    %p120 = scmp.eq.s32.totalorder %s16, 0
    %p121 = por %p119, %p120
    %p122 = scmp.ne.s32.totalorder %s110, %s111
    %p123 = scmp.eq.s32.totalorder %s17, 1
    %p124 = por %p122, %p123
    %p126 = scmp.ne.s32.totalorder %s111, %s125
    %p127 = scmp.eq.s32.totalorder %s17, 0
    %p128 = por %p126, %p127
    %s129 = ssub.s32 %s11, %s18
    %p130 = scmp.eq.s32.totalorder %s129, 0
    %s132 = sadd.s32 %s131, 1
    %s133 = scalar_select %p130, %s131, %s132
    %p136 = pneg %p130
    %p137 = scmp.eq.s32.totalorder %s11, 1
    %p138 = por %p136, %p137
    %p139 = scmp.ne.s32.totalorder %s131, %s134
    %p140 = scmp.eq.s32.totalorder %s11, 0
    %p141 = por %p139, %p140
    %p142 = scmp.ne.s32.totalorder %s131, %s134
    %p143 = scmp.eq.s32.totalorder %s16, 1
    %p144 = por %p142, %p143
    %p145 = scmp.ne.s32.totalorder %s134, %s135
    %p146 = scmp.eq.s32.totalorder %s16, 0
    %p147 = por %p145, %p146
    %p148 = scmp.ne.s32.totalorder %s134, %s135
    %p149 = scmp.eq.s32.totalorder %s17, 1
    %p150 = por %p148, %p149
    %p152 = scmp.ne.s32.totalorder %s135, %s151
    %p153 = scmp.eq.s32.totalorder %s17, 0
    %p154 = por %p152, %p153
    %p155 = scmp.le.s32.totalorder 1, %s11
    %p156 = scmp.lt.s32.totalorder %s11, 3
    %p157 = pnand %p155, %p156
    %p158 = pneg %p157
    // Predicated region
    $region9: #{hyper_residual_block_forward.1} parent=5 // pred_check
      _
    $region10: #{hyper_residual_block_forward.1} parent=5 // pred_check_branch
      %160 = sbr.rel (%p157) target = $region12
    $region11: #{hyper_residual_block_forward.1} parent=5 // pred_region
      %s161 = ssub.s32 %s11, 1
      // Predicated region
      $region13: #{hyper_residual_block_forward.1} parent=11 // pred_check
        %p162 = pneg %p58
      $region14: #{hyper_residual_block_forward.1} parent=11 // pred_check_branch
        %164 = sbr.rel (%p162) target = $region16
      $region15: #{hyper_residual_block_forward.1} parent=11 // pred_region
        _
      $region16: #{hyper_residual_block_forward.1} parent=11 // pred_fallthru
        _
      // Predicated region
      $region17: #{hyper_residual_block_forward.1} parent=11 // pred_check
        %p165 = pneg %p79
      $region18: #{hyper_residual_block_forward.1} parent=11 // pred_check_branch
        %167 = sbr.rel (%p165) target = $region20
      $region19: #{hyper_residual_block_forward.1} parent=11 // pred_region
        _
      $region20: #{hyper_residual_block_forward.1} parent=11 // pred_fallthru
        _
      // Predicated region
      $region21: #{hyper_residual_block_forward.1} parent=11 // pred_check
        %p168 = pneg %p100
      $region22: #{hyper_residual_block_forward.1} parent=11 // pred_check_branch
        %170 = sbr.rel (%p168) target = $region24
      $region23: #{hyper_residual_block_forward.1} parent=11 // pred_region
        _
      $region24: #{hyper_residual_block_forward.1} parent=11 // pred_fallthru
        _
      // Predicated region
      $region25: #{hyper_residual_block_forward.1} parent=11 // pred_check
        %p171 = pneg %p121
      $region26: #{hyper_residual_block_forward.1} parent=11 // pred_check_branch
        %173 = sbr.rel (%p171) target = $region28
      $region27: #{hyper_residual_block_forward.1} parent=11 // pred_region
        _
      $region28: #{hyper_residual_block_forward.1} parent=11 // pred_fallthru
        _
    $region12: #{hyper_residual_block_forward.1} parent=5 // pred_fallthru
      _
    %p174 = scmp.lt.s32.totalorder %s11, 2
    // Predicated region
    $region29: #{hyper_residual_block_forward.1} parent=5 // pred_check
      %p175 = pneg %p174
    $region30: #{hyper_residual_block_forward.1} parent=5 // pred_check_branch
      %177 = sbr.rel (%p175) target = $region32
    $region31: #{hyper_residual_block_forward.1} parent=5 // pred_region
      // Predicated region
      $region33: #{hyper_residual_block_forward.1} parent=31 // pred_check
        %p178 = pneg %p31
      $region34: #{hyper_residual_block_forward.1} parent=31 // pred_check_branch
        %180 = sbr.rel (%p178) target = $region36
      $region35: #{hyper_residual_block_forward.1} parent=31 // pred_region
        %p181 = scmp.lt.s32.totalorder %s11, 1
        %s182 = scalar_select %p181, %s11, 1
        %s183 = smul.addr %s182, 32
        %s184 = smul.addr %s183, 4
        %s185 = scalar_lea.vmem %s0, %s184
      $region36: #{hyper_residual_block_forward.1} parent=31 // pred_fallthru
        _
    $region32: #{hyper_residual_block_forward.1} parent=5 // pred_fallthru
      _
    %p186 = scmp.le.s32.totalorder 1, %s11
    %p187 = scmp.lt.s32.totalorder %s11, 3
    %p188 = pnand %p186, %p187
    %p189 = pneg %p188
    // Predicated region
    $region37: #{hyper_residual_block_forward.1} parent=5 // pred_check
      _
    $region38: #{hyper_residual_block_forward.1} parent=5 // pred_check_branch
      %191 = sbr.rel (%p188) target = $region40
    $region39: #{hyper_residual_block_forward.1} parent=5 // pred_region
      %s192 = ssub.s32 %s11, 1
      %p193 = scmp.lt.s32.totalorder %s16, 1
      %s194 = scalar_select %p193, %s16, 1
      %s195 = smul.addr %s194, 32
      %s196 = smul.addr %s195, 4
      %s197 = scalar_lea.vmem %s0, %s196
      %p198 = pneg %p37
      %p199 = pneg %p34
      %p200 = pneg %p58
      %p201 = pneg %p55
      %p202 = pneg %p79
      %p203 = pneg %p76
      %p204 = pneg %p100
      %p205 = pneg %p97
      %p206 = pneg %p121
      %p207 = pneg %p118
      %p208 = pneg %p147
      %p209 = pneg %p144
      %p210 = scmp.lt.s32.totalorder %s16, 1
      %s211 = scalar_select %p210, %s16, 1
      %s212 = smul.addr %s211, 32
      %s213 = smul.addr %s212, 8
      %s214 = scalar_lea.vmem %s5, %s213
      %p215 = scmp.lt.s32.totalorder %s16, 1
      %s216 = scalar_select %p215, %s16, 1
      %s217 = smul.addr %s216, 32
      %s218 = smul.addr %s217, 4
      %s219 = scalar_lea.vmem %s0, %s218
      %p220 = scmp.lt.s32.totalorder %s16, 1
      %s221 = scalar_select %p220, %s16, 1
      %s222 = smul.addr %s221, 32
      %s223 = smul.addr %s222, 8
      %s224 = scalar_lea.vmem %s5, %s223
      %vm226 = vcmask 27648
      %227 = vst.msk [vmem:[#allocation2] sm:$0xf] %vm226, 0
      %228 = vst.msk [vmem:[#allocation2 + $0x4] sm:$0xf] %vm226, 0
      %vm229 = vcmask 24576
      %230 = vst.msk [vmem:[#allocation2 + $0x8] sm:$0x1] %vm229, 0
      %s231 = scalar_lea.vmem [#allocation2], 204
      %232 = vst.msk [vmem:[%s231] sm:$0xf] %vm226, 0
      %233 = vst.msk [vmem:[%s231 + $0x4] sm:$0xf] %vm226, 0
      %234 = vst.msk [vmem:[%s231 + $0x8] sm:$0x1] %vm229, 0
      %vm235 = vcmask 24576
      %vm236 = vsmask.f32 256
      %vm237 = vmand %vm235, %vm236
      %v238 = vld [vmem:[#allocation2] sm:$0x1]
      %v239 = vsel %vm237, 0, %v238
      %240 = vst [vmem:[#allocation2] sm:$0x1] %v239
      %v241 = vld [vmem:[#allocation2 + $0xc] sm:$0x1]
      %v242 = vsel %vm237, 0, %v241
      %243 = vst [vmem:[#allocation2 + $0xc] sm:$0x1] %v242
      %v244 = vld [vmem:[#allocation2 + $0x18] sm:$0x1]
      %v245 = vsel %vm237, 0, %v244
      %246 = vst [vmem:[#allocation2 + $0x18] sm:$0x1] %v245
      %v247 = vld [vmem:[#allocation2 + $0x24] sm:$0x1]
      %v248 = vsel %vm237, 0, %v247
      %249 = vst [vmem:[#allocation2 + $0x24] sm:$0x1] %v248
      %v250 = vld [vmem:[#allocation2 + $0x30] sm:$0x1]
      %v251 = vsel %vm237, 0, %v250
      %252 = vst [vmem:[#allocation2 + $0x30] sm:$0x1] %v251
      %v253 = vld [vmem:[#allocation2 + $0x3c] sm:$0x1]
      %v254 = vsel %vm237, 0, %v253
      %255 = vst [vmem:[#allocation2 + $0x3c] sm:$0x1] %v254
      %v256 = vld [vmem:[#allocation2 + $0x48] sm:$0x1]
      %v257 = vsel %vm237, 0, %v256
      %258 = vst [vmem:[#allocation2 + $0x48] sm:$0x1] %v257
      %v259 = vld [vmem:[#allocation2 + $0x54] sm:$0x1]
      %v260 = vsel %vm237, 0, %v259
      %261 = vst [vmem:[#allocation2 + $0x54] sm:$0x1] %v260
      %v262 = vld [vmem:[#allocation2 + $0x60] sm:$0x1]
      %v263 = vsel %vm237, 0, %v262
      %264 = vst [vmem:[#allocation2 + $0x60] sm:$0x1] %v263
      %v265 = vld [vmem:[#allocation2 + $0x6c] sm:$0x1]
      %v266 = vsel %vm237, 0, %v265
      %267 = vst [vmem:[#allocation2 + $0x6c] sm:$0x1] %v266
      %v268 = vld [vmem:[#allocation2 + $0x78] sm:$0x1]
      %v269 = vsel %vm237, 0, %v268
      %270 = vst [vmem:[#allocation2 + $0x78] sm:$0x1] %v269
      %v271 = vld [vmem:[#allocation2 + $0x84] sm:$0x1]
      %v272 = vsel %vm237, 0, %v271
      %273 = vst [vmem:[#allocation2 + $0x84] sm:$0x1] %v272
      %v274 = vld [vmem:[#allocation2 + $0x90] sm:$0x1]
      %v275 = vsel %vm237, 0, %v274
      %276 = vst [vmem:[#allocation2 + $0x90] sm:$0x1] %v275
      %v277 = vld [vmem:[#allocation2 + $0x9c] sm:$0x1]
      %v278 = vsel %vm237, 0, %v277
      %279 = vst [vmem:[#allocation2 + $0x9c] sm:$0x1] %v278
      %v280 = vld [vmem:[#allocation2 + $0xa8] sm:$0x1]
      %v281 = vsel %vm237, 0, %v280
      %282 = vst [vmem:[#allocation2 + $0xa8] sm:$0x1] %v281
      %v283 = vld [vmem:[#allocation2 + $0xb4] sm:$0x1]
      %v284 = vsel %vm237, 0, %v283
      %285 = vst [vmem:[#allocation2 + $0xb4] sm:$0x1] %v284
      %v286 = vld [vmem:[#allocation2 + $0xc0] sm:$0x1]
      %v287 = vsel %vm237, 0, %v286
      %288 = vst [vmem:[#allocation2 + $0xc0] sm:$0x1] %v287
      %v289 = vld [vmem:[#allocation2 + $0xcc] sm:$0x1]
      %v290 = vsel %vm237, 0, %v289
      %291 = vst [vmem:[#allocation2 + $0xcc] sm:$0x1] %v290
      %vm292 = vsmask.f32 7938
      %vm293 = vmand %vm235, %vm292
      %v294 = vld [vmem:[#allocation2 + $0x8] sm:$0x1]
      %v295 = vsel %vm293, 0, %v294
      %296 = vst [vmem:[#allocation2 + $0x8] sm:$0x1] %v295
      %v297 = vld [vmem:[#allocation2 + $0x14] sm:$0x1]
      %v298 = vsel %vm293, 0, %v297
      %299 = vst [vmem:[#allocation2 + $0x14] sm:$0x1] %v298
      %v300 = vld [vmem:[#allocation2 + $0x20] sm:$0x1]
      %v301 = vsel %vm293, 0, %v300
      %302 = vst [vmem:[#allocation2 + $0x20] sm:$0x1] %v301
      %v303 = vld [vmem:[#allocation2 + $0x2c] sm:$0x1]
      %v304 = vsel %vm293, 0, %v303
      %305 = vst [vmem:[#allocation2 + $0x2c] sm:$0x1] %v304
      %v306 = vld [vmem:[#allocation2 + $0x38] sm:$0x1]
      %v307 = vsel %vm293, 0, %v306
      %308 = vst [vmem:[#allocation2 + $0x38] sm:$0x1] %v307
      %v309 = vld [vmem:[#allocation2 + $0x44] sm:$0x1]
      %v310 = vsel %vm293, 0, %v309
      %311 = vst [vmem:[#allocation2 + $0x44] sm:$0x1] %v310
      %v312 = vld [vmem:[#allocation2 + $0x50] sm:$0x1]
      %v313 = vsel %vm293, 0, %v312
      %314 = vst [vmem:[#allocation2 + $0x50] sm:$0x1] %v313
      %v315 = vld [vmem:[#allocation2 + $0x5c] sm:$0x1]
      %v316 = vsel %vm293, 0, %v315
      %317 = vst [vmem:[#allocation2 + $0x5c] sm:$0x1] %v316
      %v318 = vld [vmem:[#allocation2 + $0x68] sm:$0x1]
      %v319 = vsel %vm293, 0, %v318
      %320 = vst [vmem:[#allocation2 + $0x68] sm:$0x1] %v319
      %v321 = vld [vmem:[#allocation2 + $0x74] sm:$0x1]
      %v322 = vsel %vm293, 0, %v321
      %323 = vst [vmem:[#allocation2 + $0x74] sm:$0x1] %v322
      %v324 = vld [vmem:[#allocation2 + $0x80] sm:$0x1]
      %v325 = vsel %vm293, 0, %v324
      %326 = vst [vmem:[#allocation2 + $0x80] sm:$0x1] %v325
      %v327 = vld [vmem:[#allocation2 + $0x8c] sm:$0x1]
      %v328 = vsel %vm293, 0, %v327
      %329 = vst [vmem:[#allocation2 + $0x8c] sm:$0x1] %v328
      %v330 = vld [vmem:[#allocation2 + $0x98] sm:$0x1]
      %v331 = vsel %vm293, 0, %v330
      %332 = vst [vmem:[#allocation2 + $0x98] sm:$0x1] %v331
      %v333 = vld [vmem:[#allocation2 + $0xa4] sm:$0x1]
      %v334 = vsel %vm293, 0, %v333
      %335 = vst [vmem:[#allocation2 + $0xa4] sm:$0x1] %v334
      %v336 = vld [vmem:[#allocation2 + $0xb0] sm:$0x1]
      %v337 = vsel %vm293, 0, %v336
      %338 = vst [vmem:[#allocation2 + $0xb0] sm:$0x1] %v337
      %v339 = vld [vmem:[#allocation2 + $0xbc] sm:$0x1]
      %v340 = vsel %vm293, 0, %v339
      %341 = vst [vmem:[#allocation2 + $0xbc] sm:$0x1] %v340
      %v342 = vld [vmem:[#allocation2 + $0xc8] sm:$0x1]
      %v343 = vsel %vm293, 0, %v342
      %344 = vst [vmem:[#allocation2 + $0xc8] sm:$0x1] %v343
      %v345 = vld [vmem:[#allocation2 + $0xd4] sm:$0x1]
      %v346 = vsel %vm293, 0, %v345
      %347 = vst [vmem:[#allocation2 + $0xd4] sm:$0x1] %v346
      %vm348 = vcmask 60416
      %349 = vst.msk [vmem:[#allocation3] sm:$0xf] %vm348, 0
      %350 = vst.msk [vmem:[#allocation3 + $0x4] sm:$0xf] %vm348, 0
      %vm351 = vcmask 57344
      %352 = vst.msk [vmem:[#allocation3 + $0x8] sm:$0x1] %vm351, 0
      %s353 = scalar_lea.vmem [#allocation3], 204
      %354 = vst.msk [vmem:[%s353] sm:$0xf] %vm348, 0
      %355 = vst.msk [vmem:[%s353 + $0x4] sm:$0xf] %vm348, 0
      %356 = vst.msk [vmem:[%s353 + $0x8] sm:$0x1] %vm351, 0
      %vm357 = vcmask 57344
      %vm358 = vmand %vm357, %vm236
      %v359 = vld [vmem:[#allocation3] sm:$0x1]
      %v360 = vsel %vm358, 0, %v359
      %361 = vst [vmem:[#allocation3] sm:$0x1] %v360
      %v362 = vld [vmem:[#allocation3 + $0xc] sm:$0x1]
      %v363 = vsel %vm358, 0, %v362
      %364 = vst [vmem:[#allocation3 + $0xc] sm:$0x1] %v363
      %v365 = vld [vmem:[#allocation3 + $0x18] sm:$0x1]
      %v366 = vsel %vm358, 0, %v365
      %367 = vst [vmem:[#allocation3 + $0x18] sm:$0x1] %v366
      %v368 = vld [vmem:[#allocation3 + $0x24] sm:$0x1]
      %v369 = vsel %vm358, 0, %v368
      %370 = vst [vmem:[#allocation3 + $0x24] sm:$0x1] %v369
      %v371 = vld [vmem:[#allocation3 + $0x30] sm:$0x1]
      %v372 = vsel %vm358, 0, %v371
      %373 = vst [vmem:[#allocation3 + $0x30] sm:$0x1] %v372
      %v374 = vld [vmem:[#allocation3 + $0x3c] sm:$0x1]
      %v375 = vsel %vm358, 0, %v374
      %376 = vst [vmem:[#allocation3 + $0x3c] sm:$0x1] %v375
      %v377 = vld [vmem:[#allocation3 + $0x48] sm:$0x1]
      %v378 = vsel %vm358, 0, %v377
      %379 = vst [vmem:[#allocation3 + $0x48] sm:$0x1] %v378
      %v380 = vld [vmem:[#allocation3 + $0x54] sm:$0x1]
      %v381 = vsel %vm358, 0, %v380
      %382 = vst [vmem:[#allocation3 + $0x54] sm:$0x1] %v381
      %v383 = vld [vmem:[#allocation3 + $0x60] sm:$0x1]
      %v384 = vsel %vm358, 0, %v383
      %385 = vst [vmem:[#allocation3 + $0x60] sm:$0x1] %v384
      %v386 = vld [vmem:[#allocation3 + $0x6c] sm:$0x1]
      %v387 = vsel %vm358, 0, %v386
      %388 = vst [vmem:[#allocation3 + $0x6c] sm:$0x1] %v387
      %v389 = vld [vmem:[#allocation3 + $0x78] sm:$0x1]
      %v390 = vsel %vm358, 0, %v389
      %391 = vst [vmem:[#allocation3 + $0x78] sm:$0x1] %v390
      %v392 = vld [vmem:[#allocation3 + $0x84] sm:$0x1]
      %v393 = vsel %vm358, 0, %v392
      %394 = vst [vmem:[#allocation3 + $0x84] sm:$0x1] %v393
      %v395 = vld [vmem:[#allocation3 + $0x90] sm:$0x1]
      %v396 = vsel %vm358, 0, %v395
      %397 = vst [vmem:[#allocation3 + $0x90] sm:$0x1] %v396
      %v398 = vld [vmem:[#allocation3 + $0x9c] sm:$0x1]
      %v399 = vsel %vm358, 0, %v398
      %400 = vst [vmem:[#allocation3 + $0x9c] sm:$0x1] %v399
      %v401 = vld [vmem:[#allocation3 + $0xa8] sm:$0x1]
      %v402 = vsel %vm358, 0, %v401
      %403 = vst [vmem:[#allocation3 + $0xa8] sm:$0x1] %v402
      %v404 = vld [vmem:[#allocation3 + $0xb4] sm:$0x1]
      %v405 = vsel %vm358, 0, %v404
      %406 = vst [vmem:[#allocation3 + $0xb4] sm:$0x1] %v405
      %v407 = vld [vmem:[#allocation3 + $0xc0] sm:$0x1]
      %v408 = vsel %vm358, 0, %v407
      %409 = vst [vmem:[#allocation3 + $0xc0] sm:$0x1] %v408
      %v410 = vld [vmem:[#allocation3 + $0xcc] sm:$0x1]
      %v411 = vsel %vm358, 0, %v410
      %412 = vst [vmem:[#allocation3 + $0xcc] sm:$0x1] %v411
      %vm413 = vmand %vm357, %vm292
      %v414 = vld [vmem:[#allocation3 + $0x8] sm:$0x1]
      %v415 = vsel %vm413, 0, %v414
      %416 = vst [vmem:[#allocation3 + $0x8] sm:$0x1] %v415
      %v417 = vld [vmem:[#allocation3 + $0x14] sm:$0x1]
      %v418 = vsel %vm413, 0, %v417
      %419 = vst [vmem:[#allocation3 + $0x14] sm:$0x1] %v418
      %v420 = vld [vmem:[#allocation3 + $0x20] sm:$0x1]
      %v421 = vsel %vm413, 0, %v420
      %422 = vst [vmem:[#allocation3 + $0x20] sm:$0x1] %v421
      %v423 = vld [vmem:[#allocation3 + $0x2c] sm:$0x1]
      %v424 = vsel %vm413, 0, %v423
      %425 = vst [vmem:[#allocation3 + $0x2c] sm:$0x1] %v424
      %v426 = vld [vmem:[#allocation3 + $0x38] sm:$0x1]
      %v427 = vsel %vm413, 0, %v426
      %428 = vst [vmem:[#allocation3 + $0x38] sm:$0x1] %v427
      %v429 = vld [vmem:[#allocation3 + $0x44] sm:$0x1]
      %v430 = vsel %vm413, 0, %v429
      %431 = vst [vmem:[#allocation3 + $0x44] sm:$0x1] %v430
      %v432 = vld [vmem:[#allocation3 + $0x50] sm:$0x1]
      %v433 = vsel %vm413, 0, %v432
      %434 = vst [vmem:[#allocation3 + $0x50] sm:$0x1] %v433
      %v435 = vld [vmem:[#allocation3 + $0x5c] sm:$0x1]
      %v436 = vsel %vm413, 0, %v435
      %437 = vst [vmem:[#allocation3 + $0x5c] sm:$0x1] %v436
      %v438 = vld [vmem:[#allocation3 + $0x68] sm:$0x1]
      %v439 = vsel %vm413, 0, %v438
      %440 = vst [vmem:[#allocation3 + $0x68] sm:$0x1] %v439
      %v441 = vld [vmem:[#allocation3 + $0x74] sm:$0x1]
      %v442 = vsel %vm413, 0, %v441
      %443 = vst [vmem:[#allocation3 + $0x74] sm:$0x1] %v442
      %v444 = vld [vmem:[#allocation3 + $0x80] sm:$0x1]
      %v445 = vsel %vm413, 0, %v444
      %446 = vst [vmem:[#allocation3 + $0x80] sm:$0x1] %v445
      %v447 = vld [vmem:[#allocation3 + $0x8c] sm:$0x1]
      %v448 = vsel %vm413, 0, %v447
      %449 = vst [vmem:[#allocation3 + $0x8c] sm:$0x1] %v448
      %v450 = vld [vmem:[#allocation3 + $0x98] sm:$0x1]
      %v451 = vsel %vm413, 0, %v450
      %452 = vst [vmem:[#allocation3 + $0x98] sm:$0x1] %v451
      %v453 = vld [vmem:[#allocation3 + $0xa4] sm:$0x1]
      %v454 = vsel %vm413, 0, %v453
      %455 = vst [vmem:[#allocation3 + $0xa4] sm:$0x1] %v454
      %v456 = vld [vmem:[#allocation3 + $0xb0] sm:$0x1]
      %v457 = vsel %vm413, 0, %v456
      %458 = vst [vmem:[#allocation3 + $0xb0] sm:$0x1] %v457
      %v459 = vld [vmem:[#allocation3 + $0xbc] sm:$0x1]
      %v460 = vsel %vm413, 0, %v459
      %461 = vst [vmem:[#allocation3 + $0xbc] sm:$0x1] %v460
      %v462 = vld [vmem:[#allocation3 + $0xc8] sm:$0x1]
      %v463 = vsel %vm413, 0, %v462
      %464 = vst [vmem:[#allocation3 + $0xc8] sm:$0x1] %v463
      %v465 = vld [vmem:[#allocation3 + $0xd4] sm:$0x1]
      %v466 = vsel %vm413, 0, %v465
      %467 = vst [vmem:[#allocation3 + $0xd4] sm:$0x1] %v466
      %v468 = vld [vmem:[%s219] sm:$0xf]
      %v469 = vld [vmem:[%s219 + $0x4] sm:$0xf]
      %v470 = vld [vmem:[%s219 + $0x8] sm:$0xf]
      %v471 = vld [vmem:[%s219 + $0xc] sm:$0xf]
      %v472 = vld [vmem:[%s219 + $0x10] sm:$0xf]
      %v473 = vld [vmem:[%s219 + $0x14] sm:$0xf]
      %v474 = vld [vmem:[%s219 + $0x18] sm:$0xf]
      %v475 = vld [vmem:[%s219 + $0x1c] sm:$0xf]
      %v476 = vld [vmem:[%s219 + $0x20] sm:$0xf]
      %v477 = vld [vmem:[%s219 + $0x24] sm:$0xf]
      %v478 = vld [vmem:[%s219 + $0x28] sm:$0xf]
      %v479 = vld [vmem:[%s219 + $0x2c] sm:$0xf]
      %v480 = vld [vmem:[%s219 + $0x30] sm:$0xf]
      %v481 = vld [vmem:[%s219 + $0x34] sm:$0xf]
      %v482 = vld [vmem:[%s219 + $0x38] sm:$0xf]
      %v483 = vld [vmem:[%s219 + $0x3c] sm:$0xf]
      %v484 = vld [vmem:[%s219 + $0x40] sm:$0xf]
      %v485 = vld [vmem:[%s219 + $0x44] sm:$0xf]
      %v486 = vld [vmem:[%s219 + $0x48] sm:$0xf]
      %v487 = vld [vmem:[%s219 + $0x4c] sm:$0xf]
      %v488 = vld [vmem:[%s219 + $0x50] sm:$0xf]
      %v489 = vld [vmem:[%s219 + $0x54] sm:$0xf]
      %v490 = vld [vmem:[%s219 + $0x58] sm:$0xf]
      %v491 = vld [vmem:[%s219 + $0x5c] sm:$0xf]
      %v492 = vld [vmem:[%s219 + $0x60] sm:$0xf]
      %v493 = vld [vmem:[%s219 + $0x64] sm:$0xf]
      %v494 = vld [vmem:[%s219 + $0x68] sm:$0xf]
      %v495 = vld [vmem:[%s219 + $0x6c] sm:$0xf]
      %v496 = vld [vmem:[%s219 + $0x70] sm:$0xf]
      %v497 = vld [vmem:[%s219 + $0x74] sm:$0xf]
      %v498 = vld [vmem:[%s219 + $0x78] sm:$0xf]
      %v499 = vld [vmem:[%s219 + $0x7c] sm:$0xf]
      %vm500 = vsmask.f32 4368
      %vm501 = vmor %vm236, %vm500
      %v503 = vshrl.u32 %v468, 16
      %v505 = vrot.slane %v503, 7
      %v506 = vshll.u32 %v468, 16
      %v508 = vor.u32 %v505, %v506
      %v509 = vrot.slane %v505, 4
      %v511 = vshrl.u32 %v469, 16
      %v513 = vrot.slane %v511, 7
      %v514 = vshll.u32 %v469, 16
      %v516 = vor.u32 %v513, %v514
      %v517 = vsel %vm501, %v509, %v516
      %v518 = vrot.slane %v513, 4
      %v520 = vshrl.u32 %v470, 16
      %v522 = vrot.slane %v520, 7
      %v523 = vshll.u32 %v470, 16
      %v525 = vor.u32 %v522, %v523
      %v526 = vrot.slane %v522, 4
      %v528 = vshrl.u32 %v471, 16
      %v530 = vrot.slane %v528, 7
      %v531 = vshll.u32 %v471, 16
      %v533 = vor.u32 %v530, %v531
      %v534 = vsel %vm501, %v526, %v533
      %v535 = vrot.slane %v530, 4
      %v537 = vshrl.u32 %v472, 16
      %v539 = vrot.slane %v537, 7
      %v540 = vshll.u32 %v472, 16
      %v542 = vor.u32 %v539, %v540
      %v543 = vrot.slane %v539, 4
      %v545 = vshrl.u32 %v473, 16
      %v547 = vrot.slane %v545, 7
      %v548 = vshll.u32 %v473, 16
      %v550 = vor.u32 %v547, %v548
      %v551 = vsel %vm501, %v543, %v550
      %v552 = vrot.slane %v547, 4
      %v554 = vshrl.u32 %v474, 16
      %v556 = vrot.slane %v554, 7
      %v557 = vshll.u32 %v474, 16
      %v559 = vor.u32 %v556, %v557
      %v560 = vrot.slane %v556, 4
      %v562 = vshrl.u32 %v475, 16
      %v564 = vrot.slane %v562, 7
      %v565 = vshll.u32 %v475, 16
      %v567 = vor.u32 %v564, %v565
      %v568 = vsel %vm501, %v560, %v567
      %v569 = vrot.slane %v564, 4
      %v571 = vshrl.u32 %v476, 16
      %v573 = vrot.slane %v571, 7
      %v574 = vshll.u32 %v476, 16
      %v576 = vor.u32 %v573, %v574
      %v577 = vrot.slane %v573, 4
      %v579 = vshrl.u32 %v477, 16
      %v581 = vrot.slane %v579, 7
      %v582 = vshll.u32 %v477, 16
      %v584 = vor.u32 %v581, %v582
      %v585 = vsel %vm501, %v577, %v584
      %v586 = vrot.slane %v581, 4
      %v588 = vshrl.u32 %v478, 16
      %v590 = vrot.slane %v588, 7
      %v591 = vshll.u32 %v478, 16
      %v593 = vor.u32 %v590, %v591
      %v594 = vrot.slane %v590, 4
      %v596 = vshrl.u32 %v479, 16
      %v598 = vrot.slane %v596, 7
      %v599 = vshll.u32 %v479, 16
      %v601 = vor.u32 %v598, %v599
      %v602 = vsel %vm501, %v594, %v601
      %v603 = vrot.slane %v598, 4
      %v605 = vshrl.u32 %v480, 16
      %v607 = vrot.slane %v605, 7
      %v608 = vshll.u32 %v480, 16
      %v610 = vor.u32 %v607, %v608
      %v611 = vrot.slane %v607, 4
      %v613 = vshrl.u32 %v481, 16
      %v615 = vrot.slane %v613, 7
      %v616 = vshll.u32 %v481, 16
      %v618 = vor.u32 %v615, %v616
      %v619 = vsel %vm501, %v611, %v618
      %v620 = vrot.slane %v615, 4
      %v622 = vshrl.u32 %v482, 16
      %v624 = vrot.slane %v622, 7
      %v625 = vshll.u32 %v482, 16
      %v627 = vor.u32 %v624, %v625
      %v628 = vrot.slane %v624, 4
      %v630 = vshrl.u32 %v483, 16
      %v632 = vrot.slane %v630, 7
      %v633 = vshll.u32 %v483, 16
      %v635 = vor.u32 %v632, %v633
      %v636 = vsel %vm501, %v628, %v635
      %v637 = vrot.slane %v632, 4
      %v639 = vshrl.u32 %v484, 16
      %v641 = vrot.slane %v639, 7
      %v642 = vshll.u32 %v484, 16
      %v644 = vor.u32 %v641, %v642
      %v645 = vrot.slane %v641, 4
      %v647 = vshrl.u32 %v485, 16
      %v649 = vrot.slane %v647, 7
      %v650 = vshll.u32 %v485, 16
      %v652 = vor.u32 %v649, %v650
      %v653 = vsel %vm501, %v645, %v652
      %v654 = vrot.slane %v649, 4
      %v656 = vshrl.u32 %v486, 16
      %v658 = vrot.slane %v656, 7
      %v659 = vshll.u32 %v486, 16
      %v661 = vor.u32 %v658, %v659
      %v662 = vrot.slane %v658, 4
      %v664 = vshrl.u32 %v487, 16
      %v666 = vrot.slane %v664, 7
      %v667 = vshll.u32 %v487, 16
      %v669 = vor.u32 %v666, %v667
      %v670 = vsel %vm501, %v662, %v669
      %v671 = vrot.slane %v666, 4
      %v673 = vshrl.u32 %v488, 16
      %v675 = vrot.slane %v673, 7
      %v676 = vshll.u32 %v488, 16
      %v678 = vor.u32 %v675, %v676
      %v679 = vrot.slane %v675, 4
      %v681 = vshrl.u32 %v489, 16
      %v683 = vrot.slane %v681, 7
      %v684 = vshll.u32 %v489, 16
      %v686 = vor.u32 %v683, %v684
      %v687 = vsel %vm501, %v679, %v686
      %v688 = vrot.slane %v683, 4
      %v690 = vshrl.u32 %v490, 16
      %v692 = vrot.slane %v690, 7
      %v693 = vshll.u32 %v490, 16
      %v695 = vor.u32 %v692, %v693
      %v696 = vrot.slane %v692, 4
      %v698 = vshrl.u32 %v491, 16
      %v700 = vrot.slane %v698, 7
      %v701 = vshll.u32 %v491, 16
      %v703 = vor.u32 %v700, %v701
      %v704 = vsel %vm501, %v696, %v703
      %v705 = vrot.slane %v700, 4
      %v707 = vshrl.u32 %v492, 16
      %v709 = vrot.slane %v707, 7
      %v710 = vshll.u32 %v492, 16
      %v712 = vor.u32 %v709, %v710
      %v713 = vrot.slane %v709, 4
      %v715 = vshrl.u32 %v493, 16
      %v717 = vrot.slane %v715, 7
      %v718 = vshll.u32 %v493, 16
      %v720 = vor.u32 %v717, %v718
      %v721 = vsel %vm501, %v713, %v720
      %v722 = vrot.slane %v717, 4
      %v724 = vshrl.u32 %v494, 16
      %v726 = vrot.slane %v724, 7
      %v727 = vshll.u32 %v494, 16
      %v729 = vor.u32 %v726, %v727
      %v730 = vrot.slane %v726, 4
      %v732 = vshrl.u32 %v495, 16
      %v734 = vrot.slane %v732, 7
      %v735 = vshll.u32 %v495, 16
      %v737 = vor.u32 %v734, %v735
      %v738 = vsel %vm501, %v730, %v737
      %v739 = vrot.slane %v734, 4
      %v741 = vshrl.u32 %v496, 16
      %v743 = vrot.slane %v741, 7
      %v744 = vshll.u32 %v496, 16
      %v746 = vor.u32 %v743, %v744
      %v747 = vrot.slane %v743, 4
      %v749 = vshrl.u32 %v497, 16
      %v751 = vrot.slane %v749, 7
      %v752 = vshll.u32 %v497, 16
      %v754 = vor.u32 %v751, %v752
      %v755 = vsel %vm501, %v747, %v754
      %v756 = vrot.slane %v751, 4
      %v758 = vshrl.u32 %v498, 16
      %v760 = vrot.slane %v758, 7
      %v761 = vshll.u32 %v498, 16
      %v763 = vor.u32 %v760, %v761
      %v764 = vrot.slane %v760, 4
      %v766 = vshrl.u32 %v499, 16
      %v768 = vrot.slane %v766, 7
      %v769 = vshll.u32 %v499, 16
      %v771 = vor.u32 %v768, %v769
      %v772 = vsel %vm501, %v764, %v771
      %v773 = vrot.slane %v768, 4
      %s822 = scalar_lea.vmem [#allocation2], 12
      %vm823 = vcmask 27648
      %vm824 = vmand %vm823, %vm292
      %v825 = vld [vmem:[%s822] sm:$0xf]
      %v826 = vsel %vm824, %v508, %v825
      %827 = vst [vmem:[%s822] sm:$0xf] %v826
      %828 = vst.msk [vmem:[%s822 + $0x4] sm:$0xf] %vm226, %v517
      %v829 = vld [vmem:[%s822 + $0x8] sm:$0x1]
      %v830 = vsel %vm237, %v518, %v829
      %831 = vst [vmem:[%s822 + $0x8] sm:$0x1] %v830
      %v832 = vld [vmem:[%s822 + $0xc] sm:$0xf]
      %v833 = vsel %vm824, %v525, %v832
      %834 = vst [vmem:[%s822 + $0xc] sm:$0xf] %v833
      %835 = vst.msk [vmem:[%s822 + $0x10] sm:$0xf] %vm226, %v534
      %v836 = vld [vmem:[%s822 + $0x14] sm:$0x1]
      %v837 = vsel %vm237, %v535, %v836
      %838 = vst [vmem:[%s822 + $0x14] sm:$0x1] %v837
      %v839 = vld [vmem:[%s822 + $0x18] sm:$0xf]
      %v840 = vsel %vm824, %v542, %v839
      %841 = vst [vmem:[%s822 + $0x18] sm:$0xf] %v840
      %842 = vst.msk [vmem:[%s822 + $0x1c] sm:$0xf] %vm226, %v551
      %v843 = vld [vmem:[%s822 + $0x20] sm:$0x1]
      %v844 = vsel %vm237, %v552, %v843
      %845 = vst [vmem:[%s822 + $0x20] sm:$0x1] %v844
      %v846 = vld [vmem:[%s822 + $0x24] sm:$0xf]
      %v847 = vsel %vm824, %v559, %v846
      %848 = vst [vmem:[%s822 + $0x24] sm:$0xf] %v847
      %849 = vst.msk [vmem:[%s822 + $0x28] sm:$0xf] %vm226, %v568
      %v850 = vld [vmem:[%s822 + $0x2c] sm:$0x1]
      %v851 = vsel %vm237, %v569, %v850
      %852 = vst [vmem:[%s822 + $0x2c] sm:$0x1] %v851
      %v853 = vld [vmem:[%s822 + $0x30] sm:$0xf]
      %v854 = vsel %vm824, %v576, %v853
      %855 = vst [vmem:[%s822 + $0x30] sm:$0xf] %v854
      %856 = vst.msk [vmem:[%s822 + $0x34] sm:$0xf] %vm226, %v585
      %v857 = vld [vmem:[%s822 + $0x38] sm:$0x1]
      %v858 = vsel %vm237, %v586, %v857
      %859 = vst [vmem:[%s822 + $0x38] sm:$0x1] %v858
      %v860 = vld [vmem:[%s822 + $0x3c] sm:$0xf]
      %v861 = vsel %vm824, %v593, %v860
      %862 = vst [vmem:[%s822 + $0x3c] sm:$0xf] %v861
      %863 = vst.msk [vmem:[%s822 + $0x40] sm:$0xf] %vm226, %v602
      %v864 = vld [vmem:[%s822 + $0x44] sm:$0x1]
      %v865 = vsel %vm237, %v603, %v864
      %866 = vst [vmem:[%s822 + $0x44] sm:$0x1] %v865
      %v867 = vld [vmem:[%s822 + $0x48] sm:$0xf]
      %v868 = vsel %vm824, %v610, %v867
      %869 = vst [vmem:[%s822 + $0x48] sm:$0xf] %v868
      %870 = vst.msk [vmem:[%s822 + $0x4c] sm:$0xf] %vm226, %v619
      %v871 = vld [vmem:[%s822 + $0x50] sm:$0x1]
      %v872 = vsel %vm237, %v620, %v871
      %873 = vst [vmem:[%s822 + $0x50] sm:$0x1] %v872
      %v874 = vld [vmem:[%s822 + $0x54] sm:$0xf]
      %v875 = vsel %vm824, %v627, %v874
      %876 = vst [vmem:[%s822 + $0x54] sm:$0xf] %v875
      %877 = vst.msk [vmem:[%s822 + $0x58] sm:$0xf] %vm226, %v636
      %v878 = vld [vmem:[%s822 + $0x5c] sm:$0x1]
      %v879 = vsel %vm237, %v637, %v878
      %880 = vst [vmem:[%s822 + $0x5c] sm:$0x1] %v879
      %v881 = vld [vmem:[%s822 + $0x60] sm:$0xf]
      %v882 = vsel %vm824, %v644, %v881
      %883 = vst [vmem:[%s822 + $0x60] sm:$0xf] %v882
      %884 = vst.msk [vmem:[%s822 + $0x64] sm:$0xf] %vm226, %v653
      %v885 = vld [vmem:[%s822 + $0x68] sm:$0x1]
      %v886 = vsel %vm237, %v654, %v885
      %887 = vst [vmem:[%s822 + $0x68] sm:$0x1] %v886
      %v888 = vld [vmem:[%s822 + $0x6c] sm:$0xf]
      %v889 = vsel %vm824, %v661, %v888
      %890 = vst [vmem:[%s822 + $0x6c] sm:$0xf] %v889
      %891 = vst.msk [vmem:[%s822 + $0x70] sm:$0xf] %vm226, %v670
      %v892 = vld [vmem:[%s822 + $0x74] sm:$0x1]
      %v893 = vsel %vm237, %v671, %v892
      %894 = vst [vmem:[%s822 + $0x74] sm:$0x1] %v893
      %v895 = vld [vmem:[%s822 + $0x78] sm:$0xf]
      %v896 = vsel %vm824, %v678, %v895
      %897 = vst [vmem:[%s822 + $0x78] sm:$0xf] %v896
      %898 = vst.msk [vmem:[%s822 + $0x7c] sm:$0xf] %vm226, %v687
      %v899 = vld [vmem:[%s822 + $0x80] sm:$0x1]
      %v900 = vsel %vm237, %v688, %v899
      %901 = vst [vmem:[%s822 + $0x80] sm:$0x1] %v900
      %v902 = vld [vmem:[%s822 + $0x84] sm:$0xf]
      %v903 = vsel %vm824, %v695, %v902
      %904 = vst [vmem:[%s822 + $0x84] sm:$0xf] %v903
      %905 = vst.msk [vmem:[%s822 + $0x88] sm:$0xf] %vm226, %v704
      %v906 = vld [vmem:[%s822 + $0x8c] sm:$0x1]
      %v907 = vsel %vm237, %v705, %v906
      %908 = vst [vmem:[%s822 + $0x8c] sm:$0x1] %v907
      %v909 = vld [vmem:[%s822 + $0x90] sm:$0xf]
      %v910 = vsel %vm824, %v712, %v909
      %911 = vst [vmem:[%s822 + $0x90] sm:$0xf] %v910
      %912 = vst.msk [vmem:[%s822 + $0x94] sm:$0xf] %vm226, %v721
      %v913 = vld [vmem:[%s822 + $0x98] sm:$0x1]
      %v914 = vsel %vm237, %v722, %v913
      %915 = vst [vmem:[%s822 + $0x98] sm:$0x1] %v914
      %v916 = vld [vmem:[%s822 + $0x9c] sm:$0xf]
      %v917 = vsel %vm824, %v729, %v916
      %918 = vst [vmem:[%s822 + $0x9c] sm:$0xf] %v917
      %919 = vst.msk [vmem:[%s822 + $0xa0] sm:$0xf] %vm226, %v738
      %v920 = vld [vmem:[%s822 + $0xa4] sm:$0x1]
      %v921 = vsel %vm237, %v739, %v920
      %922 = vst [vmem:[%s822 + $0xa4] sm:$0x1] %v921
      %v923 = vld [vmem:[%s822 + $0xa8] sm:$0xf]
      %v924 = vsel %vm824, %v746, %v923
      %925 = vst [vmem:[%s822 + $0xa8] sm:$0xf] %v924
      %926 = vst.msk [vmem:[%s822 + $0xac] sm:$0xf] %vm226, %v755
      %v927 = vld [vmem:[%s822 + $0xb0] sm:$0x1]
      %v928 = vsel %vm237, %v756, %v927
      %929 = vst [vmem:[%s822 + $0xb0] sm:$0x1] %v928
      %v930 = vld [vmem:[%s822 + $0xb4] sm:$0xf]
      %v931 = vsel %vm824, %v763, %v930
      %932 = vst [vmem:[%s822 + $0xb4] sm:$0xf] %v931
      %933 = vst.msk [vmem:[%s822 + $0xb8] sm:$0xf] %vm226, %v772
      %v934 = vld [vmem:[%s822 + $0xbc] sm:$0x1]
      %v935 = vsel %vm237, %v773, %v934
      %936 = vst [vmem:[%s822 + $0xbc] sm:$0x1] %v935
      %v937 = vld [vmem:[#allocation2] sm:$0xf]
      %v938 = vld [vmem:[#allocation2 + $0x4] sm:$0xf]
      %v939 = vld [vmem:[#allocation2 + $0xc] sm:$0xf]
      %v940 = vld [vmem:[#allocation2 + $0x10] sm:$0xf]
      %v941 = vld [vmem:[#allocation2 + $0x18] sm:$0xf]
      %v942 = vld [vmem:[#allocation2 + $0x1c] sm:$0xf]
      %v943 = vld [vmem:[#allocation2 + $0x24] sm:$0xf]
      %v944 = vld [vmem:[#allocation2 + $0x28] sm:$0xf]
      %v945 = vld [vmem:[#allocation2 + $0x30] sm:$0xf]
      %v946 = vld [vmem:[#allocation2 + $0x34] sm:$0xf]
      %v947 = vld [vmem:[#allocation2 + $0x3c] sm:$0xf]
      %v948 = vld [vmem:[#allocation2 + $0x40] sm:$0xf]
      %v949 = vld [vmem:[#allocation2 + $0x48] sm:$0xf]
      %v950 = vld [vmem:[#allocation2 + $0x4c] sm:$0xf]
      %v951 = vld [vmem:[#allocation2 + $0x54] sm:$0xf]
      %v952 = vld [vmem:[#allocation2 + $0x58] sm:$0xf]
      %v953 = vld [vmem:[#allocation2 + $0x60] sm:$0xf]
      %v954 = vld [vmem:[#allocation2 + $0x64] sm:$0xf]
      %v955 = vld [vmem:[#allocation2 + $0x6c] sm:$0xf]
      %v956 = vld [vmem:[#allocation2 + $0x70] sm:$0xf]
      %v957 = vld [vmem:[#allocation2 + $0x78] sm:$0xf]
      %v958 = vld [vmem:[#allocation2 + $0x7c] sm:$0xf]
      %v959 = vld [vmem:[#allocation2 + $0x84] sm:$0xf]
      %v960 = vld [vmem:[#allocation2 + $0x88] sm:$0xf]
      %v961 = vld [vmem:[#allocation2 + $0x90] sm:$0xf]
      %v962 = vld [vmem:[#allocation2 + $0x94] sm:$0xf]
      %v963 = vld [vmem:[#allocation2 + $0x9c] sm:$0xf]
      %v964 = vld [vmem:[#allocation2 + $0xa0] sm:$0xf]
      %v965 = vld [vmem:[#allocation2 + $0xa8] sm:$0xf]
      %v966 = vld [vmem:[#allocation2 + $0xac] sm:$0xf]
      %v967 = vld [vmem:[#allocation2 + $0xb4] sm:$0xf]
      %v968 = vld [vmem:[#allocation2 + $0xb8] sm:$0xf]
      %v1001 = vunpack.c.l.b16 %v937
      %v1002 = vunpack.c.l.b16 %v938
      %v1003 = vunpack.c.l.b16 %v939
      %v1004 = vunpack.c.l.b16 %v940
      %v1005 = vunpack.c.l.b16 %v941
      %v1006 = vunpack.c.l.b16 %v942
      %v1007 = vunpack.c.l.b16 %v943
      %v1008 = vunpack.c.l.b16 %v944
      %v1009 = vunpack.c.l.b16 %v945
      %v1010 = vunpack.c.l.b16 %v946
      %v1011 = vunpack.c.l.b16 %v947
      %v1012 = vunpack.c.l.b16 %v948
      %v1013 = vunpack.c.l.b16 %v949
      %v1014 = vunpack.c.l.b16 %v950
      %v1015 = vunpack.c.l.b16 %v951
      %v1016 = vunpack.c.l.b16 %v952
      %v1017 = vunpack.c.l.b16 %v953
      %v1018 = vunpack.c.l.b16 %v954
      %v1019 = vunpack.c.l.b16 %v955
      %v1020 = vunpack.c.l.b16 %v956
      %v1021 = vunpack.c.l.b16 %v957
      %v1022 = vunpack.c.l.b16 %v958
      %v1023 = vunpack.c.l.b16 %v959
      %v1024 = vunpack.c.l.b16 %v960
      %v1025 = vunpack.c.l.b16 %v961
      %v1026 = vunpack.c.l.b16 %v962
      %v1027 = vunpack.c.l.b16 %v963
      %v1028 = vunpack.c.l.b16 %v964
      %v1029 = vunpack.c.l.b16 %v965
      %v1030 = vunpack.c.l.b16 %v966
      %v1031 = vunpack.c.l.b16 %v967
      %v1032 = vunpack.c.l.b16 %v968
      %v1033 = vpack.c.b16 %v1002, %v1001
      %v1034 = vpack.c.b16 %v1004, %v1003
      %v1035 = vpack.c.b16 %v1006, %v1005
      %v1036 = vpack.c.b16 %v1008, %v1007
      %v1037 = vpack.c.b16 %v1010, %v1009
      %v1038 = vpack.c.b16 %v1012, %v1011
      %v1039 = vpack.c.b16 %v1014, %v1013
      %v1040 = vpack.c.b16 %v1016, %v1015
      %v1041 = vpack.c.b16 %v1018, %v1017
      %v1042 = vpack.c.b16 %v1020, %v1019
      %v1043 = vpack.c.b16 %v1022, %v1021
      %v1044 = vpack.c.b16 %v1024, %v1023
      %v1045 = vpack.c.b16 %v1026, %v1025
      %v1046 = vpack.c.b16 %v1028, %v1027
      %v1047 = vpack.c.b16 %v1030, %v1029
      %v1048 = vpack.c.b16 %v1032, %v1031
      %vm1065 = vcmask 31744
      %1066 = vst.msk [vmem:[#allocation4] sm:$0xff] %vm1065, %v1033
      %1067 = vst.msk [vmem:[#allocation4 + $0x8] sm:$0xff] %vm1065, %v1034
      %1068 = vst.msk [vmem:[#allocation4 + $0x10] sm:$0xff] %vm1065, %v1035
      %1069 = vst.msk [vmem:[#allocation4 + $0x18] sm:$0xff] %vm1065, %v1036
      %1070 = vst.msk [vmem:[#allocation4 + $0x20] sm:$0xff] %vm1065, %v1037
      %1071 = vst.msk [vmem:[#allocation4 + $0x28] sm:$0xff] %vm1065, %v1038
      %1072 = vst.msk [vmem:[#allocation4 + $0x30] sm:$0xff] %vm1065, %v1039
      %1073 = vst.msk [vmem:[#allocation4 + $0x38] sm:$0xff] %vm1065, %v1040
      %1074 = vst.msk [vmem:[#allocation4 + $0x40] sm:$0xff] %vm1065, %v1041
      %1075 = vst.msk [vmem:[#allocation4 + $0x48] sm:$0xff] %vm1065, %v1042
      %1076 = vst.msk [vmem:[#allocation4 + $0x50] sm:$0xff] %vm1065, %v1043
      %1077 = vst.msk [vmem:[#allocation4 + $0x58] sm:$0xff] %vm1065, %v1044
      %1078 = vst.msk [vmem:[#allocation4 + $0x60] sm:$0xff] %vm1065, %v1045
      %1079 = vst.msk [vmem:[#allocation4 + $0x68] sm:$0xff] %vm1065, %v1046
      %1080 = vst.msk [vmem:[#allocation4 + $0x70] sm:$0xff] %vm1065, %v1047
      %1081 = vst.msk [vmem:[#allocation4 + $0x78] sm:$0xff] %vm1065, %v1048
      %v1082 = vld [vmem:[#allocation2] sm:$0xf]
      %v1083 = vld [vmem:[#allocation2 + $0x4] sm:$0xf]
      %v1084 = vld [vmem:[#allocation2 + $0x8] sm:$0x1]
      %v1085 = vld [vmem:[#allocation2 + $0xc] sm:$0xf]
      %v1086 = vld [vmem:[#allocation2 + $0x10] sm:$0xf]
      %v1087 = vld [vmem:[#allocation2 + $0x14] sm:$0x1]
      %v1088 = vld [vmem:[#allocation2 + $0x18] sm:$0xf]
      %v1089 = vld [vmem:[#allocation2 + $0x1c] sm:$0xf]
      %v1090 = vld [vmem:[#allocation2 + $0x20] sm:$0x1]
      %v1091 = vld [vmem:[#allocation2 + $0x24] sm:$0xf]
      %v1092 = vld [vmem:[#allocation2 + $0x28] sm:$0xf]
      %v1093 = vld [vmem:[#allocation2 + $0x2c] sm:$0x1]
      %v1094 = vld [vmem:[#allocation2 + $0x30] sm:$0xf]
      %v1095 = vld [vmem:[#allocation2 + $0x34] sm:$0xf]
      %v1096 = vld [vmem:[#allocation2 + $0x38] sm:$0x1]
      %v1097 = vld [vmem:[#allocation2 + $0x3c] sm:$0xf]
      %v1098 = vld [vmem:[#allocation2 + $0x40] sm:$0xf]
      %v1099 = vld [vmem:[#allocation2 + $0x44] sm:$0x1]
      %v1100 = vld [vmem:[#allocation2 + $0x48] sm:$0xf]
      %v1101 = vld [vmem:[#allocation2 + $0x4c] sm:$0xf]
      %v1102 = vld [vmem:[#allocation2 + $0x50] sm:$0x1]
      %v1103 = vld [vmem:[#allocation2 + $0x54] sm:$0xf]
      %v1104 = vld [vmem:[#allocation2 + $0x58] sm:$0xf]
      %v1105 = vld [vmem:[#allocation2 + $0x5c] sm:$0x1]
      %v1106 = vld [vmem:[#allocation2 + $0x60] sm:$0xf]
      %v1107 = vld [vmem:[#allocation2 + $0x64] sm:$0xf]
      %v1108 = vld [vmem:[#allocation2 + $0x68] sm:$0x1]
      %v1109 = vld [vmem:[#allocation2 + $0x6c] sm:$0xf]
      %v1110 = vld [vmem:[#allocation2 + $0x70] sm:$0xf]
      %v1111 = vld [vmem:[#allocation2 + $0x74] sm:$0x1]
      %v1112 = vld [vmem:[#allocation2 + $0x78] sm:$0xf]
      %v1113 = vld [vmem:[#allocation2 + $0x7c] sm:$0xf]
      %v1114 = vld [vmem:[#allocation2 + $0x80] sm:$0x1]
      %v1115 = vld [vmem:[#allocation2 + $0x84] sm:$0xf]
      %v1116 = vld [vmem:[#allocation2 + $0x88] sm:$0xf]
      %v1117 = vld [vmem:[#allocation2 + $0x8c] sm:$0x1]
      %v1118 = vld [vmem:[#allocation2 + $0x90] sm:$0xf]
      %v1119 = vld [vmem:[#allocation2 + $0x94] sm:$0xf]
      %v1120 = vld [vmem:[#allocation2 + $0x98] sm:$0x1]
      %v1121 = vld [vmem:[#allocation2 + $0x9c] sm:$0xf]
      %v1122 = vld [vmem:[#allocation2 + $0xa0] sm:$0xf]
      %v1123 = vld [vmem:[#allocation2 + $0xa4] sm:$0x1]
      %v1124 = vld [vmem:[#allocation2 + $0xa8] sm:$0xf]
      %v1125 = vld [vmem:[#allocation2 + $0xac] sm:$0xf]
      %v1126 = vld [vmem:[#allocation2 + $0xb0] sm:$0x1]
      %v1127 = vld [vmem:[#allocation2 + $0xb4] sm:$0xf]
      %v1128 = vld [vmem:[#allocation2 + $0xb8] sm:$0xf]
      %v1129 = vld [vmem:[#allocation2 + $0xbc] sm:$0x1]
      %vm1130 = vsmask.f32 3328
      %vm1131 = vsmask.f32 7440
      %vm1132 = vmor %vm1130, %vm1131
      %v1134 = vshrl.u32 %v1082, 16
      %v1136 = vrot.slane %v1134, 4
      %v1137 = vshll.u32 %v1082, 16
      %v1139 = vrot.slane %v1137, 5
      %v1140 = vor.u32 %v1136, %v1139
      %v1141 = vrot.slane %v1140, 4
      %v1143 = vshll.u32 %v1083, 16
      %v1145 = vrot.slane %v1143, 5
      %v1146 = vsel %vm1132, %v1141, %v1145
      %v1147 = vshrl.u32 %v1083, 16
      %v1149 = vrot.slane %v1147, 4
      %v1150 = vor.u32 %v1149, %v1145
      %v1151 = vrot.slane %v1150, 4
      %v1153 = vshll.u32 %v1084, 16
      %v1155 = vrot.slane %v1153, 5
      %v1156 = vsel %vm1132, %v1151, %v1155
      %v1158 = vshrl.u32 %v1085, 16
      %v1160 = vrot.slane %v1158, 4
      %v1161 = vshll.u32 %v1085, 16
      %v1163 = vrot.slane %v1161, 5
      %v1164 = vor.u32 %v1160, %v1163
      %v1165 = vrot.slane %v1164, 4
      %v1167 = vshll.u32 %v1086, 16
      %v1169 = vrot.slane %v1167, 5
      %v1170 = vsel %vm1132, %v1165, %v1169
      %v1171 = vshrl.u32 %v1086, 16
      %v1173 = vrot.slane %v1171, 4
      %v1174 = vor.u32 %v1173, %v1169
      %v1175 = vrot.slane %v1174, 4
      %v1177 = vshll.u32 %v1087, 16
      %v1179 = vrot.slane %v1177, 5
      %v1180 = vsel %vm1132, %v1175, %v1179
      %v1182 = vshrl.u32 %v1088, 16
      %v1184 = vrot.slane %v1182, 4
      %v1185 = vshll.u32 %v1088, 16
      %v1187 = vrot.slane %v1185, 5
      %v1188 = vor.u32 %v1184, %v1187
      %v1189 = vrot.slane %v1188, 4
      %v1191 = vshll.u32 %v1089, 16
      %v1193 = vrot.slane %v1191, 5
      %v1194 = vsel %vm1132, %v1189, %v1193
      %v1195 = vshrl.u32 %v1089, 16
      %v1197 = vrot.slane %v1195, 4
      %v1198 = vor.u32 %v1197, %v1193
      %v1199 = vrot.slane %v1198, 4
      %v1201 = vshll.u32 %v1090, 16
      %v1203 = vrot.slane %v1201, 5
      %v1204 = vsel %vm1132, %v1199, %v1203
      %v1206 = vshrl.u32 %v1091, 16
      %v1208 = vrot.slane %v1206, 4
      %v1209 = vshll.u32 %v1091, 16
      %v1211 = vrot.slane %v1209, 5
      %v1212 = vor.u32 %v1208, %v1211
      %v1213 = vrot.slane %v1212, 4
      %v1215 = vshll.u32 %v1092, 16
      %v1217 = vrot.slane %v1215, 5
      %v1218 = vsel %vm1132, %v1213, %v1217
      %v1219 = vshrl.u32 %v1092, 16
      %v1221 = vrot.slane %v1219, 4
      %v1222 = vor.u32 %v1221, %v1217
      %v1223 = vrot.slane %v1222, 4
      %v1225 = vshll.u32 %v1093, 16
      %v1227 = vrot.slane %v1225, 5
      %v1228 = vsel %vm1132, %v1223, %v1227
      %v1230 = vshrl.u32 %v1094, 16
      %v1232 = vrot.slane %v1230, 4
      %v1233 = vshll.u32 %v1094, 16
      %v1235 = vrot.slane %v1233, 5
      %v1236 = vor.u32 %v1232, %v1235
      %v1237 = vrot.slane %v1236, 4
      %v1239 = vshll.u32 %v1095, 16
      %v1241 = vrot.slane %v1239, 5
      %v1242 = vsel %vm1132, %v1237, %v1241
      %v1243 = vshrl.u32 %v1095, 16
      %v1245 = vrot.slane %v1243, 4
      %v1246 = vor.u32 %v1245, %v1241
      %v1247 = vrot.slane %v1246, 4
      %v1249 = vshll.u32 %v1096, 16
      %v1251 = vrot.slane %v1249, 5
      %v1252 = vsel %vm1132, %v1247, %v1251
      %v1254 = vshrl.u32 %v1097, 16
      %v1256 = vrot.slane %v1254, 4
      %v1257 = vshll.u32 %v1097, 16
      %v1259 = vrot.slane %v1257, 5
      %v1260 = vor.u32 %v1256, %v1259
      %v1261 = vrot.slane %v1260, 4
      %v1263 = vshll.u32 %v1098, 16
      %v1265 = vrot.slane %v1263, 5
      %v1266 = vsel %vm1132, %v1261, %v1265
      %v1267 = vshrl.u32 %v1098, 16
      %v1269 = vrot.slane %v1267, 4
      %v1270 = vor.u32 %v1269, %v1265
      %v1271 = vrot.slane %v1270, 4
      %v1273 = vshll.u32 %v1099, 16
      %v1275 = vrot.slane %v1273, 5
      %v1276 = vsel %vm1132, %v1271, %v1275
      %v1278 = vshrl.u32 %v1100, 16
      %v1280 = vrot.slane %v1278, 4
      %v1281 = vshll.u32 %v1100, 16
      %v1283 = vrot.slane %v1281, 5
      %v1284 = vor.u32 %v1280, %v1283
      %v1285 = vrot.slane %v1284, 4
      %v1287 = vshll.u32 %v1101, 16
      %v1289 = vrot.slane %v1287, 5
      %v1290 = vsel %vm1132, %v1285, %v1289
      %v1291 = vshrl.u32 %v1101, 16
      %v1293 = vrot.slane %v1291, 4
      %v1294 = vor.u32 %v1293, %v1289
      %v1295 = vrot.slane %v1294, 4
      %v1297 = vshll.u32 %v1102, 16
      %v1299 = vrot.slane %v1297, 5
      %v1300 = vsel %vm1132, %v1295, %v1299
      %v1302 = vshrl.u32 %v1103, 16
      %v1304 = vrot.slane %v1302, 4
      %v1305 = vshll.u32 %v1103, 16
      %v1307 = vrot.slane %v1305, 5
      %v1308 = vor.u32 %v1304, %v1307
      %v1309 = vrot.slane %v1308, 4
      %v1311 = vshll.u32 %v1104, 16
      %v1313 = vrot.slane %v1311, 5
      %v1314 = vsel %vm1132, %v1309, %v1313
      %v1315 = vshrl.u32 %v1104, 16
      %v1317 = vrot.slane %v1315, 4
      %v1318 = vor.u32 %v1317, %v1313
      %v1319 = vrot.slane %v1318, 4
      %v1321 = vshll.u32 %v1105, 16
      %v1323 = vrot.slane %v1321, 5
      %v1324 = vsel %vm1132, %v1319, %v1323
      %v1326 = vshrl.u32 %v1106, 16
      %v1328 = vrot.slane %v1326, 4
      %v1329 = vshll.u32 %v1106, 16
      %v1331 = vrot.slane %v1329, 5
      %v1332 = vor.u32 %v1328, %v1331
      %v1333 = vrot.slane %v1332, 4
      %v1335 = vshll.u32 %v1107, 16
      %v1337 = vrot.slane %v1335, 5
      %v1338 = vsel %vm1132, %v1333, %v1337
      %v1339 = vshrl.u32 %v1107, 16
      %v1341 = vrot.slane %v1339, 4
      %v1342 = vor.u32 %v1341, %v1337
      %v1343 = vrot.slane %v1342, 4
      %v1345 = vshll.u32 %v1108, 16
      %v1347 = vrot.slane %v1345, 5
      %v1348 = vsel %vm1132, %v1343, %v1347
      %v1350 = vshrl.u32 %v1109, 16
      %v1352 = vrot.slane %v1350, 4
      %v1353 = vshll.u32 %v1109, 16
      %v1355 = vrot.slane %v1353, 5
      %v1356 = vor.u32 %v1352, %v1355
      %v1357 = vrot.slane %v1356, 4
      %v1359 = vshll.u32 %v1110, 16
      %v1361 = vrot.slane %v1359, 5
      %v1362 = vsel %vm1132, %v1357, %v1361
      %v1363 = vshrl.u32 %v1110, 16
      %v1365 = vrot.slane %v1363, 4
      %v1366 = vor.u32 %v1365, %v1361
      %v1367 = vrot.slane %v1366, 4
      %v1369 = vshll.u32 %v1111, 16
      %v1371 = vrot.slane %v1369, 5
      %v1372 = vsel %vm1132, %v1367, %v1371
      %v1374 = vshrl.u32 %v1112, 16
      %v1376 = vrot.slane %v1374, 4
      %v1377 = vshll.u32 %v1112, 16
      %v1379 = vrot.slane %v1377, 5
      %v1380 = vor.u32 %v1376, %v1379
      %v1381 = vrot.slane %v1380, 4
      %v1383 = vshll.u32 %v1113, 16
      %v1385 = vrot.slane %v1383, 5
      %v1386 = vsel %vm1132, %v1381, %v1385
      %v1387 = vshrl.u32 %v1113, 16
      %v1389 = vrot.slane %v1387, 4
      %v1390 = vor.u32 %v1389, %v1385
      %v1391 = vrot.slane %v1390, 4
      %v1393 = vshll.u32 %v1114, 16
      %v1395 = vrot.slane %v1393, 5
      %v1396 = vsel %vm1132, %v1391, %v1395
      %v1398 = vshrl.u32 %v1115, 16
      %v1400 = vrot.slane %v1398, 4
      %v1401 = vshll.u32 %v1115, 16
      %v1403 = vrot.slane %v1401, 5
      %v1404 = vor.u32 %v1400, %v1403
      %v1405 = vrot.slane %v1404, 4
      %v1407 = vshll.u32 %v1116, 16
      %v1409 = vrot.slane %v1407, 5
      %v1410 = vsel %vm1132, %v1405, %v1409
      %v1411 = vshrl.u32 %v1116, 16
      %v1413 = vrot.slane %v1411, 4
      %v1414 = vor.u32 %v1413, %v1409
      %v1415 = vrot.slane %v1414, 4
      %v1417 = vshll.u32 %v1117, 16
      %v1419 = vrot.slane %v1417, 5
      %v1420 = vsel %vm1132, %v1415, %v1419
      %v1422 = vshrl.u32 %v1118, 16
      %v1424 = vrot.slane %v1422, 4
      %v1425 = vshll.u32 %v1118, 16
      %v1427 = vrot.slane %v1425, 5
      %v1428 = vor.u32 %v1424, %v1427
      %v1429 = vrot.slane %v1428, 4
      %v1431 = vshll.u32 %v1119, 16
      %v1433 = vrot.slane %v1431, 5
      %v1434 = vsel %vm1132, %v1429, %v1433
      %v1435 = vshrl.u32 %v1119, 16
      %v1437 = vrot.slane %v1435, 4
      %v1438 = vor.u32 %v1437, %v1433
      %v1439 = vrot.slane %v1438, 4
      %v1441 = vshll.u32 %v1120, 16
      %v1443 = vrot.slane %v1441, 5
      %v1444 = vsel %vm1132, %v1439, %v1443
      %v1446 = vshrl.u32 %v1121, 16
      %v1448 = vrot.slane %v1446, 4
      %v1449 = vshll.u32 %v1121, 16
      %v1451 = vrot.slane %v1449, 5
      %v1452 = vor.u32 %v1448, %v1451
      %v1453 = vrot.slane %v1452, 4
      %v1455 = vshll.u32 %v1122, 16
      %v1457 = vrot.slane %v1455, 5
      %v1458 = vsel %vm1132, %v1453, %v1457
      %v1459 = vshrl.u32 %v1122, 16
      %v1461 = vrot.slane %v1459, 4
      %v1462 = vor.u32 %v1461, %v1457
      %v1463 = vrot.slane %v1462, 4
      %v1465 = vshll.u32 %v1123, 16
      %v1467 = vrot.slane %v1465, 5
      %v1468 = vsel %vm1132, %v1463, %v1467
      %v1470 = vshrl.u32 %v1124, 16
      %v1472 = vrot.slane %v1470, 4
      %v1473 = vshll.u32 %v1124, 16
      %v1475 = vrot.slane %v1473, 5
      %v1476 = vor.u32 %v1472, %v1475
      %v1477 = vrot.slane %v1476, 4
      %v1479 = vshll.u32 %v1125, 16
      %v1481 = vrot.slane %v1479, 5
      %v1482 = vsel %vm1132, %v1477, %v1481
      %v1483 = vshrl.u32 %v1125, 16
      %v1485 = vrot.slane %v1483, 4
      %v1486 = vor.u32 %v1485, %v1481
      %v1487 = vrot.slane %v1486, 4
      %v1489 = vshll.u32 %v1126, 16
      %v1491 = vrot.slane %v1489, 5
      %v1492 = vsel %vm1132, %v1487, %v1491
      %v1494 = vshrl.u32 %v1127, 16
      %v1496 = vrot.slane %v1494, 4
      %v1497 = vshll.u32 %v1127, 16
      %v1499 = vrot.slane %v1497, 5
      %v1500 = vor.u32 %v1496, %v1499
      %v1501 = vrot.slane %v1500, 4
      %v1503 = vshll.u32 %v1128, 16
      %v1505 = vrot.slane %v1503, 5
      %v1506 = vsel %vm1132, %v1501, %v1505
      %v1507 = vshrl.u32 %v1128, 16
      %v1509 = vrot.slane %v1507, 4
      %v1510 = vor.u32 %v1509, %v1505
      %v1511 = vrot.slane %v1510, 4
      %v1513 = vshll.u32 %v1129, 16
      %v1515 = vrot.slane %v1513, 5
      %v1516 = vsel %vm1132, %v1511, %v1515
      %v1517 = vunpack.c.l.b16 %v1146
      %v1518 = vunpack.c.l.b16 %v1156
      %v1519 = vunpack.c.l.b16 %v1170
      %v1520 = vunpack.c.l.b16 %v1180
      %v1521 = vunpack.c.l.b16 %v1194
      %v1522 = vunpack.c.l.b16 %v1204
      %v1523 = vunpack.c.l.b16 %v1218
      %v1524 = vunpack.c.l.b16 %v1228
      %v1525 = vunpack.c.l.b16 %v1242
      %v1526 = vunpack.c.l.b16 %v1252
      %v1527 = vunpack.c.l.b16 %v1266
      %v1528 = vunpack.c.l.b16 %v1276
      %v1529 = vunpack.c.l.b16 %v1290
      %v1530 = vunpack.c.l.b16 %v1300
      %v1531 = vunpack.c.l.b16 %v1314
      %v1532 = vunpack.c.l.b16 %v1324
      %v1533 = vunpack.c.l.b16 %v1338
      %v1534 = vunpack.c.l.b16 %v1348
      %v1535 = vunpack.c.l.b16 %v1362
      %v1536 = vunpack.c.l.b16 %v1372
      %v1537 = vunpack.c.l.b16 %v1386
      %v1538 = vunpack.c.l.b16 %v1396
      %v1539 = vunpack.c.l.b16 %v1410
      %v1540 = vunpack.c.l.b16 %v1420
      %v1541 = vunpack.c.l.b16 %v1434
      %v1542 = vunpack.c.l.b16 %v1444
      %v1543 = vunpack.c.l.b16 %v1458
      %v1544 = vunpack.c.l.b16 %v1468
      %v1545 = vunpack.c.l.b16 %v1482
      %v1546 = vunpack.c.l.b16 %v1492
      %v1547 = vunpack.c.l.b16 %v1506
      %v1548 = vunpack.c.l.b16 %v1516
      %v1549 = vpack.c.b16 %v1518, %v1517
      %v1550 = vpack.c.b16 %v1520, %v1519
      %v1551 = vpack.c.b16 %v1522, %v1521
      %v1552 = vpack.c.b16 %v1524, %v1523
      %v1553 = vpack.c.b16 %v1526, %v1525
      %v1554 = vpack.c.b16 %v1528, %v1527
      %v1555 = vpack.c.b16 %v1530, %v1529
      %v1556 = vpack.c.b16 %v1532, %v1531
      %v1557 = vpack.c.b16 %v1534, %v1533
      %v1558 = vpack.c.b16 %v1536, %v1535
      %v1559 = vpack.c.b16 %v1538, %v1537
      %v1560 = vpack.c.b16 %v1540, %v1539
      %v1561 = vpack.c.b16 %v1542, %v1541
      %v1562 = vpack.c.b16 %v1544, %v1543
      %v1563 = vpack.c.b16 %v1546, %v1545
      %v1564 = vpack.c.b16 %v1548, %v1547
      %1565 = vrot.lane.b32.xlu0 %v1549, 4
      %v1566 = vpop.permute.xlu0 %1565
      %1567 = vrot.lane.b32.xlu0 %v1550, 4
      %v1568 = vpop.permute.xlu0 %1567
      %1569 = vrot.lane.b32.xlu0 %v1551, 4
      %v1570 = vpop.permute.xlu0 %1569
      %1571 = vrot.lane.b32.xlu0 %v1552, 4
      %v1572 = vpop.permute.xlu0 %1571
      %1573 = vrot.lane.b32.xlu0 %v1553, 4
      %v1574 = vpop.permute.xlu0 %1573
      %1575 = vrot.lane.b32.xlu0 %v1554, 4
      %v1576 = vpop.permute.xlu0 %1575
      %1577 = vrot.lane.b32.xlu0 %v1555, 4
      %v1578 = vpop.permute.xlu0 %1577
      %1579 = vrot.lane.b32.xlu0 %v1556, 4
      %v1580 = vpop.permute.xlu0 %1579
      %1581 = vrot.lane.b32.xlu0 %v1557, 4
      %v1582 = vpop.permute.xlu0 %1581
      %1583 = vrot.lane.b32.xlu0 %v1558, 4
      %v1584 = vpop.permute.xlu0 %1583
      %1585 = vrot.lane.b32.xlu0 %v1559, 4
      %v1586 = vpop.permute.xlu0 %1585
      %1587 = vrot.lane.b32.xlu0 %v1560, 4
      %v1588 = vpop.permute.xlu0 %1587
      %1589 = vrot.lane.b32.xlu0 %v1561, 4
      %v1590 = vpop.permute.xlu0 %1589
      %1591 = vrot.lane.b32.xlu0 %v1562, 4
      %v1592 = vpop.permute.xlu0 %1591
      %1593 = vrot.lane.b32.xlu0 %v1563, 4
      %v1594 = vpop.permute.xlu0 %1593
      %1595 = vrot.lane.b32.xlu0 %v1564, 4
      %v1596 = vpop.permute.xlu0 %1595
      %vm1613 = vcmask 64544
      %1614 = vst.msk [vmem:[#allocation4] sm:$0xff] %vm1613, %v1566
      %1615 = vst.msk [vmem:[#allocation4 + $0x8] sm:$0xff] %vm1613, %v1568
      %1616 = vst.msk [vmem:[#allocation4 + $0x10] sm:$0xff] %vm1613, %v1570
      %1617 = vst.msk [vmem:[#allocation4 + $0x18] sm:$0xff] %vm1613, %v1572
      %1618 = vst.msk [vmem:[#allocation4 + $0x20] sm:$0xff] %vm1613, %v1574
      %1619 = vst.msk [vmem:[#allocation4 + $0x28] sm:$0xff] %vm1613, %v1576
      %1620 = vst.msk [vmem:[#allocation4 + $0x30] sm:$0xff] %vm1613, %v1578
      %1621 = vst.msk [vmem:[#allocation4 + $0x38] sm:$0xff] %vm1613, %v1580
      %1622 = vst.msk [vmem:[#allocation4 + $0x40] sm:$0xff] %vm1613, %v1582
      %1623 = vst.msk [vmem:[#allocation4 + $0x48] sm:$0xff] %vm1613, %v1584
      %1624 = vst.msk [vmem:[#allocation4 + $0x50] sm:$0xff] %vm1613, %v1586
      %1625 = vst.msk [vmem:[#allocation4 + $0x58] sm:$0xff] %vm1613, %v1588
      %1626 = vst.msk [vmem:[#allocation4 + $0x60] sm:$0xff] %vm1613, %v1590
      %1627 = vst.msk [vmem:[#allocation4 + $0x68] sm:$0xff] %vm1613, %v1592
      %1628 = vst.msk [vmem:[#allocation4 + $0x70] sm:$0xff] %vm1613, %v1594
      %1629 = vst.msk [vmem:[#allocation4 + $0x78] sm:$0xff] %vm1613, %v1596
      %v1630 = vld [vmem:[#allocation2] sm:$0xe]
      %v1631 = vld [vmem:[#allocation2 + $0x4] sm:$0xf]
      %v1632 = vld [vmem:[#allocation2 + $0x8] sm:$0x1]
      %v1633 = vld [vmem:[#allocation2 + $0xc] sm:$0xe]
      %v1634 = vld [vmem:[#allocation2 + $0x10] sm:$0xf]
      %v1635 = vld [vmem:[#allocation2 + $0x14] sm:$0x1]
      %v1636 = vld [vmem:[#allocation2 + $0x18] sm:$0xe]
      %v1637 = vld [vmem:[#allocation2 + $0x1c] sm:$0xf]
      %v1638 = vld [vmem:[#allocation2 + $0x20] sm:$0x1]
      %v1639 = vld [vmem:[#allocation2 + $0x24] sm:$0xe]
      %v1640 = vld [vmem:[#allocation2 + $0x28] sm:$0xf]
      %v1641 = vld [vmem:[#allocation2 + $0x2c] sm:$0x1]
      %v1642 = vld [vmem:[#allocation2 + $0x30] sm:$0xe]
      %v1643 = vld [vmem:[#allocation2 + $0x34] sm:$0xf]
      %v1644 = vld [vmem:[#allocation2 + $0x38] sm:$0x1]
      %v1645 = vld [vmem:[#allocation2 + $0x3c] sm:$0xe]
      %v1646 = vld [vmem:[#allocation2 + $0x40] sm:$0xf]
      %v1647 = vld [vmem:[#allocation2 + $0x44] sm:$0x1]
      %v1648 = vld [vmem:[#allocation2 + $0x48] sm:$0xe]
      %v1649 = vld [vmem:[#allocation2 + $0x4c] sm:$0xf]
      %v1650 = vld [vmem:[#allocation2 + $0x50] sm:$0x1]
      %v1651 = vld [vmem:[#allocation2 + $0x54] sm:$0xe]
      %v1652 = vld [vmem:[#allocation2 + $0x58] sm:$0xf]
      %v1653 = vld [vmem:[#allocation2 + $0x5c] sm:$0x1]
      %v1654 = vld [vmem:[#allocation2 + $0x60] sm:$0xe]
      %v1655 = vld [vmem:[#allocation2 + $0x64] sm:$0xf]
      %v1656 = vld [vmem:[#allocation2 + $0x68] sm:$0x1]
      %v1657 = vld [vmem:[#allocation2 + $0x6c] sm:$0xe]
      %v1658 = vld [vmem:[#allocation2 + $0x70] sm:$0xf]
      %v1659 = vld [vmem:[#allocation2 + $0x74] sm:$0x1]
      %v1660 = vld [vmem:[#allocation2 + $0x78] sm:$0xe]
      %v1661 = vld [vmem:[#allocation2 + $0x7c] sm:$0xf]
      %v1662 = vld [vmem:[#allocation2 + $0x80] sm:$0x1]
      %v1663 = vld [vmem:[#allocation2 + $0x84] sm:$0xe]
      %v1664 = vld [vmem:[#allocation2 + $0x88] sm:$0xf]
      %v1665 = vld [vmem:[#allocation2 + $0x8c] sm:$0x1]
      %v1666 = vld [vmem:[#allocation2 + $0x90] sm:$0xe]
      %v1667 = vld [vmem:[#allocation2 + $0x94] sm:$0xf]
      %v1668 = vld [vmem:[#allocation2 + $0x98] sm:$0x1]
      %v1669 = vld [vmem:[#allocation2 + $0x9c] sm:$0xe]
      %v1670 = vld [vmem:[#allocation2 + $0xa0] sm:$0xf]
      %v1671 = vld [vmem:[#allocation2 + $0xa4] sm:$0x1]
      %v1672 = vld [vmem:[#allocation2 + $0xa8] sm:$0xe]
      %v1673 = vld [vmem:[#allocation2 + $0xac] sm:$0xf]
      %v1674 = vld [vmem:[#allocation2 + $0xb0] sm:$0x1]
      %v1675 = vld [vmem:[#allocation2 + $0xb4] sm:$0xe]
      %v1676 = vld [vmem:[#allocation2 + $0xb8] sm:$0xf]
      %v1677 = vld [vmem:[#allocation2 + $0xbc] sm:$0x1]
      %vm1726 = vcmask 1042432
      %vm1727 = vcmask 1046532
      %vm1728 = vmor %vm1726, %vm1727
      %v1729 = vrot.slane %v1630, 5
      %v1730 = vrot.slane %v1729, 4
      %v1731 = vrot.slane %v1631, 5
      %v1732 = vsel %vm1728, %v1730, %v1731
      %v1733 = vrot.slane %v1731, 4
      %v1734 = vrot.slane %v1632, 5
      %v1735 = vsel %vm1728, %v1733, %v1734
      %v1736 = vrot.slane %v1633, 5
      %v1737 = vrot.slane %v1736, 4
      %v1738 = vrot.slane %v1634, 5
      %v1739 = vsel %vm1728, %v1737, %v1738
      %v1740 = vrot.slane %v1738, 4
      %v1741 = vrot.slane %v1635, 5
      %v1742 = vsel %vm1728, %v1740, %v1741
      %v1743 = vrot.slane %v1636, 5
      %v1744 = vrot.slane %v1743, 4
      %v1745 = vrot.slane %v1637, 5
      %v1746 = vsel %vm1728, %v1744, %v1745
      %v1747 = vrot.slane %v1745, 4
      %v1748 = vrot.slane %v1638, 5
      %v1749 = vsel %vm1728, %v1747, %v1748
      %v1750 = vrot.slane %v1639, 5
      %v1751 = vrot.slane %v1750, 4
      %v1752 = vrot.slane %v1640, 5
      %v1753 = vsel %vm1728, %v1751, %v1752
      %v1754 = vrot.slane %v1752, 4
      %v1755 = vrot.slane %v1641, 5
      %v1756 = vsel %vm1728, %v1754, %v1755
      %v1757 = vrot.slane %v1642, 5
      %v1758 = vrot.slane %v1757, 4
      %v1759 = vrot.slane %v1643, 5
      %v1760 = vsel %vm1728, %v1758, %v1759
      %v1761 = vrot.slane %v1759, 4
      %v1762 = vrot.slane %v1644, 5
      %v1763 = vsel %vm1728, %v1761, %v1762
      %v1764 = vrot.slane %v1645, 5
      %v1765 = vrot.slane %v1764, 4
      %v1766 = vrot.slane %v1646, 5
      %v1767 = vsel %vm1728, %v1765, %v1766
      %v1768 = vrot.slane %v1766, 4
      %v1769 = vrot.slane %v1647, 5
      %v1770 = vsel %vm1728, %v1768, %v1769
      %v1771 = vrot.slane %v1648, 5
      %v1772 = vrot.slane %v1771, 4
      %v1773 = vrot.slane %v1649, 5
      %v1774 = vsel %vm1728, %v1772, %v1773
      %v1775 = vrot.slane %v1773, 4
      %v1776 = vrot.slane %v1650, 5
      %v1777 = vsel %vm1728, %v1775, %v1776
      %v1778 = vrot.slane %v1651, 5
      %v1779 = vrot.slane %v1778, 4
      %v1780 = vrot.slane %v1652, 5
      %v1781 = vsel %vm1728, %v1779, %v1780
      %v1782 = vrot.slane %v1780, 4
      %v1783 = vrot.slane %v1653, 5
      %v1784 = vsel %vm1728, %v1782, %v1783
      %v1785 = vrot.slane %v1654, 5
      %v1786 = vrot.slane %v1785, 4
      %v1787 = vrot.slane %v1655, 5
      %v1788 = vsel %vm1728, %v1786, %v1787
      %v1789 = vrot.slane %v1787, 4
      %v1790 = vrot.slane %v1656, 5
      %v1791 = vsel %vm1728, %v1789, %v1790
      %v1792 = vrot.slane %v1657, 5
      %v1793 = vrot.slane %v1792, 4
      %v1794 = vrot.slane %v1658, 5
      %v1795 = vsel %vm1728, %v1793, %v1794
      %v1796 = vrot.slane %v1794, 4
      %v1797 = vrot.slane %v1659, 5
      %v1798 = vsel %vm1728, %v1796, %v1797
      %v1799 = vrot.slane %v1660, 5
      %v1800 = vrot.slane %v1799, 4
      %v1801 = vrot.slane %v1661, 5
      %v1802 = vsel %vm1728, %v1800, %v1801
      %v1803 = vrot.slane %v1801, 4
      %v1804 = vrot.slane %v1662, 5
      %v1805 = vsel %vm1728, %v1803, %v1804
      %v1806 = vrot.slane %v1663, 5
      %v1807 = vrot.slane %v1806, 4
      %v1808 = vrot.slane %v1664, 5
      %v1809 = vsel %vm1728, %v1807, %v1808
      %v1810 = vrot.slane %v1808, 4
      %v1811 = vrot.slane %v1665, 5
      %v1812 = vsel %vm1728, %v1810, %v1811
      %v1813 = vrot.slane %v1666, 5
      %v1814 = vrot.slane %v1813, 4
      %v1815 = vrot.slane %v1667, 5
      %v1816 = vsel %vm1728, %v1814, %v1815
      %v1817 = vrot.slane %v1815, 4
      %v1818 = vrot.slane %v1668, 5
      %v1819 = vsel %vm1728, %v1817, %v1818
      %v1820 = vrot.slane %v1669, 5
      %v1821 = vrot.slane %v1820, 4
      %v1822 = vrot.slane %v1670, 5
      %v1823 = vsel %vm1728, %v1821, %v1822
      %v1824 = vrot.slane %v1822, 4
      %v1825 = vrot.slane %v1671, 5
      %v1826 = vsel %vm1728, %v1824, %v1825
      %v1827 = vrot.slane %v1672, 5
      %v1828 = vrot.slane %v1827, 4
      %v1829 = vrot.slane %v1673, 5
      %v1830 = vsel %vm1728, %v1828, %v1829
      %v1831 = vrot.slane %v1829, 4
      %v1832 = vrot.slane %v1674, 5
      %v1833 = vsel %vm1728, %v1831, %v1832
      %v1834 = vrot.slane %v1675, 5
      %v1835 = vrot.slane %v1834, 4
      %v1836 = vrot.slane %v1676, 5
      %v1837 = vsel %vm1728, %v1835, %v1836
      %v1838 = vrot.slane %v1836, 4
      %v1839 = vrot.slane %v1677, 5
      %v1840 = vsel %vm1728, %v1838, %v1839
      %v1841 = vunpack.c.l.b16 %v1732
      %v1842 = vunpack.c.l.b16 %v1735
      %v1843 = vunpack.c.l.b16 %v1739
      %v1844 = vunpack.c.l.b16 %v1742
      %v1845 = vunpack.c.l.b16 %v1746
      %v1846 = vunpack.c.l.b16 %v1749
      %v1847 = vunpack.c.l.b16 %v1753
      %v1848 = vunpack.c.l.b16 %v1756
      %v1849 = vunpack.c.l.b16 %v1760
      %v1850 = vunpack.c.l.b16 %v1763
      %v1851 = vunpack.c.l.b16 %v1767
      %v1852 = vunpack.c.l.b16 %v1770
      %v1853 = vunpack.c.l.b16 %v1774
      %v1854 = vunpack.c.l.b16 %v1777
      %v1855 = vunpack.c.l.b16 %v1781
      %v1856 = vunpack.c.l.b16 %v1784
      %v1857 = vunpack.c.l.b16 %v1788
      %v1858 = vunpack.c.l.b16 %v1791
      %v1859 = vunpack.c.l.b16 %v1795
      %v1860 = vunpack.c.l.b16 %v1798
      %v1861 = vunpack.c.l.b16 %v1802
      %v1862 = vunpack.c.l.b16 %v1805
      %v1863 = vunpack.c.l.b16 %v1809
      %v1864 = vunpack.c.l.b16 %v1812
      %v1865 = vunpack.c.l.b16 %v1816
      %v1866 = vunpack.c.l.b16 %v1819
      %v1867 = vunpack.c.l.b16 %v1823
      %v1868 = vunpack.c.l.b16 %v1826
      %v1869 = vunpack.c.l.b16 %v1830
      %v1870 = vunpack.c.l.b16 %v1833
      %v1871 = vunpack.c.l.b16 %v1837
      %v1872 = vunpack.c.l.b16 %v1840
      %v1873 = vpack.c.b16 %v1842, %v1841
      %v1874 = vpack.c.b16 %v1844, %v1843
      %v1875 = vpack.c.b16 %v1846, %v1845
      %v1876 = vpack.c.b16 %v1848, %v1847
      %v1877 = vpack.c.b16 %v1850, %v1849
      %v1878 = vpack.c.b16 %v1852, %v1851
      %v1879 = vpack.c.b16 %v1854, %v1853
      %v1880 = vpack.c.b16 %v1856, %v1855
      %v1881 = vpack.c.b16 %v1858, %v1857
      %v1882 = vpack.c.b16 %v1860, %v1859
      %v1883 = vpack.c.b16 %v1862, %v1861
      %v1884 = vpack.c.b16 %v1864, %v1863
      %v1885 = vpack.c.b16 %v1866, %v1865
      %v1886 = vpack.c.b16 %v1868, %v1867
      %v1887 = vpack.c.b16 %v1870, %v1869
      %v1888 = vpack.c.b16 %v1872, %v1871
      %1889 = vrot.lane.b32.xlu0 %v1873, 8
      %v1890 = vpop.permute.xlu0 %1889
      %1891 = vrot.lane.b32.xlu0 %v1874, 8
      %v1892 = vpop.permute.xlu0 %1891
      %1893 = vrot.lane.b32.xlu0 %v1875, 8
      %v1894 = vpop.permute.xlu0 %1893
      %1895 = vrot.lane.b32.xlu0 %v1876, 8
      %v1896 = vpop.permute.xlu0 %1895
      %1897 = vrot.lane.b32.xlu0 %v1877, 8
      %v1898 = vpop.permute.xlu0 %1897
      %1899 = vrot.lane.b32.xlu0 %v1878, 8
      %v1900 = vpop.permute.xlu0 %1899
      %1901 = vrot.lane.b32.xlu0 %v1879, 8
      %v1902 = vpop.permute.xlu0 %1901
      %1903 = vrot.lane.b32.xlu0 %v1880, 8
      %v1904 = vpop.permute.xlu0 %1903
      %1905 = vrot.lane.b32.xlu0 %v1881, 8
      %v1906 = vpop.permute.xlu0 %1905
      %1907 = vrot.lane.b32.xlu0 %v1882, 8
      %v1908 = vpop.permute.xlu0 %1907
      %1909 = vrot.lane.b32.xlu0 %v1883, 8
      %v1910 = vpop.permute.xlu0 %1909
      %1911 = vrot.lane.b32.xlu0 %v1884, 8
      %v1912 = vpop.permute.xlu0 %1911
      %1913 = vrot.lane.b32.xlu0 %v1885, 8
      %v1914 = vpop.permute.xlu0 %1913
      %1915 = vrot.lane.b32.xlu0 %v1886, 8
      %v1916 = vpop.permute.xlu0 %1915
      %1917 = vrot.lane.b32.xlu0 %v1887, 8
      %v1918 = vpop.permute.xlu0 %1917
      %1919 = vrot.lane.b32.xlu0 %v1888, 8
      %v1920 = vpop.permute.xlu0 %1919
      %vm1937 = vcmask 97344
      %1938 = vst.msk [vmem:[#allocation4] sm:$0xff] %vm1937, %v1890
      %1939 = vst.msk [vmem:[#allocation4 + $0x8] sm:$0xff] %vm1937, %v1892
      %1940 = vst.msk [vmem:[#allocation4 + $0x10] sm:$0xff] %vm1937, %v1894
      %1941 = vst.msk [vmem:[#allocation4 + $0x18] sm:$0xff] %vm1937, %v1896
      %1942 = vst.msk [vmem:[#allocation4 + $0x20] sm:$0xff] %vm1937, %v1898
      %1943 = vst.msk [vmem:[#allocation4 + $0x28] sm:$0xff] %vm1937, %v1900
      %1944 = vst.msk [vmem:[#allocation4 + $0x30] sm:$0xff] %vm1937, %v1902
      %1945 = vst.msk [vmem:[#allocation4 + $0x38] sm:$0xff] %vm1937, %v1904
      %1946 = vst.msk [vmem:[#allocation4 + $0x40] sm:$0xff] %vm1937, %v1906
      %1947 = vst.msk [vmem:[#allocation4 + $0x48] sm:$0xff] %vm1937, %v1908
      %1948 = vst.msk [vmem:[#allocation4 + $0x50] sm:$0xff] %vm1937, %v1910
      %1949 = vst.msk [vmem:[#allocation4 + $0x58] sm:$0xff] %vm1937, %v1912
      %1950 = vst.msk [vmem:[#allocation4 + $0x60] sm:$0xff] %vm1937, %v1914
      %1951 = vst.msk [vmem:[#allocation4 + $0x68] sm:$0xff] %vm1937, %v1916
      %1952 = vst.msk [vmem:[#allocation4 + $0x70] sm:$0xff] %vm1937, %v1918
      %1953 = vst.msk [vmem:[#allocation4 + $0x78] sm:$0xff] %vm1937, %v1920
      %v1954 = vld [vmem:[%s822] sm:$0xf]
      %v1955 = vld [vmem:[%s822 + $0x4] sm:$0xf]
      %v1956 = vld [vmem:[%s822 + $0xc] sm:$0xf]
      %v1957 = vld [vmem:[%s822 + $0x10] sm:$0xf]
      %v1958 = vld [vmem:[%s822 + $0x18] sm:$0xf]
      %v1959 = vld [vmem:[%s822 + $0x1c] sm:$0xf]
      %v1960 = vld [vmem:[%s822 + $0x24] sm:$0xf]
      %v1961 = vld [vmem:[%s822 + $0x28] sm:$0xf]
      %v1962 = vld [vmem:[%s822 + $0x30] sm:$0xf]
      %v1963 = vld [vmem:[%s822 + $0x34] sm:$0xf]
      %v1964 = vld [vmem:[%s822 + $0x3c] sm:$0xf]
      %v1965 = vld [vmem:[%s822 + $0x40] sm:$0xf]
      %v1966 = vld [vmem:[%s822 + $0x48] sm:$0xf]
      %v1967 = vld [vmem:[%s822 + $0x4c] sm:$0xf]
      %v1968 = vld [vmem:[%s822 + $0x54] sm:$0xf]
      %v1969 = vld [vmem:[%s822 + $0x58] sm:$0xf]
      %v1970 = vld [vmem:[%s822 + $0x60] sm:$0xf]
      %v1971 = vld [vmem:[%s822 + $0x64] sm:$0xf]
      %v1972 = vld [vmem:[%s822 + $0x6c] sm:$0xf]
      %v1973 = vld [vmem:[%s822 + $0x70] sm:$0xf]
      %v1974 = vld [vmem:[%s822 + $0x78] sm:$0xf]
      %v1975 = vld [vmem:[%s822 + $0x7c] sm:$0xf]
      %v1976 = vld [vmem:[%s822 + $0x84] sm:$0xf]
      %v1977 = vld [vmem:[%s822 + $0x88] sm:$0xf]
      %v1978 = vld [vmem:[%s822 + $0x90] sm:$0xf]
      %v1979 = vld [vmem:[%s822 + $0x94] sm:$0xf]
      %v1980 = vld [vmem:[%s822 + $0x9c] sm:$0xf]
      %v1981 = vld [vmem:[%s822 + $0xa0] sm:$0xf]
      %v1982 = vld [vmem:[%s822 + $0xa8] sm:$0xf]
      %v1983 = vld [vmem:[%s822 + $0xac] sm:$0xf]
      %v1984 = vld [vmem:[%s822 + $0xb4] sm:$0xf]
      %v1985 = vld [vmem:[%s822 + $0xb8] sm:$0xf]
      %v2018 = vunpack.c.l.b16 %v1954
      %v2019 = vunpack.c.l.b16 %v1955
      %v2020 = vunpack.c.l.b16 %v1956
      %v2021 = vunpack.c.l.b16 %v1957
      %v2022 = vunpack.c.l.b16 %v1958
      %v2023 = vunpack.c.l.b16 %v1959
      %v2024 = vunpack.c.l.b16 %v1960
      %v2025 = vunpack.c.l.b16 %v1961
      %v2026 = vunpack.c.l.b16 %v1962
      %v2027 = vunpack.c.l.b16 %v1963
      %v2028 = vunpack.c.l.b16 %v1964
      %v2029 = vunpack.c.l.b16 %v1965
      %v2030 = vunpack.c.l.b16 %v1966
      %v2031 = vunpack.c.l.b16 %v1967
      %v2032 = vunpack.c.l.b16 %v1968
      %v2033 = vunpack.c.l.b16 %v1969
      %v2034 = vunpack.c.l.b16 %v1970
      %v2035 = vunpack.c.l.b16 %v1971
      %v2036 = vunpack.c.l.b16 %v1972
      %v2037 = vunpack.c.l.b16 %v1973
      %v2038 = vunpack.c.l.b16 %v1974
      %v2039 = vunpack.c.l.b16 %v1975
      %v2040 = vunpack.c.l.b16 %v1976
      %v2041 = vunpack.c.l.b16 %v1977
      %v2042 = vunpack.c.l.b16 %v1978
      %v2043 = vunpack.c.l.b16 %v1979
      %v2044 = vunpack.c.l.b16 %v1980
      %v2045 = vunpack.c.l.b16 %v1981
      %v2046 = vunpack.c.l.b16 %v1982
      %v2047 = vunpack.c.l.b16 %v1983
      %v2048 = vunpack.c.l.b16 %v1984
      %v2049 = vunpack.c.l.b16 %v1985
      %v2050 = vpack.c.b16 %v2019, %v2018
      %v2051 = vpack.c.b16 %v2021, %v2020
      %v2052 = vpack.c.b16 %v2023, %v2022
      %v2053 = vpack.c.b16 %v2025, %v2024
      %v2054 = vpack.c.b16 %v2027, %v2026
      %v2055 = vpack.c.b16 %v2029, %v2028
      %v2056 = vpack.c.b16 %v2031, %v2030
      %v2057 = vpack.c.b16 %v2033, %v2032
      %v2058 = vpack.c.b16 %v2035, %v2034
      %v2059 = vpack.c.b16 %v2037, %v2036
      %v2060 = vpack.c.b16 %v2039, %v2038
      %v2061 = vpack.c.b16 %v2041, %v2040
      %v2062 = vpack.c.b16 %v2043, %v2042
      %v2063 = vpack.c.b16 %v2045, %v2044
      %v2064 = vpack.c.b16 %v2047, %v2046
      %v2065 = vpack.c.b16 %v2049, %v2048
      %2066 = vrot.lane.b32.xlu0 %v2050, 12
      %v2067 = vpop.permute.xlu0 %2066
      %2068 = vrot.lane.b32.xlu0 %v2051, 12
      %v2069 = vpop.permute.xlu0 %2068
      %2070 = vrot.lane.b32.xlu0 %v2052, 12
      %v2071 = vpop.permute.xlu0 %2070
      %2072 = vrot.lane.b32.xlu0 %v2053, 12
      %v2073 = vpop.permute.xlu0 %2072
      %2074 = vrot.lane.b32.xlu0 %v2054, 12
      %v2075 = vpop.permute.xlu0 %2074
      %2076 = vrot.lane.b32.xlu0 %v2055, 12
      %v2077 = vpop.permute.xlu0 %2076
      %2078 = vrot.lane.b32.xlu0 %v2056, 12
      %v2079 = vpop.permute.xlu0 %2078
      %2080 = vrot.lane.b32.xlu0 %v2057, 12
      %v2081 = vpop.permute.xlu0 %2080
      %2082 = vrot.lane.b32.xlu0 %v2058, 12
      %v2083 = vpop.permute.xlu0 %2082
      %2084 = vrot.lane.b32.xlu0 %v2059, 12
      %v2085 = vpop.permute.xlu0 %2084
      %2086 = vrot.lane.b32.xlu0 %v2060, 12
      %v2087 = vpop.permute.xlu0 %2086
      %2088 = vrot.lane.b32.xlu0 %v2061, 12
      %v2089 = vpop.permute.xlu0 %2088
      %2090 = vrot.lane.b32.xlu0 %v2062, 12
      %v2091 = vpop.permute.xlu0 %2090
      %2092 = vrot.lane.b32.xlu0 %v2063, 12
      %v2093 = vpop.permute.xlu0 %2092
      %2094 = vrot.lane.b32.xlu0 %v2064, 12
      %v2095 = vpop.permute.xlu0 %2094
      %2096 = vrot.lane.b32.xlu0 %v2065, 12
      %v2097 = vpop.permute.xlu0 %2096
      %vm2114 = vcmask 130144
      %2115 = vst.msk [vmem:[#allocation4] sm:$0xff] %vm2114, %v2067
      %2116 = vst.msk [vmem:[#allocation4 + $0x8] sm:$0xff] %vm2114, %v2069
      %2117 = vst.msk [vmem:[#allocation4 + $0x10] sm:$0xff] %vm2114, %v2071
      %2118 = vst.msk [vmem:[#allocation4 + $0x18] sm:$0xff] %vm2114, %v2073
      %2119 = vst.msk [vmem:[#allocation4 + $0x20] sm:$0xff] %vm2114, %v2075
      %2120 = vst.msk [vmem:[#allocation4 + $0x28] sm:$0xff] %vm2114, %v2077
      %2121 = vst.msk [vmem:[#allocation4 + $0x30] sm:$0xff] %vm2114, %v2079
      %2122 = vst.msk [vmem:[#allocation4 + $0x38] sm:$0xff] %vm2114, %v2081
      %2123 = vst.msk [vmem:[#allocation4 + $0x40] sm:$0xff] %vm2114, %v2083
      %2124 = vst.msk [vmem:[#allocation4 + $0x48] sm:$0xff] %vm2114, %v2085
      %2125 = vst.msk [vmem:[#allocation4 + $0x50] sm:$0xff] %vm2114, %v2087
      %2126 = vst.msk [vmem:[#allocation4 + $0x58] sm:$0xff] %vm2114, %v2089
      %2127 = vst.msk [vmem:[#allocation4 + $0x60] sm:$0xff] %vm2114, %v2091
      %2128 = vst.msk [vmem:[#allocation4 + $0x68] sm:$0xff] %vm2114, %v2093
      %2129 = vst.msk [vmem:[#allocation4 + $0x70] sm:$0xff] %vm2114, %v2095
      %2130 = vst.msk [vmem:[#allocation4 + $0x78] sm:$0xff] %vm2114, %v2097
      %v2131 = vld [vmem:[%s822] sm:$0xf]
      %v2132 = vld [vmem:[%s822 + $0x4] sm:$0xf]
      %v2133 = vld [vmem:[%s822 + $0x8] sm:$0x1]
      %v2134 = vld [vmem:[%s822 + $0xc] sm:$0xf]
      %v2135 = vld [vmem:[%s822 + $0x10] sm:$0xf]
      %v2136 = vld [vmem:[%s822 + $0x14] sm:$0x1]
      %v2137 = vld [vmem:[%s822 + $0x18] sm:$0xf]
      %v2138 = vld [vmem:[%s822 + $0x1c] sm:$0xf]
      %v2139 = vld [vmem:[%s822 + $0x20] sm:$0x1]
      %v2140 = vld [vmem:[%s822 + $0x24] sm:$0xf]
      %v2141 = vld [vmem:[%s822 + $0x28] sm:$0xf]
      %v2142 = vld [vmem:[%s822 + $0x2c] sm:$0x1]
      %v2143 = vld [vmem:[%s822 + $0x30] sm:$0xf]
      %v2144 = vld [vmem:[%s822 + $0x34] sm:$0xf]
      %v2145 = vld [vmem:[%s822 + $0x38] sm:$0x1]
      %v2146 = vld [vmem:[%s822 + $0x3c] sm:$0xf]
      %v2147 = vld [vmem:[%s822 + $0x40] sm:$0xf]
      %v2148 = vld [vmem:[%s822 + $0x44] sm:$0x1]
      %v2149 = vld [vmem:[%s822 + $0x48] sm:$0xf]
      %v2150 = vld [vmem:[%s822 + $0x4c] sm:$0xf]
      %v2151 = vld [vmem:[%s822 + $0x50] sm:$0x1]
      %v2152 = vld [vmem:[%s822 + $0x54] sm:$0xf]
      %v2153 = vld [vmem:[%s822 + $0x58] sm:$0xf]
      %v2154 = vld [vmem:[%s822 + $0x5c] sm:$0x1]
      %v2155 = vld [vmem:[%s822 + $0x60] sm:$0xf]
      %v2156 = vld [vmem:[%s822 + $0x64] sm:$0xf]
      %v2157 = vld [vmem:[%s822 + $0x68] sm:$0x1]
      %v2158 = vld [vmem:[%s822 + $0x6c] sm:$0xf]
      %v2159 = vld [vmem:[%s822 + $0x70] sm:$0xf]
      %v2160 = vld [vmem:[%s822 + $0x74] sm:$0x1]
      %v2161 = vld [vmem:[%s822 + $0x78] sm:$0xf]
      %v2162 = vld [vmem:[%s822 + $0x7c] sm:$0xf]
      %v2163 = vld [vmem:[%s822 + $0x80] sm:$0x1]
      %v2164 = vld [vmem:[%s822 + $0x84] sm:$0xf]
      %v2165 = vld [vmem:[%s822 + $0x88] sm:$0xf]
      %v2166 = vld [vmem:[%s822 + $0x8c] sm:$0x1]
      %v2167 = vld [vmem:[%s822 + $0x90] sm:$0xf]
      %v2168 = vld [vmem:[%s822 + $0x94] sm:$0xf]
      %v2169 = vld [vmem:[%s822 + $0x98] sm:$0x1]
      %v2170 = vld [vmem:[%s822 + $0x9c] sm:$0xf]
      %v2171 = vld [vmem:[%s822 + $0xa0] sm:$0xf]
      %v2172 = vld [vmem:[%s822 + $0xa4] sm:$0x1]
      %v2173 = vld [vmem:[%s822 + $0xa8] sm:$0xf]
      %v2174 = vld [vmem:[%s822 + $0xac] sm:$0xf]
      %v2175 = vld [vmem:[%s822 + $0xb0] sm:$0x1]
      %v2176 = vld [vmem:[%s822 + $0xb4] sm:$0xf]
      %v2177 = vld [vmem:[%s822 + $0xb8] sm:$0xf]
      %v2178 = vld [vmem:[%s822 + $0xbc] sm:$0x1]
      %v2180 = vshrl.u32 %v2131, 16
      %v2182 = vrot.slane %v2180, 4
      %v2183 = vshll.u32 %v2131, 16
      %v2185 = vrot.slane %v2183, 5
      %v2186 = vor.u32 %v2182, %v2185
      %v2187 = vrot.slane %v2186, 4
      %v2189 = vshll.u32 %v2132, 16
      %v2191 = vrot.slane %v2189, 5
      %v2192 = vsel %vm1132, %v2187, %v2191
      %v2193 = vshrl.u32 %v2132, 16
      %v2195 = vrot.slane %v2193, 4
      %v2196 = vor.u32 %v2195, %v2191
      %v2197 = vrot.slane %v2196, 4
      %v2199 = vshll.u32 %v2133, 16
      %v2201 = vrot.slane %v2199, 5
      %v2202 = vsel %vm1132, %v2197, %v2201
      %v2204 = vshrl.u32 %v2134, 16
      %v2206 = vrot.slane %v2204, 4
      %v2207 = vshll.u32 %v2134, 16
      %v2209 = vrot.slane %v2207, 5
      %v2210 = vor.u32 %v2206, %v2209
      %v2211 = vrot.slane %v2210, 4
      %v2213 = vshll.u32 %v2135, 16
      %v2215 = vrot.slane %v2213, 5
      %v2216 = vsel %vm1132, %v2211, %v2215
      %v2217 = vshrl.u32 %v2135, 16
      %v2219 = vrot.slane %v2217, 4
      %v2220 = vor.u32 %v2219, %v2215
      %v2221 = vrot.slane %v2220, 4
      %v2223 = vshll.u32 %v2136, 16
      %v2225 = vrot.slane %v2223, 5
      %v2226 = vsel %vm1132, %v2221, %v2225
      %v2228 = vshrl.u32 %v2137, 16
      %v2230 = vrot.slane %v2228, 4
      %v2231 = vshll.u32 %v2137, 16
      %v2233 = vrot.slane %v2231, 5
      %v2234 = vor.u32 %v2230, %v2233
      %v2235 = vrot.slane %v2234, 4
      %v2237 = vshll.u32 %v2138, 16
      %v2239 = vrot.slane %v2237, 5
      %v2240 = vsel %vm1132, %v2235, %v2239
      %v2241 = vshrl.u32 %v2138, 16
      %v2243 = vrot.slane %v2241, 4
      %v2244 = vor.u32 %v2243, %v2239
      %v2245 = vrot.slane %v2244, 4
      %v2247 = vshll.u32 %v2139, 16
      %v2249 = vrot.slane %v2247, 5
      %v2250 = vsel %vm1132, %v2245, %v2249
      %v2252 = vshrl.u32 %v2140, 16
      %v2254 = vrot.slane %v2252, 4
      %v2255 = vshll.u32 %v2140, 16
      %v2257 = vrot.slane %v2255, 5
      %v2258 = vor.u32 %v2254, %v2257
      %v2259 = vrot.slane %v2258, 4
      %v2261 = vshll.u32 %v2141, 16
      %v2263 = vrot.slane %v2261, 5
      %v2264 = vsel %vm1132, %v2259, %v2263
      %v2265 = vshrl.u32 %v2141, 16
      %v2267 = vrot.slane %v2265, 4
      %v2268 = vor.u32 %v2267, %v2263
      %v2269 = vrot.slane %v2268, 4
      %v2271 = vshll.u32 %v2142, 16
      %v2273 = vrot.slane %v2271, 5
      %v2274 = vsel %vm1132, %v2269, %v2273
      %v2276 = vshrl.u32 %v2143, 16
      %v2278 = vrot.slane %v2276, 4
      %v2279 = vshll.u32 %v2143, 16
      %v2281 = vrot.slane %v2279, 5
      %v2282 = vor.u32 %v2278, %v2281
      %v2283 = vrot.slane %v2282, 4
      %v2285 = vshll.u32 %v2144, 16
      %v2287 = vrot.slane %v2285, 5
      %v2288 = vsel %vm1132, %v2283, %v2287
      %v2289 = vshrl.u32 %v2144, 16
      %v2291 = vrot.slane %v2289, 4
      %v2292 = vor.u32 %v2291, %v2287
      %v2293 = vrot.slane %v2292, 4
      %v2295 = vshll.u32 %v2145, 16
      %v2297 = vrot.slane %v2295, 5
      %v2298 = vsel %vm1132, %v2293, %v2297
      %v2300 = vshrl.u32 %v2146, 16
      %v2302 = vrot.slane %v2300, 4
      %v2303 = vshll.u32 %v2146, 16
      %v2305 = vrot.slane %v2303, 5
      %v2306 = vor.u32 %v2302, %v2305
      %v2307 = vrot.slane %v2306, 4
      %v2309 = vshll.u32 %v2147, 16
      %v2311 = vrot.slane %v2309, 5
      %v2312 = vsel %vm1132, %v2307, %v2311
      %v2313 = vshrl.u32 %v2147, 16
      %v2315 = vrot.slane %v2313, 4
      %v2316 = vor.u32 %v2315, %v2311
      %v2317 = vrot.slane %v2316, 4
      %v2319 = vshll.u32 %v2148, 16
      %v2321 = vrot.slane %v2319, 5
      %v2322 = vsel %vm1132, %v2317, %v2321
      %v2324 = vshrl.u32 %v2149, 16
      %v2326 = vrot.slane %v2324, 4
      %v2327 = vshll.u32 %v2149, 16
      %v2329 = vrot.slane %v2327, 5
      %v2330 = vor.u32 %v2326, %v2329
      %v2331 = vrot.slane %v2330, 4
      %v2333 = vshll.u32 %v2150, 16
      %v2335 = vrot.slane %v2333, 5
      %v2336 = vsel %vm1132, %v2331, %v2335
      %v2337 = vshrl.u32 %v2150, 16
      %v2339 = vrot.slane %v2337, 4
      %v2340 = vor.u32 %v2339, %v2335
      %v2341 = vrot.slane %v2340, 4
      %v2343 = vshll.u32 %v2151, 16
      %v2345 = vrot.slane %v2343, 5
      %v2346 = vsel %vm1132, %v2341, %v2345
      %v2348 = vshrl.u32 %v2152, 16
      %v2350 = vrot.slane %v2348, 4
      %v2351 = vshll.u32 %v2152, 16
      %v2353 = vrot.slane %v2351, 5
      %v2354 = vor.u32 %v2350, %v2353
      %v2355 = vrot.slane %v2354, 4
      %v2357 = vshll.u32 %v2153, 16
      %v2359 = vrot.slane %v2357, 5
      %v2360 = vsel %vm1132, %v2355, %v2359
      %v2361 = vshrl.u32 %v2153, 16
      %v2363 = vrot.slane %v2361, 4
      %v2364 = vor.u32 %v2363, %v2359
      %v2365 = vrot.slane %v2364, 4
      %v2367 = vshll.u32 %v2154, 16
      %v2369 = vrot.slane %v2367, 5
      %v2370 = vsel %vm1132, %v2365, %v2369
      %v2372 = vshrl.u32 %v2155, 16
      %v2374 = vrot.slane %v2372, 4
      %v2375 = vshll.u32 %v2155, 16
      %v2377 = vrot.slane %v2375, 5
      %v2378 = vor.u32 %v2374, %v2377
      %v2379 = vrot.slane %v2378, 4
      %v2381 = vshll.u32 %v2156, 16
      %v2383 = vrot.slane %v2381, 5
      %v2384 = vsel %vm1132, %v2379, %v2383
      %v2385 = vshrl.u32 %v2156, 16
      %v2387 = vrot.slane %v2385, 4
      %v2388 = vor.u32 %v2387, %v2383
      %v2389 = vrot.slane %v2388, 4
      %v2391 = vshll.u32 %v2157, 16
      %v2393 = vrot.slane %v2391, 5
      %v2394 = vsel %vm1132, %v2389, %v2393
      %v2396 = vshrl.u32 %v2158, 16
      %v2398 = vrot.slane %v2396, 4
      %v2399 = vshll.u32 %v2158, 16
      %v2401 = vrot.slane %v2399, 5
      %v2402 = vor.u32 %v2398, %v2401
      %v2403 = vrot.slane %v2402, 4
      %v2405 = vshll.u32 %v2159, 16
      %v2407 = vrot.slane %v2405, 5
      %v2408 = vsel %vm1132, %v2403, %v2407
      %v2409 = vshrl.u32 %v2159, 16
      %v2411 = vrot.slane %v2409, 4
      %v2412 = vor.u32 %v2411, %v2407
      %v2413 = vrot.slane %v2412, 4
      %v2415 = vshll.u32 %v2160, 16
      %v2417 = vrot.slane %v2415, 5
      %v2418 = vsel %vm1132, %v2413, %v2417
      %v2420 = vshrl.u32 %v2161, 16
      %v2422 = vrot.slane %v2420, 4
      %v2423 = vshll.u32 %v2161, 16
      %v2425 = vrot.slane %v2423, 5
      %v2426 = vor.u32 %v2422, %v2425
      %v2427 = vrot.slane %v2426, 4
      %v2429 = vshll.u32 %v2162, 16
      %v2431 = vrot.slane %v2429, 5
      %v2432 = vsel %vm1132, %v2427, %v2431
      %v2433 = vshrl.u32 %v2162, 16
      %v2435 = vrot.slane %v2433, 4
      %v2436 = vor.u32 %v2435, %v2431
      %v2437 = vrot.slane %v2436, 4
      %v2439 = vshll.u32 %v2163, 16
      %v2441 = vrot.slane %v2439, 5
      %v2442 = vsel %vm1132, %v2437, %v2441
      %v2444 = vshrl.u32 %v2164, 16
      %v2446 = vrot.slane %v2444, 4
      %v2447 = vshll.u32 %v2164, 16
      %v2449 = vrot.slane %v2447, 5
      %v2450 = vor.u32 %v2446, %v2449
      %v2451 = vrot.slane %v2450, 4
      %v2453 = vshll.u32 %v2165, 16
      %v2455 = vrot.slane %v2453, 5
      %v2456 = vsel %vm1132, %v2451, %v2455
      %v2457 = vshrl.u32 %v2165, 16
      %v2459 = vrot.slane %v2457, 4
      %v2460 = vor.u32 %v2459, %v2455
      %v2461 = vrot.slane %v2460, 4
      %v2463 = vshll.u32 %v2166, 16
      %v2465 = vrot.slane %v2463, 5
      %v2466 = vsel %vm1132, %v2461, %v2465
      %v2468 = vshrl.u32 %v2167, 16
      %v2470 = vrot.slane %v2468, 4
      %v2471 = vshll.u32 %v2167, 16
      %v2473 = vrot.slane %v2471, 5
      %v2474 = vor.u32 %v2470, %v2473
      %v2475 = vrot.slane %v2474, 4
      %v2477 = vshll.u32 %v2168, 16
      %v2479 = vrot.slane %v2477, 5
      %v2480 = vsel %vm1132, %v2475, %v2479
      %v2481 = vshrl.u32 %v2168, 16
      %v2483 = vrot.slane %v2481, 4
      %v2484 = vor.u32 %v2483, %v2479
      %v2485 = vrot.slane %v2484, 4
      %v2487 = vshll.u32 %v2169, 16
      %v2489 = vrot.slane %v2487, 5
      %v2490 = vsel %vm1132, %v2485, %v2489
      %v2492 = vshrl.u32 %v2170, 16
      %v2494 = vrot.slane %v2492, 4
      %v2495 = vshll.u32 %v2170, 16
      %v2497 = vrot.slane %v2495, 5
      %v2498 = vor.u32 %v2494, %v2497
      %v2499 = vrot.slane %v2498, 4
      %v2501 = vshll.u32 %v2171, 16
      %v2503 = vrot.slane %v2501, 5
      %v2504 = vsel %vm1132, %v2499, %v2503
      %v2505 = vshrl.u32 %v2171, 16
      %v2507 = vrot.slane %v2505, 4
      %v2508 = vor.u32 %v2507, %v2503
      %v2509 = vrot.slane %v2508, 4
      %v2511 = vshll.u32 %v2172, 16
      %v2513 = vrot.slane %v2511, 5
      %v2514 = vsel %vm1132, %v2509, %v2513
      %v2516 = vshrl.u32 %v2173, 16
      %v2518 = vrot.slane %v2516, 4
      %v2519 = vshll.u32 %v2173, 16
      %v2521 = vrot.slane %v2519, 5
      %v2522 = vor.u32 %v2518, %v2521
      %v2523 = vrot.slane %v2522, 4
      %v2525 = vshll.u32 %v2174, 16
      %v2527 = vrot.slane %v2525, 5
      %v2528 = vsel %vm1132, %v2523, %v2527
      %v2529 = vshrl.u32 %v2174, 16
      %v2531 = vrot.slane %v2529, 4
      %v2532 = vor.u32 %v2531, %v2527
      %v2533 = vrot.slane %v2532, 4
      %v2535 = vshll.u32 %v2175, 16
      %v2537 = vrot.slane %v2535, 5
      %v2538 = vsel %vm1132, %v2533, %v2537
      %v2540 = vshrl.u32 %v2176, 16
      %v2542 = vrot.slane %v2540, 4
      %v2543 = vshll.u32 %v2176, 16
      %v2545 = vrot.slane %v2543, 5
      %v2546 = vor.u32 %v2542, %v2545
      %v2547 = vrot.slane %v2546, 4
      %v2549 = vshll.u32 %v2177, 16
      %v2551 = vrot.slane %v2549, 5
      %v2552 = vsel %vm1132, %v2547, %v2551
      %v2553 = vshrl.u32 %v2177, 16
      %v2555 = vrot.slane %v2553, 4
      %v2556 = vor.u32 %v2555, %v2551
      %v2557 = vrot.slane %v2556, 4
      %v2559 = vshll.u32 %v2178, 16
      %v2561 = vrot.slane %v2559, 5
      %v2562 = vsel %vm1132, %v2557, %v2561
      %v2563 = vunpack.c.l.b16 %v2192
      %v2564 = vunpack.c.l.b16 %v2202
      %v2565 = vunpack.c.l.b16 %v2216
      %v2566 = vunpack.c.l.b16 %v2226
      %v2567 = vunpack.c.l.b16 %v2240
      %v2568 = vunpack.c.l.b16 %v2250
      %v2569 = vunpack.c.l.b16 %v2264
      %v2570 = vunpack.c.l.b16 %v2274
      %v2571 = vunpack.c.l.b16 %v2288
      %v2572 = vunpack.c.l.b16 %v2298
      %v2573 = vunpack.c.l.b16 %v2312
      %v2574 = vunpack.c.l.b16 %v2322
      %v2575 = vunpack.c.l.b16 %v2336
      %v2576 = vunpack.c.l.b16 %v2346
      %v2577 = vunpack.c.l.b16 %v2360
      %v2578 = vunpack.c.l.b16 %v2370
      %v2579 = vunpack.c.l.b16 %v2384
      %v2580 = vunpack.c.l.b16 %v2394
      %v2581 = vunpack.c.l.b16 %v2408
      %v2582 = vunpack.c.l.b16 %v2418
      %v2583 = vunpack.c.l.b16 %v2432
      %v2584 = vunpack.c.l.b16 %v2442
      %v2585 = vunpack.c.l.b16 %v2456
      %v2586 = vunpack.c.l.b16 %v2466
      %v2587 = vunpack.c.l.b16 %v2480
      %v2588 = vunpack.c.l.b16 %v2490
      %v2589 = vunpack.c.l.b16 %v2504
      %v2590 = vunpack.c.l.b16 %v2514
      %v2591 = vunpack.c.l.b16 %v2528
      %v2592 = vunpack.c.l.b16 %v2538
      %v2593 = vunpack.c.l.b16 %v2552
      %v2594 = vunpack.c.l.b16 %v2562
      %v2595 = vpack.c.b16 %v2564, %v2563
      %v2596 = vpack.c.b16 %v2566, %v2565
      %v2597 = vpack.c.b16 %v2568, %v2567
      %v2598 = vpack.c.b16 %v2570, %v2569
      %v2599 = vpack.c.b16 %v2572, %v2571
      %v2600 = vpack.c.b16 %v2574, %v2573
      %v2601 = vpack.c.b16 %v2576, %v2575
      %v2602 = vpack.c.b16 %v2578, %v2577
      %v2603 = vpack.c.b16 %v2580, %v2579
      %v2604 = vpack.c.b16 %v2582, %v2581
      %v2605 = vpack.c.b16 %v2584, %v2583
      %v2606 = vpack.c.b16 %v2586, %v2585
      %v2607 = vpack.c.b16 %v2588, %v2587
      %v2608 = vpack.c.b16 %v2590, %v2589
      %v2609 = vpack.c.b16 %v2592, %v2591
      %v2610 = vpack.c.b16 %v2594, %v2593
      %2611 = vrot.lane.b32.xlu0 %v2595, 16
      %v2612 = vpop.permute.xlu0 %2611
      %2613 = vrot.lane.b32.xlu0 %v2596, 16
      %v2614 = vpop.permute.xlu0 %2613
      %2615 = vrot.lane.b32.xlu0 %v2597, 16
      %v2616 = vpop.permute.xlu0 %2615
      %2617 = vrot.lane.b32.xlu0 %v2598, 16
      %v2618 = vpop.permute.xlu0 %2617
      %2619 = vrot.lane.b32.xlu0 %v2599, 16
      %v2620 = vpop.permute.xlu0 %2619
      %2621 = vrot.lane.b32.xlu0 %v2600, 16
      %v2622 = vpop.permute.xlu0 %2621
      %2623 = vrot.lane.b32.xlu0 %v2601, 16
      %v2624 = vpop.permute.xlu0 %2623
      %2625 = vrot.lane.b32.xlu0 %v2602, 16
      %v2626 = vpop.permute.xlu0 %2625
      %2627 = vrot.lane.b32.xlu0 %v2603, 16
      %v2628 = vpop.permute.xlu0 %2627
      %2629 = vrot.lane.b32.xlu0 %v2604, 16
      %v2630 = vpop.permute.xlu0 %2629
      %2631 = vrot.lane.b32.xlu0 %v2605, 16
      %v2632 = vpop.permute.xlu0 %2631
      %2633 = vrot.lane.b32.xlu0 %v2606, 16
      %v2634 = vpop.permute.xlu0 %2633
      %2635 = vrot.lane.b32.xlu0 %v2607, 16
      %v2636 = vpop.permute.xlu0 %2635
      %2637 = vrot.lane.b32.xlu0 %v2608, 16
      %v2638 = vpop.permute.xlu0 %2637
      %2639 = vrot.lane.b32.xlu0 %v2609, 16
      %v2640 = vpop.permute.xlu0 %2639
      %2641 = vrot.lane.b32.xlu0 %v2610, 16
      %v2642 = vpop.permute.xlu0 %2641
      %vm2659 = vcmask 162944
      %2660 = vst.msk [vmem:[#allocation4] sm:$0xff] %vm2659, %v2612
      %2661 = vst.msk [vmem:[#allocation4 + $0x8] sm:$0xff] %vm2659, %v2614
      %2662 = vst.msk [vmem:[#allocation4 + $0x10] sm:$0xff] %vm2659, %v2616
      %2663 = vst.msk [vmem:[#allocation4 + $0x18] sm:$0xff] %vm2659, %v2618
      %2664 = vst.msk [vmem:[#allocation4 + $0x20] sm:$0xff] %vm2659, %v2620
      %2665 = vst.msk [vmem:[#allocation4 + $0x28] sm:$0xff] %vm2659, %v2622
      %2666 = vst.msk [vmem:[#allocation4 + $0x30] sm:$0xff] %vm2659, %v2624
      %2667 = vst.msk [vmem:[#allocation4 + $0x38] sm:$0xff] %vm2659, %v2626
      %2668 = vst.msk [vmem:[#allocation4 + $0x40] sm:$0xff] %vm2659, %v2628
      %2669 = vst.msk [vmem:[#allocation4 + $0x48] sm:$0xff] %vm2659, %v2630
      %2670 = vst.msk [vmem:[#allocation4 + $0x50] sm:$0xff] %vm2659, %v2632
      %2671 = vst.msk [vmem:[#allocation4 + $0x58] sm:$0xff] %vm2659, %v2634
      %2672 = vst.msk [vmem:[#allocation4 + $0x60] sm:$0xff] %vm2659, %v2636
      %2673 = vst.msk [vmem:[#allocation4 + $0x68] sm:$0xff] %vm2659, %v2638
      %2674 = vst.msk [vmem:[#allocation4 + $0x70] sm:$0xff] %vm2659, %v2640
      %2675 = vst.msk [vmem:[#allocation4 + $0x78] sm:$0xff] %vm2659, %v2642
      %v2676 = vld [vmem:[%s822] sm:$0xe]
      %v2677 = vld [vmem:[%s822 + $0x4] sm:$0xf]
      %v2678 = vld [vmem:[%s822 + $0x8] sm:$0x1]
      %v2679 = vld [vmem:[%s822 + $0xc] sm:$0xe]
      %v2680 = vld [vmem:[%s822 + $0x10] sm:$0xf]
      %v2681 = vld [vmem:[%s822 + $0x14] sm:$0x1]
      %v2682 = vld [vmem:[%s822 + $0x18] sm:$0xe]
      %v2683 = vld [vmem:[%s822 + $0x1c] sm:$0xf]
      %v2684 = vld [vmem:[%s822 + $0x20] sm:$0x1]
      %v2685 = vld [vmem:[%s822 + $0x24] sm:$0xe]
      %v2686 = vld [vmem:[%s822 + $0x28] sm:$0xf]
      %v2687 = vld [vmem:[%s822 + $0x2c] sm:$0x1]
      %v2688 = vld [vmem:[%s822 + $0x30] sm:$0xe]
      %v2689 = vld [vmem:[%s822 + $0x34] sm:$0xf]
      %v2690 = vld [vmem:[%s822 + $0x38] sm:$0x1]
      %v2691 = vld [vmem:[%s822 + $0x3c] sm:$0xe]
      %v2692 = vld [vmem:[%s822 + $0x40] sm:$0xf]
      %v2693 = vld [vmem:[%s822 + $0x44] sm:$0x1]
      %v2694 = vld [vmem:[%s822 + $0x48] sm:$0xe]
      %v2695 = vld [vmem:[%s822 + $0x4c] sm:$0xf]
      %v2696 = vld [vmem:[%s822 + $0x50] sm:$0x1]
      %v2697 = vld [vmem:[%s822 + $0x54] sm:$0xe]
      %v2698 = vld [vmem:[%s822 + $0x58] sm:$0xf]
      %v2699 = vld [vmem:[%s822 + $0x5c] sm:$0x1]
      %v2700 = vld [vmem:[%s822 + $0x60] sm:$0xe]
      %v2701 = vld [vmem:[%s822 + $0x64] sm:$0xf]
      %v2702 = vld [vmem:[%s822 + $0x68] sm:$0x1]
      %v2703 = vld [vmem:[%s822 + $0x6c] sm:$0xe]
      %v2704 = vld [vmem:[%s822 + $0x70] sm:$0xf]
      %v2705 = vld [vmem:[%s822 + $0x74] sm:$0x1]
      %v2706 = vld [vmem:[%s822 + $0x78] sm:$0xe]
      %v2707 = vld [vmem:[%s822 + $0x7c] sm:$0xf]
      %v2708 = vld [vmem:[%s822 + $0x80] sm:$0x1]
      %v2709 = vld [vmem:[%s822 + $0x84] sm:$0xe]
      %v2710 = vld [vmem:[%s822 + $0x88] sm:$0xf]
      %v2711 = vld [vmem:[%s822 + $0x8c] sm:$0x1]
      %v2712 = vld [vmem:[%s822 + $0x90] sm:$0xe]
      %v2713 = vld [vmem:[%s822 + $0x94] sm:$0xf]
      %v2714 = vld [vmem:[%s822 + $0x98] sm:$0x1]
      %v2715 = vld [vmem:[%s822 + $0x9c] sm:$0xe]
      %v2716 = vld [vmem:[%s822 + $0xa0] sm:$0xf]
      %v2717 = vld [vmem:[%s822 + $0xa4] sm:$0x1]
      %v2718 = vld [vmem:[%s822 + $0xa8] sm:$0xe]
      %v2719 = vld [vmem:[%s822 + $0xac] sm:$0xf]
      %v2720 = vld [vmem:[%s822 + $0xb0] sm:$0x1]
      %v2721 = vld [vmem:[%s822 + $0xb4] sm:$0xe]
      %v2722 = vld [vmem:[%s822 + $0xb8] sm:$0xf]
      %v2723 = vld [vmem:[%s822 + $0xbc] sm:$0x1]
      %v2772 = vrot.slane %v2676, 5
      %v2773 = vrot.slane %v2772, 4
      %v2774 = vrot.slane %v2677, 5
      %v2775 = vsel %vm1728, %v2773, %v2774
      %v2776 = vrot.slane %v2774, 4
      %v2777 = vrot.slane %v2678, 5
      %v2778 = vsel %vm1728, %v2776, %v2777
      %v2779 = vrot.slane %v2679, 5
      %v2780 = vrot.slane %v2779, 4
      %v2781 = vrot.slane %v2680, 5
      %v2782 = vsel %vm1728, %v2780, %v2781
      %v2783 = vrot.slane %v2781, 4
      %v2784 = vrot.slane %v2681, 5
      %v2785 = vsel %vm1728, %v2783, %v2784
      %v2786 = vrot.slane %v2682, 5
      %v2787 = vrot.slane %v2786, 4
      %v2788 = vrot.slane %v2683, 5
      %v2789 = vsel %vm1728, %v2787, %v2788
      %v2790 = vrot.slane %v2788, 4
      %v2791 = vrot.slane %v2684, 5
      %v2792 = vsel %vm1728, %v2790, %v2791
      %v2793 = vrot.slane %v2685, 5
      %v2794 = vrot.slane %v2793, 4
      %v2795 = vrot.slane %v2686, 5
      %v2796 = vsel %vm1728, %v2794, %v2795
      %v2797 = vrot.slane %v2795, 4
      %v2798 = vrot.slane %v2687, 5
      %v2799 = vsel %vm1728, %v2797, %v2798
      %v2800 = vrot.slane %v2688, 5
      %v2801 = vrot.slane %v2800, 4
      %v2802 = vrot.slane %v2689, 5
      %v2803 = vsel %vm1728, %v2801, %v2802
      %v2804 = vrot.slane %v2802, 4
      %v2805 = vrot.slane %v2690, 5
      %v2806 = vsel %vm1728, %v2804, %v2805
      %v2807 = vrot.slane %v2691, 5
      %v2808 = vrot.slane %v2807, 4
      %v2809 = vrot.slane %v2692, 5
      %v2810 = vsel %vm1728, %v2808, %v2809
      %v2811 = vrot.slane %v2809, 4
      %v2812 = vrot.slane %v2693, 5
      %v2813 = vsel %vm1728, %v2811, %v2812
      %v2814 = vrot.slane %v2694, 5
      %v2815 = vrot.slane %v2814, 4
      %v2816 = vrot.slane %v2695, 5
      %v2817 = vsel %vm1728, %v2815, %v2816
      %v2818 = vrot.slane %v2816, 4
      %v2819 = vrot.slane %v2696, 5
      %v2820 = vsel %vm1728, %v2818, %v2819
      %v2821 = vrot.slane %v2697, 5
      %v2822 = vrot.slane %v2821, 4
      %v2823 = vrot.slane %v2698, 5
      %v2824 = vsel %vm1728, %v2822, %v2823
      %v2825 = vrot.slane %v2823, 4
      %v2826 = vrot.slane %v2699, 5
      %v2827 = vsel %vm1728, %v2825, %v2826
      %v2828 = vrot.slane %v2700, 5
      %v2829 = vrot.slane %v2828, 4
      %v2830 = vrot.slane %v2701, 5
      %v2831 = vsel %vm1728, %v2829, %v2830
      %v2832 = vrot.slane %v2830, 4
      %v2833 = vrot.slane %v2702, 5
      %v2834 = vsel %vm1728, %v2832, %v2833
      %v2835 = vrot.slane %v2703, 5
      %v2836 = vrot.slane %v2835, 4
      %v2837 = vrot.slane %v2704, 5
      %v2838 = vsel %vm1728, %v2836, %v2837
      %v2839 = vrot.slane %v2837, 4
      %v2840 = vrot.slane %v2705, 5
      %v2841 = vsel %vm1728, %v2839, %v2840
      %v2842 = vrot.slane %v2706, 5
      %v2843 = vrot.slane %v2842, 4
      %v2844 = vrot.slane %v2707, 5
      %v2845 = vsel %vm1728, %v2843, %v2844
      %v2846 = vrot.slane %v2844, 4
      %v2847 = vrot.slane %v2708, 5
      %v2848 = vsel %vm1728, %v2846, %v2847
      %v2849 = vrot.slane %v2709, 5
      %v2850 = vrot.slane %v2849, 4
      %v2851 = vrot.slane %v2710, 5
      %v2852 = vsel %vm1728, %v2850, %v2851
      %v2853 = vrot.slane %v2851, 4
      %v2854 = vrot.slane %v2711, 5
      %v2855 = vsel %vm1728, %v2853, %v2854
      %v2856 = vrot.slane %v2712, 5
      %v2857 = vrot.slane %v2856, 4
      %v2858 = vrot.slane %v2713, 5
      %v2859 = vsel %vm1728, %v2857, %v2858
      %v2860 = vrot.slane %v2858, 4
      %v2861 = vrot.slane %v2714, 5
      %v2862 = vsel %vm1728, %v2860, %v2861
      %v2863 = vrot.slane %v2715, 5
      %v2864 = vrot.slane %v2863, 4
      %v2865 = vrot.slane %v2716, 5
      %v2866 = vsel %vm1728, %v2864, %v2865
      %v2867 = vrot.slane %v2865, 4
      %v2868 = vrot.slane %v2717, 5
      %v2869 = vsel %vm1728, %v2867, %v2868
      %v2870 = vrot.slane %v2718, 5
      %v2871 = vrot.slane %v2870, 4
      %v2872 = vrot.slane %v2719, 5
      %v2873 = vsel %vm1728, %v2871, %v2872
      %v2874 = vrot.slane %v2872, 4
      %v2875 = vrot.slane %v2720, 5
      %v2876 = vsel %vm1728, %v2874, %v2875
      %v2877 = vrot.slane %v2721, 5
      %v2878 = vrot.slane %v2877, 4
      %v2879 = vrot.slane %v2722, 5
      %v2880 = vsel %vm1728, %v2878, %v2879
      %v2881 = vrot.slane %v2879, 4
      %v2882 = vrot.slane %v2723, 5
      %v2883 = vsel %vm1728, %v2881, %v2882
      %v2884 = vunpack.c.l.b16 %v2775
      %v2885 = vunpack.c.l.b16 %v2778
      %v2886 = vunpack.c.l.b16 %v2782
      %v2887 = vunpack.c.l.b16 %v2785
      %v2888 = vunpack.c.l.b16 %v2789
      %v2889 = vunpack.c.l.b16 %v2792
      %v2890 = vunpack.c.l.b16 %v2796
      %v2891 = vunpack.c.l.b16 %v2799
      %v2892 = vunpack.c.l.b16 %v2803
      %v2893 = vunpack.c.l.b16 %v2806
      %v2894 = vunpack.c.l.b16 %v2810
      %v2895 = vunpack.c.l.b16 %v2813
      %v2896 = vunpack.c.l.b16 %v2817
      %v2897 = vunpack.c.l.b16 %v2820
      %v2898 = vunpack.c.l.b16 %v2824
      %v2899 = vunpack.c.l.b16 %v2827
      %v2900 = vunpack.c.l.b16 %v2831
      %v2901 = vunpack.c.l.b16 %v2834
      %v2902 = vunpack.c.l.b16 %v2838
      %v2903 = vunpack.c.l.b16 %v2841
      %v2904 = vunpack.c.l.b16 %v2845
      %v2905 = vunpack.c.l.b16 %v2848
      %v2906 = vunpack.c.l.b16 %v2852
      %v2907 = vunpack.c.l.b16 %v2855
      %v2908 = vunpack.c.l.b16 %v2859
      %v2909 = vunpack.c.l.b16 %v2862
      %v2910 = vunpack.c.l.b16 %v2866
      %v2911 = vunpack.c.l.b16 %v2869
      %v2912 = vunpack.c.l.b16 %v2873
      %v2913 = vunpack.c.l.b16 %v2876
      %v2914 = vunpack.c.l.b16 %v2880
      %v2915 = vunpack.c.l.b16 %v2883
      %v2916 = vpack.c.b16 %v2885, %v2884
      %v2917 = vpack.c.b16 %v2887, %v2886
      %v2918 = vpack.c.b16 %v2889, %v2888
      %v2919 = vpack.c.b16 %v2891, %v2890
      %v2920 = vpack.c.b16 %v2893, %v2892
      %v2921 = vpack.c.b16 %v2895, %v2894
      %v2922 = vpack.c.b16 %v2897, %v2896
      %v2923 = vpack.c.b16 %v2899, %v2898
      %v2924 = vpack.c.b16 %v2901, %v2900
      %v2925 = vpack.c.b16 %v2903, %v2902
      %v2926 = vpack.c.b16 %v2905, %v2904
      %v2927 = vpack.c.b16 %v2907, %v2906
      %v2928 = vpack.c.b16 %v2909, %v2908
      %v2929 = vpack.c.b16 %v2911, %v2910
      %v2930 = vpack.c.b16 %v2913, %v2912
      %v2931 = vpack.c.b16 %v2915, %v2914
      %2932 = vrot.lane.b32.xlu0 %v2916, 20
      %v2933 = vpop.permute.xlu0 %2932
      %2934 = vrot.lane.b32.xlu0 %v2917, 20
      %v2935 = vpop.permute.xlu0 %2934
      %2936 = vrot.lane.b32.xlu0 %v2918, 20
      %v2937 = vpop.permute.xlu0 %2936
      %2938 = vrot.lane.b32.xlu0 %v2919, 20
      %v2939 = vpop.permute.xlu0 %2938
      %2940 = vrot.lane.b32.xlu0 %v2920, 20
      %v2941 = vpop.permute.xlu0 %2940
      %2942 = vrot.lane.b32.xlu0 %v2921, 20
      %v2943 = vpop.permute.xlu0 %2942
      %2944 = vrot.lane.b32.xlu0 %v2922, 20
      %v2945 = vpop.permute.xlu0 %2944
      %2946 = vrot.lane.b32.xlu0 %v2923, 20
      %v2947 = vpop.permute.xlu0 %2946
      %2948 = vrot.lane.b32.xlu0 %v2924, 20
      %v2949 = vpop.permute.xlu0 %2948
      %2950 = vrot.lane.b32.xlu0 %v2925, 20
      %v2951 = vpop.permute.xlu0 %2950
      %2952 = vrot.lane.b32.xlu0 %v2926, 20
      %v2953 = vpop.permute.xlu0 %2952
      %2954 = vrot.lane.b32.xlu0 %v2927, 20
      %v2955 = vpop.permute.xlu0 %2954
      %2956 = vrot.lane.b32.xlu0 %v2928, 20
      %v2957 = vpop.permute.xlu0 %2956
      %2958 = vrot.lane.b32.xlu0 %v2929, 20
      %v2959 = vpop.permute.xlu0 %2958
      %2960 = vrot.lane.b32.xlu0 %v2930, 20
      %v2961 = vpop.permute.xlu0 %2960
      %2962 = vrot.lane.b32.xlu0 %v2931, 20
      %v2963 = vpop.permute.xlu0 %2962
      %vm2980 = vcmask 195744
      %2981 = vst.msk [vmem:[#allocation4] sm:$0xff] %vm2980, %v2933
      %2982 = vst.msk [vmem:[#allocation4 + $0x8] sm:$0xff] %vm2980, %v2935
      %2983 = vst.msk [vmem:[#allocation4 + $0x10] sm:$0xff] %vm2980, %v2937
      %2984 = vst.msk [vmem:[#allocation4 + $0x18] sm:$0xff] %vm2980, %v2939
      %2985 = vst.msk [vmem:[#allocation4 + $0x20] sm:$0xff] %vm2980, %v2941
      %2986 = vst.msk [vmem:[#allocation4 + $0x28] sm:$0xff] %vm2980, %v2943
      %2987 = vst.msk [vmem:[#allocation4 + $0x30] sm:$0xff] %vm2980, %v2945
      %2988 = vst.msk [vmem:[#allocation4 + $0x38] sm:$0xff] %vm2980, %v2947
      %2989 = vst.msk [vmem:[#allocation4 + $0x40] sm:$0xff] %vm2980, %v2949
      %2990 = vst.msk [vmem:[#allocation4 + $0x48] sm:$0xff] %vm2980, %v2951
      %2991 = vst.msk [vmem:[#allocation4 + $0x50] sm:$0xff] %vm2980, %v2953
      %2992 = vst.msk [vmem:[#allocation4 + $0x58] sm:$0xff] %vm2980, %v2955
      %2993 = vst.msk [vmem:[#allocation4 + $0x60] sm:$0xff] %vm2980, %v2957
      %2994 = vst.msk [vmem:[#allocation4 + $0x68] sm:$0xff] %vm2980, %v2959
      %2995 = vst.msk [vmem:[#allocation4 + $0x70] sm:$0xff] %vm2980, %v2961
      %2996 = vst.msk [vmem:[#allocation4 + $0x78] sm:$0xff] %vm2980, %v2963
      %s2997 = scalar_lea.vmem [#allocation2], 24
      %v2998 = vld [vmem:[%s2997] sm:$0xf]
      %v2999 = vld [vmem:[%s2997 + $0x4] sm:$0xf]
      %v3000 = vld [vmem:[%s2997 + $0xc] sm:$0xf]
      %v3001 = vld [vmem:[%s2997 + $0x10] sm:$0xf]
      %v3002 = vld [vmem:[%s2997 + $0x18] sm:$0xf]
      %v3003 = vld [vmem:[%s2997 + $0x1c] sm:$0xf]
      %v3004 = vld [vmem:[%s2997 + $0x24] sm:$0xf]
      %v3005 = vld [vmem:[%s2997 + $0x28] sm:$0xf]
      %v3006 = vld [vmem:[%s2997 + $0x30] sm:$0xf]
      %v3007 = vld [vmem:[%s2997 + $0x34] sm:$0xf]
      %v3008 = vld [vmem:[%s2997 + $0x3c] sm:$0xf]
      %v3009 = vld [vmem:[%s2997 + $0x40] sm:$0xf]
      %v3010 = vld [vmem:[%s2997 + $0x48] sm:$0xf]
      %v3011 = vld [vmem:[%s2997 + $0x4c] sm:$0xf]
      %v3012 = vld [vmem:[%s2997 + $0x54] sm:$0xf]
      %v3013 = vld [vmem:[%s2997 + $0x58] sm:$0xf]
      %v3014 = vld [vmem:[%s2997 + $0x60] sm:$0xf]
      %v3015 = vld [vmem:[%s2997 + $0x64] sm:$0xf]
      %v3016 = vld [vmem:[%s2997 + $0x6c] sm:$0xf]
      %v3017 = vld [vmem:[%s2997 + $0x70] sm:$0xf]
      %v3018 = vld [vmem:[%s2997 + $0x78] sm:$0xf]
      %v3019 = vld [vmem:[%s2997 + $0x7c] sm:$0xf]
      %v3020 = vld [vmem:[%s2997 + $0x84] sm:$0xf]
      %v3021 = vld [vmem:[%s2997 + $0x88] sm:$0xf]
      %v3022 = vld [vmem:[%s2997 + $0x90] sm:$0xf]
      %v3023 = vld [vmem:[%s2997 + $0x94] sm:$0xf]
      %v3024 = vld [vmem:[%s2997 + $0x9c] sm:$0xf]
      %v3025 = vld [vmem:[%s2997 + $0xa0] sm:$0xf]
      %v3026 = vld [vmem:[%s2997 + $0xa8] sm:$0xf]
      %v3027 = vld [vmem:[%s2997 + $0xac] sm:$0xf]
      %v3028 = vld [vmem:[%s2997 + $0xb4] sm:$0xf]
      %v3029 = vld [vmem:[%s2997 + $0xb8] sm:$0xf]
      %v3062 = vunpack.c.l.b16 %v2998
      %v3063 = vunpack.c.l.b16 %v2999
      %v3064 = vunpack.c.l.b16 %v3000
      %v3065 = vunpack.c.l.b16 %v3001
      %v3066 = vunpack.c.l.b16 %v3002
      %v3067 = vunpack.c.l.b16 %v3003
      %v3068 = vunpack.c.l.b16 %v3004
      %v3069 = vunpack.c.l.b16 %v3005
      %v3070 = vunpack.c.l.b16 %v3006
      %v3071 = vunpack.c.l.b16 %v3007
      %v3072 = vunpack.c.l.b16 %v3008
      %v3073 = vunpack.c.l.b16 %v3009
      %v3074 = vunpack.c.l.b16 %v3010
      %v3075 = vunpack.c.l.b16 %v3011
      %v3076 = vunpack.c.l.b16 %v3012
      %v3077 = vunpack.c.l.b16 %v3013
      %v3078 = vunpack.c.l.b16 %v3014
      %v3079 = vunpack.c.l.b16 %v3015
      %v3080 = vunpack.c.l.b16 %v3016
      %v3081 = vunpack.c.l.b16 %v3017
      %v3082 = vunpack.c.l.b16 %v3018
      %v3083 = vunpack.c.l.b16 %v3019
      %v3084 = vunpack.c.l.b16 %v3020
      %v3085 = vunpack.c.l.b16 %v3021
      %v3086 = vunpack.c.l.b16 %v3022
      %v3087 = vunpack.c.l.b16 %v3023
      %v3088 = vunpack.c.l.b16 %v3024
      %v3089 = vunpack.c.l.b16 %v3025
      %v3090 = vunpack.c.l.b16 %v3026
      %v3091 = vunpack.c.l.b16 %v3027
      %v3092 = vunpack.c.l.b16 %v3028
      %v3093 = vunpack.c.l.b16 %v3029
      %v3094 = vpack.c.b16 %v3063, %v3062
      %v3095 = vpack.c.b16 %v3065, %v3064
      %v3096 = vpack.c.b16 %v3067, %v3066
      %v3097 = vpack.c.b16 %v3069, %v3068
      %v3098 = vpack.c.b16 %v3071, %v3070
      %v3099 = vpack.c.b16 %v3073, %v3072
      %v3100 = vpack.c.b16 %v3075, %v3074
      %v3101 = vpack.c.b16 %v3077, %v3076
      %v3102 = vpack.c.b16 %v3079, %v3078
      %v3103 = vpack.c.b16 %v3081, %v3080
      %v3104 = vpack.c.b16 %v3083, %v3082
      %v3105 = vpack.c.b16 %v3085, %v3084
      %v3106 = vpack.c.b16 %v3087, %v3086
      %v3107 = vpack.c.b16 %v3089, %v3088
      %v3108 = vpack.c.b16 %v3091, %v3090
      %v3109 = vpack.c.b16 %v3093, %v3092
      %3110 = vrot.lane.b32.xlu0 %v3094, 24
      %v3111 = vpop.permute.xlu0 %3110
      %3112 = vrot.lane.b32.xlu0 %v3095, 24
      %v3113 = vpop.permute.xlu0 %3112
      %3114 = vrot.lane.b32.xlu0 %v3096, 24
      %v3115 = vpop.permute.xlu0 %3114
      %3116 = vrot.lane.b32.xlu0 %v3097, 24
      %v3117 = vpop.permute.xlu0 %3116
      %3118 = vrot.lane.b32.xlu0 %v3098, 24
      %v3119 = vpop.permute.xlu0 %3118
      %3120 = vrot.lane.b32.xlu0 %v3099, 24
      %v3121 = vpop.permute.xlu0 %3120
      %3122 = vrot.lane.b32.xlu0 %v3100, 24
      %v3123 = vpop.permute.xlu0 %3122
      %3124 = vrot.lane.b32.xlu0 %v3101, 24
      %v3125 = vpop.permute.xlu0 %3124
      %3126 = vrot.lane.b32.xlu0 %v3102, 24
      %v3127 = vpop.permute.xlu0 %3126
      %3128 = vrot.lane.b32.xlu0 %v3103, 24
      %v3129 = vpop.permute.xlu0 %3128
      %3130 = vrot.lane.b32.xlu0 %v3104, 24
      %v3131 = vpop.permute.xlu0 %3130
      %3132 = vrot.lane.b32.xlu0 %v3105, 24
      %v3133 = vpop.permute.xlu0 %3132
      %3134 = vrot.lane.b32.xlu0 %v3106, 24
      %v3135 = vpop.permute.xlu0 %3134
      %3136 = vrot.lane.b32.xlu0 %v3107, 24
      %v3137 = vpop.permute.xlu0 %3136
      %3138 = vrot.lane.b32.xlu0 %v3108, 24
      %v3139 = vpop.permute.xlu0 %3138
      %3140 = vrot.lane.b32.xlu0 %v3109, 24
      %v3141 = vpop.permute.xlu0 %3140
      %vm3158 = vcmask 228544
      %3159 = vst.msk [vmem:[#allocation4] sm:$0xff] %vm3158, %v3111
      %3160 = vst.msk [vmem:[#allocation4 + $0x8] sm:$0xff] %vm3158, %v3113
      %3161 = vst.msk [vmem:[#allocation4 + $0x10] sm:$0xff] %vm3158, %v3115
      %3162 = vst.msk [vmem:[#allocation4 + $0x18] sm:$0xff] %vm3158, %v3117
      %3163 = vst.msk [vmem:[#allocation4 + $0x20] sm:$0xff] %vm3158, %v3119
      %3164 = vst.msk [vmem:[#allocation4 + $0x28] sm:$0xff] %vm3158, %v3121
      %3165 = vst.msk [vmem:[#allocation4 + $0x30] sm:$0xff] %vm3158, %v3123
      %3166 = vst.msk [vmem:[#allocation4 + $0x38] sm:$0xff] %vm3158, %v3125
      %3167 = vst.msk [vmem:[#allocation4 + $0x40] sm:$0xff] %vm3158, %v3127
      %3168 = vst.msk [vmem:[#allocation4 + $0x48] sm:$0xff] %vm3158, %v3129
      %3169 = vst.msk [vmem:[#allocation4 + $0x50] sm:$0xff] %vm3158, %v3131
      %3170 = vst.msk [vmem:[#allocation4 + $0x58] sm:$0xff] %vm3158, %v3133
      %3171 = vst.msk [vmem:[#allocation4 + $0x60] sm:$0xff] %vm3158, %v3135
      %3172 = vst.msk [vmem:[#allocation4 + $0x68] sm:$0xff] %vm3158, %v3137
      %3173 = vst.msk [vmem:[#allocation4 + $0x70] sm:$0xff] %vm3158, %v3139
      %3174 = vst.msk [vmem:[#allocation4 + $0x78] sm:$0xff] %vm3158, %v3141
      %v3175 = vld [vmem:[%s2997] sm:$0xf]
      %v3176 = vld [vmem:[%s2997 + $0x4] sm:$0xf]
      %v3177 = vld [vmem:[%s2997 + $0x8] sm:$0x1]
      %v3178 = vld [vmem:[%s2997 + $0xc] sm:$0xf]
      %v3179 = vld [vmem:[%s2997 + $0x10] sm:$0xf]
      %v3180 = vld [vmem:[%s2997 + $0x14] sm:$0x1]
      %v3181 = vld [vmem:[%s2997 + $0x18] sm:$0xf]
      %v3182 = vld [vmem:[%s2997 + $0x1c] sm:$0xf]
      %v3183 = vld [vmem:[%s2997 + $0x20] sm:$0x1]
      %v3184 = vld [vmem:[%s2997 + $0x24] sm:$0xf]
      %v3185 = vld [vmem:[%s2997 + $0x28] sm:$0xf]
      %v3186 = vld [vmem:[%s2997 + $0x2c] sm:$0x1]
      %v3187 = vld [vmem:[%s2997 + $0x30] sm:$0xf]
      %v3188 = vld [vmem:[%s2997 + $0x34] sm:$0xf]
      %v3189 = vld [vmem:[%s2997 + $0x38] sm:$0x1]
      %v3190 = vld [vmem:[%s2997 + $0x3c] sm:$0xf]
      %v3191 = vld [vmem:[%s2997 + $0x40] sm:$0xf]
      %v3192 = vld [vmem:[%s2997 + $0x44] sm:$0x1]
      %v3193 = vld [vmem:[%s2997 + $0x48] sm:$0xf]
      %v3194 = vld [vmem:[%s2997 + $0x4c] sm:$0xf]
      %v3195 = vld [vmem:[%s2997 + $0x50] sm:$0x1]
      %v3196 = vld [vmem:[%s2997 + $0x54] sm:$0xf]
      %v3197 = vld [vmem:[%s2997 + $0x58] sm:$0xf]
      %v3198 = vld [vmem:[%s2997 + $0x5c] sm:$0x1]
      %v3199 = vld [vmem:[%s2997 + $0x60] sm:$0xf]
      %v3200 = vld [vmem:[%s2997 + $0x64] sm:$0xf]
      %v3201 = vld [vmem:[%s2997 + $0x68] sm:$0x1]
      %v3202 = vld [vmem:[%s2997 + $0x6c] sm:$0xf]
      %v3203 = vld [vmem:[%s2997 + $0x70] sm:$0xf]
      %v3204 = vld [vmem:[%s2997 + $0x74] sm:$0x1]
      %v3205 = vld [vmem:[%s2997 + $0x78] sm:$0xf]
      %v3206 = vld [vmem:[%s2997 + $0x7c] sm:$0xf]
      %v3207 = vld [vmem:[%s2997 + $0x80] sm:$0x1]
      %v3208 = vld [vmem:[%s2997 + $0x84] sm:$0xf]
      %v3209 = vld [vmem:[%s2997 + $0x88] sm:$0xf]
      %v3210 = vld [vmem:[%s2997 + $0x8c] sm:$0x1]
      %v3211 = vld [vmem:[%s2997 + $0x90] sm:$0xf]
      %v3212 = vld [vmem:[%s2997 + $0x94] sm:$0xf]
      %v3213 = vld [vmem:[%s2997 + $0x98] sm:$0x1]
      %v3214 = vld [vmem:[%s2997 + $0x9c] sm:$0xf]
      %v3215 = vld [vmem:[%s2997 + $0xa0] sm:$0xf]
      %v3216 = vld [vmem:[%s2997 + $0xa4] sm:$0x1]
      %v3217 = vld [vmem:[%s2997 + $0xa8] sm:$0xf]
      %v3218 = vld [vmem:[%s2997 + $0xac] sm:$0xf]
      %v3219 = vld [vmem:[%s2997 + $0xb0] sm:$0x1]
      %v3220 = vld [vmem:[%s2997 + $0xb4] sm:$0xf]
      %v3221 = vld [vmem:[%s2997 + $0xb8] sm:$0xf]
      %v3222 = vld [vmem:[%s2997 + $0xbc] sm:$0x1]
      %v3224 = vshrl.u32 %v3175, 16
      %v3226 = vrot.slane %v3224, 4
      %v3227 = vshll.u32 %v3175, 16
      %v3229 = vrot.slane %v3227, 5
      %v3230 = vor.u32 %v3226, %v3229
      %v3231 = vrot.slane %v3230, 4
      %v3233 = vshll.u32 %v3176, 16
      %v3235 = vrot.slane %v3233, 5
      %v3236 = vsel %vm1132, %v3231, %v3235
      %v3237 = vshrl.u32 %v3176, 16
      %v3239 = vrot.slane %v3237, 4
      %v3240 = vor.u32 %v3239, %v3235
      %v3241 = vrot.slane %v3240, 4
      %v3243 = vshll.u32 %v3177, 16
      %v3245 = vrot.slane %v3243, 5
      %v3246 = vsel %vm1132, %v3241, %v3245
      %v3248 = vshrl.u32 %v3178, 16
      %v3250 = vrot.slane %v3248, 4
      %v3251 = vshll.u32 %v3178, 16
      %v3253 = vrot.slane %v3251, 5
      %v3254 = vor.u32 %v3250, %v3253
      %v3255 = vrot.slane %v3254, 4
      %v3257 = vshll.u32 %v3179, 16
      %v3259 = vrot.slane %v3257, 5
      %v3260 = vsel %vm1132, %v3255, %v3259
      %v3261 = vshrl.u32 %v3179, 16
      %v3263 = vrot.slane %v3261, 4
      %v3264 = vor.u32 %v3263, %v3259
      %v3265 = vrot.slane %v3264, 4
      %v3267 = vshll.u32 %v3180, 16
      %v3269 = vrot.slane %v3267, 5
      %v3270 = vsel %vm1132, %v3265, %v3269
      %v3272 = vshrl.u32 %v3181, 16
      %v3274 = vrot.slane %v3272, 4
      %v3275 = vshll.u32 %v3181, 16
      %v3277 = vrot.slane %v3275, 5
      %v3278 = vor.u32 %v3274, %v3277
      %v3279 = vrot.slane %v3278, 4
      %v3281 = vshll.u32 %v3182, 16
      %v3283 = vrot.slane %v3281, 5
      %v3284 = vsel %vm1132, %v3279, %v3283
      %v3285 = vshrl.u32 %v3182, 16
      %v3287 = vrot.slane %v3285, 4
      %v3288 = vor.u32 %v3287, %v3283
      %v3289 = vrot.slane %v3288, 4
      %v3291 = vshll.u32 %v3183, 16
      %v3293 = vrot.slane %v3291, 5
      %v3294 = vsel %vm1132, %v3289, %v3293
      %v3296 = vshrl.u32 %v3184, 16
      %v3298 = vrot.slane %v3296, 4
      %v3299 = vshll.u32 %v3184, 16
      %v3301 = vrot.slane %v3299, 5
      %v3302 = vor.u32 %v3298, %v3301
      %v3303 = vrot.slane %v3302, 4
      %v3305 = vshll.u32 %v3185, 16
      %v3307 = vrot.slane %v3305, 5
      %v3308 = vsel %vm1132, %v3303, %v3307
      %v3309 = vshrl.u32 %v3185, 16
      %v3311 = vrot.slane %v3309, 4
      %v3312 = vor.u32 %v3311, %v3307
      %v3313 = vrot.slane %v3312, 4
      %v3315 = vshll.u32 %v3186, 16
      %v3317 = vrot.slane %v3315, 5
      %v3318 = vsel %vm1132, %v3313, %v3317
      %v3320 = vshrl.u32 %v3187, 16
      %v3322 = vrot.slane %v3320, 4
      %v3323 = vshll.u32 %v3187, 16
      %v3325 = vrot.slane %v3323, 5
      %v3326 = vor.u32 %v3322, %v3325
      %v3327 = vrot.slane %v3326, 4
      %v3329 = vshll.u32 %v3188, 16
      %v3331 = vrot.slane %v3329, 5
      %v3332 = vsel %vm1132, %v3327, %v3331
      %v3333 = vshrl.u32 %v3188, 16
      %v3335 = vrot.slane %v3333, 4
      %v3336 = vor.u32 %v3335, %v3331
      %v3337 = vrot.slane %v3336, 4
      %v3339 = vshll.u32 %v3189, 16
      %v3341 = vrot.slane %v3339, 5
      %v3342 = vsel %vm1132, %v3337, %v3341
      %v3344 = vshrl.u32 %v3190, 16
      %v3346 = vrot.slane %v3344, 4
      %v3347 = vshll.u32 %v3190, 16
      %v3349 = vrot.slane %v3347, 5
      %v3350 = vor.u32 %v3346, %v3349
      %v3351 = vrot.slane %v3350, 4
      %v3353 = vshll.u32 %v3191, 16
      %v3355 = vrot.slane %v3353, 5
      %v3356 = vsel %vm1132, %v3351, %v3355
      %v3357 = vshrl.u32 %v3191, 16
      %v3359 = vrot.slane %v3357, 4
      %v3360 = vor.u32 %v3359, %v3355
      %v3361 = vrot.slane %v3360, 4
      %v3363 = vshll.u32 %v3192, 16
      %v3365 = vrot.slane %v3363, 5
      %v3366 = vsel %vm1132, %v3361, %v3365
      %v3368 = vshrl.u32 %v3193, 16
      %v3370 = vrot.slane %v3368, 4
      %v3371 = vshll.u32 %v3193, 16
      %v3373 = vrot.slane %v3371, 5
      %v3374 = vor.u32 %v3370, %v3373
      %v3375 = vrot.slane %v3374, 4
      %v3377 = vshll.u32 %v3194, 16
      %v3379 = vrot.slane %v3377, 5
      %v3380 = vsel %vm1132, %v3375, %v3379
      %v3381 = vshrl.u32 %v3194, 16
      %v3383 = vrot.slane %v3381, 4
      %v3384 = vor.u32 %v3383, %v3379
      %v3385 = vrot.slane %v3384, 4
      %v3387 = vshll.u32 %v3195, 16
      %v3389 = vrot.slane %v3387, 5
      %v3390 = vsel %vm1132, %v3385, %v3389
      %v3392 = vshrl.u32 %v3196, 16
      %v3394 = vrot.slane %v3392, 4
      %v3395 = vshll.u32 %v3196, 16
      %v3397 = vrot.slane %v3395, 5
      %v3398 = vor.u32 %v3394, %v3397
      %v3399 = vrot.slane %v3398, 4
      %v3401 = vshll.u32 %v3197, 16
      %v3403 = vrot.slane %v3401, 5
      %v3404 = vsel %vm1132, %v3399, %v3403
      %v3405 = vshrl.u32 %v3197, 16
      %v3407 = vrot.slane %v3405, 4
      %v3408 = vor.u32 %v3407, %v3403
      %v3409 = vrot.slane %v3408, 4
      %v3411 = vshll.u32 %v3198, 16
      %v3413 = vrot.slane %v3411, 5
      %v3414 = vsel %vm1132, %v3409, %v3413
      %v3416 = vshrl.u32 %v3199, 16
      %v3418 = vrot.slane %v3416, 4
      %v3419 = vshll.u32 %v3199, 16
      %v3421 = vrot.slane %v3419, 5
      %v3422 = vor.u32 %v3418, %v3421
      %v3423 = vrot.slane %v3422, 4
      %v3425 = vshll.u32 %v3200, 16
      %v3427 = vrot.slane %v3425, 5
      %v3428 = vsel %vm1132, %v3423, %v3427
      %v3429 = vshrl.u32 %v3200, 16
      %v3431 = vrot.slane %v3429, 4
      %v3432 = vor.u32 %v3431, %v3427
      %v3433 = vrot.slane %v3432, 4
      %v3435 = vshll.u32 %v3201, 16
      %v3437 = vrot.slane %v3435, 5
      %v3438 = vsel %vm1132, %v3433, %v3437
      %v3440 = vshrl.u32 %v3202, 16
      %v3442 = vrot.slane %v3440, 4
      %v3443 = vshll.u32 %v3202, 16
      %v3445 = vrot.slane %v3443, 5
      %v3446 = vor.u32 %v3442, %v3445
      %v3447 = vrot.slane %v3446, 4
      %v3449 = vshll.u32 %v3203, 16
      %v3451 = vrot.slane %v3449, 5
      %v3452 = vsel %vm1132, %v3447, %v3451
      %v3453 = vshrl.u32 %v3203, 16
      %v3455 = vrot.slane %v3453, 4
      %v3456 = vor.u32 %v3455, %v3451
      %v3457 = vrot.slane %v3456, 4
      %v3459 = vshll.u32 %v3204, 16
      %v3461 = vrot.slane %v3459, 5
      %v3462 = vsel %vm1132, %v3457, %v3461
      %v3464 = vshrl.u32 %v3205, 16
      %v3466 = vrot.slane %v3464, 4
      %v3467 = vshll.u32 %v3205, 16
      %v3469 = vrot.slane %v3467, 5
      %v3470 = vor.u32 %v3466, %v3469
      %v3471 = vrot.slane %v3470, 4
      %v3473 = vshll.u32 %v3206, 16
      %v3475 = vrot.slane %v3473, 5
      %v3476 = vsel %vm1132, %v3471, %v3475
      %v3477 = vshrl.u32 %v3206, 16
      %v3479 = vrot.slane %v3477, 4
      %v3480 = vor.u32 %v3479, %v3475
      %v3481 = vrot.slane %v3480, 4
      %v3483 = vshll.u32 %v3207, 16
      %v3485 = vrot.slane %v3483, 5
      %v3486 = vsel %vm1132, %v3481, %v3485
      %v3488 = vshrl.u32 %v3208, 16
      %v3490 = vrot.slane %v3488, 4
      %v3491 = vshll.u32 %v3208, 16
      %v3493 = vrot.slane %v3491, 5
      %v3494 = vor.u32 %v3490, %v3493
      %v3495 = vrot.slane %v3494, 4
      %v3497 = vshll.u32 %v3209, 16
      %v3499 = vrot.slane %v3497, 5
      %v3500 = vsel %vm1132, %v3495, %v3499
      %v3501 = vshrl.u32 %v3209, 16
      %v3503 = vrot.slane %v3501, 4
      %v3504 = vor.u32 %v3503, %v3499
      %v3505 = vrot.slane %v3504, 4
      %v3507 = vshll.u32 %v3210, 16
      %v3509 = vrot.slane %v3507, 5
      %v3510 = vsel %vm1132, %v3505, %v3509
      %v3512 = vshrl.u32 %v3211, 16
      %v3514 = vrot.slane %v3512, 4
      %v3515 = vshll.u32 %v3211, 16
      %v3517 = vrot.slane %v3515, 5
      %v3518 = vor.u32 %v3514, %v3517
      %v3519 = vrot.slane %v3518, 4
      %v3521 = vshll.u32 %v3212, 16
      %v3523 = vrot.slane %v3521, 5
      %v3524 = vsel %vm1132, %v3519, %v3523
      %v3525 = vshrl.u32 %v3212, 16
      %v3527 = vrot.slane %v3525, 4
      %v3528 = vor.u32 %v3527, %v3523
      %v3529 = vrot.slane %v3528, 4
      %v3531 = vshll.u32 %v3213, 16
      %v3533 = vrot.slane %v3531, 5
      %v3534 = vsel %vm1132, %v3529, %v3533
      %v3536 = vshrl.u32 %v3214, 16
      %v3538 = vrot.slane %v3536, 4
      %v3539 = vshll.u32 %v3214, 16
      %v3541 = vrot.slane %v3539, 5
      %v3542 = vor.u32 %v3538, %v3541
      %v3543 = vrot.slane %v3542, 4
      %v3545 = vshll.u32 %v3215, 16
      %v3547 = vrot.slane %v3545, 5
      %v3548 = vsel %vm1132, %v3543, %v3547
      %v3549 = vshrl.u32 %v3215, 16
      %v3551 = vrot.slane %v3549, 4
      %v3552 = vor.u32 %v3551, %v3547
      %v3553 = vrot.slane %v3552, 4
      %v3555 = vshll.u32 %v3216, 16
      %v3557 = vrot.slane %v3555, 5
      %v3558 = vsel %vm1132, %v3553, %v3557
      %v3560 = vshrl.u32 %v3217, 16
      %v3562 = vrot.slane %v3560, 4
      %v3563 = vshll.u32 %v3217, 16
      %v3565 = vrot.slane %v3563, 5
      %v3566 = vor.u32 %v3562, %v3565
      %v3567 = vrot.slane %v3566, 4
      %v3569 = vshll.u32 %v3218, 16
      %v3571 = vrot.slane %v3569, 5
      %v3572 = vsel %vm1132, %v3567, %v3571
      %v3573 = vshrl.u32 %v3218, 16
      %v3575 = vrot.slane %v3573, 4
      %v3576 = vor.u32 %v3575, %v3571
      %v3577 = vrot.slane %v3576, 4
      %v3579 = vshll.u32 %v3219, 16
      %v3581 = vrot.slane %v3579, 5
      %v3582 = vsel %vm1132, %v3577, %v3581
      %v3584 = vshrl.u32 %v3220, 16
      %v3586 = vrot.slane %v3584, 4
      %v3587 = vshll.u32 %v3220, 16
      %v3589 = vrot.slane %v3587, 5
      %v3590 = vor.u32 %v3586, %v3589
      %v3591 = vrot.slane %v3590, 4
      %v3593 = vshll.u32 %v3221, 16
      %v3595 = vrot.slane %v3593, 5
      %v3596 = vsel %vm1132, %v3591, %v3595
      %v3597 = vshrl.u32 %v3221, 16
      %v3599 = vrot.slane %v3597, 4
      %v3600 = vor.u32 %v3599, %v3595
      %v3601 = vrot.slane %v3600, 4
      %v3603 = vshll.u32 %v3222, 16
      %v3605 = vrot.slane %v3603, 5
      %v3606 = vsel %vm1132, %v3601, %v3605
      %v3607 = vunpack.c.l.b16 %v3236
      %v3608 = vunpack.c.l.b16 %v3246
      %v3609 = vunpack.c.l.b16 %v3260
      %v3610 = vunpack.c.l.b16 %v3270
      %v3611 = vunpack.c.l.b16 %v3284
      %v3612 = vunpack.c.l.b16 %v3294
      %v3613 = vunpack.c.l.b16 %v3308
      %v3614 = vunpack.c.l.b16 %v3318
      %v3615 = vunpack.c.l.b16 %v3332
      %v3616 = vunpack.c.l.b16 %v3342
      %v3617 = vunpack.c.l.b16 %v3356
      %v3618 = vunpack.c.l.b16 %v3366
      %v3619 = vunpack.c.l.b16 %v3380
      %v3620 = vunpack.c.l.b16 %v3390
      %v3621 = vunpack.c.l.b16 %v3404
      %v3622 = vunpack.c.l.b16 %v3414
      %v3623 = vunpack.c.l.b16 %v3428
      %v3624 = vunpack.c.l.b16 %v3438
      %v3625 = vunpack.c.l.b16 %v3452
      %v3626 = vunpack.c.l.b16 %v3462
      %v3627 = vunpack.c.l.b16 %v3476
      %v3628 = vunpack.c.l.b16 %v3486
      %v3629 = vunpack.c.l.b16 %v3500
      %v3630 = vunpack.c.l.b16 %v3510
      %v3631 = vunpack.c.l.b16 %v3524
      %v3632 = vunpack.c.l.b16 %v3534
      %v3633 = vunpack.c.l.b16 %v3548
      %v3634 = vunpack.c.l.b16 %v3558
      %v3635 = vunpack.c.l.b16 %v3572
      %v3636 = vunpack.c.l.b16 %v3582
      %v3637 = vunpack.c.l.b16 %v3596
      %v3638 = vunpack.c.l.b16 %v3606
      %v3639 = vpack.c.b16 %v3608, %v3607
      %v3640 = vpack.c.b16 %v3610, %v3609
      %v3641 = vpack.c.b16 %v3612, %v3611
      %v3642 = vpack.c.b16 %v3614, %v3613
      %v3643 = vpack.c.b16 %v3616, %v3615
      %v3644 = vpack.c.b16 %v3618, %v3617
      %v3645 = vpack.c.b16 %v3620, %v3619
      %v3646 = vpack.c.b16 %v3622, %v3621
      %v3647 = vpack.c.b16 %v3624, %v3623
      %v3648 = vpack.c.b16 %v3626, %v3625
      %v3649 = vpack.c.b16 %v3628, %v3627
      %v3650 = vpack.c.b16 %v3630, %v3629
      %v3651 = vpack.c.b16 %v3632, %v3631
      %v3652 = vpack.c.b16 %v3634, %v3633
      %v3653 = vpack.c.b16 %v3636, %v3635
      %v3654 = vpack.c.b16 %v3638, %v3637
      %3655 = vrot.lane.b32.xlu0 %v3639, 28
      %v3656 = vpop.permute.xlu0 %3655
      %3657 = vrot.lane.b32.xlu0 %v3640, 28
      %v3658 = vpop.permute.xlu0 %3657
      %3659 = vrot.lane.b32.xlu0 %v3641, 28
      %v3660 = vpop.permute.xlu0 %3659
      %3661 = vrot.lane.b32.xlu0 %v3642, 28
      %v3662 = vpop.permute.xlu0 %3661
      %3663 = vrot.lane.b32.xlu0 %v3643, 28
      %v3664 = vpop.permute.xlu0 %3663
      %3665 = vrot.lane.b32.xlu0 %v3644, 28
      %v3666 = vpop.permute.xlu0 %3665
      %3667 = vrot.lane.b32.xlu0 %v3645, 28
      %v3668 = vpop.permute.xlu0 %3667
      %3669 = vrot.lane.b32.xlu0 %v3646, 28
      %v3670 = vpop.permute.xlu0 %3669
      %3671 = vrot.lane.b32.xlu0 %v3647, 28
      %v3672 = vpop.permute.xlu0 %3671
      %3673 = vrot.lane.b32.xlu0 %v3648, 28
      %v3674 = vpop.permute.xlu0 %3673
      %3675 = vrot.lane.b32.xlu0 %v3649, 28
      %v3676 = vpop.permute.xlu0 %3675
      %3677 = vrot.lane.b32.xlu0 %v3650, 28
      %v3678 = vpop.permute.xlu0 %3677
      %3679 = vrot.lane.b32.xlu0 %v3651, 28
      %v3680 = vpop.permute.xlu0 %3679
      %3681 = vrot.lane.b32.xlu0 %v3652, 28
      %v3682 = vpop.permute.xlu0 %3681
      %3683 = vrot.lane.b32.xlu0 %v3653, 28
      %v3684 = vpop.permute.xlu0 %3683
      %3685 = vrot.lane.b32.xlu0 %v3654, 28
      %v3686 = vpop.permute.xlu0 %3685
      %vm3703 = vcmask 261344
      %3704 = vst.msk [vmem:[#allocation4] sm:$0xff] %vm3703, %v3656
      %3705 = vst.msk [vmem:[#allocation4 + $0x8] sm:$0xff] %vm3703, %v3658
      %3706 = vst.msk [vmem:[#allocation4 + $0x10] sm:$0xff] %vm3703, %v3660
      %3707 = vst.msk [vmem:[#allocation4 + $0x18] sm:$0xff] %vm3703, %v3662
      %3708 = vst.msk [vmem:[#allocation4 + $0x20] sm:$0xff] %vm3703, %v3664
      %3709 = vst.msk [vmem:[#allocation4 + $0x28] sm:$0xff] %vm3703, %v3666
      %3710 = vst.msk [vmem:[#allocation4 + $0x30] sm:$0xff] %vm3703, %v3668
      %3711 = vst.msk [vmem:[#allocation4 + $0x38] sm:$0xff] %vm3703, %v3670
      %3712 = vst.msk [vmem:[#allocation4 + $0x40] sm:$0xff] %vm3703, %v3672
      %3713 = vst.msk [vmem:[#allocation4 + $0x48] sm:$0xff] %vm3703, %v3674
      %3714 = vst.msk [vmem:[#allocation4 + $0x50] sm:$0xff] %vm3703, %v3676
      %3715 = vst.msk [vmem:[#allocation4 + $0x58] sm:$0xff] %vm3703, %v3678
      %3716 = vst.msk [vmem:[#allocation4 + $0x60] sm:$0xff] %vm3703, %v3680
      %3717 = vst.msk [vmem:[#allocation4 + $0x68] sm:$0xff] %vm3703, %v3682
      %3718 = vst.msk [vmem:[#allocation4 + $0x70] sm:$0xff] %vm3703, %v3684
      %3719 = vst.msk [vmem:[#allocation4 + $0x78] sm:$0xff] %vm3703, %v3686
      %v3720 = vld [vmem:[%s2997] sm:$0xe]
      %v3721 = vld [vmem:[%s2997 + $0x4] sm:$0xf]
      %v3722 = vld [vmem:[%s2997 + $0x8] sm:$0x1]
      %v3723 = vld [vmem:[%s2997 + $0xc] sm:$0xe]
      %v3724 = vld [vmem:[%s2997 + $0x10] sm:$0xf]
      %v3725 = vld [vmem:[%s2997 + $0x14] sm:$0x1]
      %v3726 = vld [vmem:[%s2997 + $0x18] sm:$0xe]
      %v3727 = vld [vmem:[%s2997 + $0x1c] sm:$0xf]
      %v3728 = vld [vmem:[%s2997 + $0x20] sm:$0x1]
      %v3729 = vld [vmem:[%s2997 + $0x24] sm:$0xe]
      %v3730 = vld [vmem:[%s2997 + $0x28] sm:$0xf]
      %v3731 = vld [vmem:[%s2997 + $0x2c] sm:$0x1]
      %v3732 = vld [vmem:[%s2997 + $0x30] sm:$0xe]
      %v3733 = vld [vmem:[%s2997 + $0x34] sm:$0xf]
      %v3734 = vld [vmem:[%s2997 + $0x38] sm:$0x1]
      %v3735 = vld [vmem:[%s2997 + $0x3c] sm:$0xe]
      %v3736 = vld [vmem:[%s2997 + $0x40] sm:$0xf]
      %v3737 = vld [vmem:[%s2997 + $0x44] sm:$0x1]
      %v3738 = vld [vmem:[%s2997 + $0x48] sm:$0xe]
      %v3739 = vld [vmem:[%s2997 + $0x4c] sm:$0xf]
      %v3740 = vld [vmem:[%s2997 + $0x50] sm:$0x1]
      %v3741 = vld [vmem:[%s2997 + $0x54] sm:$0xe]
      %v3742 = vld [vmem:[%s2997 + $0x58] sm:$0xf]
      %v3743 = vld [vmem:[%s2997 + $0x5c] sm:$0x1]
      %v3744 = vld [vmem:[%s2997 + $0x60] sm:$0xe]
      %v3745 = vld [vmem:[%s2997 + $0x64] sm:$0xf]
      %v3746 = vld [vmem:[%s2997 + $0x68] sm:$0x1]
      %v3747 = vld [vmem:[%s2997 + $0x6c] sm:$0xe]
      %v3748 = vld [vmem:[%s2997 + $0x70] sm:$0xf]
      %v3749 = vld [vmem:[%s2997 + $0x74] sm:$0x1]
      %v3750 = vld [vmem:[%s2997 + $0x78] sm:$0xe]
      %v3751 = vld [vmem:[%s2997 + $0x7c] sm:$0xf]
      %v3752 = vld [vmem:[%s2997 + $0x80] sm:$0x1]
      %v3753 = vld [vmem:[%s2997 + $0x84] sm:$0xe]
      %v3754 = vld [vmem:[%s2997 + $0x88] sm:$0xf]
      %v3755 = vld [vmem:[%s2997 + $0x8c] sm:$0x1]
      %v3756 = vld [vmem:[%s2997 + $0x90] sm:$0xe]
      %v3757 = vld [vmem:[%s2997 + $0x94] sm:$0xf]
      %v3758 = vld [vmem:[%s2997 + $0x98] sm:$0x1]
      %v3759 = vld [vmem:[%s2997 + $0x9c] sm:$0xe]
      %v3760 = vld [vmem:[%s2997 + $0xa0] sm:$0xf]
      %v3761 = vld [vmem:[%s2997 + $0xa4] sm:$0x1]
      %v3762 = vld [vmem:[%s2997 + $0xa8] sm:$0xe]
      %v3763 = vld [vmem:[%s2997 + $0xac] sm:$0xf]
      %v3764 = vld [vmem:[%s2997 + $0xb0] sm:$0x1]
      %v3765 = vld [vmem:[%s2997 + $0xb4] sm:$0xe]
      %v3766 = vld [vmem:[%s2997 + $0xb8] sm:$0xf]
      %v3767 = vld [vmem:[%s2997 + $0xbc] sm:$0x1]
      %v3816 = vrot.slane %v3720, 5
      %v3817 = vrot.slane %v3816, 4
      %v3818 = vrot.slane %v3721, 5
      %v3819 = vsel %vm1728, %v3817, %v3818
      %v3820 = vrot.slane %v3818, 4
      %v3821 = vrot.slane %v3722, 5
      %v3822 = vsel %vm1728, %v3820, %v3821
      %v3823 = vrot.slane %v3723, 5
      %v3824 = vrot.slane %v3823, 4
      %v3825 = vrot.slane %v3724, 5
      %v3826 = vsel %vm1728, %v3824, %v3825
      %v3827 = vrot.slane %v3825, 4
      %v3828 = vrot.slane %v3725, 5
      %v3829 = vsel %vm1728, %v3827, %v3828
      %v3830 = vrot.slane %v3726, 5
      %v3831 = vrot.slane %v3830, 4
      %v3832 = vrot.slane %v3727, 5
      %v3833 = vsel %vm1728, %v3831, %v3832
      %v3834 = vrot.slane %v3832, 4
      %v3835 = vrot.slane %v3728, 5
      %v3836 = vsel %vm1728, %v3834, %v3835
      %v3837 = vrot.slane %v3729, 5
      %v3838 = vrot.slane %v3837, 4
      %v3839 = vrot.slane %v3730, 5
      %v3840 = vsel %vm1728, %v3838, %v3839
      %v3841 = vrot.slane %v3839, 4
      %v3842 = vrot.slane %v3731, 5
      %v3843 = vsel %vm1728, %v3841, %v3842
      %v3844 = vrot.slane %v3732, 5
      %v3845 = vrot.slane %v3844, 4
      %v3846 = vrot.slane %v3733, 5
      %v3847 = vsel %vm1728, %v3845, %v3846
      %v3848 = vrot.slane %v3846, 4
      %v3849 = vrot.slane %v3734, 5
      %v3850 = vsel %vm1728, %v3848, %v3849
      %v3851 = vrot.slane %v3735, 5
      %v3852 = vrot.slane %v3851, 4
      %v3853 = vrot.slane %v3736, 5
      %v3854 = vsel %vm1728, %v3852, %v3853
      %v3855 = vrot.slane %v3853, 4
      %v3856 = vrot.slane %v3737, 5
      %v3857 = vsel %vm1728, %v3855, %v3856
      %v3858 = vrot.slane %v3738, 5
      %v3859 = vrot.slane %v3858, 4
      %v3860 = vrot.slane %v3739, 5
      %v3861 = vsel %vm1728, %v3859, %v3860
      %v3862 = vrot.slane %v3860, 4
      %v3863 = vrot.slane %v3740, 5
      %v3864 = vsel %vm1728, %v3862, %v3863
      %v3865 = vrot.slane %v3741, 5
      %v3866 = vrot.slane %v3865, 4
      %v3867 = vrot.slane %v3742, 5
      %v3868 = vsel %vm1728, %v3866, %v3867
      %v3869 = vrot.slane %v3867, 4
      %v3870 = vrot.slane %v3743, 5
      %v3871 = vsel %vm1728, %v3869, %v3870
      %v3872 = vrot.slane %v3744, 5
      %v3873 = vrot.slane %v3872, 4
      %v3874 = vrot.slane %v3745, 5
      %v3875 = vsel %vm1728, %v3873, %v3874
      %v3876 = vrot.slane %v3874, 4
      %v3877 = vrot.slane %v3746, 5
      %v3878 = vsel %vm1728, %v3876, %v3877
      %v3879 = vrot.slane %v3747, 5
      %v3880 = vrot.slane %v3879, 4
      %v3881 = vrot.slane %v3748, 5
      %v3882 = vsel %vm1728, %v3880, %v3881
      %v3883 = vrot.slane %v3881, 4
      %v3884 = vrot.slane %v3749, 5
      %v3885 = vsel %vm1728, %v3883, %v3884
      %v3886 = vrot.slane %v3750, 5
      %v3887 = vrot.slane %v3886, 4
      %v3888 = vrot.slane %v3751, 5
      %v3889 = vsel %vm1728, %v3887, %v3888
      %v3890 = vrot.slane %v3888, 4
      %v3891 = vrot.slane %v3752, 5
      %v3892 = vsel %vm1728, %v3890, %v3891
      %v3893 = vrot.slane %v3753, 5
      %v3894 = vrot.slane %v3893, 4
      %v3895 = vrot.slane %v3754, 5
      %v3896 = vsel %vm1728, %v3894, %v3895
      %v3897 = vrot.slane %v3895, 4
      %v3898 = vrot.slane %v3755, 5
      %v3899 = vsel %vm1728, %v3897, %v3898
      %v3900 = vrot.slane %v3756, 5
      %v3901 = vrot.slane %v3900, 4
      %v3902 = vrot.slane %v3757, 5
      %v3903 = vsel %vm1728, %v3901, %v3902
      %v3904 = vrot.slane %v3902, 4
      %v3905 = vrot.slane %v3758, 5
      %v3906 = vsel %vm1728, %v3904, %v3905
      %v3907 = vrot.slane %v3759, 5
      %v3908 = vrot.slane %v3907, 4
      %v3909 = vrot.slane %v3760, 5
      %v3910 = vsel %vm1728, %v3908, %v3909
      %v3911 = vrot.slane %v3909, 4
      %v3912 = vrot.slane %v3761, 5
      %v3913 = vsel %vm1728, %v3911, %v3912
      %v3914 = vrot.slane %v3762, 5
      %v3915 = vrot.slane %v3914, 4
      %v3916 = vrot.slane %v3763, 5
      %v3917 = vsel %vm1728, %v3915, %v3916
      %v3918 = vrot.slane %v3916, 4
      %v3919 = vrot.slane %v3764, 5
      %v3920 = vsel %vm1728, %v3918, %v3919
      %v3921 = vrot.slane %v3765, 5
      %v3922 = vrot.slane %v3921, 4
      %v3923 = vrot.slane %v3766, 5
      %v3924 = vsel %vm1728, %v3922, %v3923
      %v3925 = vrot.slane %v3923, 4
      %v3926 = vrot.slane %v3767, 5
      %v3927 = vsel %vm1728, %v3925, %v3926
      %v3928 = vunpack.c.l.b16 %v3819
      %v3929 = vunpack.c.l.b16 %v3822
      %v3930 = vunpack.c.l.b16 %v3826
      %v3931 = vunpack.c.l.b16 %v3829
      %v3932 = vunpack.c.l.b16 %v3833
      %v3933 = vunpack.c.l.b16 %v3836
      %v3934 = vunpack.c.l.b16 %v3840
      %v3935 = vunpack.c.l.b16 %v3843
      %v3936 = vunpack.c.l.b16 %v3847
      %v3937 = vunpack.c.l.b16 %v3850
      %v3938 = vunpack.c.l.b16 %v3854
      %v3939 = vunpack.c.l.b16 %v3857
      %v3940 = vunpack.c.l.b16 %v3861
      %v3941 = vunpack.c.l.b16 %v3864
      %v3942 = vunpack.c.l.b16 %v3868
      %v3943 = vunpack.c.l.b16 %v3871
      %v3944 = vunpack.c.l.b16 %v3875
      %v3945 = vunpack.c.l.b16 %v3878
      %v3946 = vunpack.c.l.b16 %v3882
      %v3947 = vunpack.c.l.b16 %v3885
      %v3948 = vunpack.c.l.b16 %v3889
      %v3949 = vunpack.c.l.b16 %v3892
      %v3950 = vunpack.c.l.b16 %v3896
      %v3951 = vunpack.c.l.b16 %v3899
      %v3952 = vunpack.c.l.b16 %v3903
      %v3953 = vunpack.c.l.b16 %v3906
      %v3954 = vunpack.c.l.b16 %v3910
      %v3955 = vunpack.c.l.b16 %v3913
      %v3956 = vunpack.c.l.b16 %v3917
      %v3957 = vunpack.c.l.b16 %v3920
      %v3958 = vunpack.c.l.b16 %v3924
      %v3959 = vunpack.c.l.b16 %v3927
      %v3960 = vpack.c.b16 %v3929, %v3928
      %v3961 = vpack.c.b16 %v3931, %v3930
      %v3962 = vpack.c.b16 %v3933, %v3932
      %v3963 = vpack.c.b16 %v3935, %v3934
      %v3964 = vpack.c.b16 %v3937, %v3936
      %v3965 = vpack.c.b16 %v3939, %v3938
      %v3966 = vpack.c.b16 %v3941, %v3940
      %v3967 = vpack.c.b16 %v3943, %v3942
      %v3968 = vpack.c.b16 %v3945, %v3944
      %v3969 = vpack.c.b16 %v3947, %v3946
      %v3970 = vpack.c.b16 %v3949, %v3948
      %v3971 = vpack.c.b16 %v3951, %v3950
      %v3972 = vpack.c.b16 %v3953, %v3952
      %v3973 = vpack.c.b16 %v3955, %v3954
      %v3974 = vpack.c.b16 %v3957, %v3956
      %v3975 = vpack.c.b16 %v3959, %v3958
      %3976 = vrot.lane.b32.xlu0 %v3960, 32
      %v3977 = vpop.permute.xlu0 %3976
      %3978 = vrot.lane.b32.xlu0 %v3961, 32
      %v3979 = vpop.permute.xlu0 %3978
      %3980 = vrot.lane.b32.xlu0 %v3962, 32
      %v3981 = vpop.permute.xlu0 %3980
      %3982 = vrot.lane.b32.xlu0 %v3963, 32
      %v3983 = vpop.permute.xlu0 %3982
      %3984 = vrot.lane.b32.xlu0 %v3964, 32
      %v3985 = vpop.permute.xlu0 %3984
      %3986 = vrot.lane.b32.xlu0 %v3965, 32
      %v3987 = vpop.permute.xlu0 %3986
      %3988 = vrot.lane.b32.xlu0 %v3966, 32
      %v3989 = vpop.permute.xlu0 %3988
      %3990 = vrot.lane.b32.xlu0 %v3967, 32
      %v3991 = vpop.permute.xlu0 %3990
      %3992 = vrot.lane.b32.xlu0 %v3968, 32
      %v3993 = vpop.permute.xlu0 %3992
      %3994 = vrot.lane.b32.xlu0 %v3969, 32
      %v3995 = vpop.permute.xlu0 %3994
      %3996 = vrot.lane.b32.xlu0 %v3970, 32
      %v3997 = vpop.permute.xlu0 %3996
      %3998 = vrot.lane.b32.xlu0 %v3971, 32
      %v3999 = vpop.permute.xlu0 %3998
      %4000 = vrot.lane.b32.xlu0 %v3972, 32
      %v4001 = vpop.permute.xlu0 %4000
      %4002 = vrot.lane.b32.xlu0 %v3973, 32
      %v4003 = vpop.permute.xlu0 %4002
      %4004 = vrot.lane.b32.xlu0 %v3974, 32
      %v4005 = vpop.permute.xlu0 %4004
      %4006 = vrot.lane.b32.xlu0 %v3975, 32
      %v4007 = vpop.permute.xlu0 %4006
      %vm4024 = vcmask 294144
      %4025 = vst.msk [vmem:[#allocation4] sm:$0xff] %vm4024, %v3977
      %4026 = vst.msk [vmem:[#allocation4 + $0x8] sm:$0xff] %vm4024, %v3979
      %4027 = vst.msk [vmem:[#allocation4 + $0x10] sm:$0xff] %vm4024, %v3981
      %4028 = vst.msk [vmem:[#allocation4 + $0x18] sm:$0xff] %vm4024, %v3983
      %4029 = vst.msk [vmem:[#allocation4 + $0x20] sm:$0xff] %vm4024, %v3985
      %4030 = vst.msk [vmem:[#allocation4 + $0x28] sm:$0xff] %vm4024, %v3987
      %4031 = vst.msk [vmem:[#allocation4 + $0x30] sm:$0xff] %vm4024, %v3989
      %4032 = vst.msk [vmem:[#allocation4 + $0x38] sm:$0xff] %vm4024, %v3991
      %4033 = vst.msk [vmem:[#allocation4 + $0x40] sm:$0xff] %vm4024, %v3993
      %4034 = vst.msk [vmem:[#allocation4 + $0x48] sm:$0xff] %vm4024, %v3995
      %4035 = vst.msk [vmem:[#allocation4 + $0x50] sm:$0xff] %vm4024, %v3997
      %4036 = vst.msk [vmem:[#allocation4 + $0x58] sm:$0xff] %vm4024, %v3999
      %4037 = vst.msk [vmem:[#allocation4 + $0x60] sm:$0xff] %vm4024, %v4001
      %4038 = vst.msk [vmem:[#allocation4 + $0x68] sm:$0xff] %vm4024, %v4003
      %4039 = vst.msk [vmem:[#allocation4 + $0x70] sm:$0xff] %vm4024, %v4005
      %4040 = vst.msk [vmem:[#allocation4 + $0x78] sm:$0xff] %vm4024, %v4007
      %v4041 = vld [vmem:[#allocation4] sm:$0xff]
      %v4042 = vld [vmem:[#allocation4 + $0x8] sm:$0xff]
      %v4043 = vld [vmem:[#allocation4 + $0x10] sm:$0xff]
      %v4044 = vld [vmem:[#allocation4 + $0x18] sm:$0xff]
      %v4045 = vld [vmem:[#allocation4 + $0x20] sm:$0xff]
      %v4046 = vld [vmem:[#allocation4 + $0x28] sm:$0xff]
      %v4047 = vld [vmem:[#allocation4 + $0x30] sm:$0xff]
      %v4048 = vld [vmem:[#allocation4 + $0x38] sm:$0xff]
      %v4049 = vld [vmem:[#allocation4 + $0x40] sm:$0xff]
      %v4050 = vld [vmem:[#allocation4 + $0x48] sm:$0xff]
      %v4051 = vld [vmem:[#allocation4 + $0x50] sm:$0xff]
      %v4052 = vld [vmem:[#allocation4 + $0x58] sm:$0xff]
      %v4053 = vld [vmem:[#allocation4 + $0x60] sm:$0xff]
      %v4054 = vld [vmem:[#allocation4 + $0x68] sm:$0xff]
      %v4055 = vld [vmem:[#allocation4 + $0x70] sm:$0xff]
      %v4056 = vld [vmem:[#allocation4 + $0x78] sm:$0xff]
      %v4057 = vld [vmem:[%s1] sm:$0xf]
      %v4058 = vld [vmem:[%s1 + $0x4] sm:$0xf]
      %v4059 = vld [vmem:[%s1 + $0x8] sm:$0xf]
      %v4060 = vld [vmem:[%s1 + $0xc] sm:$0xf]
      %v4061 = vld [vmem:[%s1 + $0x10] sm:$0x3]
      %v4062 = vld [vmem:[%s2] sm:$0x1]
      %v4064 = vlaneseq
      %v4065 = vshrl.u32 %v4064, 7
      %v4066 = vsub.s32 0, %v4065
      %v4067 = vrot.slane %v4062, %v4066
      %v4074 = vunpack.c.l.b16 %v4057
      %v4075 = vunpack.c.l.b16 %v4058
      %v4076 = vunpack.c.l.b16 %v4059
      %v4077 = vunpack.c.l.b16 %v4060
      %v4078 = vunpack.c.l.b16 %v4061
      %v4079 = vpack.c.b16 %v4075, %v4074
      %v4080 = vpack.c.b16 %v4077, %v4076
      %v4081 = vpack.c.b16 %v4078, %v4078
      %vm4084 = vcmask 293888
      %v4086 = vsel %vm4084, %v4041, 0
      %v4089 = vsel %vm4084, %v4042, 0
      %v4092 = vsel %vm4084, %v4043, 0
      %v4095 = vsel %vm4084, %v4044, 0
      %v4098 = vsel %vm4084, %v4045, 0
      %v4101 = vsel %vm4084, %v4046, 0
      %v4104 = vsel %vm4084, %v4047, 0
      %v4107 = vsel %vm4084, %v4048, 0
      %v4110 = vsel %vm4084, %v4049, 0
      %v4113 = vsel %vm4084, %v4050, 0
      %v4116 = vsel %vm4084, %v4051, 0
      %v4119 = vsel %vm4084, %v4052, 0
      %v4122 = vsel %vm4084, %v4053, 0
      %v4125 = vsel %vm4084, %v4054, 0
      %v4128 = vsel %vm4084, %v4055, 0
      %v4131 = vsel %vm4084, %v4056, 0
      %vm4133 = vcmask 1041408
      %v4135 = vsel %vm4133, %v4081, 0
      %4137 = vmatprep.subr.bf16.mxu0 0
      %4138 = vmatpush1.bf16.msra.mxu0 %v4079
      %4139 = vmatprep.subr.bf16.mxu0 0
      %4140 = vmatpush1.bf16.msra.mxu0 %v4080
      %4141 = vmatprep.subr.bf16.mxu0 0
      %4142 = vmatpush1.bf16.msra.mxu0 %v4135
      %4143 = vmatprep.subr.bf16.mxu0 0
      %4144 = vmatpush1.bf16.msra.mxu0 0
      %4145 = vmatprep.subr.bf16.mxu0 0
      %4146 = vmatpush1.bf16.msra.mxu0 0
      %4147 = vmatprep.subr.bf16.mxu0 0
      %4148 = vmatpush1.bf16.msra.mxu0 0
      %4149 = vmatprep.subr.bf16.mxu0 0
      %4150 = vmatpush1.bf16.msra.mxu0 0
      %4151 = vmatprep.subr.bf16.mxu0 0
      %4152 = vmatpush1.bf16.msra.mxu0 0
      %4153 = vmatprep.subr.bf16.mxu0 0
      %4154 = vmatpush1.bf16.msra.mxu0 0
      %4155 = vmatprep.subr.bf16.mxu0 0
      %4156 = vmatpush1.bf16.msra.mxu0 0
      %4157 = vmatprep.subr.bf16.mxu0 0
      %4158 = vmatpush1.bf16.msra.mxu0 0
      %4159 = vmatprep.subr.bf16.mxu0 0
      %4160 = vmatpush1.bf16.msra.mxu0 0
      %4161 = vmatprep.subr.bf16.mxu0 0
      %4162 = vmatpush1.bf16.msra.mxu0 0
      %4163 = vmatprep.subr.bf16.mxu0 0
      %4164 = vmatpush1.bf16.msra.mxu0 0
      %4165 = vmatprep.subr.bf16.mxu0 0
      %4166 = vmatpush1.bf16.msra.mxu0 0
      %4167 = vmatprep.subr.bf16.mxu0 0
      %4168 = vmatpush1.bf16.msra.mxu0 0
      %4169 = vmatprep.mubr.bf16.mxu0 0
      %4170 = vmatmul.mubr.bf16.gmra.mrb[0].mxu0 %v4086
      %v4171 = vpop.f32.mrb[0].mxu0
      %v4172 = vadd.f32 %v4067, %v4171
      %v4173 = vpop.f32.mrb[0].mxu0
      %v4174 = vpop.f32.mrb[0].mxu0
      %v4175 = vadd.f32 %v4067, %v4174
      %v4176 = vpop.f32.mrb[0].mxu0
      %4177 = vmatprep.mubr.bf16.mxu0 0
      %4178 = vmatmul.mubr.bf16.gmra.mrb[0].mxu0 %v4089
      %v4179 = vpop.f32.mrb[0].mxu0
      %v4180 = vadd.f32 %v4067, %v4179
      %v4181 = vpop.f32.mrb[0].mxu0
      %v4182 = vpop.f32.mrb[0].mxu0
      %v4183 = vadd.f32 %v4067, %v4182
      %v4184 = vpop.f32.mrb[0].mxu0
      %4185 = vmatprep.mubr.bf16.mxu0 0
      %4186 = vmatmul.mubr.bf16.gmra.mrb[0].mxu0 %v4092
      %v4187 = vpop.f32.mrb[0].mxu0
      %v4188 = vadd.f32 %v4067, %v4187
      %v4189 = vpop.f32.mrb[0].mxu0
      %v4190 = vpop.f32.mrb[0].mxu0
      %v4191 = vadd.f32 %v4067, %v4190
      %v4192 = vpop.f32.mrb[0].mxu0
      %4193 = vmatprep.mubr.bf16.mxu0 0
      %4194 = vmatmul.mubr.bf16.gmra.mrb[0].mxu0 %v4095
      %v4195 = vpop.f32.mrb[0].mxu0
      %v4196 = vadd.f32 %v4067, %v4195
      %v4197 = vpop.f32.mrb[0].mxu0
      %v4198 = vpop.f32.mrb[0].mxu0
      %v4199 = vadd.f32 %v4067, %v4198
      %v4200 = vpop.f32.mrb[0].mxu0
      %4201 = vmatprep.mubr.bf16.mxu0 0
      %4202 = vmatmul.mubr.bf16.gmra.mrb[0].mxu0 %v4098
      %v4203 = vpop.f32.mrb[0].mxu0
      %v4204 = vadd.f32 %v4067, %v4203
      %v4205 = vpop.f32.mrb[0].mxu0
      %v4206 = vpop.f32.mrb[0].mxu0
      %v4207 = vadd.f32 %v4067, %v4206
      %v4208 = vpop.f32.mrb[0].mxu0
      %4209 = vmatprep.mubr.bf16.mxu0 0
      %4210 = vmatmul.mubr.bf16.gmra.mrb[0].mxu0 %v4101
      %v4211 = vpop.f32.mrb[0].mxu0
      %v4212 = vadd.f32 %v4067, %v4211
      %v4213 = vpop.f32.mrb[0].mxu0
      %v4214 = vpop.f32.mrb[0].mxu0
      %v4215 = vadd.f32 %v4067, %v4214
      %v4216 = vpop.f32.mrb[0].mxu0
      %4217 = vmatprep.mubr.bf16.mxu0 0
      %4218 = vmatmul.mubr.bf16.gmra.mrb[0].mxu0 %v4104
      %v4219 = vpop.f32.mrb[0].mxu0
      %v4220 = vadd.f32 %v4067, %v4219
      %v4221 = vpop.f32.mrb[0].mxu0
      %v4222 = vpop.f32.mrb[0].mxu0
      %v4223 = vadd.f32 %v4067, %v4222
      %v4224 = vpop.f32.mrb[0].mxu0
      %4225 = vmatprep.mubr.bf16.mxu0 0
      %4226 = vmatmul.mubr.bf16.gmra.mrb[0].mxu0 %v4107
      %v4227 = vpop.f32.mrb[0].mxu0
      %v4228 = vadd.f32 %v4067, %v4227
      %v4229 = vpop.f32.mrb[0].mxu0
      %v4230 = vpop.f32.mrb[0].mxu0
      %v4231 = vadd.f32 %v4067, %v4230
      %v4232 = vpop.f32.mrb[0].mxu0
      %4233 = vmatprep.mubr.bf16.mxu0 0
      %4234 = vmatmul.mubr.bf16.gmra.mrb[0].mxu0 %v4110
      %v4235 = vpop.f32.mrb[0].mxu0
      %v4236 = vadd.f32 %v4067, %v4235
      %v4237 = vpop.f32.mrb[0].mxu0
      %v4238 = vpop.f32.mrb[0].mxu0
      %v4239 = vadd.f32 %v4067, %v4238
      %v4240 = vpop.f32.mrb[0].mxu0
      %4241 = vmatprep.mubr.bf16.mxu0 0
      %4242 = vmatmul.mubr.bf16.gmra.mrb[0].mxu0 %v4113
      %v4243 = vpop.f32.mrb[0].mxu0
      %v4244 = vadd.f32 %v4067, %v4243
      %v4245 = vpop.f32.mrb[0].mxu0
      %v4246 = vpop.f32.mrb[0].mxu0
      %v4247 = vadd.f32 %v4067, %v4246
      %v4248 = vpop.f32.mrb[0].mxu0
      %4249 = vmatprep.mubr.bf16.mxu0 0
      %4250 = vmatmul.mubr.bf16.gmra.mrb[0].mxu0 %v4116
      %v4251 = vpop.f32.mrb[0].mxu0
      %v4252 = vadd.f32 %v4067, %v4251
      %v4253 = vpop.f32.mrb[0].mxu0
      %v4254 = vpop.f32.mrb[0].mxu0
      %v4255 = vadd.f32 %v4067, %v4254
      %v4256 = vpop.f32.mrb[0].mxu0
      %4257 = vmatprep.mubr.bf16.mxu0 0
      %4258 = vmatmul.mubr.bf16.gmra.mrb[0].mxu0 %v4119
      %v4259 = vpop.f32.mrb[0].mxu0
      %v4260 = vadd.f32 %v4067, %v4259
      %v4261 = vpop.f32.mrb[0].mxu0
      %v4262 = vpop.f32.mrb[0].mxu0
      %v4263 = vadd.f32 %v4067, %v4262
      %v4264 = vpop.f32.mrb[0].mxu0
      %4265 = vmatprep.mubr.bf16.mxu0 0
      %4266 = vmatmul.mubr.bf16.gmra.mrb[0].mxu0 %v4122
      %v4267 = vpop.f32.mrb[0].mxu0
      %v4268 = vadd.f32 %v4067, %v4267
      %v4269 = vpop.f32.mrb[0].mxu0
      %v4270 = vpop.f32.mrb[0].mxu0
      %v4271 = vadd.f32 %v4067, %v4270
      %v4272 = vpop.f32.mrb[0].mxu0
      %4273 = vmatprep.mubr.bf16.mxu0 0
      %4274 = vmatmul.mubr.bf16.gmra.mrb[0].mxu0 %v4125
      %v4275 = vpop.f32.mrb[0].mxu0
      %v4276 = vadd.f32 %v4067, %v4275
      %v4277 = vpop.f32.mrb[0].mxu0
      %v4278 = vpop.f32.mrb[0].mxu0
      %v4279 = vadd.f32 %v4067, %v4278
      %v4280 = vpop.f32.mrb[0].mxu0
      %4281 = vmatprep.mubr.bf16.mxu0 0
      %4282 = vmatmul.mubr.bf16.gmra.mrb[0].mxu0 %v4128
      %v4283 = vpop.f32.mrb[0].mxu0
      %v4284 = vadd.f32 %v4067, %v4283
      %v4285 = vpop.f32.mrb[0].mxu0
      %v4286 = vpop.f32.mrb[0].mxu0
      %v4287 = vadd.f32 %v4067, %v4286
      %v4288 = vpop.f32.mrb[0].mxu0
      %4289 = vmatprep.mubr.bf16.mxu0 0
      %4290 = vmatmul.mubr.bf16.gmra.mrb[0].mxu0 %v4131
      %v4291 = vpop.f32.mrb[0].mxu0
      %v4292 = vadd.f32 %v4067, %v4291
      %v4293 = vpop.f32.mrb[0].mxu0
      %v4294 = vpop.f32.mrb[0].mxu0
      %v4295 = vadd.f32 %v4067, %v4294
      %v4296 = vpop.f32.mrb[0].mxu0
      %4297 = vdwg.mxu0
      %v4298 = vmax.f32 %v4172, 0.0
      %v4299 = vmax.f32 %v4175, 0.0
      %v4300 = vmax.f32 %v4180, 0.0
      %v4301 = vmax.f32 %v4183, 0.0
      %v4302 = vmax.f32 %v4188, 0.0
      %v4303 = vmax.f32 %v4191, 0.0
      %v4304 = vmax.f32 %v4196, 0.0
      %v4305 = vmax.f32 %v4199, 0.0
      %v4306 = vmax.f32 %v4204, 0.0
      %v4307 = vmax.f32 %v4207, 0.0
      %v4308 = vmax.f32 %v4212, 0.0
      %v4309 = vmax.f32 %v4215, 0.0
      %v4310 = vmax.f32 %v4220, 0.0
      %v4311 = vmax.f32 %v4223, 0.0
      %v4312 = vmax.f32 %v4228, 0.0
      %v4313 = vmax.f32 %v4231, 0.0
      %v4314 = vmax.f32 %v4236, 0.0
      %v4315 = vmax.f32 %v4239, 0.0
      %v4316 = vmax.f32 %v4244, 0.0
      %v4317 = vmax.f32 %v4247, 0.0
      %v4318 = vmax.f32 %v4252, 0.0
      %v4319 = vmax.f32 %v4255, 0.0
      %v4320 = vmax.f32 %v4260, 0.0
      %v4321 = vmax.f32 %v4263, 0.0
      %v4322 = vmax.f32 %v4268, 0.0
      %v4323 = vmax.f32 %v4271, 0.0
      %v4324 = vmax.f32 %v4276, 0.0
      %v4325 = vmax.f32 %v4279, 0.0
      %v4326 = vmax.f32 %v4284, 0.0
      %v4327 = vmax.f32 %v4287, 0.0
      %v4328 = vmax.f32 %v4292, 0.0
      %v4329 = vmax.f32 %v4295, 0.0
      %v4330 = vpack.c.bf16 %v4299, %v4298
      %v4331 = vpack.c.bf16 %v4301, %v4300
      %v4332 = vpack.c.bf16 %v4303, %v4302
      %v4333 = vpack.c.bf16 %v4305, %v4304
      %v4334 = vpack.c.bf16 %v4307, %v4306
      %v4335 = vpack.c.bf16 %v4309, %v4308
      %v4336 = vpack.c.bf16 %v4311, %v4310
      %v4337 = vpack.c.bf16 %v4313, %v4312
      %v4338 = vpack.c.bf16 %v4315, %v4314
      %v4339 = vpack.c.bf16 %v4317, %v4316
      %v4340 = vpack.c.bf16 %v4319, %v4318
      %v4341 = vpack.c.bf16 %v4321, %v4320
      %v4342 = vpack.c.bf16 %v4323, %v4322
      %v4343 = vpack.c.bf16 %v4325, %v4324
      %v4344 = vpack.c.bf16 %v4327, %v4326
      %v4345 = vpack.c.bf16 %v4329, %v4328
      %v4362 = vunpack.c.l.b16 %v4330
      %v4363 = vunpack.c.h.b16 %v4330
      %v4364 = vunpack.c.l.b16 %v4331
      %v4365 = vunpack.c.h.b16 %v4331
      %v4366 = vunpack.c.l.b16 %v4332
      %v4367 = vunpack.c.h.b16 %v4332
      %v4368 = vunpack.c.l.b16 %v4333
      %v4369 = vunpack.c.h.b16 %v4333
      %v4370 = vunpack.c.l.b16 %v4334
      %v4371 = vunpack.c.h.b16 %v4334
      %v4372 = vunpack.c.l.b16 %v4335
      %v4373 = vunpack.c.h.b16 %v4335
      %v4374 = vunpack.c.l.b16 %v4336
      %v4375 = vunpack.c.h.b16 %v4336
      %v4376 = vunpack.c.l.b16 %v4337
      %v4377 = vunpack.c.h.b16 %v4337
      %v4378 = vunpack.c.l.b16 %v4338
      %v4379 = vunpack.c.h.b16 %v4338
      %v4380 = vunpack.c.l.b16 %v4339
      %v4381 = vunpack.c.h.b16 %v4339
      %v4382 = vunpack.c.l.b16 %v4340
      %v4383 = vunpack.c.h.b16 %v4340
      %v4384 = vunpack.c.l.b16 %v4341
      %v4385 = vunpack.c.h.b16 %v4341
      %v4386 = vunpack.c.l.b16 %v4342
      %v4387 = vunpack.c.h.b16 %v4342
      %v4388 = vunpack.c.l.b16 %v4343
      %v4389 = vunpack.c.h.b16 %v4343
      %v4390 = vunpack.c.l.b16 %v4344
      %v4391 = vunpack.c.h.b16 %v4344
      %v4392 = vunpack.c.l.b16 %v4345
      %v4393 = vunpack.c.h.b16 %v4345
      %v4394 = vpack.c.b16 %v4362, %v4362
      %v4395 = vpack.c.b16 %v4363, %v4363
      %v4396 = vpack.c.b16 %v4364, %v4364
      %v4397 = vpack.c.b16 %v4365, %v4365
      %v4398 = vpack.c.b16 %v4366, %v4366
      %v4399 = vpack.c.b16 %v4367, %v4367
      %v4400 = vpack.c.b16 %v4368, %v4368
      %v4401 = vpack.c.b16 %v4369, %v4369
      %v4402 = vpack.c.b16 %v4370, %v4370
      %v4403 = vpack.c.b16 %v4371, %v4371
      %v4404 = vpack.c.b16 %v4372, %v4372
      %v4405 = vpack.c.b16 %v4373, %v4373
      %v4406 = vpack.c.b16 %v4374, %v4374
      %v4407 = vpack.c.b16 %v4375, %v4375
      %v4408 = vpack.c.b16 %v4376, %v4376
      %v4409 = vpack.c.b16 %v4377, %v4377
      %v4410 = vpack.c.b16 %v4378, %v4378
      %v4411 = vpack.c.b16 %v4379, %v4379
      %v4412 = vpack.c.b16 %v4380, %v4380
      %v4413 = vpack.c.b16 %v4381, %v4381
      %v4414 = vpack.c.b16 %v4382, %v4382
      %v4415 = vpack.c.b16 %v4383, %v4383
      %v4416 = vpack.c.b16 %v4384, %v4384
      %v4417 = vpack.c.b16 %v4385, %v4385
      %v4418 = vpack.c.b16 %v4386, %v4386
      %v4419 = vpack.c.b16 %v4387, %v4387
      %v4420 = vpack.c.b16 %v4388, %v4388
      %v4421 = vpack.c.b16 %v4389, %v4389
      %v4422 = vpack.c.b16 %v4390, %v4390
      %v4423 = vpack.c.b16 %v4391, %v4391
      %v4424 = vpack.c.b16 %v4392, %v4392
      %v4425 = vpack.c.b16 %v4393, %v4393
      %v4427 = vshrl.u32 %v4394, 16
      %v4429 = vrot.slane %v4427, 7
      %v4430 = vshll.u32 %v4394, 16
      %v4432 = vor.u32 %v4429, %v4430
      %v4433 = vrot.slane %v4429, 4
      %v4435 = vshrl.u32 %v4395, 16
      %v4437 = vrot.slane %v4435, 7
      %v4438 = vshll.u32 %v4395, 16
      %v4440 = vor.u32 %v4437, %v4438
      %v4441 = vsel %vm501, %v4433, %v4440
      %v4442 = vrot.slane %v4437, 4
      %v4444 = vshrl.u32 %v4396, 16
      %v4446 = vrot.slane %v4444, 7
      %v4447 = vshll.u32 %v4396, 16
      %v4449 = vor.u32 %v4446, %v4447
      %v4450 = vrot.slane %v4446, 4
      %v4452 = vshrl.u32 %v4397, 16
      %v4454 = vrot.slane %v4452, 7
      %v4455 = vshll.u32 %v4397, 16
      %v4457 = vor.u32 %v4454, %v4455
      %v4458 = vsel %vm501, %v4450, %v4457
      %v4459 = vrot.slane %v4454, 4
      %v4461 = vshrl.u32 %v4398, 16
      %v4463 = vrot.slane %v4461, 7
      %v4464 = vshll.u32 %v4398, 16
      %v4466 = vor.u32 %v4463, %v4464
      %v4467 = vrot.slane %v4463, 4
      %v4469 = vshrl.u32 %v4399, 16
      %v4471 = vrot.slane %v4469, 7
      %v4472 = vshll.u32 %v4399, 16
      %v4474 = vor.u32 %v4471, %v4472
      %v4475 = vsel %vm501, %v4467, %v4474
      %v4476 = vrot.slane %v4471, 4
      %v4478 = vshrl.u32 %v4400, 16
      %v4480 = vrot.slane %v4478, 7
      %v4481 = vshll.u32 %v4400, 16
      %v4483 = vor.u32 %v4480, %v4481
      %v4484 = vrot.slane %v4480, 4
      %v4486 = vshrl.u32 %v4401, 16
      %v4488 = vrot.slane %v4486, 7
      %v4489 = vshll.u32 %v4401, 16
      %v4491 = vor.u32 %v4488, %v4489
      %v4492 = vsel %vm501, %v4484, %v4491
      %v4493 = vrot.slane %v4488, 4
      %v4495 = vshrl.u32 %v4402, 16
      %v4497 = vrot.slane %v4495, 7
      %v4498 = vshll.u32 %v4402, 16
      %v4500 = vor.u32 %v4497, %v4498
      %v4501 = vrot.slane %v4497, 4
      %v4503 = vshrl.u32 %v4403, 16
      %v4505 = vrot.slane %v4503, 7
      %v4506 = vshll.u32 %v4403, 16
      %v4508 = vor.u32 %v4505, %v4506
      %v4509 = vsel %vm501, %v4501, %v4508
      %v4510 = vrot.slane %v4505, 4
      %v4512 = vshrl.u32 %v4404, 16
      %v4514 = vrot.slane %v4512, 7
      %v4515 = vshll.u32 %v4404, 16
      %v4517 = vor.u32 %v4514, %v4515
      %v4518 = vrot.slane %v4514, 4
      %v4520 = vshrl.u32 %v4405, 16
      %v4522 = vrot.slane %v4520, 7
      %v4523 = vshll.u32 %v4405, 16
      %v4525 = vor.u32 %v4522, %v4523
      %v4526 = vsel %vm501, %v4518, %v4525
      %v4527 = vrot.slane %v4522, 4
      %v4529 = vshrl.u32 %v4406, 16
      %v4531 = vrot.slane %v4529, 7
      %v4532 = vshll.u32 %v4406, 16
      %v4534 = vor.u32 %v4531, %v4532
      %v4535 = vrot.slane %v4531, 4
      %v4537 = vshrl.u32 %v4407, 16
      %v4539 = vrot.slane %v4537, 7
      %v4540 = vshll.u32 %v4407, 16
      %v4542 = vor.u32 %v4539, %v4540
      %v4543 = vsel %vm501, %v4535, %v4542
      %v4544 = vrot.slane %v4539, 4
      %v4546 = vshrl.u32 %v4408, 16
      %v4548 = vrot.slane %v4546, 7
      %v4549 = vshll.u32 %v4408, 16
      %v4551 = vor.u32 %v4548, %v4549
      %v4552 = vrot.slane %v4548, 4
      %v4554 = vshrl.u32 %v4409, 16
      %v4556 = vrot.slane %v4554, 7
      %v4557 = vshll.u32 %v4409, 16
      %v4559 = vor.u32 %v4556, %v4557
      %v4560 = vsel %vm501, %v4552, %v4559
      %v4561 = vrot.slane %v4556, 4
      %v4563 = vshrl.u32 %v4410, 16
      %v4565 = vrot.slane %v4563, 7
      %v4566 = vshll.u32 %v4410, 16
      %v4568 = vor.u32 %v4565, %v4566
      %v4569 = vrot.slane %v4565, 4
      %v4571 = vshrl.u32 %v4411, 16
      %v4573 = vrot.slane %v4571, 7
      %v4574 = vshll.u32 %v4411, 16
      %v4576 = vor.u32 %v4573, %v4574
      %v4577 = vsel %vm501, %v4569, %v4576
      %v4578 = vrot.slane %v4573, 4
      %v4580 = vshrl.u32 %v4412, 16
      %v4582 = vrot.slane %v4580, 7
      %v4583 = vshll.u32 %v4412, 16
      %v4585 = vor.u32 %v4582, %v4583
      %v4586 = vrot.slane %v4582, 4
      %v4588 = vshrl.u32 %v4413, 16
      %v4590 = vrot.slane %v4588, 7
      %v4591 = vshll.u32 %v4413, 16
      %v4593 = vor.u32 %v4590, %v4591
      %v4594 = vsel %vm501, %v4586, %v4593
      %v4595 = vrot.slane %v4590, 4
      %v4597 = vshrl.u32 %v4414, 16
      %v4599 = vrot.slane %v4597, 7
      %v4600 = vshll.u32 %v4414, 16
      %v4602 = vor.u32 %v4599, %v4600
      %v4603 = vrot.slane %v4599, 4
      %v4605 = vshrl.u32 %v4415, 16
      %v4607 = vrot.slane %v4605, 7
      %v4608 = vshll.u32 %v4415, 16
      %v4610 = vor.u32 %v4607, %v4608
      %v4611 = vsel %vm501, %v4603, %v4610
      %v4612 = vrot.slane %v4607, 4
      %v4614 = vshrl.u32 %v4416, 16
      %v4616 = vrot.slane %v4614, 7
      %v4617 = vshll.u32 %v4416, 16
      %v4619 = vor.u32 %v4616, %v4617
      %v4620 = vrot.slane %v4616, 4
      %v4622 = vshrl.u32 %v4417, 16
      %v4624 = vrot.slane %v4622, 7
      %v4625 = vshll.u32 %v4417, 16
      %v4627 = vor.u32 %v4624, %v4625
      %v4628 = vsel %vm501, %v4620, %v4627
      %v4629 = vrot.slane %v4624, 4
      %v4631 = vshrl.u32 %v4418, 16
      %v4633 = vrot.slane %v4631, 7
      %v4634 = vshll.u32 %v4418, 16
      %v4636 = vor.u32 %v4633, %v4634
      %v4637 = vrot.slane %v4633, 4
      %v4639 = vshrl.u32 %v4419, 16
      %v4641 = vrot.slane %v4639, 7
      %v4642 = vshll.u32 %v4419, 16
      %v4644 = vor.u32 %v4641, %v4642
      %v4645 = vsel %vm501, %v4637, %v4644
      %v4646 = vrot.slane %v4641, 4
      %v4648 = vshrl.u32 %v4420, 16
      %v4650 = vrot.slane %v4648, 7
      %v4651 = vshll.u32 %v4420, 16
      %v4653 = vor.u32 %v4650, %v4651
      %v4654 = vrot.slane %v4650, 4
      %v4656 = vshrl.u32 %v4421, 16
      %v4658 = vrot.slane %v4656, 7
      %v4659 = vshll.u32 %v4421, 16
      %v4661 = vor.u32 %v4658, %v4659
      %v4662 = vsel %vm501, %v4654, %v4661
      %v4663 = vrot.slane %v4658, 4
      %v4665 = vshrl.u32 %v4422, 16
      %v4667 = vrot.slane %v4665, 7
      %v4668 = vshll.u32 %v4422, 16
      %v4670 = vor.u32 %v4667, %v4668
      %v4671 = vrot.slane %v4667, 4
      %v4673 = vshrl.u32 %v4423, 16
      %v4675 = vrot.slane %v4673, 7
      %v4676 = vshll.u32 %v4423, 16
      %v4678 = vor.u32 %v4675, %v4676
      %v4679 = vsel %vm501, %v4671, %v4678
      %v4680 = vrot.slane %v4675, 4
      %v4682 = vshrl.u32 %v4424, 16
      %v4684 = vrot.slane %v4682, 7
      %v4685 = vshll.u32 %v4424, 16
      %v4687 = vor.u32 %v4684, %v4685
      %v4688 = vrot.slane %v4684, 4
      %v4690 = vshrl.u32 %v4425, 16
      %v4692 = vrot.slane %v4690, 7
      %v4693 = vshll.u32 %v4425, 16
      %v4695 = vor.u32 %v4692, %v4693
      %v4696 = vsel %vm501, %v4688, %v4695
      %v4697 = vrot.slane %v4692, 4
      %s4746 = scalar_lea.vmem [#allocation3], 12
      %vm4747 = vcmask 60416
      %vm4748 = vmand %vm4747, %vm292
      %v4749 = vld [vmem:[%s4746] sm:$0xf]
      %v4750 = vsel %vm4748, %v4432, %v4749
      %4751 = vst [vmem:[%s4746] sm:$0xf] %v4750
      %4752 = vst.msk [vmem:[%s4746 + $0x4] sm:$0xf] %vm348, %v4441
      %v4753 = vld [vmem:[%s4746 + $0x8] sm:$0x1]
      %v4754 = vsel %vm358, %v4442, %v4753
      %4755 = vst [vmem:[%s4746 + $0x8] sm:$0x1] %v4754
      %v4756 = vld [vmem:[%s4746 + $0xc] sm:$0xf]
      %v4757 = vsel %vm4748, %v4449, %v4756
      %4758 = vst [vmem:[%s4746 + $0xc] sm:$0xf] %v4757
      %4759 = vst.msk [vmem:[%s4746 + $0x10] sm:$0xf] %vm348, %v4458
      %v4760 = vld [vmem:[%s4746 + $0x14] sm:$0x1]
      %v4761 = vsel %vm358, %v4459, %v4760
      %4762 = vst [vmem:[%s4746 + $0x14] sm:$0x1] %v4761
      %v4763 = vld [vmem:[%s4746 + $0x18] sm:$0xf]
      %v4764 = vsel %vm4748, %v4466, %v4763
      %4765 = vst [vmem:[%s4746 + $0x18] sm:$0xf] %v4764
      %4766 = vst.msk [vmem:[%s4746 + $0x1c] sm:$0xf] %vm348, %v4475
      %v4767 = vld [vmem:[%s4746 + $0x20] sm:$0x1]
      %v4768 = vsel %vm358, %v4476, %v4767
      %4769 = vst [vmem:[%s4746 + $0x20] sm:$0x1] %v4768
      %v4770 = vld [vmem:[%s4746 + $0x24] sm:$0xf]
      %v4771 = vsel %vm4748, %v4483, %v4770
      %4772 = vst [vmem:[%s4746 + $0x24] sm:$0xf] %v4771
      %4773 = vst.msk [vmem:[%s4746 + $0x28] sm:$0xf] %vm348, %v4492
      %v4774 = vld [vmem:[%s4746 + $0x2c] sm:$0x1]
      %v4775 = vsel %vm358, %v4493, %v4774
      %4776 = vst [vmem:[%s4746 + $0x2c] sm:$0x1] %v4775
      %v4777 = vld [vmem:[%s4746 + $0x30] sm:$0xf]
      %v4778 = vsel %vm4748, %v4500, %v4777
      %4779 = vst [vmem:[%s4746 + $0x30] sm:$0xf] %v4778
      %4780 = vst.msk [vmem:[%s4746 + $0x34] sm:$0xf] %vm348, %v4509
      %v4781 = vld [vmem:[%s4746 + $0x38] sm:$0x1]
      %v4782 = vsel %vm358, %v4510, %v4781
      %4783 = vst [vmem:[%s4746 + $0x38] sm:$0x1] %v4782
      %v4784 = vld [vmem:[%s4746 + $0x3c] sm:$0xf]
      %v4785 = vsel %vm4748, %v4517, %v4784
      %4786 = vst [vmem:[%s4746 + $0x3c] sm:$0xf] %v4785
      %4787 = vst.msk [vmem:[%s4746 + $0x40] sm:$0xf] %vm348, %v4526
      %v4788 = vld [vmem:[%s4746 + $0x44] sm:$0x1]
      %v4789 = vsel %vm358, %v4527, %v4788
      %4790 = vst [vmem:[%s4746 + $0x44] sm:$0x1] %v4789
      %v4791 = vld [vmem:[%s4746 + $0x48] sm:$0xf]
      %v4792 = vsel %vm4748, %v4534, %v4791
      %4793 = vst [vmem:[%s4746 + $0x48] sm:$0xf] %v4792
      %4794 = vst.msk [vmem:[%s4746 + $0x4c] sm:$0xf] %vm348, %v4543
      %v4795 = vld [vmem:[%s4746 + $0x50] sm:$0x1]
      %v4796 = vsel %vm358, %v4544, %v4795
      %4797 = vst [vmem:[%s4746 + $0x50] sm:$0x1] %v4796
      %v4798 = vld [vmem:[%s4746 + $0x54] sm:$0xf]
      %v4799 = vsel %vm4748, %v4551, %v4798
      %4800 = vst [vmem:[%s4746 + $0x54] sm:$0xf] %v4799
      %4801 = vst.msk [vmem:[%s4746 + $0x58] sm:$0xf] %vm348, %v4560
      %v4802 = vld [vmem:[%s4746 + $0x5c] sm:$0x1]
      %v4803 = vsel %vm358, %v4561, %v4802
      %4804 = vst [vmem:[%s4746 + $0x5c] sm:$0x1] %v4803
      %v4805 = vld [vmem:[%s4746 + $0x60] sm:$0xf]
      %v4806 = vsel %vm4748, %v4568, %v4805
      %4807 = vst [vmem:[%s4746 + $0x60] sm:$0xf] %v4806
      %4808 = vst.msk [vmem:[%s4746 + $0x64] sm:$0xf] %vm348, %v4577
      %v4809 = vld [vmem:[%s4746 + $0x68] sm:$0x1]
      %v4810 = vsel %vm358, %v4578, %v4809
      %4811 = vst [vmem:[%s4746 + $0x68] sm:$0x1] %v4810
      %v4812 = vld [vmem:[%s4746 + $0x6c] sm:$0xf]
      %v4813 = vsel %vm4748, %v4585, %v4812
      %4814 = vst [vmem:[%s4746 + $0x6c] sm:$0xf] %v4813
      %4815 = vst.msk [vmem:[%s4746 + $0x70] sm:$0xf] %vm348, %v4594
      %v4816 = vld [vmem:[%s4746 + $0x74] sm:$0x1]
      %v4817 = vsel %vm358, %v4595, %v4816
      %4818 = vst [vmem:[%s4746 + $0x74] sm:$0x1] %v4817
      %v4819 = vld [vmem:[%s4746 + $0x78] sm:$0xf]
      %v4820 = vsel %vm4748, %v4602, %v4819
      %4821 = vst [vmem:[%s4746 + $0x78] sm:$0xf] %v4820
      %4822 = vst.msk [vmem:[%s4746 + $0x7c] sm:$0xf] %vm348, %v4611
      %v4823 = vld [vmem:[%s4746 + $0x80] sm:$0x1]
      %v4824 = vsel %vm358, %v4612, %v4823
      %4825 = vst [vmem:[%s4746 + $0x80] sm:$0x1] %v4824
      %v4826 = vld [vmem:[%s4746 + $0x84] sm:$0xf]
      %v4827 = vsel %vm4748, %v4619, %v4826
      %4828 = vst [vmem:[%s4746 + $0x84] sm:$0xf] %v4827
      %4829 = vst.msk [vmem:[%s4746 + $0x88] sm:$0xf] %vm348, %v4628
      %v4830 = vld [vmem:[%s4746 + $0x8c] sm:$0x1]
      %v4831 = vsel %vm358, %v4629, %v4830
      %4832 = vst [vmem:[%s4746 + $0x8c] sm:$0x1] %v4831
      %v4833 = vld [vmem:[%s4746 + $0x90] sm:$0xf]
      %v4834 = vsel %vm4748, %v4636, %v4833
      %4835 = vst [vmem:[%s4746 + $0x90] sm:$0xf] %v4834
      %4836 = vst.msk [vmem:[%s4746 + $0x94] sm:$0xf] %vm348, %v4645
      %v4837 = vld [vmem:[%s4746 + $0x98] sm:$0x1]
      %v4838 = vsel %vm358, %v4646, %v4837
      %4839 = vst [vmem:[%s4746 + $0x98] sm:$0x1] %v4838
      %v4840 = vld [vmem:[%s4746 + $0x9c] sm:$0xf]
      %v4841 = vsel %vm4748, %v4653, %v4840
      %4842 = vst [vmem:[%s4746 + $0x9c] sm:$0xf] %v4841
      %4843 = vst.msk [vmem:[%s4746 + $0xa0] sm:$0xf] %vm348, %v4662
      %v4844 = vld [vmem:[%s4746 + $0xa4] sm:$0x1]
      %v4845 = vsel %vm358, %v4663, %v4844
      %4846 = vst [vmem:[%s4746 + $0xa4] sm:$0x1] %v4845
      %v4847 = vld [vmem:[%s4746 + $0xa8] sm:$0xf]
      %v4848 = vsel %vm4748, %v4670, %v4847
      %4849 = vst [vmem:[%s4746 + $0xa8] sm:$0xf] %v4848
      %4850 = vst.msk [vmem:[%s4746 + $0xac] sm:$0xf] %vm348, %v4679
      %v4851 = vld [vmem:[%s4746 + $0xb0] sm:$0x1]
      %v4852 = vsel %vm358, %v4680, %v4851
      %4853 = vst [vmem:[%s4746 + $0xb0] sm:$0x1] %v4852
      %v4854 = vld [vmem:[%s4746 + $0xb4] sm:$0xf]
      %v4855 = vsel %vm4748, %v4687, %v4854
      %4856 = vst [vmem:[%s4746 + $0xb4] sm:$0xf] %v4855
      %4857 = vst.msk [vmem:[%s4746 + $0xb8] sm:$0xf] %vm348, %v4696
      %v4858 = vld [vmem:[%s4746 + $0xbc] sm:$0x1]
      %v4859 = vsel %vm358, %v4697, %v4858
      %4860 = vst [vmem:[%s4746 + $0xbc] sm:$0x1] %v4859
      %v4861 = vld [vmem:[#allocation3] sm:$0xf]
      %v4862 = vld [vmem:[#allocation3 + $0x4] sm:$0xf]
      %v4863 = vld [vmem:[#allocation3 + $0xc] sm:$0xf]
      %v4864 = vld [vmem:[#allocation3 + $0x10] sm:$0xf]
      %v4865 = vld [vmem:[#allocation3 + $0x18] sm:$0xf]
      %v4866 = vld [vmem:[#allocation3 + $0x1c] sm:$0xf]
      %v4867 = vld [vmem:[#allocation3 + $0x24] sm:$0xf]
      %v4868 = vld [vmem:[#allocation3 + $0x28] sm:$0xf]
      %v4869 = vld [vmem:[#allocation3 + $0x30] sm:$0xf]
      %v4870 = vld [vmem:[#allocation3 + $0x34] sm:$0xf]
      %v4871 = vld [vmem:[#allocation3 + $0x3c] sm:$0xf]
      %v4872 = vld [vmem:[#allocation3 + $0x40] sm:$0xf]
      %v4873 = vld [vmem:[#allocation3 + $0x48] sm:$0xf]
      %v4874 = vld [vmem:[#allocation3 + $0x4c] sm:$0xf]
      %v4875 = vld [vmem:[#allocation3 + $0x54] sm:$0xf]
      %v4876 = vld [vmem:[#allocation3 + $0x58] sm:$0xf]
      %v4877 = vld [vmem:[#allocation3 + $0x60] sm:$0xf]
      %v4878 = vld [vmem:[#allocation3 + $0x64] sm:$0xf]
      %v4879 = vld [vmem:[#allocation3 + $0x6c] sm:$0xf]
      %v4880 = vld [vmem:[#allocation3 + $0x70] sm:$0xf]
      %v4881 = vld [vmem:[#allocation3 + $0x78] sm:$0xf]
      %v4882 = vld [vmem:[#allocation3 + $0x7c] sm:$0xf]
      %v4883 = vld [vmem:[#allocation3 + $0x84] sm:$0xf]
      %v4884 = vld [vmem:[#allocation3 + $0x88] sm:$0xf]
      %v4885 = vld [vmem:[#allocation3 + $0x90] sm:$0xf]
      %v4886 = vld [vmem:[#allocation3 + $0x94] sm:$0xf]
      %v4887 = vld [vmem:[#allocation3 + $0x9c] sm:$0xf]
      %v4888 = vld [vmem:[#allocation3 + $0xa0] sm:$0xf]
      %v4889 = vld [vmem:[#allocation3 + $0xa8] sm:$0xf]
      %v4890 = vld [vmem:[#allocation3 + $0xac] sm:$0xf]
      %v4891 = vld [vmem:[#allocation3 + $0xb4] sm:$0xf]
      %v4892 = vld [vmem:[#allocation3 + $0xb8] sm:$0xf]
      %v4925 = vunpack.c.l.b16 %v4861
      %v4926 = vunpack.c.l.b16 %v4862
      %v4927 = vunpack.c.l.b16 %v4863
      %v4928 = vunpack.c.l.b16 %v4864
      %v4929 = vunpack.c.l.b16 %v4865
      %v4930 = vunpack.c.l.b16 %v4866
      %v4931 = vunpack.c.l.b16 %v4867
      %v4932 = vunpack.c.l.b16 %v4868
      %v4933 = vunpack.c.l.b16 %v4869
      %v4934 = vunpack.c.l.b16 %v4870
      %v4935 = vunpack.c.l.b16 %v4871
      %v4936 = vunpack.c.l.b16 %v4872
      %v4937 = vunpack.c.l.b16 %v4873
      %v4938 = vunpack.c.l.b16 %v4874
      %v4939 = vunpack.c.l.b16 %v4875
      %v4940 = vunpack.c.l.b16 %v4876
      %v4941 = vunpack.c.l.b16 %v4877
      %v4942 = vunpack.c.l.b16 %v4878
      %v4943 = vunpack.c.l.b16 %v4879
      %v4944 = vunpack.c.l.b16 %v4880
      %v4945 = vunpack.c.l.b16 %v4881
      %v4946 = vunpack.c.l.b16 %v4882
      %v4947 = vunpack.c.l.b16 %v4883
      %v4948 = vunpack.c.l.b16 %v4884
      %v4949 = vunpack.c.l.b16 %v4885
      %v4950 = vunpack.c.l.b16 %v4886
      %v4951 = vunpack.c.l.b16 %v4887
      %v4952 = vunpack.c.l.b16 %v4888
      %v4953 = vunpack.c.l.b16 %v4889
      %v4954 = vunpack.c.l.b16 %v4890
      %v4955 = vunpack.c.l.b16 %v4891
      %v4956 = vunpack.c.l.b16 %v4892
      %v4957 = vpack.c.b16 %v4926, %v4925
      %v4958 = vpack.c.b16 %v4928, %v4927
      %v4959 = vpack.c.b16 %v4930, %v4929
      %v4960 = vpack.c.b16 %v4932, %v4931
      %v4961 = vpack.c.b16 %v4934, %v4933
      %v4962 = vpack.c.b16 %v4936, %v4935
      %v4963 = vpack.c.b16 %v4938, %v4937
      %v4964 = vpack.c.b16 %v4940, %v4939
      %v4965 = vpack.c.b16 %v4942, %v4941
      %v4966 = vpack.c.b16 %v4944, %v4943
      %v4967 = vpack.c.b16 %v4946, %v4945
      %v4968 = vpack.c.b16 %v4948, %v4947
      %v4969 = vpack.c.b16 %v4950, %v4949
      %v4970 = vpack.c.b16 %v4952, %v4951
      %v4971 = vpack.c.b16 %v4954, %v4953
      %v4972 = vpack.c.b16 %v4956, %v4955
      %4973 = vrot.lane.b32.xlu0 %v4957, 36
      %v4974 = vpop.permute.xlu0 %4973
      %4975 = vrot.lane.b32.xlu0 %v4958, 36
      %v4976 = vpop.permute.xlu0 %4975
      %4977 = vrot.lane.b32.xlu0 %v4959, 36
      %v4978 = vpop.permute.xlu0 %4977
      %4979 = vrot.lane.b32.xlu0 %v4960, 36
      %v4980 = vpop.permute.xlu0 %4979
      %4981 = vrot.lane.b32.xlu0 %v4961, 36
      %v4982 = vpop.permute.xlu0 %4981
      %4983 = vrot.lane.b32.xlu0 %v4962, 36
      %v4984 = vpop.permute.xlu0 %4983
      %4985 = vrot.lane.b32.xlu0 %v4963, 36
      %v4986 = vpop.permute.xlu0 %4985
      %4987 = vrot.lane.b32.xlu0 %v4964, 36
      %v4988 = vpop.permute.xlu0 %4987
      %4989 = vrot.lane.b32.xlu0 %v4965, 36
      %v4990 = vpop.permute.xlu0 %4989
      %4991 = vrot.lane.b32.xlu0 %v4966, 36
      %v4992 = vpop.permute.xlu0 %4991
      %4993 = vrot.lane.b32.xlu0 %v4967, 36
      %v4994 = vpop.permute.xlu0 %4993
      %4995 = vrot.lane.b32.xlu0 %v4968, 36
      %v4996 = vpop.permute.xlu0 %4995
      %4997 = vrot.lane.b32.xlu0 %v4969, 36
      %v4998 = vpop.permute.xlu0 %4997
      %4999 = vrot.lane.b32.xlu0 %v4970, 36
      %v5000 = vpop.permute.xlu0 %4999
      %5001 = vrot.lane.b32.xlu0 %v4971, 36
      %v5002 = vpop.permute.xlu0 %5001
      %5003 = vrot.lane.b32.xlu0 %v4972, 36
      %v5004 = vpop.permute.xlu0 %5003
      %vm5021 = vcmask 359712
      %5022 = vst.msk [vmem:[#allocation4] sm:$0xff] %vm5021, %v4974
      %5023 = vst.msk [vmem:[#allocation4 + $0x8] sm:$0xff] %vm5021, %v4976
      %5024 = vst.msk [vmem:[#allocation4 + $0x10] sm:$0xff] %vm5021, %v4978
      %5025 = vst.msk [vmem:[#allocation4 + $0x18] sm:$0xff] %vm5021, %v4980
      %5026 = vst.msk [vmem:[#allocation4 + $0x20] sm:$0xff] %vm5021, %v4982
      %5027 = vst.msk [vmem:[#allocation4 + $0x28] sm:$0xff] %vm5021, %v4984
      %5028 = vst.msk [vmem:[#allocation4 + $0x30] sm:$0xff] %vm5021, %v4986
      %5029 = vst.msk [vmem:[#allocation4 + $0x38] sm:$0xff] %vm5021, %v4988
      %5030 = vst.msk [vmem:[#allocation4 + $0x40] sm:$0xff] %vm5021, %v4990
      %5031 = vst.msk [vmem:[#allocation4 + $0x48] sm:$0xff] %vm5021, %v4992
      %5032 = vst.msk [vmem:[#allocation4 + $0x50] sm:$0xff] %vm5021, %v4994
      %5033 = vst.msk [vmem:[#allocation4 + $0x58] sm:$0xff] %vm5021, %v4996
      %5034 = vst.msk [vmem:[#allocation4 + $0x60] sm:$0xff] %vm5021, %v4998
      %5035 = vst.msk [vmem:[#allocation4 + $0x68] sm:$0xff] %vm5021, %v5000
      %5036 = vst.msk [vmem:[#allocation4 + $0x70] sm:$0xff] %vm5021, %v5002
      %5037 = vst.msk [vmem:[#allocation4 + $0x78] sm:$0xff] %vm5021, %v5004
      %v5038 = vld [vmem:[#allocation3] sm:$0xf]
      %v5039 = vld [vmem:[#allocation3 + $0x4] sm:$0xf]
      %v5040 = vld [vmem:[#allocation3 + $0x8] sm:$0x1]
      %v5041 = vld [vmem:[#allocation3 + $0xc] sm:$0xf]
      %v5042 = vld [vmem:[#allocation3 + $0x10] sm:$0xf]
      %v5043 = vld [vmem:[#allocation3 + $0x14] sm:$0x1]
      %v5044 = vld [vmem:[#allocation3 + $0x18] sm:$0xf]
      %v5045 = vld [vmem:[#allocation3 + $0x1c] sm:$0xf]
      %v5046 = vld [vmem:[#allocation3 + $0x20] sm:$0x1]
      %v5047 = vld [vmem:[#allocation3 + $0x24] sm:$0xf]
      %v5048 = vld [vmem:[#allocation3 + $0x28] sm:$0xf]
      %v5049 = vld [vmem:[#allocation3 + $0x2c] sm:$0x1]
      %v5050 = vld [vmem:[#allocation3 + $0x30] sm:$0xf]
      %v5051 = vld [vmem:[#allocation3 + $0x34] sm:$0xf]
      %v5052 = vld [vmem:[#allocation3 + $0x38] sm:$0x1]
      %v5053 = vld [vmem:[#allocation3 + $0x3c] sm:$0xf]
      %v5054 = vld [vmem:[#allocation3 + $0x40] sm:$0xf]
      %v5055 = vld [vmem:[#allocation3 + $0x44] sm:$0x1]
      %v5056 = vld [vmem:[#allocation3 + $0x48] sm:$0xf]
      %v5057 = vld [vmem:[#allocation3 + $0x4c] sm:$0xf]
      %v5058 = vld [vmem:[#allocation3 + $0x50] sm:$0x1]
      %v5059 = vld [vmem:[#allocation3 + $0x54] sm:$0xf]
      %v5060 = vld [vmem:[#allocation3 + $0x58] sm:$0xf]
      %v5061 = vld [vmem:[#allocation3 + $0x5c] sm:$0x1]
      %v5062 = vld [vmem:[#allocation3 + $0x60] sm:$0xf]
      %v5063 = vld [vmem:[#allocation3 + $0x64] sm:$0xf]
      %v5064 = vld [vmem:[#allocation3 + $0x68] sm:$0x1]
      %v5065 = vld [vmem:[#allocation3 + $0x6c] sm:$0xf]
      %v5066 = vld [vmem:[#allocation3 + $0x70] sm:$0xf]
      %v5067 = vld [vmem:[#allocation3 + $0x74] sm:$0x1]
      %v5068 = vld [vmem:[#allocation3 + $0x78] sm:$0xf]
      %v5069 = vld [vmem:[#allocation3 + $0x7c] sm:$0xf]
      %v5070 = vld [vmem:[#allocation3 + $0x80] sm:$0x1]
      %v5071 = vld [vmem:[#allocation3 + $0x84] sm:$0xf]
      %v5072 = vld [vmem:[#allocation3 + $0x88] sm:$0xf]
      %v5073 = vld [vmem:[#allocation3 + $0x8c] sm:$0x1]
      %v5074 = vld [vmem:[#allocation3 + $0x90] sm:$0xf]
      %v5075 = vld [vmem:[#allocation3 + $0x94] sm:$0xf]
      %v5076 = vld [vmem:[#allocation3 + $0x98] sm:$0x1]
      %v5077 = vld [vmem:[#allocation3 + $0x9c] sm:$0xf]
      %v5078 = vld [vmem:[#allocation3 + $0xa0] sm:$0xf]
      %v5079 = vld [vmem:[#allocation3 + $0xa4] sm:$0x1]
      %v5080 = vld [vmem:[#allocation3 + $0xa8] sm:$0xf]
      %v5081 = vld [vmem:[#allocation3 + $0xac] sm:$0xf]
      %v5082 = vld [vmem:[#allocation3 + $0xb0] sm:$0x1]
      %v5083 = vld [vmem:[#allocation3 + $0xb4] sm:$0xf]
      %v5084 = vld [vmem:[#allocation3 + $0xb8] sm:$0xf]
      %v5085 = vld [vmem:[#allocation3 + $0xbc] sm:$0x1]
      %v5087 = vshrl.u32 %v5038, 16
      %v5089 = vrot.slane %v5087, 4
      %v5090 = vshll.u32 %v5038, 16
      %v5092 = vrot.slane %v5090, 5
      %v5093 = vor.u32 %v5089, %v5092
      %v5094 = vrot.slane %v5093, 4
      %v5096 = vshll.u32 %v5039, 16
      %v5098 = vrot.slane %v5096, 5
      %v5099 = vsel %vm1132, %v5094, %v5098
      %v5100 = vshrl.u32 %v5039, 16
      %v5102 = vrot.slane %v5100, 4
      %v5103 = vor.u32 %v5102, %v5098
      %v5104 = vrot.slane %v5103, 4
      %v5106 = vshll.u32 %v5040, 16
      %v5108 = vrot.slane %v5106, 5
      %v5109 = vsel %vm1132, %v5104, %v5108
      %v5111 = vshrl.u32 %v5041, 16
      %v5113 = vrot.slane %v5111, 4
      %v5114 = vshll.u32 %v5041, 16
      %v5116 = vrot.slane %v5114, 5
      %v5117 = vor.u32 %v5113, %v5116
      %v5118 = vrot.slane %v5117, 4
      %v5120 = vshll.u32 %v5042, 16
      %v5122 = vrot.slane %v5120, 5
      %v5123 = vsel %vm1132, %v5118, %v5122
      %v5124 = vshrl.u32 %v5042, 16
      %v5126 = vrot.slane %v5124, 4
      %v5127 = vor.u32 %v5126, %v5122
      %v5128 = vrot.slane %v5127, 4
      %v5130 = vshll.u32 %v5043, 16
      %v5132 = vrot.slane %v5130, 5
      %v5133 = vsel %vm1132, %v5128, %v5132
      %v5135 = vshrl.u32 %v5044, 16
      %v5137 = vrot.slane %v5135, 4
      %v5138 = vshll.u32 %v5044, 16
      %v5140 = vrot.slane %v5138, 5
      %v5141 = vor.u32 %v5137, %v5140
      %v5142 = vrot.slane %v5141, 4
      %v5144 = vshll.u32 %v5045, 16
      %v5146 = vrot.slane %v5144, 5
      %v5147 = vsel %vm1132, %v5142, %v5146
      %v5148 = vshrl.u32 %v5045, 16
      %v5150 = vrot.slane %v5148, 4
      %v5151 = vor.u32 %v5150, %v5146
      %v5152 = vrot.slane %v5151, 4
      %v5154 = vshll.u32 %v5046, 16
      %v5156 = vrot.slane %v5154, 5
      %v5157 = vsel %vm1132, %v5152, %v5156
      %v5159 = vshrl.u32 %v5047, 16
      %v5161 = vrot.slane %v5159, 4
      %v5162 = vshll.u32 %v5047, 16
      %v5164 = vrot.slane %v5162, 5
      %v5165 = vor.u32 %v5161, %v5164
      %v5166 = vrot.slane %v5165, 4
      %v5168 = vshll.u32 %v5048, 16
      %v5170 = vrot.slane %v5168, 5
      %v5171 = vsel %vm1132, %v5166, %v5170
      %v5172 = vshrl.u32 %v5048, 16
      %v5174 = vrot.slane %v5172, 4
      %v5175 = vor.u32 %v5174, %v5170
      %v5176 = vrot.slane %v5175, 4
      %v5178 = vshll.u32 %v5049, 16
      %v5180 = vrot.slane %v5178, 5
      %v5181 = vsel %vm1132, %v5176, %v5180
      %v5183 = vshrl.u32 %v5050, 16
      %v5185 = vrot.slane %v5183, 4
      %v5186 = vshll.u32 %v5050, 16
      %v5188 = vrot.slane %v5186, 5
      %v5189 = vor.u32 %v5185, %v5188
      %v5190 = vrot.slane %v5189, 4
      %v5192 = vshll.u32 %v5051, 16
      %v5194 = vrot.slane %v5192, 5
      %v5195 = vsel %vm1132, %v5190, %v5194
      %v5196 = vshrl.u32 %v5051, 16
      %v5198 = vrot.slane %v5196, 4
      %v5199 = vor.u32 %v5198, %v5194
      %v5200 = vrot.slane %v5199, 4
      %v5202 = vshll.u32 %v5052, 16
      %v5204 = vrot.slane %v5202, 5
      %v5205 = vsel %vm1132, %v5200, %v5204
      %v5207 = vshrl.u32 %v5053, 16
      %v5209 = vrot.slane %v5207, 4
      %v5210 = vshll.u32 %v5053, 16
      %v5212 = vrot.slane %v5210, 5
      %v5213 = vor.u32 %v5209, %v5212
      %v5214 = vrot.slane %v5213, 4
      %v5216 = vshll.u32 %v5054, 16
      %v5218 = vrot.slane %v5216, 5
      %v5219 = vsel %vm1132, %v5214, %v5218
      %v5220 = vshrl.u32 %v5054, 16
      %v5222 = vrot.slane %v5220, 4
      %v5223 = vor.u32 %v5222, %v5218
      %v5224 = vrot.slane %v5223, 4
      %v5226 = vshll.u32 %v5055, 16
      %v5228 = vrot.slane %v5226, 5
      %v5229 = vsel %vm1132, %v5224, %v5228
      %v5231 = vshrl.u32 %v5056, 16
      %v5233 = vrot.slane %v5231, 4
      %v5234 = vshll.u32 %v5056, 16
      %v5236 = vrot.slane %v5234, 5
      %v5237 = vor.u32 %v5233, %v5236
      %v5238 = vrot.slane %v5237, 4
      %v5240 = vshll.u32 %v5057, 16
      %v5242 = vrot.slane %v5240, 5
      %v5243 = vsel %vm1132, %v5238, %v5242
      %v5244 = vshrl.u32 %v5057, 16
      %v5246 = vrot.slane %v5244, 4
      %v5247 = vor.u32 %v5246, %v5242
      %v5248 = vrot.slane %v5247, 4
      %v5250 = vshll.u32 %v5058, 16
      %v5252 = vrot.slane %v5250, 5
      %v5253 = vsel %vm1132, %v5248, %v5252
      %v5255 = vshrl.u32 %v5059, 16
      %v5257 = vrot.slane %v5255, 4
      %v5258 = vshll.u32 %v5059, 16
      %v5260 = vrot.slane %v5258, 5
      %v5261 = vor.u32 %v5257, %v5260
      %v5262 = vrot.slane %v5261, 4
      %v5264 = vshll.u32 %v5060, 16
      %v5266 = vrot.slane %v5264, 5
      %v5267 = vsel %vm1132, %v5262, %v5266
      %v5268 = vshrl.u32 %v5060, 16
      %v5270 = vrot.slane %v5268, 4
      %v5271 = vor.u32 %v5270, %v5266
      %v5272 = vrot.slane %v5271, 4
      %v5274 = vshll.u32 %v5061, 16
      %v5276 = vrot.slane %v5274, 5
      %v5277 = vsel %vm1132, %v5272, %v5276
      %v5279 = vshrl.u32 %v5062, 16
      %v5281 = vrot.slane %v5279, 4
      %v5282 = vshll.u32 %v5062, 16
      %v5284 = vrot.slane %v5282, 5
      %v5285 = vor.u32 %v5281, %v5284
      %v5286 = vrot.slane %v5285, 4
      %v5288 = vshll.u32 %v5063, 16
      %v5290 = vrot.slane %v5288, 5
      %v5291 = vsel %vm1132, %v5286, %v5290
      %v5292 = vshrl.u32 %v5063, 16
      %v5294 = vrot.slane %v5292, 4
      %v5295 = vor.u32 %v5294, %v5290
      %v5296 = vrot.slane %v5295, 4
      %v5298 = vshll.u32 %v5064, 16
      %v5300 = vrot.slane %v5298, 5
      %v5301 = vsel %vm1132, %v5296, %v5300
      %v5303 = vshrl.u32 %v5065, 16
      %v5305 = vrot.slane %v5303, 4
      %v5306 = vshll.u32 %v5065, 16
      %v5308 = vrot.slane %v5306, 5
      %v5309 = vor.u32 %v5305, %v5308
      %v5310 = vrot.slane %v5309, 4
      %v5312 = vshll.u32 %v5066, 16
      %v5314 = vrot.slane %v5312, 5
      %v5315 = vsel %vm1132, %v5310, %v5314
      %v5316 = vshrl.u32 %v5066, 16
      %v5318 = vrot.slane %v5316, 4
      %v5319 = vor.u32 %v5318, %v5314
      %v5320 = vrot.slane %v5319, 4
      %v5322 = vshll.u32 %v5067, 16
      %v5324 = vrot.slane %v5322, 5
      %v5325 = vsel %vm1132, %v5320, %v5324
      %v5327 = vshrl.u32 %v5068, 16
      %v5329 = vrot.slane %v5327, 4
      %v5330 = vshll.u32 %v5068, 16
      %v5332 = vrot.slane %v5330, 5
      %v5333 = vor.u32 %v5329, %v5332
      %v5334 = vrot.slane %v5333, 4
      %v5336 = vshll.u32 %v5069, 16
      %v5338 = vrot.slane %v5336, 5
      %v5339 = vsel %vm1132, %v5334, %v5338
      %v5340 = vshrl.u32 %v5069, 16
      %v5342 = vrot.slane %v5340, 4
      %v5343 = vor.u32 %v5342, %v5338
      %v5344 = vrot.slane %v5343, 4
      %v5346 = vshll.u32 %v5070, 16
      %v5348 = vrot.slane %v5346, 5
      %v5349 = vsel %vm1132, %v5344, %v5348
      %v5351 = vshrl.u32 %v5071, 16
      %v5353 = vrot.slane %v5351, 4
      %v5354 = vshll.u32 %v5071, 16
      %v5356 = vrot.slane %v5354, 5
      %v5357 = vor.u32 %v5353, %v5356
      %v5358 = vrot.slane %v5357, 4
      %v5360 = vshll.u32 %v5072, 16
      %v5362 = vrot.slane %v5360, 5
      %v5363 = vsel %vm1132, %v5358, %v5362
      %v5364 = vshrl.u32 %v5072, 16
      %v5366 = vrot.slane %v5364, 4
      %v5367 = vor.u32 %v5366, %v5362
      %v5368 = vrot.slane %v5367, 4
      %v5370 = vshll.u32 %v5073, 16
      %v5372 = vrot.slane %v5370, 5
      %v5373 = vsel %vm1132, %v5368, %v5372
      %v5375 = vshrl.u32 %v5074, 16
      %v5377 = vrot.slane %v5375, 4
      %v5378 = vshll.u32 %v5074, 16
      %v5380 = vrot.slane %v5378, 5
      %v5381 = vor.u32 %v5377, %v5380
      %v5382 = vrot.slane %v5381, 4
      %v5384 = vshll.u32 %v5075, 16
      %v5386 = vrot.slane %v5384, 5
      %v5387 = vsel %vm1132, %v5382, %v5386
      %v5388 = vshrl.u32 %v5075, 16
      %v5390 = vrot.slane %v5388, 4
      %v5391 = vor.u32 %v5390, %v5386
      %v5392 = vrot.slane %v5391, 4
      %v5394 = vshll.u32 %v5076, 16
      %v5396 = vrot.slane %v5394, 5
      %v5397 = vsel %vm1132, %v5392, %v5396
      %v5399 = vshrl.u32 %v5077, 16
      %v5401 = vrot.slane %v5399, 4
      %v5402 = vshll.u32 %v5077, 16
      %v5404 = vrot.slane %v5402, 5
      %v5405 = vor.u32 %v5401, %v5404
      %v5406 = vrot.slane %v5405, 4
      %v5408 = vshll.u32 %v5078, 16
      %v5410 = vrot.slane %v5408, 5
      %v5411 = vsel %vm1132, %v5406, %v5410
      %v5412 = vshrl.u32 %v5078, 16
      %v5414 = vrot.slane %v5412, 4
      %v5415 = vor.u32 %v5414, %v5410
      %v5416 = vrot.slane %v5415, 4
      %v5418 = vshll.u32 %v5079, 16
      %v5420 = vrot.slane %v5418, 5
      %v5421 = vsel %vm1132, %v5416, %v5420
      %v5423 = vshrl.u32 %v5080, 16
      %v5425 = vrot.slane %v5423, 4
      %v5426 = vshll.u32 %v5080, 16
      %v5428 = vrot.slane %v5426, 5
      %v5429 = vor.u32 %v5425, %v5428
      %v5430 = vrot.slane %v5429, 4
      %v5432 = vshll.u32 %v5081, 16
      %v5434 = vrot.slane %v5432, 5
      %v5435 = vsel %vm1132, %v5430, %v5434
      %v5436 = vshrl.u32 %v5081, 16
      %v5438 = vrot.slane %v5436, 4
      %v5439 = vor.u32 %v5438, %v5434
      %v5440 = vrot.slane %v5439, 4
      %v5442 = vshll.u32 %v5082, 16
      %v5444 = vrot.slane %v5442, 5
      %v5445 = vsel %vm1132, %v5440, %v5444
      %v5447 = vshrl.u32 %v5083, 16
      %v5449 = vrot.slane %v5447, 4
      %v5450 = vshll.u32 %v5083, 16
      %v5452 = vrot.slane %v5450, 5
      %v5453 = vor.u32 %v5449, %v5452
      %v5454 = vrot.slane %v5453, 4
      %v5456 = vshll.u32 %v5084, 16
      %v5458 = vrot.slane %v5456, 5
      %v5459 = vsel %vm1132, %v5454, %v5458
      %v5460 = vshrl.u32 %v5084, 16
      %v5462 = vrot.slane %v5460, 4
      %v5463 = vor.u32 %v5462, %v5458
      %v5464 = vrot.slane %v5463, 4
      %v5466 = vshll.u32 %v5085, 16
      %v5468 = vrot.slane %v5466, 5
      %v5469 = vsel %vm1132, %v5464, %v5468
      %v5470 = vunpack.c.l.b16 %v5099
      %v5471 = vunpack.c.l.b16 %v5109
      %v5472 = vunpack.c.l.b16 %v5123
      %v5473 = vunpack.c.l.b16 %v5133
      %v5474 = vunpack.c.l.b16 %v5147
      %v5475 = vunpack.c.l.b16 %v5157
      %v5476 = vunpack.c.l.b16 %v5171
      %v5477 = vunpack.c.l.b16 %v5181
      %v5478 = vunpack.c.l.b16 %v5195
      %v5479 = vunpack.c.l.b16 %v5205
      %v5480 = vunpack.c.l.b16 %v5219
      %v5481 = vunpack.c.l.b16 %v5229
      %v5482 = vunpack.c.l.b16 %v5243
      %v5483 = vunpack.c.l.b16 %v5253
      %v5484 = vunpack.c.l.b16 %v5267
      %v5485 = vunpack.c.l.b16 %v5277
      %v5486 = vunpack.c.l.b16 %v5291
      %v5487 = vunpack.c.l.b16 %v5301
      %v5488 = vunpack.c.l.b16 %v5315
      %v5489 = vunpack.c.l.b16 %v5325
      %v5490 = vunpack.c.l.b16 %v5339
      %v5491 = vunpack.c.l.b16 %v5349
      %v5492 = vunpack.c.l.b16 %v5363
      %v5493 = vunpack.c.l.b16 %v5373
      %v5494 = vunpack.c.l.b16 %v5387
      %v5495 = vunpack.c.l.b16 %v5397
      %v5496 = vunpack.c.l.b16 %v5411
      %v5497 = vunpack.c.l.b16 %v5421
      %v5498 = vunpack.c.l.b16 %v5435
      %v5499 = vunpack.c.l.b16 %v5445
      %v5500 = vunpack.c.l.b16 %v5459
      %v5501 = vunpack.c.l.b16 %v5469
      %v5502 = vpack.c.b16 %v5471, %v5470
      %v5503 = vpack.c.b16 %v5473, %v5472
      %v5504 = vpack.c.b16 %v5475, %v5474
      %v5505 = vpack.c.b16 %v5477, %v5476
      %v5506 = vpack.c.b16 %v5479, %v5478
      %v5507 = vpack.c.b16 %v5481, %v5480
      %v5508 = vpack.c.b16 %v5483, %v5482
      %v5509 = vpack.c.b16 %v5485, %v5484
      %v5510 = vpack.c.b16 %v5487, %v5486
      %v5511 = vpack.c.b16 %v5489, %v5488
      %v5512 = vpack.c.b16 %v5491, %v5490
      %v5513 = vpack.c.b16 %v5493, %v5492
      %v5514 = vpack.c.b16 %v5495, %v5494
      %v5515 = vpack.c.b16 %v5497, %v5496
      %v5516 = vpack.c.b16 %v5499, %v5498
      %v5517 = vpack.c.b16 %v5501, %v5500
      %5518 = vrot.lane.b32.xlu0 %v5502, 44
      %v5519 = vpop.permute.xlu0 %5518
      %5520 = vrot.lane.b32.xlu0 %v5503, 44
      %v5521 = vpop.permute.xlu0 %5520
      %5522 = vrot.lane.b32.xlu0 %v5504, 44
      %v5523 = vpop.permute.xlu0 %5522
      %5524 = vrot.lane.b32.xlu0 %v5505, 44
      %v5525 = vpop.permute.xlu0 %5524
      %5526 = vrot.lane.b32.xlu0 %v5506, 44
      %v5527 = vpop.permute.xlu0 %5526
      %5528 = vrot.lane.b32.xlu0 %v5507, 44
      %v5529 = vpop.permute.xlu0 %5528
      %5530 = vrot.lane.b32.xlu0 %v5508, 44
      %v5531 = vpop.permute.xlu0 %5530
      %5532 = vrot.lane.b32.xlu0 %v5509, 44
      %v5533 = vpop.permute.xlu0 %5532
      %5534 = vrot.lane.b32.xlu0 %v5510, 44
      %v5535 = vpop.permute.xlu0 %5534
      %5536 = vrot.lane.b32.xlu0 %v5511, 44
      %v5537 = vpop.permute.xlu0 %5536
      %5538 = vrot.lane.b32.xlu0 %v5512, 44
      %v5539 = vpop.permute.xlu0 %5538
      %5540 = vrot.lane.b32.xlu0 %v5513, 44
      %v5541 = vpop.permute.xlu0 %5540
      %5542 = vrot.lane.b32.xlu0 %v5514, 44
      %v5543 = vpop.permute.xlu0 %5542
      %5544 = vrot.lane.b32.xlu0 %v5515, 44
      %v5545 = vpop.permute.xlu0 %5544
      %5546 = vrot.lane.b32.xlu0 %v5516, 44
      %v5547 = vpop.permute.xlu0 %5546
      %5548 = vrot.lane.b32.xlu0 %v5517, 44
      %v5549 = vpop.permute.xlu0 %5548
      %vm5566 = vcmask 425312
      %5567 = vst.msk [vmem:[#allocation4] sm:$0xff] %vm5566, %v5519
      %5568 = vst.msk [vmem:[#allocation4 + $0x8] sm:$0xff] %vm5566, %v5521
      %5569 = vst.msk [vmem:[#allocation4 + $0x10] sm:$0xff] %vm5566, %v5523
      %5570 = vst.msk [vmem:[#allocation4 + $0x18] sm:$0xff] %vm5566, %v5525
      %5571 = vst.msk [vmem:[#allocation4 + $0x20] sm:$0xff] %vm5566, %v5527
      %5572 = vst.msk [vmem:[#allocation4 + $0x28] sm:$0xff] %vm5566, %v5529
      %5573 = vst.msk [vmem:[#allocation4 + $0x30] sm:$0xff] %vm5566, %v5531
      %5574 = vst.msk [vmem:[#allocation4 + $0x38] sm:$0xff] %vm5566, %v5533
      %5575 = vst.msk [vmem:[#allocation4 + $0x40] sm:$0xff] %vm5566, %v5535
      %5576 = vst.msk [vmem:[#allocation4 + $0x48] sm:$0xff] %vm5566, %v5537
      %5577 = vst.msk [vmem:[#allocation4 + $0x50] sm:$0xff] %vm5566, %v5539
      %5578 = vst.msk [vmem:[#allocation4 + $0x58] sm:$0xff] %vm5566, %v5541
      %5579 = vst.msk [vmem:[#allocation4 + $0x60] sm:$0xff] %vm5566, %v5543
      %5580 = vst.msk [vmem:[#allocation4 + $0x68] sm:$0xff] %vm5566, %v5545
      %5581 = vst.msk [vmem:[#allocation4 + $0x70] sm:$0xff] %vm5566, %v5547
      %5582 = vst.msk [vmem:[#allocation4 + $0x78] sm:$0xff] %vm5566, %v5549
      %v5583 = vld [vmem:[#allocation3] sm:$0xe]
      %v5584 = vld [vmem:[#allocation3 + $0x4] sm:$0xf]
      %v5585 = vld [vmem:[#allocation3 + $0x8] sm:$0x1]
      %v5586 = vld [vmem:[#allocation3 + $0xc] sm:$0xe]
      %v5587 = vld [vmem:[#allocation3 + $0x10] sm:$0xf]
      %v5588 = vld [vmem:[#allocation3 + $0x14] sm:$0x1]
      %v5589 = vld [vmem:[#allocation3 + $0x18] sm:$0xe]
      %v5590 = vld [vmem:[#allocation3 + $0x1c] sm:$0xf]
      %v5591 = vld [vmem:[#allocation3 + $0x20] sm:$0x1]
      %v5592 = vld [vmem:[#allocation3 + $0x24] sm:$0xe]
      %v5593 = vld [vmem:[#allocation3 + $0x28] sm:$0xf]
      %v5594 = vld [vmem:[#allocation3 + $0x2c] sm:$0x1]
      %v5595 = vld [vmem:[#allocation3 + $0x30] sm:$0xe]
      %v5596 = vld [vmem:[#allocation3 + $0x34] sm:$0xf]
      %v5597 = vld [vmem:[#allocation3 + $0x38] sm:$0x1]
      %v5598 = vld [vmem:[#allocation3 + $0x3c] sm:$0xe]
      %v5599 = vld [vmem:[#allocation3 + $0x40] sm:$0xf]
      %v5600 = vld [vmem:[#allocation3 + $0x44] sm:$0x1]
      %v5601 = vld [vmem:[#allocation3 + $0x48] sm:$0xe]
      %v5602 = vld [vmem:[#allocation3 + $0x4c] sm:$0xf]
      %v5603 = vld [vmem:[#allocation3 + $0x50] sm:$0x1]
      %v5604 = vld [vmem:[#allocation3 + $0x54] sm:$0xe]
      %v5605 = vld [vmem:[#allocation3 + $0x58] sm:$0xf]
      %v5606 = vld [vmem:[#allocation3 + $0x5c] sm:$0x1]
      %v5607 = vld [vmem:[#allocation3 + $0x60] sm:$0xe]
      %v5608 = vld [vmem:[#allocation3 + $0x64] sm:$0xf]
      %v5609 = vld [vmem:[#allocation3 + $0x68] sm:$0x1]
      %v5610 = vld [vmem:[#allocation3 + $0x6c] sm:$0xe]
      %v5611 = vld [vmem:[#allocation3 + $0x70] sm:$0xf]
      %v5612 = vld [vmem:[#allocation3 + $0x74] sm:$0x1]
      %v5613 = vld [vmem:[#allocation3 + $0x78] sm:$0xe]
      %v5614 = vld [vmem:[#allocation3 + $0x7c] sm:$0xf]
      %v5615 = vld [vmem:[#allocation3 + $0x80] sm:$0x1]
      %v5616 = vld [vmem:[#allocation3 + $0x84] sm:$0xe]
      %v5617 = vld [vmem:[#allocation3 + $0x88] sm:$0xf]
      %v5618 = vld [vmem:[#allocation3 + $0x8c] sm:$0x1]
      %v5619 = vld [vmem:[#allocation3 + $0x90] sm:$0xe]
      %v5620 = vld [vmem:[#allocation3 + $0x94] sm:$0xf]
      %v5621 = vld [vmem:[#allocation3 + $0x98] sm:$0x1]
      %v5622 = vld [vmem:[#allocation3 + $0x9c] sm:$0xe]
      %v5623 = vld [vmem:[#allocation3 + $0xa0] sm:$0xf]
      %v5624 = vld [vmem:[#allocation3 + $0xa4] sm:$0x1]
      %v5625 = vld [vmem:[#allocation3 + $0xa8] sm:$0xe]
      %v5626 = vld [vmem:[#allocation3 + $0xac] sm:$0xf]
      %v5627 = vld [vmem:[#allocation3 + $0xb0] sm:$0x1]
      %v5628 = vld [vmem:[#allocation3 + $0xb4] sm:$0xe]
      %v5629 = vld [vmem:[#allocation3 + $0xb8] sm:$0xf]
      %v5630 = vld [vmem:[#allocation3 + $0xbc] sm:$0x1]
      %v5679 = vrot.slane %v5583, 5
      %v5680 = vrot.slane %v5679, 4
      %v5681 = vrot.slane %v5584, 5
      %v5682 = vsel %vm1728, %v5680, %v5681
      %v5683 = vrot.slane %v5681, 4
      %v5684 = vrot.slane %v5585, 5
      %v5685 = vsel %vm1728, %v5683, %v5684
      %v5686 = vrot.slane %v5586, 5
      %v5687 = vrot.slane %v5686, 4
      %v5688 = vrot.slane %v5587, 5
      %v5689 = vsel %vm1728, %v5687, %v5688
      %v5690 = vrot.slane %v5688, 4
      %v5691 = vrot.slane %v5588, 5
      %v5692 = vsel %vm1728, %v5690, %v5691
      %v5693 = vrot.slane %v5589, 5
      %v5694 = vrot.slane %v5693, 4
      %v5695 = vrot.slane %v5590, 5
      %v5696 = vsel %vm1728, %v5694, %v5695
      %v5697 = vrot.slane %v5695, 4
      %v5698 = vrot.slane %v5591, 5
      %v5699 = vsel %vm1728, %v5697, %v5698
      %v5700 = vrot.slane %v5592, 5
      %v5701 = vrot.slane %v5700, 4
      %v5702 = vrot.slane %v5593, 5
      %v5703 = vsel %vm1728, %v5701, %v5702
      %v5704 = vrot.slane %v5702, 4
      %v5705 = vrot.slane %v5594, 5
      %v5706 = vsel %vm1728, %v5704, %v5705
      %v5707 = vrot.slane %v5595, 5
      %v5708 = vrot.slane %v5707, 4
      %v5709 = vrot.slane %v5596, 5
      %v5710 = vsel %vm1728, %v5708, %v5709
      %v5711 = vrot.slane %v5709, 4
      %v5712 = vrot.slane %v5597, 5
      %v5713 = vsel %vm1728, %v5711, %v5712
      %v5714 = vrot.slane %v5598, 5
      %v5715 = vrot.slane %v5714, 4
      %v5716 = vrot.slane %v5599, 5
      %v5717 = vsel %vm1728, %v5715, %v5716
      %v5718 = vrot.slane %v5716, 4
      %v5719 = vrot.slane %v5600, 5
      %v5720 = vsel %vm1728, %v5718, %v5719
      %v5721 = vrot.slane %v5601, 5
      %v5722 = vrot.slane %v5721, 4
      %v5723 = vrot.slane %v5602, 5
      %v5724 = vsel %vm1728, %v5722, %v5723
      %v5725 = vrot.slane %v5723, 4
      %v5726 = vrot.slane %v5603, 5
      %v5727 = vsel %vm1728, %v5725, %v5726
      %v5728 = vrot.slane %v5604, 5
      %v5729 = vrot.slane %v5728, 4
      %v5730 = vrot.slane %v5605, 5
      %v5731 = vsel %vm1728, %v5729, %v5730
      %v5732 = vrot.slane %v5730, 4
      %v5733 = vrot.slane %v5606, 5
      %v5734 = vsel %vm1728, %v5732, %v5733
      %v5735 = vrot.slane %v5607, 5
      %v5736 = vrot.slane %v5735, 4
      %v5737 = vrot.slane %v5608, 5
      %v5738 = vsel %vm1728, %v5736, %v5737
      %v5739 = vrot.slane %v5737, 4
      %v5740 = vrot.slane %v5609, 5
      %v5741 = vsel %vm1728, %v5739, %v5740
      %v5742 = vrot.slane %v5610, 5
      %v5743 = vrot.slane %v5742, 4
      %v5744 = vrot.slane %v5611, 5
      %v5745 = vsel %vm1728, %v5743, %v5744
      %v5746 = vrot.slane %v5744, 4
      %v5747 = vrot.slane %v5612, 5
      %v5748 = vsel %vm1728, %v5746, %v5747
      %v5749 = vrot.slane %v5613, 5
      %v5750 = vrot.slane %v5749, 4
      %v5751 = vrot.slane %v5614, 5
      %v5752 = vsel %vm1728, %v5750, %v5751
      %v5753 = vrot.slane %v5751, 4
      %v5754 = vrot.slane %v5615, 5
      %v5755 = vsel %vm1728, %v5753, %v5754
      %v5756 = vrot.slane %v5616, 5
      %v5757 = vrot.slane %v5756, 4
      %v5758 = vrot.slane %v5617, 5
      %v5759 = vsel %vm1728, %v5757, %v5758
      %v5760 = vrot.slane %v5758, 4
      %v5761 = vrot.slane %v5618, 5
      %v5762 = vsel %vm1728, %v5760, %v5761
      %v5763 = vrot.slane %v5619, 5
      %v5764 = vrot.slane %v5763, 4
      %v5765 = vrot.slane %v5620, 5
      %v5766 = vsel %vm1728, %v5764, %v5765
      %v5767 = vrot.slane %v5765, 4
      %v5768 = vrot.slane %v5621, 5
      %v5769 = vsel %vm1728, %v5767, %v5768
      %v5770 = vrot.slane %v5622, 5
      %v5771 = vrot.slane %v5770, 4
      %v5772 = vrot.slane %v5623, 5
      %v5773 = vsel %vm1728, %v5771, %v5772
      %v5774 = vrot.slane %v5772, 4
      %v5775 = vrot.slane %v5624, 5
      %v5776 = vsel %vm1728, %v5774, %v5775
      %v5777 = vrot.slane %v5625, 5
      %v5778 = vrot.slane %v5777, 4
      %v5779 = vrot.slane %v5626, 5
      %v5780 = vsel %vm1728, %v5778, %v5779
      %v5781 = vrot.slane %v5779, 4
      %v5782 = vrot.slane %v5627, 5
      %v5783 = vsel %vm1728, %v5781, %v5782
      %v5784 = vrot.slane %v5628, 5
      %v5785 = vrot.slane %v5784, 4
      %v5786 = vrot.slane %v5629, 5
      %v5787 = vsel %vm1728, %v5785, %v5786
      %v5788 = vrot.slane %v5786, 4
      %v5789 = vrot.slane %v5630, 5
      %v5790 = vsel %vm1728, %v5788, %v5789
      %v5791 = vunpack.c.l.b16 %v5682
      %v5792 = vunpack.c.l.b16 %v5685
      %v5793 = vunpack.c.l.b16 %v5689
      %v5794 = vunpack.c.l.b16 %v5692
      %v5795 = vunpack.c.l.b16 %v5696
      %v5796 = vunpack.c.l.b16 %v5699
      %v5797 = vunpack.c.l.b16 %v5703
      %v5798 = vunpack.c.l.b16 %v5706
      %v5799 = vunpack.c.l.b16 %v5710
      %v5800 = vunpack.c.l.b16 %v5713
      %v5801 = vunpack.c.l.b16 %v5717
      %v5802 = vunpack.c.l.b16 %v5720
      %v5803 = vunpack.c.l.b16 %v5724
      %v5804 = vunpack.c.l.b16 %v5727
      %v5805 = vunpack.c.l.b16 %v5731
      %v5806 = vunpack.c.l.b16 %v5734
      %v5807 = vunpack.c.l.b16 %v5738
      %v5808 = vunpack.c.l.b16 %v5741
      %v5809 = vunpack.c.l.b16 %v5745
      %v5810 = vunpack.c.l.b16 %v5748
      %v5811 = vunpack.c.l.b16 %v5752
      %v5812 = vunpack.c.l.b16 %v5755
      %v5813 = vunpack.c.l.b16 %v5759
      %v5814 = vunpack.c.l.b16 %v5762
      %v5815 = vunpack.c.l.b16 %v5766
      %v5816 = vunpack.c.l.b16 %v5769
      %v5817 = vunpack.c.l.b16 %v5773
      %v5818 = vunpack.c.l.b16 %v5776
      %v5819 = vunpack.c.l.b16 %v5780
      %v5820 = vunpack.c.l.b16 %v5783
      %v5821 = vunpack.c.l.b16 %v5787
      %v5822 = vunpack.c.l.b16 %v5790
      %v5823 = vpack.c.b16 %v5792, %v5791
      %v5824 = vpack.c.b16 %v5794, %v5793
      %v5825 = vpack.c.b16 %v5796, %v5795
      %v5826 = vpack.c.b16 %v5798, %v5797
      %v5827 = vpack.c.b16 %v5800, %v5799
      %v5828 = vpack.c.b16 %v5802, %v5801
      %v5829 = vpack.c.b16 %v5804, %v5803
      %v5830 = vpack.c.b16 %v5806, %v5805
      %v5831 = vpack.c.b16 %v5808, %v5807
      %v5832 = vpack.c.b16 %v5810, %v5809
      %v5833 = vpack.c.b16 %v5812, %v5811
      %v5834 = vpack.c.b16 %v5814, %v5813
      %v5835 = vpack.c.b16 %v5816, %v5815
      %v5836 = vpack.c.b16 %v5818, %v5817
      %v5837 = vpack.c.b16 %v5820, %v5819
      %v5838 = vpack.c.b16 %v5822, %v5821
      %5839 = vrot.lane.b32.xlu0 %v5823, 52
      %v5840 = vpop.permute.xlu0 %5839
      %5841 = vrot.lane.b32.xlu0 %v5824, 52
      %v5842 = vpop.permute.xlu0 %5841
      %5843 = vrot.lane.b32.xlu0 %v5825, 52
      %v5844 = vpop.permute.xlu0 %5843
      %5845 = vrot.lane.b32.xlu0 %v5826, 52
      %v5846 = vpop.permute.xlu0 %5845
      %5847 = vrot.lane.b32.xlu0 %v5827, 52
      %v5848 = vpop.permute.xlu0 %5847
      %5849 = vrot.lane.b32.xlu0 %v5828, 52
      %v5850 = vpop.permute.xlu0 %5849
      %5851 = vrot.lane.b32.xlu0 %v5829, 52
      %v5852 = vpop.permute.xlu0 %5851
      %5853 = vrot.lane.b32.xlu0 %v5830, 52
      %v5854 = vpop.permute.xlu0 %5853
      %5855 = vrot.lane.b32.xlu0 %v5831, 52
      %v5856 = vpop.permute.xlu0 %5855
      %5857 = vrot.lane.b32.xlu0 %v5832, 52
      %v5858 = vpop.permute.xlu0 %5857
      %5859 = vrot.lane.b32.xlu0 %v5833, 52
      %v5860 = vpop.permute.xlu0 %5859
      %5861 = vrot.lane.b32.xlu0 %v5834, 52
      %v5862 = vpop.permute.xlu0 %5861
      %5863 = vrot.lane.b32.xlu0 %v5835, 52
      %v5864 = vpop.permute.xlu0 %5863
      %5865 = vrot.lane.b32.xlu0 %v5836, 52
      %v5866 = vpop.permute.xlu0 %5865
      %5867 = vrot.lane.b32.xlu0 %v5837, 52
      %v5868 = vpop.permute.xlu0 %5867
      %5869 = vrot.lane.b32.xlu0 %v5838, 52
      %v5870 = vpop.permute.xlu0 %5869
      %vm5887 = vcmask 490912
      %5888 = vst.msk [vmem:[#allocation4] sm:$0xff] %vm5887, %v5840
      %5889 = vst.msk [vmem:[#allocation4 + $0x8] sm:$0xff] %vm5887, %v5842
      %5890 = vst.msk [vmem:[#allocation4 + $0x10] sm:$0xff] %vm5887, %v5844
      %5891 = vst.msk [vmem:[#allocation4 + $0x18] sm:$0xff] %vm5887, %v5846
      %5892 = vst.msk [vmem:[#allocation4 + $0x20] sm:$0xff] %vm5887, %v5848
      %5893 = vst.msk [vmem:[#allocation4 + $0x28] sm:$0xff] %vm5887, %v5850
      %5894 = vst.msk [vmem:[#allocation4 + $0x30] sm:$0xff] %vm5887, %v5852
      %5895 = vst.msk [vmem:[#allocation4 + $0x38] sm:$0xff] %vm5887, %v5854
      %5896 = vst.msk [vmem:[#allocation4 + $0x40] sm:$0xff] %vm5887, %v5856
      %5897 = vst.msk [vmem:[#allocation4 + $0x48] sm:$0xff] %vm5887, %v5858
      %5898 = vst.msk [vmem:[#allocation4 + $0x50] sm:$0xff] %vm5887, %v5860
      %5899 = vst.msk [vmem:[#allocation4 + $0x58] sm:$0xff] %vm5887, %v5862
      %5900 = vst.msk [vmem:[#allocation4 + $0x60] sm:$0xff] %vm5887, %v5864
      %5901 = vst.msk [vmem:[#allocation4 + $0x68] sm:$0xff] %vm5887, %v5866
      %5902 = vst.msk [vmem:[#allocation4 + $0x70] sm:$0xff] %vm5887, %v5868
      %5903 = vst.msk [vmem:[#allocation4 + $0x78] sm:$0xff] %vm5887, %v5870
      %v5904 = vld [vmem:[%s4746] sm:$0xf]
      %v5905 = vld [vmem:[%s4746 + $0x4] sm:$0xf]
      %v5906 = vld [vmem:[%s4746 + $0xc] sm:$0xf]
      %v5907 = vld [vmem:[%s4746 + $0x10] sm:$0xf]
      %v5908 = vld [vmem:[%s4746 + $0x18] sm:$0xf]
      %v5909 = vld [vmem:[%s4746 + $0x1c] sm:$0xf]
      %v5910 = vld [vmem:[%s4746 + $0x24] sm:$0xf]
      %v5911 = vld [vmem:[%s4746 + $0x28] sm:$0xf]
      %v5912 = vld [vmem:[%s4746 + $0x30] sm:$0xf]
      %v5913 = vld [vmem:[%s4746 + $0x34] sm:$0xf]
      %v5914 = vld [vmem:[%s4746 + $0x3c] sm:$0xf]
      %v5915 = vld [vmem:[%s4746 + $0x40] sm:$0xf]
      %v5916 = vld [vmem:[%s4746 + $0x48] sm:$0xf]
      %v5917 = vld [vmem:[%s4746 + $0x4c] sm:$0xf]
      %v5918 = vld [vmem:[%s4746 + $0x54] sm:$0xf]
      %v5919 = vld [vmem:[%s4746 + $0x58] sm:$0xf]
      %v5920 = vld [vmem:[%s4746 + $0x60] sm:$0xf]
      %v5921 = vld [vmem:[%s4746 + $0x64] sm:$0xf]
      %v5922 = vld [vmem:[%s4746 + $0x6c] sm:$0xf]
      %v5923 = vld [vmem:[%s4746 + $0x70] sm:$0xf]
      %v5924 = vld [vmem:[%s4746 + $0x78] sm:$0xf]
      %v5925 = vld [vmem:[%s4746 + $0x7c] sm:$0xf]
      %v5926 = vld [vmem:[%s4746 + $0x84] sm:$0xf]
      %v5927 = vld [vmem:[%s4746 + $0x88] sm:$0xf]
      %v5928 = vld [vmem:[%s4746 + $0x90] sm:$0xf]
      %v5929 = vld [vmem:[%s4746 + $0x94] sm:$0xf]
      %v5930 = vld [vmem:[%s4746 + $0x9c] sm:$0xf]
      %v5931 = vld [vmem:[%s4746 + $0xa0] sm:$0xf]
      %v5932 = vld [vmem:[%s4746 + $0xa8] sm:$0xf]
      %v5933 = vld [vmem:[%s4746 + $0xac] sm:$0xf]
      %v5934 = vld [vmem:[%s4746 + $0xb4] sm:$0xf]
      %v5935 = vld [vmem:[%s4746 + $0xb8] sm:$0xf]
      %v5968 = vunpack.c.l.b16 %v5904
      %v5969 = vunpack.c.l.b16 %v5905
      %v5970 = vunpack.c.l.b16 %v5906
      %v5971 = vunpack.c.l.b16 %v5907
      %v5972 = vunpack.c.l.b16 %v5908
      %v5973 = vunpack.c.l.b16 %v5909
      %v5974 = vunpack.c.l.b16 %v5910
      %v5975 = vunpack.c.l.b16 %v5911
      %v5976 = vunpack.c.l.b16 %v5912
      %v5977 = vunpack.c.l.b16 %v5913
      %v5978 = vunpack.c.l.b16 %v5914
      %v5979 = vunpack.c.l.b16 %v5915
      %v5980 = vunpack.c.l.b16 %v5916
      %v5981 = vunpack.c.l.b16 %v5917
      %v5982 = vunpack.c.l.b16 %v5918
      %v5983 = vunpack.c.l.b16 %v5919
      %v5984 = vunpack.c.l.b16 %v5920
      %v5985 = vunpack.c.l.b16 %v5921
      %v5986 = vunpack.c.l.b16 %v5922
      %v5987 = vunpack.c.l.b16 %v5923
      %v5988 = vunpack.c.l.b16 %v5924
      %v5989 = vunpack.c.l.b16 %v5925
      %v5990 = vunpack.c.l.b16 %v5926
      %v5991 = vunpack.c.l.b16 %v5927
      %v5992 = vunpack.c.l.b16 %v5928
      %v5993 = vunpack.c.l.b16 %v5929
      %v5994 = vunpack.c.l.b16 %v5930
      %v5995 = vunpack.c.l.b16 %v5931
      %v5996 = vunpack.c.l.b16 %v5932
      %v5997 = vunpack.c.l.b16 %v5933
      %v5998 = vunpack.c.l.b16 %v5934
      %v5999 = vunpack.c.l.b16 %v5935
      %v6000 = vpack.c.b16 %v5969, %v5968
      %v6001 = vpack.c.b16 %v5971, %v5970
      %v6002 = vpack.c.b16 %v5973, %v5972
      %v6003 = vpack.c.b16 %v5975, %v5974
      %v6004 = vpack.c.b16 %v5977, %v5976
      %v6005 = vpack.c.b16 %v5979, %v5978
      %v6006 = vpack.c.b16 %v5981, %v5980
      %v6007 = vpack.c.b16 %v5983, %v5982
      %v6008 = vpack.c.b16 %v5985, %v5984
      %v6009 = vpack.c.b16 %v5987, %v5986
      %v6010 = vpack.c.b16 %v5989, %v5988
      %v6011 = vpack.c.b16 %v5991, %v5990
      %v6012 = vpack.c.b16 %v5993, %v5992
      %v6013 = vpack.c.b16 %v5995, %v5994
      %v6014 = vpack.c.b16 %v5997, %v5996
      %v6015 = vpack.c.b16 %v5999, %v5998
      %6016 = vrot.lane.b32.xlu0 %v6000, 60
      %v6017 = vpop.permute.xlu0 %6016
      %6018 = vrot.lane.b32.xlu0 %v6001, 60
      %v6019 = vpop.permute.xlu0 %6018
      %6020 = vrot.lane.b32.xlu0 %v6002, 60
      %v6021 = vpop.permute.xlu0 %6020
      %6022 = vrot.lane.b32.xlu0 %v6003, 60
      %v6023 = vpop.permute.xlu0 %6022
      %6024 = vrot.lane.b32.xlu0 %v6004, 60
      %v6025 = vpop.permute.xlu0 %6024
      %6026 = vrot.lane.b32.xlu0 %v6005, 60
      %v6027 = vpop.permute.xlu0 %6026
      %6028 = vrot.lane.b32.xlu0 %v6006, 60
      %v6029 = vpop.permute.xlu0 %6028
      %6030 = vrot.lane.b32.xlu0 %v6007, 60
      %v6031 = vpop.permute.xlu0 %6030
      %6032 = vrot.lane.b32.xlu0 %v6008, 60
      %v6033 = vpop.permute.xlu0 %6032
      %6034 = vrot.lane.b32.xlu0 %v6009, 60
      %v6035 = vpop.permute.xlu0 %6034
      %6036 = vrot.lane.b32.xlu0 %v6010, 60
      %v6037 = vpop.permute.xlu0 %6036
      %6038 = vrot.lane.b32.xlu0 %v6011, 60
      %v6039 = vpop.permute.xlu0 %6038
      %6040 = vrot.lane.b32.xlu0 %v6012, 60
      %v6041 = vpop.permute.xlu0 %6040
      %6042 = vrot.lane.b32.xlu0 %v6013, 60
      %v6043 = vpop.permute.xlu0 %6042
      %6044 = vrot.lane.b32.xlu0 %v6014, 60
      %v6045 = vpop.permute.xlu0 %6044
      %6046 = vrot.lane.b32.xlu0 %v6015, 60
      %v6047 = vpop.permute.xlu0 %6046
      %vm6064 = vcmask 556512
      %6065 = vst.msk [vmem:[#allocation4] sm:$0xff] %vm6064, %v6017
      %6066 = vst.msk [vmem:[#allocation4 + $0x8] sm:$0xff] %vm6064, %v6019
      %6067 = vst.msk [vmem:[#allocation4 + $0x10] sm:$0xff] %vm6064, %v6021
      %6068 = vst.msk [vmem:[#allocation4 + $0x18] sm:$0xff] %vm6064, %v6023
      %6069 = vst.msk [vmem:[#allocation4 + $0x20] sm:$0xff] %vm6064, %v6025
      %6070 = vst.msk [vmem:[#allocation4 + $0x28] sm:$0xff] %vm6064, %v6027
      %6071 = vst.msk [vmem:[#allocation4 + $0x30] sm:$0xff] %vm6064, %v6029
      %6072 = vst.msk [vmem:[#allocation4 + $0x38] sm:$0xff] %vm6064, %v6031
      %6073 = vst.msk [vmem:[#allocation4 + $0x40] sm:$0xff] %vm6064, %v6033
      %6074 = vst.msk [vmem:[#allocation4 + $0x48] sm:$0xff] %vm6064, %v6035
      %6075 = vst.msk [vmem:[#allocation4 + $0x50] sm:$0xff] %vm6064, %v6037
      %6076 = vst.msk [vmem:[#allocation4 + $0x58] sm:$0xff] %vm6064, %v6039
      %6077 = vst.msk [vmem:[#allocation4 + $0x60] sm:$0xff] %vm6064, %v6041
      %6078 = vst.msk [vmem:[#allocation4 + $0x68] sm:$0xff] %vm6064, %v6043
      %6079 = vst.msk [vmem:[#allocation4 + $0x70] sm:$0xff] %vm6064, %v6045
      %6080 = vst.msk [vmem:[#allocation4 + $0x78] sm:$0xff] %vm6064, %v6047
      %v6081 = vld [vmem:[%s4746] sm:$0xf]
      %v6082 = vld [vmem:[%s4746 + $0x4] sm:$0xf]
      %v6083 = vld [vmem:[%s4746 + $0x8] sm:$0x1]
      %v6084 = vld [vmem:[%s4746 + $0xc] sm:$0xf]
      %v6085 = vld [vmem:[%s4746 + $0x10] sm:$0xf]
      %v6086 = vld [vmem:[%s4746 + $0x14] sm:$0x1]
      %v6087 = vld [vmem:[%s4746 + $0x18] sm:$0xf]
      %v6088 = vld [vmem:[%s4746 + $0x1c] sm:$0xf]
      %v6089 = vld [vmem:[%s4746 + $0x20] sm:$0x1]
      %v6090 = vld [vmem:[%s4746 + $0x24] sm:$0xf]
      %v6091 = vld [vmem:[%s4746 + $0x28] sm:$0xf]
      %v6092 = vld [vmem:[%s4746 + $0x2c] sm:$0x1]
      %v6093 = vld [vmem:[%s4746 + $0x30] sm:$0xf]
      %v6094 = vld [vmem:[%s4746 + $0x34] sm:$0xf]
      %v6095 = vld [vmem:[%s4746 + $0x38] sm:$0x1]
      %v6096 = vld [vmem:[%s4746 + $0x3c] sm:$0xf]
      %v6097 = vld [vmem:[%s4746 + $0x40] sm:$0xf]
      %v6098 = vld [vmem:[%s4746 + $0x44] sm:$0x1]
      %v6099 = vld [vmem:[%s4746 + $0x48] sm:$0xf]
      %v6100 = vld [vmem:[%s4746 + $0x4c] sm:$0xf]
      %v6101 = vld [vmem:[%s4746 + $0x50] sm:$0x1]
      %v6102 = vld [vmem:[%s4746 + $0x54] sm:$0xf]
      %v6103 = vld [vmem:[%s4746 + $0x58] sm:$0xf]
      %v6104 = vld [vmem:[%s4746 + $0x5c] sm:$0x1]
      %v6105 = vld [vmem:[%s4746 + $0x60] sm:$0xf]
      %v6106 = vld [vmem:[%s4746 + $0x64] sm:$0xf]
      %v6107 = vld [vmem:[%s4746 + $0x68] sm:$0x1]
      %v6108 = vld [vmem:[%s4746 + $0x6c] sm:$0xf]
      %v6109 = vld [vmem:[%s4746 + $0x70] sm:$0xf]
      %v6110 = vld [vmem:[%s4746 + $0x74] sm:$0x1]
      %v6111 = vld [vmem:[%s4746 + $0x78] sm:$0xf]
      %v6112 = vld [vmem:[%s4746 + $0x7c] sm:$0xf]
      %v6113 = vld [vmem:[%s4746 + $0x80] sm:$0x1]
      %v6114 = vld [vmem:[%s4746 + $0x84] sm:$0xf]
      %v6115 = vld [vmem:[%s4746 + $0x88] sm:$0xf]
      %v6116 = vld [vmem:[%s4746 + $0x8c] sm:$0x1]
      %v6117 = vld [vmem:[%s4746 + $0x90] sm:$0xf]
      %v6118 = vld [vmem:[%s4746 + $0x94] sm:$0xf]
      %v6119 = vld [vmem:[%s4746 + $0x98] sm:$0x1]
      %v6120 = vld [vmem:[%s4746 + $0x9c] sm:$0xf]
      %v6121 = vld [vmem:[%s4746 + $0xa0] sm:$0xf]
      %v6122 = vld [vmem:[%s4746 + $0xa4] sm:$0x1]
      %v6123 = vld [vmem:[%s4746 + $0xa8] sm:$0xf]
      %v6124 = vld [vmem:[%s4746 + $0xac] sm:$0xf]
      %v6125 = vld [vmem:[%s4746 + $0xb0] sm:$0x1]
      %v6126 = vld [vmem:[%s4746 + $0xb4] sm:$0xf]
      %v6127 = vld [vmem:[%s4746 + $0xb8] sm:$0xf]
      %v6128 = vld [vmem:[%s4746 + $0xbc] sm:$0x1]
      %v6130 = vshrl.u32 %v6081, 16
      %v6132 = vrot.slane %v6130, 4
      %v6133 = vshll.u32 %v6081, 16
      %v6135 = vrot.slane %v6133, 5
      %v6136 = vor.u32 %v6132, %v6135
      %v6137 = vrot.slane %v6136, 4
      %v6139 = vshll.u32 %v6082, 16
      %v6141 = vrot.slane %v6139, 5
      %v6142 = vsel %vm1132, %v6137, %v6141
      %v6143 = vshrl.u32 %v6082, 16
      %v6145 = vrot.slane %v6143, 4
      %v6146 = vor.u32 %v6145, %v6141
      %v6147 = vrot.slane %v6146, 4
      %v6149 = vshll.u32 %v6083, 16
      %v6151 = vrot.slane %v6149, 5
      %v6152 = vsel %vm1132, %v6147, %v6151
      %v6154 = vshrl.u32 %v6084, 16
      %v6156 = vrot.slane %v6154, 4
      %v6157 = vshll.u32 %v6084, 16
      %v6159 = vrot.slane %v6157, 5
      %v6160 = vor.u32 %v6156, %v6159
      %v6161 = vrot.slane %v6160, 4
      %v6163 = vshll.u32 %v6085, 16
      %v6165 = vrot.slane %v6163, 5
      %v6166 = vsel %vm1132, %v6161, %v6165
      %v6167 = vshrl.u32 %v6085, 16
      %v6169 = vrot.slane %v6167, 4
      %v6170 = vor.u32 %v6169, %v6165
      %v6171 = vrot.slane %v6170, 4
      %v6173 = vshll.u32 %v6086, 16
      %v6175 = vrot.slane %v6173, 5
      %v6176 = vsel %vm1132, %v6171, %v6175
      %v6178 = vshrl.u32 %v6087, 16
      %v6180 = vrot.slane %v6178, 4
      %v6181 = vshll.u32 %v6087, 16
      %v6183 = vrot.slane %v6181, 5
      %v6184 = vor.u32 %v6180, %v6183
      %v6185 = vrot.slane %v6184, 4
      %v6187 = vshll.u32 %v6088, 16
      %v6189 = vrot.slane %v6187, 5
      %v6190 = vsel %vm1132, %v6185, %v6189
      %v6191 = vshrl.u32 %v6088, 16
      %v6193 = vrot.slane %v6191, 4
      %v6194 = vor.u32 %v6193, %v6189
      %v6195 = vrot.slane %v6194, 4
      %v6197 = vshll.u32 %v6089, 16
      %v6199 = vrot.slane %v6197, 5
      %v6200 = vsel %vm1132, %v6195, %v6199
      %v6202 = vshrl.u32 %v6090, 16
      %v6204 = vrot.slane %v6202, 4
      %v6205 = vshll.u32 %v6090, 16
      %v6207 = vrot.slane %v6205, 5
      %v6208 = vor.u32 %v6204, %v6207
      %v6209 = vrot.slane %v6208, 4
      %v6211 = vshll.u32 %v6091, 16
      %v6213 = vrot.slane %v6211, 5
      %v6214 = vsel %vm1132, %v6209, %v6213
      %v6215 = vshrl.u32 %v6091, 16
      %v6217 = vrot.slane %v6215, 4
      %v6218 = vor.u32 %v6217, %v6213
      %v6219 = vrot.slane %v6218, 4
      %v6221 = vshll.u32 %v6092, 16
      %v6223 = vrot.slane %v6221, 5
      %v6224 = vsel %vm1132, %v6219, %v6223
      %v6226 = vshrl.u32 %v6093, 16
      %v6228 = vrot.slane %v6226, 4
      %v6229 = vshll.u32 %v6093, 16
      %v6231 = vrot.slane %v6229, 5
      %v6232 = vor.u32 %v6228, %v6231
      %v6233 = vrot.slane %v6232, 4
      %v6235 = vshll.u32 %v6094, 16
      %v6237 = vrot.slane %v6235, 5
      %v6238 = vsel %vm1132, %v6233, %v6237
      %v6239 = vshrl.u32 %v6094, 16
      %v6241 = vrot.slane %v6239, 4
      %v6242 = vor.u32 %v6241, %v6237
      %v6243 = vrot.slane %v6242, 4
      %v6245 = vshll.u32 %v6095, 16
      %v6247 = vrot.slane %v6245, 5
      %v6248 = vsel %vm1132, %v6243, %v6247
      %v6250 = vshrl.u32 %v6096, 16
      %v6252 = vrot.slane %v6250, 4
      %v6253 = vshll.u32 %v6096, 16
      %v6255 = vrot.slane %v6253, 5
      %v6256 = vor.u32 %v6252, %v6255
      %v6257 = vrot.slane %v6256, 4
      %v6259 = vshll.u32 %v6097, 16
      %v6261 = vrot.slane %v6259, 5
      %v6262 = vsel %vm1132, %v6257, %v6261
      %v6263 = vshrl.u32 %v6097, 16
      %v6265 = vrot.slane %v6263, 4
      %v6266 = vor.u32 %v6265, %v6261
      %v6267 = vrot.slane %v6266, 4
      %v6269 = vshll.u32 %v6098, 16
      %v6271 = vrot.slane %v6269, 5
      %v6272 = vsel %vm1132, %v6267, %v6271
      %v6274 = vshrl.u32 %v6099, 16
      %v6276 = vrot.slane %v6274, 4
      %v6277 = vshll.u32 %v6099, 16
      %v6279 = vrot.slane %v6277, 5
      %v6280 = vor.u32 %v6276, %v6279
      %v6281 = vrot.slane %v6280, 4
      %v6283 = vshll.u32 %v6100, 16
      %v6285 = vrot.slane %v6283, 5
      %v6286 = vsel %vm1132, %v6281, %v6285
      %v6287 = vshrl.u32 %v6100, 16
      %v6289 = vrot.slane %v6287, 4
      %v6290 = vor.u32 %v6289, %v6285
      %v6291 = vrot.slane %v6290, 4
      %v6293 = vshll.u32 %v6101, 16
      %v6295 = vrot.slane %v6293, 5
      %v6296 = vsel %vm1132, %v6291, %v6295
      %v6298 = vshrl.u32 %v6102, 16
      %v6300 = vrot.slane %v6298, 4
      %v6301 = vshll.u32 %v6102, 16
      %v6303 = vrot.slane %v6301, 5
      %v6304 = vor.u32 %v6300, %v6303
      %v6305 = vrot.slane %v6304, 4
      %v6307 = vshll.u32 %v6103, 16
      %v6309 = vrot.slane %v6307, 5
      %v6310 = vsel %vm1132, %v6305, %v6309
      %v6311 = vshrl.u32 %v6103, 16
      %v6313 = vrot.slane %v6311, 4
      %v6314 = vor.u32 %v6313, %v6309
      %v6315 = vrot.slane %v6314, 4
      %v6317 = vshll.u32 %v6104, 16
      %v6319 = vrot.slane %v6317, 5
      %v6320 = vsel %vm1132, %v6315, %v6319
      %v6322 = vshrl.u32 %v6105, 16
      %v6324 = vrot.slane %v6322, 4
      %v6325 = vshll.u32 %v6105, 16
      %v6327 = vrot.slane %v6325, 5
      %v6328 = vor.u32 %v6324, %v6327
      %v6329 = vrot.slane %v6328, 4
      %v6331 = vshll.u32 %v6106, 16
      %v6333 = vrot.slane %v6331, 5
      %v6334 = vsel %vm1132, %v6329, %v6333
      %v6335 = vshrl.u32 %v6106, 16
      %v6337 = vrot.slane %v6335, 4
      %v6338 = vor.u32 %v6337, %v6333
      %v6339 = vrot.slane %v6338, 4
      %v6341 = vshll.u32 %v6107, 16
      %v6343 = vrot.slane %v6341, 5
      %v6344 = vsel %vm1132, %v6339, %v6343
      %v6346 = vshrl.u32 %v6108, 16
      %v6348 = vrot.slane %v6346, 4
      %v6349 = vshll.u32 %v6108, 16
      %v6351 = vrot.slane %v6349, 5
      %v6352 = vor.u32 %v6348, %v6351
      %v6353 = vrot.slane %v6352, 4
      %v6355 = vshll.u32 %v6109, 16
      %v6357 = vrot.slane %v6355, 5
      %v6358 = vsel %vm1132, %v6353, %v6357
      %v6359 = vshrl.u32 %v6109, 16
      %v6361 = vrot.slane %v6359, 4
      %v6362 = vor.u32 %v6361, %v6357
      %v6363 = vrot.slane %v6362, 4
      %v6365 = vshll.u32 %v6110, 16
      %v6367 = vrot.slane %v6365, 5
      %v6368 = vsel %vm1132, %v6363, %v6367
      %v6370 = vshrl.u32 %v6111, 16
      %v6372 = vrot.slane %v6370, 4
      %v6373 = vshll.u32 %v6111, 16
      %v6375 = vrot.slane %v6373, 5
      %v6376 = vor.u32 %v6372, %v6375
      %v6377 = vrot.slane %v6376, 4
      %v6379 = vshll.u32 %v6112, 16
      %v6381 = vrot.slane %v6379, 5
      %v6382 = vsel %vm1132, %v6377, %v6381
      %v6383 = vshrl.u32 %v6112, 16
      %v6385 = vrot.slane %v6383, 4
      %v6386 = vor.u32 %v6385, %v6381
      %v6387 = vrot.slane %v6386, 4
      %v6389 = vshll.u32 %v6113, 16
      %v6391 = vrot.slane %v6389, 5
      %v6392 = vsel %vm1132, %v6387, %v6391
      %v6394 = vshrl.u32 %v6114, 16
      %v6396 = vrot.slane %v6394, 4
      %v6397 = vshll.u32 %v6114, 16
      %v6399 = vrot.slane %v6397, 5
      %v6400 = vor.u32 %v6396, %v6399
      %v6401 = vrot.slane %v6400, 4
      %v6403 = vshll.u32 %v6115, 16
      %v6405 = vrot.slane %v6403, 5
      %v6406 = vsel %vm1132, %v6401, %v6405
      %v6407 = vshrl.u32 %v6115, 16
      %v6409 = vrot.slane %v6407, 4
      %v6410 = vor.u32 %v6409, %v6405
      %v6411 = vrot.slane %v6410, 4
      %v6413 = vshll.u32 %v6116, 16
      %v6415 = vrot.slane %v6413, 5
      %v6416 = vsel %vm1132, %v6411, %v6415
      %v6418 = vshrl.u32 %v6117, 16
      %v6420 = vrot.slane %v6418, 4
      %v6421 = vshll.u32 %v6117, 16
      %v6423 = vrot.slane %v6421, 5
      %v6424 = vor.u32 %v6420, %v6423
      %v6425 = vrot.slane %v6424, 4
      %v6427 = vshll.u32 %v6118, 16
      %v6429 = vrot.slane %v6427, 5
      %v6430 = vsel %vm1132, %v6425, %v6429
      %v6431 = vshrl.u32 %v6118, 16
      %v6433 = vrot.slane %v6431, 4
      %v6434 = vor.u32 %v6433, %v6429
      %v6435 = vrot.slane %v6434, 4
      %v6437 = vshll.u32 %v6119, 16
      %v6439 = vrot.slane %v6437, 5
      %v6440 = vsel %vm1132, %v6435, %v6439
      %v6442 = vshrl.u32 %v6120, 16
      %v6444 = vrot.slane %v6442, 4
      %v6445 = vshll.u32 %v6120, 16
      %v6447 = vrot.slane %v6445, 5
      %v6448 = vor.u32 %v6444, %v6447
      %v6449 = vrot.slane %v6448, 4
      %v6451 = vshll.u32 %v6121, 16
      %v6453 = vrot.slane %v6451, 5
      %v6454 = vsel %vm1132, %v6449, %v6453
      %v6455 = vshrl.u32 %v6121, 16
      %v6457 = vrot.slane %v6455, 4
      %v6458 = vor.u32 %v6457, %v6453
      %v6459 = vrot.slane %v6458, 4
      %v6461 = vshll.u32 %v6122, 16
      %v6463 = vrot.slane %v6461, 5
      %v6464 = vsel %vm1132, %v6459, %v6463
      %v6466 = vshrl.u32 %v6123, 16
      %v6468 = vrot.slane %v6466, 4
      %v6469 = vshll.u32 %v6123, 16
      %v6471 = vrot.slane %v6469, 5
      %v6472 = vor.u32 %v6468, %v6471
      %v6473 = vrot.slane %v6472, 4
      %v6475 = vshll.u32 %v6124, 16
      %v6477 = vrot.slane %v6475, 5
      %v6478 = vsel %vm1132, %v6473, %v6477
      %v6479 = vshrl.u32 %v6124, 16
      %v6481 = vrot.slane %v6479, 4
      %v6482 = vor.u32 %v6481, %v6477
      %v6483 = vrot.slane %v6482, 4
      %v6485 = vshll.u32 %v6125, 16
      %v6487 = vrot.slane %v6485, 5
      %v6488 = vsel %vm1132, %v6483, %v6487
      %v6490 = vshrl.u32 %v6126, 16
      %v6492 = vrot.slane %v6490, 4
      %v6493 = vshll.u32 %v6126, 16
      %v6495 = vrot.slane %v6493, 5
      %v6496 = vor.u32 %v6492, %v6495
      %v6497 = vrot.slane %v6496, 4
      %v6499 = vshll.u32 %v6127, 16
      %v6501 = vrot.slane %v6499, 5
      %v6502 = vsel %vm1132, %v6497, %v6501
      %v6503 = vshrl.u32 %v6127, 16
      %v6505 = vrot.slane %v6503, 4
      %v6506 = vor.u32 %v6505, %v6501
      %v6507 = vrot.slane %v6506, 4
      %v6509 = vshll.u32 %v6128, 16
      %v6511 = vrot.slane %v6509, 5
      %v6512 = vsel %vm1132, %v6507, %v6511
      %v6513 = vunpack.c.l.b16 %v6142
      %v6514 = vunpack.c.l.b16 %v6152
      %v6515 = vunpack.c.l.b16 %v6166
      %v6516 = vunpack.c.l.b16 %v6176
      %v6517 = vunpack.c.l.b16 %v6190
      %v6518 = vunpack.c.l.b16 %v6200
      %v6519 = vunpack.c.l.b16 %v6214
      %v6520 = vunpack.c.l.b16 %v6224
      %v6521 = vunpack.c.l.b16 %v6238
      %v6522 = vunpack.c.l.b16 %v6248
      %v6523 = vunpack.c.l.b16 %v6262
      %v6524 = vunpack.c.l.b16 %v6272
      %v6525 = vunpack.c.l.b16 %v6286
      %v6526 = vunpack.c.l.b16 %v6296
      %v6527 = vunpack.c.l.b16 %v6310
      %v6528 = vunpack.c.l.b16 %v6320
      %v6529 = vunpack.c.l.b16 %v6334
      %v6530 = vunpack.c.l.b16 %v6344
      %v6531 = vunpack.c.l.b16 %v6358
      %v6532 = vunpack.c.l.b16 %v6368
      %v6533 = vunpack.c.l.b16 %v6382
      %v6534 = vunpack.c.l.b16 %v6392
      %v6535 = vunpack.c.l.b16 %v6406
      %v6536 = vunpack.c.l.b16 %v6416
      %v6537 = vunpack.c.l.b16 %v6430
      %v6538 = vunpack.c.l.b16 %v6440
      %v6539 = vunpack.c.l.b16 %v6454
      %v6540 = vunpack.c.l.b16 %v6464
      %v6541 = vunpack.c.l.b16 %v6478
      %v6542 = vunpack.c.l.b16 %v6488
      %v6543 = vunpack.c.l.b16 %v6502
      %v6544 = vunpack.c.l.b16 %v6512
      %v6545 = vpack.c.b16 %v6514, %v6513
      %v6546 = vpack.c.b16 %v6516, %v6515
      %v6547 = vpack.c.b16 %v6518, %v6517
      %v6548 = vpack.c.b16 %v6520, %v6519
      %v6549 = vpack.c.b16 %v6522, %v6521
      %v6550 = vpack.c.b16 %v6524, %v6523
      %v6551 = vpack.c.b16 %v6526, %v6525
      %v6552 = vpack.c.b16 %v6528, %v6527
      %v6553 = vpack.c.b16 %v6530, %v6529
      %v6554 = vpack.c.b16 %v6532, %v6531
      %v6555 = vpack.c.b16 %v6534, %v6533
      %v6556 = vpack.c.b16 %v6536, %v6535
      %v6557 = vpack.c.b16 %v6538, %v6537
      %v6558 = vpack.c.b16 %v6540, %v6539
      %v6559 = vpack.c.b16 %v6542, %v6541
      %v6560 = vpack.c.b16 %v6544, %v6543
      %6561 = vrot.lane.b32.xlu0 %v6545, 68
      %v6562 = vpop.permute.xlu0 %6561
      %6563 = vrot.lane.b32.xlu0 %v6546, 68
      %v6564 = vpop.permute.xlu0 %6563
      %6565 = vrot.lane.b32.xlu0 %v6547, 68
      %v6566 = vpop.permute.xlu0 %6565
      %6567 = vrot.lane.b32.xlu0 %v6548, 68
      %v6568 = vpop.permute.xlu0 %6567
      %6569 = vrot.lane.b32.xlu0 %v6549, 68
      %v6570 = vpop.permute.xlu0 %6569
      %6571 = vrot.lane.b32.xlu0 %v6550, 68
      %v6572 = vpop.permute.xlu0 %6571
      %6573 = vrot.lane.b32.xlu0 %v6551, 68
      %v6574 = vpop.permute.xlu0 %6573
      %6575 = vrot.lane.b32.xlu0 %v6552, 68
      %v6576 = vpop.permute.xlu0 %6575
      %6577 = vrot.lane.b32.xlu0 %v6553, 68
      %v6578 = vpop.permute.xlu0 %6577
      %6579 = vrot.lane.b32.xlu0 %v6554, 68
      %v6580 = vpop.permute.xlu0 %6579
      %6581 = vrot.lane.b32.xlu0 %v6555, 68
      %v6582 = vpop.permute.xlu0 %6581
      %6583 = vrot.lane.b32.xlu0 %v6556, 68
      %v6584 = vpop.permute.xlu0 %6583
      %6585 = vrot.lane.b32.xlu0 %v6557, 68
      %v6586 = vpop.permute.xlu0 %6585
      %6587 = vrot.lane.b32.xlu0 %v6558, 68
      %v6588 = vpop.permute.xlu0 %6587
      %6589 = vrot.lane.b32.xlu0 %v6559, 68
      %v6590 = vpop.permute.xlu0 %6589
      %6591 = vrot.lane.b32.xlu0 %v6560, 68
      %v6592 = vpop.permute.xlu0 %6591
      %vm6609 = vcmask 622112
      %6610 = vst.msk [vmem:[#allocation4] sm:$0xff] %vm6609, %v6562
      %6611 = vst.msk [vmem:[#allocation4 + $0x8] sm:$0xff] %vm6609, %v6564
      %6612 = vst.msk [vmem:[#allocation4 + $0x10] sm:$0xff] %vm6609, %v6566
      %6613 = vst.msk [vmem:[#allocation4 + $0x18] sm:$0xff] %vm6609, %v6568
      %6614 = vst.msk [vmem:[#allocation4 + $0x20] sm:$0xff] %vm6609, %v6570
      %6615 = vst.msk [vmem:[#allocation4 + $0x28] sm:$0xff] %vm6609, %v6572
      %6616 = vst.msk [vmem:[#allocation4 + $0x30] sm:$0xff] %vm6609, %v6574
      %6617 = vst.msk [vmem:[#allocation4 + $0x38] sm:$0xff] %vm6609, %v6576
      %6618 = vst.msk [vmem:[#allocation4 + $0x40] sm:$0xff] %vm6609, %v6578
      %6619 = vst.msk [vmem:[#allocation4 + $0x48] sm:$0xff] %vm6609, %v6580
      %6620 = vst.msk [vmem:[#allocation4 + $0x50] sm:$0xff] %vm6609, %v6582
      %6621 = vst.msk [vmem:[#allocation4 + $0x58] sm:$0xff] %vm6609, %v6584
      %6622 = vst.msk [vmem:[#allocation4 + $0x60] sm:$0xff] %vm6609, %v6586
      %6623 = vst.msk [vmem:[#allocation4 + $0x68] sm:$0xff] %vm6609, %v6588
      %6624 = vst.msk [vmem:[#allocation4 + $0x70] sm:$0xff] %vm6609, %v6590
      %6625 = vst.msk [vmem:[#allocation4 + $0x78] sm:$0xff] %vm6609, %v6592
      %v6626 = vld [vmem:[%s4746] sm:$0xe]
      %v6627 = vld [vmem:[%s4746 + $0x4] sm:$0xf]
      %v6628 = vld [vmem:[%s4746 + $0x8] sm:$0x1]
      %v6629 = vld [vmem:[%s4746 + $0xc] sm:$0xe]
      %v6630 = vld [vmem:[%s4746 + $0x10] sm:$0xf]
      %v6631 = vld [vmem:[%s4746 + $0x14] sm:$0x1]
      %v6632 = vld [vmem:[%s4746 + $0x18] sm:$0xe]
      %v6633 = vld [vmem:[%s4746 + $0x1c] sm:$0xf]
      %v6634 = vld [vmem:[%s4746 + $0x20] sm:$0x1]
      %v6635 = vld [vmem:[%s4746 + $0x24] sm:$0xe]
      %v6636 = vld [vmem:[%s4746 + $0x28] sm:$0xf]
      %v6637 = vld [vmem:[%s4746 + $0x2c] sm:$0x1]
      %v6638 = vld [vmem:[%s4746 + $0x30] sm:$0xe]
      %v6639 = vld [vmem:[%s4746 + $0x34] sm:$0xf]
      %v6640 = vld [vmem:[%s4746 + $0x38] sm:$0x1]
      %v6641 = vld [vmem:[%s4746 + $0x3c] sm:$0xe]
      %v6642 = vld [vmem:[%s4746 + $0x40] sm:$0xf]
      %v6643 = vld [vmem:[%s4746 + $0x44] sm:$0x1]
      %v6644 = vld [vmem:[%s4746 + $0x48] sm:$0xe]
      %v6645 = vld [vmem:[%s4746 + $0x4c] sm:$0xf]
      %v6646 = vld [vmem:[%s4746 + $0x50] sm:$0x1]
      %v6647 = vld [vmem:[%s4746 + $0x54] sm:$0xe]
      %v6648 = vld [vmem:[%s4746 + $0x58] sm:$0xf]
      %v6649 = vld [vmem:[%s4746 + $0x5c] sm:$0x1]
      %v6650 = vld [vmem:[%s4746 + $0x60] sm:$0xe]
      %v6651 = vld [vmem:[%s4746 + $0x64] sm:$0xf]
      %v6652 = vld [vmem:[%s4746 + $0x68] sm:$0x1]
      %v6653 = vld [vmem:[%s4746 + $0x6c] sm:$0xe]
      %v6654 = vld [vmem:[%s4746 + $0x70] sm:$0xf]
      %v6655 = vld [vmem:[%s4746 + $0x74] sm:$0x1]
      %v6656 = vld [vmem:[%s4746 + $0x78] sm:$0xe]
      %v6657 = vld [vmem:[%s4746 + $0x7c] sm:$0xf]
      %v6658 = vld [vmem:[%s4746 + $0x80] sm:$0x1]
      %v6659 = vld [vmem:[%s4746 + $0x84] sm:$0xe]
      %v6660 = vld [vmem:[%s4746 + $0x88] sm:$0xf]
      %v6661 = vld [vmem:[%s4746 + $0x8c] sm:$0x1]
      %v6662 = vld [vmem:[%s4746 + $0x90] sm:$0xe]
      %v6663 = vld [vmem:[%s4746 + $0x94] sm:$0xf]
      %v6664 = vld [vmem:[%s4746 + $0x98] sm:$0x1]
      %v6665 = vld [vmem:[%s4746 + $0x9c] sm:$0xe]
      %v6666 = vld [vmem:[%s4746 + $0xa0] sm:$0xf]
      %v6667 = vld [vmem:[%s4746 + $0xa4] sm:$0x1]
      %v6668 = vld [vmem:[%s4746 + $0xa8] sm:$0xe]
      %v6669 = vld [vmem:[%s4746 + $0xac] sm:$0xf]
      %v6670 = vld [vmem:[%s4746 + $0xb0] sm:$0x1]
      %v6671 = vld [vmem:[%s4746 + $0xb4] sm:$0xe]
      %v6672 = vld [vmem:[%s4746 + $0xb8] sm:$0xf]
      %v6673 = vld [vmem:[%s4746 + $0xbc] sm:$0x1]
      %v6722 = vrot.slane %v6626, 5
      %v6723 = vrot.slane %v6722, 4
      %v6724 = vrot.slane %v6627, 5
      %v6725 = vsel %vm1728, %v6723, %v6724
      %v6726 = vrot.slane %v6724, 4
      %v6727 = vrot.slane %v6628, 5
      %v6728 = vsel %vm1728, %v6726, %v6727
      %v6729 = vrot.slane %v6629, 5
      %v6730 = vrot.slane %v6729, 4
      %v6731 = vrot.slane %v6630, 5
      %v6732 = vsel %vm1728, %v6730, %v6731
      %v6733 = vrot.slane %v6731, 4
      %v6734 = vrot.slane %v6631, 5
      %v6735 = vsel %vm1728, %v6733, %v6734
      %v6736 = vrot.slane %v6632, 5
      %v6737 = vrot.slane %v6736, 4
      %v6738 = vrot.slane %v6633, 5
      %v6739 = vsel %vm1728, %v6737, %v6738
      %v6740 = vrot.slane %v6738, 4
      %v6741 = vrot.slane %v6634, 5
      %v6742 = vsel %vm1728, %v6740, %v6741
      %v6743 = vrot.slane %v6635, 5
      %v6744 = vrot.slane %v6743, 4
      %v6745 = vrot.slane %v6636, 5
      %v6746 = vsel %vm1728, %v6744, %v6745
      %v6747 = vrot.slane %v6745, 4
      %v6748 = vrot.slane %v6637, 5
      %v6749 = vsel %vm1728, %v6747, %v6748
      %v6750 = vrot.slane %v6638, 5
      %v6751 = vrot.slane %v6750, 4
      %v6752 = vrot.slane %v6639, 5
      %v6753 = vsel %vm1728, %v6751, %v6752
      %v6754 = vrot.slane %v6752, 4
      %v6755 = vrot.slane %v6640, 5
      %v6756 = vsel %vm1728, %v6754, %v6755
      %v6757 = vrot.slane %v6641, 5
      %v6758 = vrot.slane %v6757, 4
      %v6759 = vrot.slane %v6642, 5
      %v6760 = vsel %vm1728, %v6758, %v6759
      %v6761 = vrot.slane %v6759, 4
      %v6762 = vrot.slane %v6643, 5
      %v6763 = vsel %vm1728, %v6761, %v6762
      %v6764 = vrot.slane %v6644, 5
      %v6765 = vrot.slane %v6764, 4
      %v6766 = vrot.slane %v6645, 5
      %v6767 = vsel %vm1728, %v6765, %v6766
      %v6768 = vrot.slane %v6766, 4
      %v6769 = vrot.slane %v6646, 5
      %v6770 = vsel %vm1728, %v6768, %v6769
      %v6771 = vrot.slane %v6647, 5
      %v6772 = vrot.slane %v6771, 4
      %v6773 = vrot.slane %v6648, 5
      %v6774 = vsel %vm1728, %v6772, %v6773
      %v6775 = vrot.slane %v6773, 4
      %v6776 = vrot.slane %v6649, 5
      %v6777 = vsel %vm1728, %v6775, %v6776
      %v6778 = vrot.slane %v6650, 5
      %v6779 = vrot.slane %v6778, 4
      %v6780 = vrot.slane %v6651, 5
      %v6781 = vsel %vm1728, %v6779, %v6780
      %v6782 = vrot.slane %v6780, 4
      %v6783 = vrot.slane %v6652, 5
      %v6784 = vsel %vm1728, %v6782, %v6783
      %v6785 = vrot.slane %v6653, 5
      %v6786 = vrot.slane %v6785, 4
      %v6787 = vrot.slane %v6654, 5
      %v6788 = vsel %vm1728, %v6786, %v6787
      %v6789 = vrot.slane %v6787, 4
      %v6790 = vrot.slane %v6655, 5
      %v6791 = vsel %vm1728, %v6789, %v6790
      %v6792 = vrot.slane %v6656, 5
      %v6793 = vrot.slane %v6792, 4
      %v6794 = vrot.slane %v6657, 5
      %v6795 = vsel %vm1728, %v6793, %v6794
      %v6796 = vrot.slane %v6794, 4
      %v6797 = vrot.slane %v6658, 5
      %v6798 = vsel %vm1728, %v6796, %v6797
      %v6799 = vrot.slane %v6659, 5
      %v6800 = vrot.slane %v6799, 4
      %v6801 = vrot.slane %v6660, 5
      %v6802 = vsel %vm1728, %v6800, %v6801
      %v6803 = vrot.slane %v6801, 4
      %v6804 = vrot.slane %v6661, 5
      %v6805 = vsel %vm1728, %v6803, %v6804
      %v6806 = vrot.slane %v6662, 5
      %v6807 = vrot.slane %v6806, 4
      %v6808 = vrot.slane %v6663, 5
      %v6809 = vsel %vm1728, %v6807, %v6808
      %v6810 = vrot.slane %v6808, 4
      %v6811 = vrot.slane %v6664, 5
      %v6812 = vsel %vm1728, %v6810, %v6811
      %v6813 = vrot.slane %v6665, 5
      %v6814 = vrot.slane %v6813, 4
      %v6815 = vrot.slane %v6666, 5
      %v6816 = vsel %vm1728, %v6814, %v6815
      %v6817 = vrot.slane %v6815, 4
      %v6818 = vrot.slane %v6667, 5
      %v6819 = vsel %vm1728, %v6817, %v6818
      %v6820 = vrot.slane %v6668, 5
      %v6821 = vrot.slane %v6820, 4
      %v6822 = vrot.slane %v6669, 5
      %v6823 = vsel %vm1728, %v6821, %v6822
      %v6824 = vrot.slane %v6822, 4
      %v6825 = vrot.slane %v6670, 5
      %v6826 = vsel %vm1728, %v6824, %v6825
      %v6827 = vrot.slane %v6671, 5
      %v6828 = vrot.slane %v6827, 4
      %v6829 = vrot.slane %v6672, 5
      %v6830 = vsel %vm1728, %v6828, %v6829
      %v6831 = vrot.slane %v6829, 4
      %v6832 = vrot.slane %v6673, 5
      %v6833 = vsel %vm1728, %v6831, %v6832
      %v6834 = vunpack.c.l.b16 %v6725
      %v6835 = vunpack.c.l.b16 %v6728
      %v6836 = vunpack.c.l.b16 %v6732
      %v6837 = vunpack.c.l.b16 %v6735
      %v6838 = vunpack.c.l.b16 %v6739
      %v6839 = vunpack.c.l.b16 %v6742
      %v6840 = vunpack.c.l.b16 %v6746
      %v6841 = vunpack.c.l.b16 %v6749
      %v6842 = vunpack.c.l.b16 %v6753
      %v6843 = vunpack.c.l.b16 %v6756
      %v6844 = vunpack.c.l.b16 %v6760
      %v6845 = vunpack.c.l.b16 %v6763
      %v6846 = vunpack.c.l.b16 %v6767
      %v6847 = vunpack.c.l.b16 %v6770
      %v6848 = vunpack.c.l.b16 %v6774
      %v6849 = vunpack.c.l.b16 %v6777
      %v6850 = vunpack.c.l.b16 %v6781
      %v6851 = vunpack.c.l.b16 %v6784
      %v6852 = vunpack.c.l.b16 %v6788
      %v6853 = vunpack.c.l.b16 %v6791
      %v6854 = vunpack.c.l.b16 %v6795
      %v6855 = vunpack.c.l.b16 %v6798
      %v6856 = vunpack.c.l.b16 %v6802
      %v6857 = vunpack.c.l.b16 %v6805
      %v6858 = vunpack.c.l.b16 %v6809
      %v6859 = vunpack.c.l.b16 %v6812
      %v6860 = vunpack.c.l.b16 %v6816
      %v6861 = vunpack.c.l.b16 %v6819
      %v6862 = vunpack.c.l.b16 %v6823
      %v6863 = vunpack.c.l.b16 %v6826
      %v6864 = vunpack.c.l.b16 %v6830
      %v6865 = vunpack.c.l.b16 %v6833
      %v6866 = vpack.c.b16 %v6835, %v6834
      %v6867 = vpack.c.b16 %v6837, %v6836
      %v6868 = vpack.c.b16 %v6839, %v6838
      %v6869 = vpack.c.b16 %v6841, %v6840
      %v6870 = vpack.c.b16 %v6843, %v6842
      %v6871 = vpack.c.b16 %v6845, %v6844
      %v6872 = vpack.c.b16 %v6847, %v6846
      %v6873 = vpack.c.b16 %v6849, %v6848
      %v6874 = vpack.c.b16 %v6851, %v6850
      %v6875 = vpack.c.b16 %v6853, %v6852
      %v6876 = vpack.c.b16 %v6855, %v6854
      %v6877 = vpack.c.b16 %v6857, %v6856
      %v6878 = vpack.c.b16 %v6859, %v6858
      %v6879 = vpack.c.b16 %v6861, %v6860
      %v6880 = vpack.c.b16 %v6863, %v6862
      %v6881 = vpack.c.b16 %v6865, %v6864
      %6882 = vrot.lane.b32.xlu0 %v6866, 76
      %v6883 = vpop.permute.xlu0 %6882
      %6884 = vrot.lane.b32.xlu0 %v6867, 76
      %v6885 = vpop.permute.xlu0 %6884
      %6886 = vrot.lane.b32.xlu0 %v6868, 76
      %v6887 = vpop.permute.xlu0 %6886
      %6888 = vrot.lane.b32.xlu0 %v6869, 76
      %v6889 = vpop.permute.xlu0 %6888
      %6890 = vrot.lane.b32.xlu0 %v6870, 76
      %v6891 = vpop.permute.xlu0 %6890
      %6892 = vrot.lane.b32.xlu0 %v6871, 76
      %v6893 = vpop.permute.xlu0 %6892
      %6894 = vrot.lane.b32.xlu0 %v6872, 76
      %v6895 = vpop.permute.xlu0 %6894
      %6896 = vrot.lane.b32.xlu0 %v6873, 76
      %v6897 = vpop.permute.xlu0 %6896
      %6898 = vrot.lane.b32.xlu0 %v6874, 76
      %v6899 = vpop.permute.xlu0 %6898
      %6900 = vrot.lane.b32.xlu0 %v6875, 76
      %v6901 = vpop.permute.xlu0 %6900
      %6902 = vrot.lane.b32.xlu0 %v6876, 76
      %v6903 = vpop.permute.xlu0 %6902
      %6904 = vrot.lane.b32.xlu0 %v6877, 76
      %v6905 = vpop.permute.xlu0 %6904
      %6906 = vrot.lane.b32.xlu0 %v6878, 76
      %v6907 = vpop.permute.xlu0 %6906
      %6908 = vrot.lane.b32.xlu0 %v6879, 76
      %v6909 = vpop.permute.xlu0 %6908
      %6910 = vrot.lane.b32.xlu0 %v6880, 76
      %v6911 = vpop.permute.xlu0 %6910
      %6912 = vrot.lane.b32.xlu0 %v6881, 76
      %v6913 = vpop.permute.xlu0 %6912
      %vm6930 = vcmask 687712
      %6931 = vst.msk [vmem:[#allocation4] sm:$0xff] %vm6930, %v6883
      %6932 = vst.msk [vmem:[#allocation4 + $0x8] sm:$0xff] %vm6930, %v6885
      %6933 = vst.msk [vmem:[#allocation4 + $0x10] sm:$0xff] %vm6930, %v6887
      %6934 = vst.msk [vmem:[#allocation4 + $0x18] sm:$0xff] %vm6930, %v6889
      %6935 = vst.msk [vmem:[#allocation4 + $0x20] sm:$0xff] %vm6930, %v6891
      %6936 = vst.msk [vmem:[#allocation4 + $0x28] sm:$0xff] %vm6930, %v6893
      %6937 = vst.msk [vmem:[#allocation4 + $0x30] sm:$0xff] %vm6930, %v6895
      %6938 = vst.msk [vmem:[#allocation4 + $0x38] sm:$0xff] %vm6930, %v6897
      %6939 = vst.msk [vmem:[#allocation4 + $0x40] sm:$0xff] %vm6930, %v6899
      %6940 = vst.msk [vmem:[#allocation4 + $0x48] sm:$0xff] %vm6930, %v6901
      %6941 = vst.msk [vmem:[#allocation4 + $0x50] sm:$0xff] %vm6930, %v6903
      %6942 = vst.msk [vmem:[#allocation4 + $0x58] sm:$0xff] %vm6930, %v6905
      %6943 = vst.msk [vmem:[#allocation4 + $0x60] sm:$0xff] %vm6930, %v6907
      %6944 = vst.msk [vmem:[#allocation4 + $0x68] sm:$0xff] %vm6930, %v6909
      %6945 = vst.msk [vmem:[#allocation4 + $0x70] sm:$0xff] %vm6930, %v6911
      %6946 = vst.msk [vmem:[#allocation4 + $0x78] sm:$0xff] %vm6930, %v6913
      %s6947 = scalar_lea.vmem [#allocation3], 24
      %v6948 = vld [vmem:[%s6947] sm:$0xf]
      %v6949 = vld [vmem:[%s6947 + $0x4] sm:$0xf]
      %v6950 = vld [vmem:[%s6947 + $0xc] sm:$0xf]
      %v6951 = vld [vmem:[%s6947 + $0x10] sm:$0xf]
      %v6952 = vld [vmem:[%s6947 + $0x18] sm:$0xf]
      %v6953 = vld [vmem:[%s6947 + $0x1c] sm:$0xf]
      %v6954 = vld [vmem:[%s6947 + $0x24] sm:$0xf]
      %v6955 = vld [vmem:[%s6947 + $0x28] sm:$0xf]
      %v6956 = vld [vmem:[%s6947 + $0x30] sm:$0xf]
      %v6957 = vld [vmem:[%s6947 + $0x34] sm:$0xf]
      %v6958 = vld [vmem:[%s6947 + $0x3c] sm:$0xf]
      %v6959 = vld [vmem:[%s6947 + $0x40] sm:$0xf]
      %v6960 = vld [vmem:[%s6947 + $0x48] sm:$0xf]
      %v6961 = vld [vmem:[%s6947 + $0x4c] sm:$0xf]
      %v6962 = vld [vmem:[%s6947 + $0x54] sm:$0xf]
      %v6963 = vld [vmem:[%s6947 + $0x58] sm:$0xf]
      %v6964 = vld [vmem:[%s6947 + $0x60] sm:$0xf]
      %v6965 = vld [vmem:[%s6947 + $0x64] sm:$0xf]
      %v6966 = vld [vmem:[%s6947 + $0x6c] sm:$0xf]
      %v6967 = vld [vmem:[%s6947 + $0x70] sm:$0xf]
      %v6968 = vld [vmem:[%s6947 + $0x78] sm:$0xf]
      %v6969 = vld [vmem:[%s6947 + $0x7c] sm:$0xf]
      %v6970 = vld [vmem:[%s6947 + $0x84] sm:$0xf]
      %v6971 = vld [vmem:[%s6947 + $0x88] sm:$0xf]
      %v6972 = vld [vmem:[%s6947 + $0x90] sm:$0xf]
      %v6973 = vld [vmem:[%s6947 + $0x94] sm:$0xf]
      %v6974 = vld [vmem:[%s6947 + $0x9c] sm:$0xf]
      %v6975 = vld [vmem:[%s6947 + $0xa0] sm:$0xf]
      %v6976 = vld [vmem:[%s6947 + $0xa8] sm:$0xf]
      %v6977 = vld [vmem:[%s6947 + $0xac] sm:$0xf]
      %v6978 = vld [vmem:[%s6947 + $0xb4] sm:$0xf]
      %v6979 = vld [vmem:[%s6947 + $0xb8] sm:$0xf]
      %v7012 = vunpack.c.l.b16 %v6948
      %v7013 = vunpack.c.l.b16 %v6949
      %v7014 = vunpack.c.l.b16 %v6950
      %v7015 = vunpack.c.l.b16 %v6951
      %v7016 = vunpack.c.l.b16 %v6952
      %v7017 = vunpack.c.l.b16 %v6953
      %v7018 = vunpack.c.l.b16 %v6954
      %v7019 = vunpack.c.l.b16 %v6955
      %v7020 = vunpack.c.l.b16 %v6956
      %v7021 = vunpack.c.l.b16 %v6957
      %v7022 = vunpack.c.l.b16 %v6958
      %v7023 = vunpack.c.l.b16 %v6959
      %v7024 = vunpack.c.l.b16 %v6960
      %v7025 = vunpack.c.l.b16 %v6961
      %v7026 = vunpack.c.l.b16 %v6962
      %v7027 = vunpack.c.l.b16 %v6963
      %v7028 = vunpack.c.l.b16 %v6964
      %v7029 = vunpack.c.l.b16 %v6965
      %v7030 = vunpack.c.l.b16 %v6966
      %v7031 = vunpack.c.l.b16 %v6967
      %v7032 = vunpack.c.l.b16 %v6968
      %v7033 = vunpack.c.l.b16 %v6969
      %v7034 = vunpack.c.l.b16 %v6970
      %v7035 = vunpack.c.l.b16 %v6971
      %v7036 = vunpack.c.l.b16 %v6972
      %v7037 = vunpack.c.l.b16 %v6973
      %v7038 = vunpack.c.l.b16 %v6974
      %v7039 = vunpack.c.l.b16 %v6975
      %v7040 = vunpack.c.l.b16 %v6976
      %v7041 = vunpack.c.l.b16 %v6977
      %v7042 = vunpack.c.l.b16 %v6978
      %v7043 = vunpack.c.l.b16 %v6979
      %v7044 = vpack.c.b16 %v7013, %v7012
      %v7045 = vpack.c.b16 %v7015, %v7014
      %v7046 = vpack.c.b16 %v7017, %v7016
      %v7047 = vpack.c.b16 %v7019, %v7018
      %v7048 = vpack.c.b16 %v7021, %v7020
      %v7049 = vpack.c.b16 %v7023, %v7022
      %v7050 = vpack.c.b16 %v7025, %v7024
      %v7051 = vpack.c.b16 %v7027, %v7026
      %v7052 = vpack.c.b16 %v7029, %v7028
      %v7053 = vpack.c.b16 %v7031, %v7030
      %v7054 = vpack.c.b16 %v7033, %v7032
      %v7055 = vpack.c.b16 %v7035, %v7034
      %v7056 = vpack.c.b16 %v7037, %v7036
      %v7057 = vpack.c.b16 %v7039, %v7038
      %v7058 = vpack.c.b16 %v7041, %v7040
      %v7059 = vpack.c.b16 %v7043, %v7042
      %7060 = vrot.lane.b32.xlu0 %v7044, 84
      %v7061 = vpop.permute.xlu0 %7060
      %7062 = vrot.lane.b32.xlu0 %v7045, 84
      %v7063 = vpop.permute.xlu0 %7062
      %7064 = vrot.lane.b32.xlu0 %v7046, 84
      %v7065 = vpop.permute.xlu0 %7064
      %7066 = vrot.lane.b32.xlu0 %v7047, 84
      %v7067 = vpop.permute.xlu0 %7066
      %7068 = vrot.lane.b32.xlu0 %v7048, 84
      %v7069 = vpop.permute.xlu0 %7068
      %7070 = vrot.lane.b32.xlu0 %v7049, 84
      %v7071 = vpop.permute.xlu0 %7070
      %7072 = vrot.lane.b32.xlu0 %v7050, 84
      %v7073 = vpop.permute.xlu0 %7072
      %7074 = vrot.lane.b32.xlu0 %v7051, 84
      %v7075 = vpop.permute.xlu0 %7074
      %7076 = vrot.lane.b32.xlu0 %v7052, 84
      %v7077 = vpop.permute.xlu0 %7076
      %7078 = vrot.lane.b32.xlu0 %v7053, 84
      %v7079 = vpop.permute.xlu0 %7078
      %7080 = vrot.lane.b32.xlu0 %v7054, 84
      %v7081 = vpop.permute.xlu0 %7080
      %7082 = vrot.lane.b32.xlu0 %v7055, 84
      %v7083 = vpop.permute.xlu0 %7082
      %7084 = vrot.lane.b32.xlu0 %v7056, 84
      %v7085 = vpop.permute.xlu0 %7084
      %7086 = vrot.lane.b32.xlu0 %v7057, 84
      %v7087 = vpop.permute.xlu0 %7086
      %7088 = vrot.lane.b32.xlu0 %v7058, 84
      %v7089 = vpop.permute.xlu0 %7088
      %7090 = vrot.lane.b32.xlu0 %v7059, 84
      %v7091 = vpop.permute.xlu0 %7090
      %vm7108 = vcmask 753312
      %7109 = vst.msk [vmem:[#allocation4] sm:$0xff] %vm7108, %v7061
      %7110 = vst.msk [vmem:[#allocation4 + $0x8] sm:$0xff] %vm7108, %v7063
      %7111 = vst.msk [vmem:[#allocation4 + $0x10] sm:$0xff] %vm7108, %v7065
      %7112 = vst.msk [vmem:[#allocation4 + $0x18] sm:$0xff] %vm7108, %v7067
      %7113 = vst.msk [vmem:[#allocation4 + $0x20] sm:$0xff] %vm7108, %v7069
      %7114 = vst.msk [vmem:[#allocation4 + $0x28] sm:$0xff] %vm7108, %v7071
      %7115 = vst.msk [vmem:[#allocation4 + $0x30] sm:$0xff] %vm7108, %v7073
      %7116 = vst.msk [vmem:[#allocation4 + $0x38] sm:$0xff] %vm7108, %v7075
      %7117 = vst.msk [vmem:[#allocation4 + $0x40] sm:$0xff] %vm7108, %v7077
      %7118 = vst.msk [vmem:[#allocation4 + $0x48] sm:$0xff] %vm7108, %v7079
      %7119 = vst.msk [vmem:[#allocation4 + $0x50] sm:$0xff] %vm7108, %v7081
      %7120 = vst.msk [vmem:[#allocation4 + $0x58] sm:$0xff] %vm7108, %v7083
      %7121 = vst.msk [vmem:[#allocation4 + $0x60] sm:$0xff] %vm7108, %v7085
      %7122 = vst.msk [vmem:[#allocation4 + $0x68] sm:$0xff] %vm7108, %v7087
      %7123 = vst.msk [vmem:[#allocation4 + $0x70] sm:$0xff] %vm7108, %v7089
      %7124 = vst.msk [vmem:[#allocation4 + $0x78] sm:$0xff] %vm7108, %v7091
      %v7125 = vld [vmem:[%s6947] sm:$0xf]
      %v7126 = vld [vmem:[%s6947 + $0x4] sm:$0xf]
      %v7127 = vld [vmem:[%s6947 + $0x8] sm:$0x1]
      %v7128 = vld [vmem:[%s6947 + $0xc] sm:$0xf]
      %v7129 = vld [vmem:[%s6947 + $0x10] sm:$0xf]
      %v7130 = vld [vmem:[%s6947 + $0x14] sm:$0x1]
      %v7131 = vld [vmem:[%s6947 + $0x18] sm:$0xf]
      %v7132 = vld [vmem:[%s6947 + $0x1c] sm:$0xf]
      %v7133 = vld [vmem:[%s6947 + $0x20] sm:$0x1]
      %v7134 = vld [vmem:[%s6947 + $0x24] sm:$0xf]
      %v7135 = vld [vmem:[%s6947 + $0x28] sm:$0xf]
      %v7136 = vld [vmem:[%s6947 + $0x2c] sm:$0x1]
      %v7137 = vld [vmem:[%s6947 + $0x30] sm:$0xf]
      %v7138 = vld [vmem:[%s6947 + $0x34] sm:$0xf]
      %v7139 = vld [vmem:[%s6947 + $0x38] sm:$0x1]
      %v7140 = vld [vmem:[%s6947 + $0x3c] sm:$0xf]
      %v7141 = vld [vmem:[%s6947 + $0x40] sm:$0xf]
      %v7142 = vld [vmem:[%s6947 + $0x44] sm:$0x1]
      %v7143 = vld [vmem:[%s6947 + $0x48] sm:$0xf]
      %v7144 = vld [vmem:[%s6947 + $0x4c] sm:$0xf]
      %v7145 = vld [vmem:[%s6947 + $0x50] sm:$0x1]
      %v7146 = vld [vmem:[%s6947 + $0x54] sm:$0xf]
      %v7147 = vld [vmem:[%s6947 + $0x58] sm:$0xf]
      %v7148 = vld [vmem:[%s6947 + $0x5c] sm:$0x1]
      %v7149 = vld [vmem:[%s6947 + $0x60] sm:$0xf]
      %v7150 = vld [vmem:[%s6947 + $0x64] sm:$0xf]
      %v7151 = vld [vmem:[%s6947 + $0x68] sm:$0x1]
      %v7152 = vld [vmem:[%s6947 + $0x6c] sm:$0xf]
      %v7153 = vld [vmem:[%s6947 + $0x70] sm:$0xf]
      %v7154 = vld [vmem:[%s6947 + $0x74] sm:$0x1]
      %v7155 = vld [vmem:[%s6947 + $0x78] sm:$0xf]
      %v7156 = vld [vmem:[%s6947 + $0x7c] sm:$0xf]
      %v7157 = vld [vmem:[%s6947 + $0x80] sm:$0x1]
      %v7158 = vld [vmem:[%s6947 + $0x84] sm:$0xf]
      %v7159 = vld [vmem:[%s6947 + $0x88] sm:$0xf]
      %v7160 = vld [vmem:[%s6947 + $0x8c] sm:$0x1]
      %v7161 = vld [vmem:[%s6947 + $0x90] sm:$0xf]
      %v7162 = vld [vmem:[%s6947 + $0x94] sm:$0xf]
      %v7163 = vld [vmem:[%s6947 + $0x98] sm:$0x1]
      %v7164 = vld [vmem:[%s6947 + $0x9c] sm:$0xf]
      %v7165 = vld [vmem:[%s6947 + $0xa0] sm:$0xf]
      %v7166 = vld [vmem:[%s6947 + $0xa4] sm:$0x1]
      %v7167 = vld [vmem:[%s6947 + $0xa8] sm:$0xf]
      %v7168 = vld [vmem:[%s6947 + $0xac] sm:$0xf]
      %v7169 = vld [vmem:[%s6947 + $0xb0] sm:$0x1]
      %v7170 = vld [vmem:[%s6947 + $0xb4] sm:$0xf]
      %v7171 = vld [vmem:[%s6947 + $0xb8] sm:$0xf]
      %v7172 = vld [vmem:[%s6947 + $0xbc] sm:$0x1]
      %v7174 = vshrl.u32 %v7125, 16
      %v7176 = vrot.slane %v7174, 4
      %v7177 = vshll.u32 %v7125, 16
      %v7179 = vrot.slane %v7177, 5
      %v7180 = vor.u32 %v7176, %v7179
      %v7181 = vrot.slane %v7180, 4
      %v7183 = vshll.u32 %v7126, 16
      %v7185 = vrot.slane %v7183, 5
      %v7186 = vsel %vm1132, %v7181, %v7185
      %v7187 = vshrl.u32 %v7126, 16
      %v7189 = vrot.slane %v7187, 4
      %v7190 = vor.u32 %v7189, %v7185
      %v7191 = vrot.slane %v7190, 4
      %v7193 = vshll.u32 %v7127, 16
      %v7195 = vrot.slane %v7193, 5
      %v7196 = vsel %vm1132, %v7191, %v7195
      %v7198 = vshrl.u32 %v7128, 16
      %v7200 = vrot.slane %v7198, 4
      %v7201 = vshll.u32 %v7128, 16
      %v7203 = vrot.slane %v7201, 5
      %v7204 = vor.u32 %v7200, %v7203
      %v7205 = vrot.slane %v7204, 4
      %v7207 = vshll.u32 %v7129, 16
      %v7209 = vrot.slane %v7207, 5
      %v7210 = vsel %vm1132, %v7205, %v7209
      %v7211 = vshrl.u32 %v7129, 16
      %v7213 = vrot.slane %v7211, 4
      %v7214 = vor.u32 %v7213, %v7209
      %v7215 = vrot.slane %v7214, 4
      %v7217 = vshll.u32 %v7130, 16
      %v7219 = vrot.slane %v7217, 5
      %v7220 = vsel %vm1132, %v7215, %v7219
      %v7222 = vshrl.u32 %v7131, 16
      %v7224 = vrot.slane %v7222, 4
      %v7225 = vshll.u32 %v7131, 16
      %v7227 = vrot.slane %v7225, 5
      %v7228 = vor.u32 %v7224, %v7227
      %v7229 = vrot.slane %v7228, 4
      %v7231 = vshll.u32 %v7132, 16
      %v7233 = vrot.slane %v7231, 5
      %v7234 = vsel %vm1132, %v7229, %v7233
      %v7235 = vshrl.u32 %v7132, 16
      %v7237 = vrot.slane %v7235, 4
      %v7238 = vor.u32 %v7237, %v7233
      %v7239 = vrot.slane %v7238, 4
      %v7241 = vshll.u32 %v7133, 16
      %v7243 = vrot.slane %v7241, 5
      %v7244 = vsel %vm1132, %v7239, %v7243
      %v7246 = vshrl.u32 %v7134, 16
      %v7248 = vrot.slane %v7246, 4
      %v7249 = vshll.u32 %v7134, 16
      %v7251 = vrot.slane %v7249, 5
      %v7252 = vor.u32 %v7248, %v7251
      %v7253 = vrot.slane %v7252, 4
      %v7255 = vshll.u32 %v7135, 16
      %v7257 = vrot.slane %v7255, 5
      %v7258 = vsel %vm1132, %v7253, %v7257
      %v7259 = vshrl.u32 %v7135, 16
      %v7261 = vrot.slane %v7259, 4
      %v7262 = vor.u32 %v7261, %v7257
      %v7263 = vrot.slane %v7262, 4
      %v7265 = vshll.u32 %v7136, 16
      %v7267 = vrot.slane %v7265, 5
      %v7268 = vsel %vm1132, %v7263, %v7267
      %v7270 = vshrl.u32 %v7137, 16
      %v7272 = vrot.slane %v7270, 4
      %v7273 = vshll.u32 %v7137, 16
      %v7275 = vrot.slane %v7273, 5
      %v7276 = vor.u32 %v7272, %v7275
      %v7277 = vrot.slane %v7276, 4
      %v7279 = vshll.u32 %v7138, 16
      %v7281 = vrot.slane %v7279, 5
      %v7282 = vsel %vm1132, %v7277, %v7281
      %v7283 = vshrl.u32 %v7138, 16
      %v7285 = vrot.slane %v7283, 4
      %v7286 = vor.u32 %v7285, %v7281
      %v7287 = vrot.slane %v7286, 4
      %v7289 = vshll.u32 %v7139, 16
      %v7291 = vrot.slane %v7289, 5
      %v7292 = vsel %vm1132, %v7287, %v7291
      %v7294 = vshrl.u32 %v7140, 16
      %v7296 = vrot.slane %v7294, 4
      %v7297 = vshll.u32 %v7140, 16
      %v7299 = vrot.slane %v7297, 5
      %v7300 = vor.u32 %v7296, %v7299
      %v7301 = vrot.slane %v7300, 4
      %v7303 = vshll.u32 %v7141, 16
      %v7305 = vrot.slane %v7303, 5
      %v7306 = vsel %vm1132, %v7301, %v7305
      %v7307 = vshrl.u32 %v7141, 16
      %v7309 = vrot.slane %v7307, 4
      %v7310 = vor.u32 %v7309, %v7305
      %v7311 = vrot.slane %v7310, 4
      %v7313 = vshll.u32 %v7142, 16
      %v7315 = vrot.slane %v7313, 5
      %v7316 = vsel %vm1132, %v7311, %v7315
      %v7318 = vshrl.u32 %v7143, 16
      %v7320 = vrot.slane %v7318, 4
      %v7321 = vshll.u32 %v7143, 16
      %v7323 = vrot.slane %v7321, 5
      %v7324 = vor.u32 %v7320, %v7323
      %v7325 = vrot.slane %v7324, 4
      %v7327 = vshll.u32 %v7144, 16
      %v7329 = vrot.slane %v7327, 5
      %v7330 = vsel %vm1132, %v7325, %v7329
      %v7331 = vshrl.u32 %v7144, 16
      %v7333 = vrot.slane %v7331, 4
      %v7334 = vor.u32 %v7333, %v7329
      %v7335 = vrot.slane %v7334, 4
      %v7337 = vshll.u32 %v7145, 16
      %v7339 = vrot.slane %v7337, 5
      %v7340 = vsel %vm1132, %v7335, %v7339
      %v7342 = vshrl.u32 %v7146, 16
      %v7344 = vrot.slane %v7342, 4
      %v7345 = vshll.u32 %v7146, 16
      %v7347 = vrot.slane %v7345, 5
      %v7348 = vor.u32 %v7344, %v7347
      %v7349 = vrot.slane %v7348, 4
      %v7351 = vshll.u32 %v7147, 16
      %v7353 = vrot.slane %v7351, 5
      %v7354 = vsel %vm1132, %v7349, %v7353
      %v7355 = vshrl.u32 %v7147, 16
      %v7357 = vrot.slane %v7355, 4
      %v7358 = vor.u32 %v7357, %v7353
      %v7359 = vrot.slane %v7358, 4
      %v7361 = vshll.u32 %v7148, 16
      %v7363 = vrot.slane %v7361, 5
      %v7364 = vsel %vm1132, %v7359, %v7363
      %v7366 = vshrl.u32 %v7149, 16
      %v7368 = vrot.slane %v7366, 4
      %v7369 = vshll.u32 %v7149, 16
      %v7371 = vrot.slane %v7369, 5
      %v7372 = vor.u32 %v7368, %v7371
      %v7373 = vrot.slane %v7372, 4
      %v7375 = vshll.u32 %v7150, 16
      %v7377 = vrot.slane %v7375, 5
      %v7378 = vsel %vm1132, %v7373, %v7377
      %v7379 = vshrl.u32 %v7150, 16
      %v7381 = vrot.slane %v7379, 4
      %v7382 = vor.u32 %v7381, %v7377
      %v7383 = vrot.slane %v7382, 4
      %v7385 = vshll.u32 %v7151, 16
      %v7387 = vrot.slane %v7385, 5
      %v7388 = vsel %vm1132, %v7383, %v7387
      %v7390 = vshrl.u32 %v7152, 16
      %v7392 = vrot.slane %v7390, 4
      %v7393 = vshll.u32 %v7152, 16
      %v7395 = vrot.slane %v7393, 5
      %v7396 = vor.u32 %v7392, %v7395
      %v7397 = vrot.slane %v7396, 4
      %v7399 = vshll.u32 %v7153, 16
      %v7401 = vrot.slane %v7399, 5
      %v7402 = vsel %vm1132, %v7397, %v7401
      %v7403 = vshrl.u32 %v7153, 16
      %v7405 = vrot.slane %v7403, 4
      %v7406 = vor.u32 %v7405, %v7401
      %v7407 = vrot.slane %v7406, 4
      %v7409 = vshll.u32 %v7154, 16
      %v7411 = vrot.slane %v7409, 5
      %v7412 = vsel %vm1132, %v7407, %v7411
      %v7414 = vshrl.u32 %v7155, 16
      %v7416 = vrot.slane %v7414, 4
      %v7417 = vshll.u32 %v7155, 16
      %v7419 = vrot.slane %v7417, 5
      %v7420 = vor.u32 %v7416, %v7419
      %v7421 = vrot.slane %v7420, 4
      %v7423 = vshll.u32 %v7156, 16
      %v7425 = vrot.slane %v7423, 5
      %v7426 = vsel %vm1132, %v7421, %v7425
      %v7427 = vshrl.u32 %v7156, 16
      %v7429 = vrot.slane %v7427, 4
      %v7430 = vor.u32 %v7429, %v7425
      %v7431 = vrot.slane %v7430, 4
      %v7433 = vshll.u32 %v7157, 16
      %v7435 = vrot.slane %v7433, 5
      %v7436 = vsel %vm1132, %v7431, %v7435
      %v7438 = vshrl.u32 %v7158, 16
      %v7440 = vrot.slane %v7438, 4
      %v7441 = vshll.u32 %v7158, 16
      %v7443 = vrot.slane %v7441, 5
      %v7444 = vor.u32 %v7440, %v7443
      %v7445 = vrot.slane %v7444, 4
      %v7447 = vshll.u32 %v7159, 16
      %v7449 = vrot.slane %v7447, 5
      %v7450 = vsel %vm1132, %v7445, %v7449
      %v7451 = vshrl.u32 %v7159, 16
      %v7453 = vrot.slane %v7451, 4
      %v7454 = vor.u32 %v7453, %v7449
      %v7455 = vrot.slane %v7454, 4
      %v7457 = vshll.u32 %v7160, 16
      %v7459 = vrot.slane %v7457, 5
      %v7460 = vsel %vm1132, %v7455, %v7459
      %v7462 = vshrl.u32 %v7161, 16
      %v7464 = vrot.slane %v7462, 4
      %v7465 = vshll.u32 %v7161, 16
      %v7467 = vrot.slane %v7465, 5
      %v7468 = vor.u32 %v7464, %v7467
      %v7469 = vrot.slane %v7468, 4
      %v7471 = vshll.u32 %v7162, 16
      %v7473 = vrot.slane %v7471, 5
      %v7474 = vsel %vm1132, %v7469, %v7473
      %v7475 = vshrl.u32 %v7162, 16
      %v7477 = vrot.slane %v7475, 4
      %v7478 = vor.u32 %v7477, %v7473
      %v7479 = vrot.slane %v7478, 4
      %v7481 = vshll.u32 %v7163, 16
      %v7483 = vrot.slane %v7481, 5
      %v7484 = vsel %vm1132, %v7479, %v7483
      %v7486 = vshrl.u32 %v7164, 16
      %v7488 = vrot.slane %v7486, 4
      %v7489 = vshll.u32 %v7164, 16
      %v7491 = vrot.slane %v7489, 5
      %v7492 = vor.u32 %v7488, %v7491
      %v7493 = vrot.slane %v7492, 4
      %v7495 = vshll.u32 %v7165, 16
      %v7497 = vrot.slane %v7495, 5
      %v7498 = vsel %vm1132, %v7493, %v7497
      %v7499 = vshrl.u32 %v7165, 16
      %v7501 = vrot.slane %v7499, 4
      %v7502 = vor.u32 %v7501, %v7497
      %v7503 = vrot.slane %v7502, 4
      %v7505 = vshll.u32 %v7166, 16
      %v7507 = vrot.slane %v7505, 5
      %v7508 = vsel %vm1132, %v7503, %v7507
      %v7510 = vshrl.u32 %v7167, 16
      %v7512 = vrot.slane %v7510, 4
      %v7513 = vshll.u32 %v7167, 16
      %v7515 = vrot.slane %v7513, 5
      %v7516 = vor.u32 %v7512, %v7515
      %v7517 = vrot.slane %v7516, 4
      %v7519 = vshll.u32 %v7168, 16
      %v7521 = vrot.slane %v7519, 5
      %v7522 = vsel %vm1132, %v7517, %v7521
      %v7523 = vshrl.u32 %v7168, 16
      %v7525 = vrot.slane %v7523, 4
      %v7526 = vor.u32 %v7525, %v7521
      %v7527 = vrot.slane %v7526, 4
      %v7529 = vshll.u32 %v7169, 16
      %v7531 = vrot.slane %v7529, 5
      %v7532 = vsel %vm1132, %v7527, %v7531
      %v7534 = vshrl.u32 %v7170, 16
      %v7536 = vrot.slane %v7534, 4
      %v7537 = vshll.u32 %v7170, 16
      %v7539 = vrot.slane %v7537, 5
      %v7540 = vor.u32 %v7536, %v7539
      %v7541 = vrot.slane %v7540, 4
      %v7543 = vshll.u32 %v7171, 16
      %v7545 = vrot.slane %v7543, 5
      %v7546 = vsel %vm1132, %v7541, %v7545
      %v7547 = vshrl.u32 %v7171, 16
      %v7549 = vrot.slane %v7547, 4
      %v7550 = vor.u32 %v7549, %v7545
      %v7551 = vrot.slane %v7550, 4
      %v7553 = vshll.u32 %v7172, 16
      %v7555 = vrot.slane %v7553, 5
      %v7556 = vsel %vm1132, %v7551, %v7555
      %v7557 = vunpack.c.l.b16 %v7186
      %v7558 = vunpack.c.l.b16 %v7196
      %v7559 = vunpack.c.l.b16 %v7210
      %v7560 = vunpack.c.l.b16 %v7220
      %v7561 = vunpack.c.l.b16 %v7234
      %v7562 = vunpack.c.l.b16 %v7244
      %v7563 = vunpack.c.l.b16 %v7258
      %v7564 = vunpack.c.l.b16 %v7268
      %v7565 = vunpack.c.l.b16 %v7282
      %v7566 = vunpack.c.l.b16 %v7292
      %v7567 = vunpack.c.l.b16 %v7306
      %v7568 = vunpack.c.l.b16 %v7316
      %v7569 = vunpack.c.l.b16 %v7330
      %v7570 = vunpack.c.l.b16 %v7340
      %v7571 = vunpack.c.l.b16 %v7354
      %v7572 = vunpack.c.l.b16 %v7364
      %v7573 = vunpack.c.l.b16 %v7378
      %v7574 = vunpack.c.l.b16 %v7388
      %v7575 = vunpack.c.l.b16 %v7402
      %v7576 = vunpack.c.l.b16 %v7412
      %v7577 = vunpack.c.l.b16 %v7426
      %v7578 = vunpack.c.l.b16 %v7436
      %v7579 = vunpack.c.l.b16 %v7450
      %v7580 = vunpack.c.l.b16 %v7460
      %v7581 = vunpack.c.l.b16 %v7474
      %v7582 = vunpack.c.l.b16 %v7484
      %v7583 = vunpack.c.l.b16 %v7498
      %v7584 = vunpack.c.l.b16 %v7508
      %v7585 = vunpack.c.l.b16 %v7522
      %v7586 = vunpack.c.l.b16 %v7532
      %v7587 = vunpack.c.l.b16 %v7546
      %v7588 = vunpack.c.l.b16 %v7556
      %v7589 = vpack.c.b16 %v7558, %v7557
      %v7590 = vpack.c.b16 %v7560, %v7559
      %v7591 = vpack.c.b16 %v7562, %v7561
      %v7592 = vpack.c.b16 %v7564, %v7563
      %v7593 = vpack.c.b16 %v7566, %v7565
      %v7594 = vpack.c.b16 %v7568, %v7567
      %v7595 = vpack.c.b16 %v7570, %v7569
      %v7596 = vpack.c.b16 %v7572, %v7571
      %v7597 = vpack.c.b16 %v7574, %v7573
      %v7598 = vpack.c.b16 %v7576, %v7575
      %v7599 = vpack.c.b16 %v7578, %v7577
      %v7600 = vpack.c.b16 %v7580, %v7579
      %v7601 = vpack.c.b16 %v7582, %v7581
      %v7602 = vpack.c.b16 %v7584, %v7583
      %v7603 = vpack.c.b16 %v7586, %v7585
      %v7604 = vpack.c.b16 %v7588, %v7587
      %7605 = vrot.lane.b32.xlu0 %v7589, 92
      %v7606 = vpop.permute.xlu0 %7605
      %7607 = vrot.lane.b32.xlu0 %v7590, 92
      %v7608 = vpop.permute.xlu0 %7607
      %7609 = vrot.lane.b32.xlu0 %v7591, 92
      %v7610 = vpop.permute.xlu0 %7609
      %7611 = vrot.lane.b32.xlu0 %v7592, 92
      %v7612 = vpop.permute.xlu0 %7611
      %7613 = vrot.lane.b32.xlu0 %v7593, 92
      %v7614 = vpop.permute.xlu0 %7613
      %7615 = vrot.lane.b32.xlu0 %v7594, 92
      %v7616 = vpop.permute.xlu0 %7615
      %7617 = vrot.lane.b32.xlu0 %v7595, 92
      %v7618 = vpop.permute.xlu0 %7617
      %7619 = vrot.lane.b32.xlu0 %v7596, 92
      %v7620 = vpop.permute.xlu0 %7619
      %7621 = vrot.lane.b32.xlu0 %v7597, 92
      %v7622 = vpop.permute.xlu0 %7621
      %7623 = vrot.lane.b32.xlu0 %v7598, 92
      %v7624 = vpop.permute.xlu0 %7623
      %7625 = vrot.lane.b32.xlu0 %v7599, 92
      %v7626 = vpop.permute.xlu0 %7625
      %7627 = vrot.lane.b32.xlu0 %v7600, 92
      %v7628 = vpop.permute.xlu0 %7627
      %7629 = vrot.lane.b32.xlu0 %v7601, 92
      %v7630 = vpop.permute.xlu0 %7629
      %7631 = vrot.lane.b32.xlu0 %v7602, 92
      %v7632 = vpop.permute.xlu0 %7631
      %7633 = vrot.lane.b32.xlu0 %v7603, 92
      %v7634 = vpop.permute.xlu0 %7633
      %7635 = vrot.lane.b32.xlu0 %v7604, 92
      %v7636 = vpop.permute.xlu0 %7635
      %vm7653 = vcmask 818912
      %7654 = vst.msk [vmem:[#allocation4] sm:$0xff] %vm7653, %v7606
      %7655 = vst.msk [vmem:[#allocation4 + $0x8] sm:$0xff] %vm7653, %v7608
      %7656 = vst.msk [vmem:[#allocation4 + $0x10] sm:$0xff] %vm7653, %v7610
      %7657 = vst.msk [vmem:[#allocation4 + $0x18] sm:$0xff] %vm7653, %v7612
      %7658 = vst.msk [vmem:[#allocation4 + $0x20] sm:$0xff] %vm7653, %v7614
      %7659 = vst.msk [vmem:[#allocation4 + $0x28] sm:$0xff] %vm7653, %v7616
      %7660 = vst.msk [vmem:[#allocation4 + $0x30] sm:$0xff] %vm7653, %v7618
      %7661 = vst.msk [vmem:[#allocation4 + $0x38] sm:$0xff] %vm7653, %v7620
      %7662 = vst.msk [vmem:[#allocation4 + $0x40] sm:$0xff] %vm7653, %v7622
      %7663 = vst.msk [vmem:[#allocation4 + $0x48] sm:$0xff] %vm7653, %v7624
      %7664 = vst.msk [vmem:[#allocation4 + $0x50] sm:$0xff] %vm7653, %v7626
      %7665 = vst.msk [vmem:[#allocation4 + $0x58] sm:$0xff] %vm7653, %v7628
      %7666 = vst.msk [vmem:[#allocation4 + $0x60] sm:$0xff] %vm7653, %v7630
      %7667 = vst.msk [vmem:[#allocation4 + $0x68] sm:$0xff] %vm7653, %v7632
      %7668 = vst.msk [vmem:[#allocation4 + $0x70] sm:$0xff] %vm7653, %v7634
      %7669 = vst.msk [vmem:[#allocation4 + $0x78] sm:$0xff] %vm7653, %v7636
      %v7670 = vld [vmem:[%s6947] sm:$0xe]
      %v7671 = vld [vmem:[%s6947 + $0x4] sm:$0xf]
      %v7672 = vld [vmem:[%s6947 + $0x8] sm:$0x1]
      %v7673 = vld [vmem:[%s6947 + $0xc] sm:$0xe]
      %v7674 = vld [vmem:[%s6947 + $0x10] sm:$0xf]
      %v7675 = vld [vmem:[%s6947 + $0x14] sm:$0x1]
      %v7676 = vld [vmem:[%s6947 + $0x18] sm:$0xe]
      %v7677 = vld [vmem:[%s6947 + $0x1c] sm:$0xf]
      %v7678 = vld [vmem:[%s6947 + $0x20] sm:$0x1]
      %v7679 = vld [vmem:[%s6947 + $0x24] sm:$0xe]
      %v7680 = vld [vmem:[%s6947 + $0x28] sm:$0xf]
      %v7681 = vld [vmem:[%s6947 + $0x2c] sm:$0x1]
      %v7682 = vld [vmem:[%s6947 + $0x30] sm:$0xe]
      %v7683 = vld [vmem:[%s6947 + $0x34] sm:$0xf]
      %v7684 = vld [vmem:[%s6947 + $0x38] sm:$0x1]
      %v7685 = vld [vmem:[%s6947 + $0x3c] sm:$0xe]
      %v7686 = vld [vmem:[%s6947 + $0x40] sm:$0xf]
      %v7687 = vld [vmem:[%s6947 + $0x44] sm:$0x1]
      %v7688 = vld [vmem:[%s6947 + $0x48] sm:$0xe]
      %v7689 = vld [vmem:[%s6947 + $0x4c] sm:$0xf]
      %v7690 = vld [vmem:[%s6947 + $0x50] sm:$0x1]
      %v7691 = vld [vmem:[%s6947 + $0x54] sm:$0xe]
      %v7692 = vld [vmem:[%s6947 + $0x58] sm:$0xf]
      %v7693 = vld [vmem:[%s6947 + $0x5c] sm:$0x1]
      %v7694 = vld [vmem:[%s6947 + $0x60] sm:$0xe]
      %v7695 = vld [vmem:[%s6947 + $0x64] sm:$0xf]
      %v7696 = vld [vmem:[%s6947 + $0x68] sm:$0x1]
      %v7697 = vld [vmem:[%s6947 + $0x6c] sm:$0xe]
      %v7698 = vld [vmem:[%s6947 + $0x70] sm:$0xf]
      %v7699 = vld [vmem:[%s6947 + $0x74] sm:$0x1]
      %v7700 = vld [vmem:[%s6947 + $0x78] sm:$0xe]
      %v7701 = vld [vmem:[%s6947 + $0x7c] sm:$0xf]
      %v7702 = vld [vmem:[%s6947 + $0x80] sm:$0x1]
      %v7703 = vld [vmem:[%s6947 + $0x84] sm:$0xe]
      %v7704 = vld [vmem:[%s6947 + $0x88] sm:$0xf]
      %v7705 = vld [vmem:[%s6947 + $0x8c] sm:$0x1]
      %v7706 = vld [vmem:[%s6947 + $0x90] sm:$0xe]
      %v7707 = vld [vmem:[%s6947 + $0x94] sm:$0xf]
      %v7708 = vld [vmem:[%s6947 + $0x98] sm:$0x1]
      %v7709 = vld [vmem:[%s6947 + $0x9c] sm:$0xe]
      %v7710 = vld [vmem:[%s6947 + $0xa0] sm:$0xf]
      %v7711 = vld [vmem:[%s6947 + $0xa4] sm:$0x1]
      %v7712 = vld [vmem:[%s6947 + $0xa8] sm:$0xe]
      %v7713 = vld [vmem:[%s6947 + $0xac] sm:$0xf]
      %v7714 = vld [vmem:[%s6947 + $0xb0] sm:$0x1]
      %v7715 = vld [vmem:[%s6947 + $0xb4] sm:$0xe]
      %v7716 = vld [vmem:[%s6947 + $0xb8] sm:$0xf]
      %v7717 = vld [vmem:[%s6947 + $0xbc] sm:$0x1]
      %v7766 = vrot.slane %v7670, 5
      %v7767 = vrot.slane %v7766, 4
      %v7768 = vrot.slane %v7671, 5
      %v7769 = vsel %vm1728, %v7767, %v7768
      %v7770 = vrot.slane %v7768, 4
      %v7771 = vrot.slane %v7672, 5
      %v7772 = vsel %vm1728, %v7770, %v7771
      %v7773 = vrot.slane %v7673, 5
      %v7774 = vrot.slane %v7773, 4
      %v7775 = vrot.slane %v7674, 5
      %v7776 = vsel %vm1728, %v7774, %v7775
      %v7777 = vrot.slane %v7775, 4
      %v7778 = vrot.slane %v7675, 5
      %v7779 = vsel %vm1728, %v7777, %v7778
      %v7780 = vrot.slane %v7676, 5
      %v7781 = vrot.slane %v7780, 4
      %v7782 = vrot.slane %v7677, 5
      %v7783 = vsel %vm1728, %v7781, %v7782
      %v7784 = vrot.slane %v7782, 4
      %v7785 = vrot.slane %v7678, 5
      %v7786 = vsel %vm1728, %v7784, %v7785
      %v7787 = vrot.slane %v7679, 5
      %v7788 = vrot.slane %v7787, 4
      %v7789 = vrot.slane %v7680, 5
      %v7790 = vsel %vm1728, %v7788, %v7789
      %v7791 = vrot.slane %v7789, 4
      %v7792 = vrot.slane %v7681, 5
      %v7793 = vsel %vm1728, %v7791, %v7792
      %v7794 = vrot.slane %v7682, 5
      %v7795 = vrot.slane %v7794, 4
      %v7796 = vrot.slane %v7683, 5
      %v7797 = vsel %vm1728, %v7795, %v7796
      %v7798 = vrot.slane %v7796, 4
      %v7799 = vrot.slane %v7684, 5
      %v7800 = vsel %vm1728, %v7798, %v7799
      %v7801 = vrot.slane %v7685, 5
      %v7802 = vrot.slane %v7801, 4
      %v7803 = vrot.slane %v7686, 5
      %v7804 = vsel %vm1728, %v7802, %v7803
      %v7805 = vrot.slane %v7803, 4
      %v7806 = vrot.slane %v7687, 5
      %v7807 = vsel %vm1728, %v7805, %v7806
      %v7808 = vrot.slane %v7688, 5
      %v7809 = vrot.slane %v7808, 4
      %v7810 = vrot.slane %v7689, 5
      %v7811 = vsel %vm1728, %v7809, %v7810
      %v7812 = vrot.slane %v7810, 4
      %v7813 = vrot.slane %v7690, 5
      %v7814 = vsel %vm1728, %v7812, %v7813
      %v7815 = vrot.slane %v7691, 5
      %v7816 = vrot.slane %v7815, 4
      %v7817 = vrot.slane %v7692, 5
      %v7818 = vsel %vm1728, %v7816, %v7817
      %v7819 = vrot.slane %v7817, 4
      %v7820 = vrot.slane %v7693, 5
      %v7821 = vsel %vm1728, %v7819, %v7820
      %v7822 = vrot.slane %v7694, 5
      %v7823 = vrot.slane %v7822, 4
      %v7824 = vrot.slane %v7695, 5
      %v7825 = vsel %vm1728, %v7823, %v7824
      %v7826 = vrot.slane %v7824, 4
      %v7827 = vrot.slane %v7696, 5
      %v7828 = vsel %vm1728, %v7826, %v7827
      %v7829 = vrot.slane %v7697, 5
      %v7830 = vrot.slane %v7829, 4
      %v7831 = vrot.slane %v7698, 5
      %v7832 = vsel %vm1728, %v7830, %v7831
      %v7833 = vrot.slane %v7831, 4
      %v7834 = vrot.slane %v7699, 5
      %v7835 = vsel %vm1728, %v7833, %v7834
      %v7836 = vrot.slane %v7700, 5
      %v7837 = vrot.slane %v7836, 4
      %v7838 = vrot.slane %v7701, 5
      %v7839 = vsel %vm1728, %v7837, %v7838
      %v7840 = vrot.slane %v7838, 4
      %v7841 = vrot.slane %v7702, 5
      %v7842 = vsel %vm1728, %v7840, %v7841
      %v7843 = vrot.slane %v7703, 5
      %v7844 = vrot.slane %v7843, 4
      %v7845 = vrot.slane %v7704, 5
      %v7846 = vsel %vm1728, %v7844, %v7845
      %v7847 = vrot.slane %v7845, 4
      %v7848 = vrot.slane %v7705, 5
      %v7849 = vsel %vm1728, %v7847, %v7848
      %v7850 = vrot.slane %v7706, 5
      %v7851 = vrot.slane %v7850, 4
      %v7852 = vrot.slane %v7707, 5
      %v7853 = vsel %vm1728, %v7851, %v7852
      %v7854 = vrot.slane %v7852, 4
      %v7855 = vrot.slane %v7708, 5
      %v7856 = vsel %vm1728, %v7854, %v7855
      %v7857 = vrot.slane %v7709, 5
      %v7858 = vrot.slane %v7857, 4
      %v7859 = vrot.slane %v7710, 5
      %v7860 = vsel %vm1728, %v7858, %v7859
      %v7861 = vrot.slane %v7859, 4
      %v7862 = vrot.slane %v7711, 5
      %v7863 = vsel %vm1728, %v7861, %v7862
      %v7864 = vrot.slane %v7712, 5
      %v7865 = vrot.slane %v7864, 4
      %v7866 = vrot.slane %v7713, 5
      %v7867 = vsel %vm1728, %v7865, %v7866
      %v7868 = vrot.slane %v7866, 4
      %v7869 = vrot.slane %v7714, 5
      %v7870 = vsel %vm1728, %v7868, %v7869
      %v7871 = vrot.slane %v7715, 5
      %v7872 = vrot.slane %v7871, 4
      %v7873 = vrot.slane %v7716, 5
      %v7874 = vsel %vm1728, %v7872, %v7873
      %v7875 = vrot.slane %v7873, 4
      %v7876 = vrot.slane %v7717, 5
      %v7877 = vsel %vm1728, %v7875, %v7876
      %v7878 = vunpack.c.l.b16 %v7769
      %v7879 = vunpack.c.l.b16 %v7772
      %v7880 = vunpack.c.l.b16 %v7776
      %v7881 = vunpack.c.l.b16 %v7779
      %v7882 = vunpack.c.l.b16 %v7783
      %v7883 = vunpack.c.l.b16 %v7786
      %v7884 = vunpack.c.l.b16 %v7790
      %v7885 = vunpack.c.l.b16 %v7793
      %v7886 = vunpack.c.l.b16 %v7797
      %v7887 = vunpack.c.l.b16 %v7800
      %v7888 = vunpack.c.l.b16 %v7804
      %v7889 = vunpack.c.l.b16 %v7807
      %v7890 = vunpack.c.l.b16 %v7811
      %v7891 = vunpack.c.l.b16 %v7814
      %v7892 = vunpack.c.l.b16 %v7818
      %v7893 = vunpack.c.l.b16 %v7821
      %v7894 = vunpack.c.l.b16 %v7825
      %v7895 = vunpack.c.l.b16 %v7828
      %v7896 = vunpack.c.l.b16 %v7832
      %v7897 = vunpack.c.l.b16 %v7835
      %v7898 = vunpack.c.l.b16 %v7839
      %v7899 = vunpack.c.l.b16 %v7842
      %v7900 = vunpack.c.l.b16 %v7846
      %v7901 = vunpack.c.l.b16 %v7849
      %v7902 = vunpack.c.l.b16 %v7853
      %v7903 = vunpack.c.l.b16 %v7856
      %v7904 = vunpack.c.l.b16 %v7860
      %v7905 = vunpack.c.l.b16 %v7863
      %v7906 = vunpack.c.l.b16 %v7867
      %v7907 = vunpack.c.l.b16 %v7870
      %v7908 = vunpack.c.l.b16 %v7874
      %v7909 = vunpack.c.l.b16 %v7877
      %v7910 = vpack.c.b16 %v7879, %v7878
      %v7911 = vpack.c.b16 %v7881, %v7880
      %v7912 = vpack.c.b16 %v7883, %v7882
      %v7913 = vpack.c.b16 %v7885, %v7884
      %v7914 = vpack.c.b16 %v7887, %v7886
      %v7915 = vpack.c.b16 %v7889, %v7888
      %v7916 = vpack.c.b16 %v7891, %v7890
      %v7917 = vpack.c.b16 %v7893, %v7892
      %v7918 = vpack.c.b16 %v7895, %v7894
      %v7919 = vpack.c.b16 %v7897, %v7896
      %v7920 = vpack.c.b16 %v7899, %v7898
      %v7921 = vpack.c.b16 %v7901, %v7900
      %v7922 = vpack.c.b16 %v7903, %v7902
      %v7923 = vpack.c.b16 %v7905, %v7904
      %v7924 = vpack.c.b16 %v7907, %v7906
      %v7925 = vpack.c.b16 %v7909, %v7908
      %7926 = vrot.lane.b32.xlu0 %v7910, 100
      %v7927 = vpop.permute.xlu0 %7926
      %7928 = vrot.lane.b32.xlu0 %v7911, 100
      %v7929 = vpop.permute.xlu0 %7928
      %7930 = vrot.lane.b32.xlu0 %v7912, 100
      %v7931 = vpop.permute.xlu0 %7930
      %7932 = vrot.lane.b32.xlu0 %v7913, 100
      %v7933 = vpop.permute.xlu0 %7932
      %7934 = vrot.lane.b32.xlu0 %v7914, 100
      %v7935 = vpop.permute.xlu0 %7934
      %7936 = vrot.lane.b32.xlu0 %v7915, 100
      %v7937 = vpop.permute.xlu0 %7936
      %7938 = vrot.lane.b32.xlu0 %v7916, 100
      %v7939 = vpop.permute.xlu0 %7938
      %7940 = vrot.lane.b32.xlu0 %v7917, 100
      %v7941 = vpop.permute.xlu0 %7940
      %7942 = vrot.lane.b32.xlu0 %v7918, 100
      %v7943 = vpop.permute.xlu0 %7942
      %7944 = vrot.lane.b32.xlu0 %v7919, 100
      %v7945 = vpop.permute.xlu0 %7944
      %7946 = vrot.lane.b32.xlu0 %v7920, 100
      %v7947 = vpop.permute.xlu0 %7946
      %7948 = vrot.lane.b32.xlu0 %v7921, 100
      %v7949 = vpop.permute.xlu0 %7948
      %7950 = vrot.lane.b32.xlu0 %v7922, 100
      %v7951 = vpop.permute.xlu0 %7950
      %7952 = vrot.lane.b32.xlu0 %v7923, 100
      %v7953 = vpop.permute.xlu0 %7952
      %7954 = vrot.lane.b32.xlu0 %v7924, 100
      %v7955 = vpop.permute.xlu0 %7954
      %7956 = vrot.lane.b32.xlu0 %v7925, 100
      %v7957 = vpop.permute.xlu0 %7956
      %vm7974 = vcmask 884512
      %7975 = vst.msk [vmem:[#allocation4] sm:$0xff] %vm7974, %v7927
      %7976 = vst.msk [vmem:[#allocation4 + $0x8] sm:$0xff] %vm7974, %v7929
      %7977 = vst.msk [vmem:[#allocation4 + $0x10] sm:$0xff] %vm7974, %v7931
      %7978 = vst.msk [vmem:[#allocation4 + $0x18] sm:$0xff] %vm7974, %v7933
      %7979 = vst.msk [vmem:[#allocation4 + $0x20] sm:$0xff] %vm7974, %v7935
      %7980 = vst.msk [vmem:[#allocation4 + $0x28] sm:$0xff] %vm7974, %v7937
      %7981 = vst.msk [vmem:[#allocation4 + $0x30] sm:$0xff] %vm7974, %v7939
      %7982 = vst.msk [vmem:[#allocation4 + $0x38] sm:$0xff] %vm7974, %v7941
      %7983 = vst.msk [vmem:[#allocation4 + $0x40] sm:$0xff] %vm7974, %v7943
      %7984 = vst.msk [vmem:[#allocation4 + $0x48] sm:$0xff] %vm7974, %v7945
      %7985 = vst.msk [vmem:[#allocation4 + $0x50] sm:$0xff] %vm7974, %v7947
      %7986 = vst.msk [vmem:[#allocation4 + $0x58] sm:$0xff] %vm7974, %v7949
      %7987 = vst.msk [vmem:[#allocation4 + $0x60] sm:$0xff] %vm7974, %v7951
      %7988 = vst.msk [vmem:[#allocation4 + $0x68] sm:$0xff] %vm7974, %v7953
      %7989 = vst.msk [vmem:[#allocation4 + $0x70] sm:$0xff] %vm7974, %v7955
      %7990 = vst.msk [vmem:[#allocation4 + $0x78] sm:$0xff] %vm7974, %v7957
      %v7991 = vld [vmem:[#allocation4] sm:$0xff]
      %v7992 = vld [vmem:[#allocation4 + $0x8] sm:$0xff]
      %v7993 = vld [vmem:[#allocation4 + $0x10] sm:$0xff]
      %v7994 = vld [vmem:[#allocation4 + $0x18] sm:$0xff]
      %v7995 = vld [vmem:[#allocation4 + $0x20] sm:$0xff]
      %v7996 = vld [vmem:[#allocation4 + $0x28] sm:$0xff]
      %v7997 = vld [vmem:[#allocation4 + $0x30] sm:$0xff]
      %v7998 = vld [vmem:[#allocation4 + $0x38] sm:$0xff]
      %v7999 = vld [vmem:[#allocation4 + $0x40] sm:$0xff]
      %v8000 = vld [vmem:[#allocation4 + $0x48] sm:$0xff]
      %v8001 = vld [vmem:[#allocation4 + $0x50] sm:$0xff]
      %v8002 = vld [vmem:[#allocation4 + $0x58] sm:$0xff]
      %v8003 = vld [vmem:[#allocation4 + $0x60] sm:$0xff]
      %v8004 = vld [vmem:[#allocation4 + $0x68] sm:$0xff]
      %v8005 = vld [vmem:[#allocation4 + $0x70] sm:$0xff]
      %v8006 = vld [vmem:[#allocation4 + $0x78] sm:$0xff]
      %v8007 = vld [vmem:[%s3] sm:$0xf]
      %v8008 = vld [vmem:[%s3 + $0x4] sm:$0xf]
      %v8009 = vld [vmem:[%s3 + $0x8] sm:$0xf]
      %v8010 = vld [vmem:[%s3 + $0xc] sm:$0xf]
      %v8011 = vld [vmem:[%s3 + $0x10] sm:$0xf]
      %v8012 = vld [vmem:[%s3 + $0x14] sm:$0xf]
      %v8013 = vld [vmem:[%s3 + $0x18] sm:$0xf]
      %v8014 = vld [vmem:[%s3 + $0x1c] sm:$0xf]
      %v8015 = vld [vmem:[%s3 + $0x20] sm:$0xf]
      %v8016 = vld [vmem:[%s3 + $0x24] sm:$0xf]
      %v8017 = vld [vmem:[%s3 + $0x28] sm:$0xf]
      %v8018 = vld [vmem:[%s3 + $0x2c] sm:$0xf]
      %v8019 = vld [vmem:[%s3 + $0x30] sm:$0xf]
      %v8020 = vld [vmem:[%s3 + $0x34] sm:$0x3]
      %v8021 = vld [vmem:[%s4] sm:$0x1]
      %v8023 = vlaneseq
      %v8024 = vshrl.u32 %v8023, 7
      %v8025 = vsub.s32 0, %v8024
      %v8026 = vrot.slane %v8021, %v8025
      %v8042 = vunpack.c.l.b16 %v8007
      %v8043 = vunpack.c.l.b16 %v8008
      %v8044 = vunpack.c.l.b16 %v8009
      %v8045 = vunpack.c.l.b16 %v8010
      %v8046 = vunpack.c.l.b16 %v8011
      %v8047 = vunpack.c.l.b16 %v8012
      %v8048 = vunpack.c.l.b16 %v8013
      %v8049 = vunpack.c.l.b16 %v8014
      %v8050 = vunpack.c.l.b16 %v8015
      %v8051 = vunpack.c.l.b16 %v8016
      %v8052 = vunpack.c.l.b16 %v8017
      %v8053 = vunpack.c.l.b16 %v8018
      %v8054 = vunpack.c.l.b16 %v8019
      %v8055 = vunpack.c.l.b16 %v8020
      %v8056 = vpack.c.b16 %v8043, %v8042
      %v8057 = vpack.c.b16 %v8045, %v8044
      %v8058 = vpack.c.b16 %v8047, %v8046
      %v8059 = vpack.c.b16 %v8049, %v8048
      %v8060 = vpack.c.b16 %v8051, %v8050
      %v8061 = vpack.c.b16 %v8053, %v8052
      %v8062 = vpack.c.b16 %v8055, %v8054
      %vm8069 = vcmask 883712
      %v8071 = vsel %vm8069, %v7991, 0
      %v8074 = vsel %vm8069, %v7992, 0
      %v8077 = vsel %vm8069, %v7993, 0
      %v8080 = vsel %vm8069, %v7994, 0
      %v8083 = vsel %vm8069, %v7995, 0
      %v8086 = vsel %vm8069, %v7996, 0
      %v8089 = vsel %vm8069, %v7997, 0
      %v8092 = vsel %vm8069, %v7998, 0
      %v8095 = vsel %vm8069, %v7999, 0
      %v8098 = vsel %vm8069, %v8000, 0
      %v8101 = vsel %vm8069, %v8001, 0
      %v8104 = vsel %vm8069, %v8002, 0
      %v8107 = vsel %vm8069, %v8003, 0
      %v8110 = vsel %vm8069, %v8004, 0
      %v8113 = vsel %vm8069, %v8005, 0
      %v8116 = vsel %vm8069, %v8006, 0
      %vm8118 = vcmask 1045504
      %v8120 = vsel %vm8118, %v8062, 0
      %8122 = vmatprep.subr.bf16.mxu0 0
      %8123 = vmatpush1.bf16.msra.mxu0 %v8056
      %8124 = vmatprep.subr.bf16.mxu0 0
      %8125 = vmatpush1.bf16.msra.mxu0 %v8057
      %8126 = vmatprep.subr.bf16.mxu0 0
      %8127 = vmatpush1.bf16.msra.mxu0 %v8058
      %8128 = vmatprep.subr.bf16.mxu0 0
      %8129 = vmatpush1.bf16.msra.mxu0 %v8059
      %8130 = vmatprep.subr.bf16.mxu0 0
      %8131 = vmatpush1.bf16.msra.mxu0 %v8060
      %8132 = vmatprep.subr.bf16.mxu0 0
      %8133 = vmatpush1.bf16.msra.mxu0 %v8061
      %8134 = vmatprep.subr.bf16.mxu0 0
      %8135 = vmatpush1.bf16.msra.mxu0 %v8120
      %8136 = vmatprep.subr.bf16.mxu0 0
      %8137 = vmatpush1.bf16.msra.mxu0 0
      %8138 = vmatprep.subr.bf16.mxu0 0
      %8139 = vmatpush1.bf16.msra.mxu0 0
      %8140 = vmatprep.subr.bf16.mxu0 0
      %8141 = vmatpush1.bf16.msra.mxu0 0
      %8142 = vmatprep.subr.bf16.mxu0 0
      %8143 = vmatpush1.bf16.msra.mxu0 0
      %8144 = vmatprep.subr.bf16.mxu0 0
      %8145 = vmatpush1.bf16.msra.mxu0 0
      %8146 = vmatprep.subr.bf16.mxu0 0
      %8147 = vmatpush1.bf16.msra.mxu0 0
      %8148 = vmatprep.subr.bf16.mxu0 0
      %8149 = vmatpush1.bf16.msra.mxu0 0
      %8150 = vmatprep.subr.bf16.mxu0 0
      %8151 = vmatpush1.bf16.msra.mxu0 0
      %8152 = vmatprep.subr.bf16.mxu0 0
      %8153 = vmatpush1.bf16.msra.mxu0 0
      %8154 = vmatprep.mubr.bf16.mxu0 0
      %8155 = vmatmul.mubr.bf16.gmra.mrb[0].mxu0 %v8071
      %v8156 = vpop.f32.mrb[0].mxu0
      %v8157 = vadd.f32 %v8026, %v8156
      %v8158 = vpop.f32.mrb[0].mxu0
      %v8159 = vpop.f32.mrb[0].mxu0
      %v8160 = vadd.f32 %v8026, %v8159
      %v8161 = vpop.f32.mrb[0].mxu0
      %8162 = vmatprep.mubr.bf16.mxu0 0
      %8163 = vmatmul.mubr.bf16.gmra.mrb[0].mxu0 %v8074
      %v8164 = vpop.f32.mrb[0].mxu0
      %v8165 = vadd.f32 %v8026, %v8164
      %v8166 = vpop.f32.mrb[0].mxu0
      %v8167 = vpop.f32.mrb[0].mxu0
      %v8168 = vadd.f32 %v8026, %v8167
      %v8169 = vpop.f32.mrb[0].mxu0
      %8170 = vmatprep.mubr.bf16.mxu0 0
      %8171 = vmatmul.mubr.bf16.gmra.mrb[0].mxu0 %v8077
      %v8172 = vpop.f32.mrb[0].mxu0
      %v8173 = vadd.f32 %v8026, %v8172
      %v8174 = vpop.f32.mrb[0].mxu0
      %v8175 = vpop.f32.mrb[0].mxu0
      %v8176 = vadd.f32 %v8026, %v8175
      %v8177 = vpop.f32.mrb[0].mxu0
      %8178 = vmatprep.mubr.bf16.mxu0 0
      %8179 = vmatmul.mubr.bf16.gmra.mrb[0].mxu0 %v8080
      %v8180 = vpop.f32.mrb[0].mxu0
      %v8181 = vadd.f32 %v8026, %v8180
      %v8182 = vpop.f32.mrb[0].mxu0
      %v8183 = vpop.f32.mrb[0].mxu0
      %v8184 = vadd.f32 %v8026, %v8183
      %v8185 = vpop.f32.mrb[0].mxu0
      %8186 = vmatprep.mubr.bf16.mxu0 0
      %8187 = vmatmul.mubr.bf16.gmra.mrb[0].mxu0 %v8083
      %v8188 = vpop.f32.mrb[0].mxu0
      %v8189 = vadd.f32 %v8026, %v8188
      %v8190 = vpop.f32.mrb[0].mxu0
      %v8191 = vpop.f32.mrb[0].mxu0
      %v8192 = vadd.f32 %v8026, %v8191
      %v8193 = vpop.f32.mrb[0].mxu0
      %8194 = vmatprep.mubr.bf16.mxu0 0
      %8195 = vmatmul.mubr.bf16.gmra.mrb[0].mxu0 %v8086
      %v8196 = vpop.f32.mrb[0].mxu0
      %v8197 = vadd.f32 %v8026, %v8196
      %v8198 = vpop.f32.mrb[0].mxu0
      %v8199 = vpop.f32.mrb[0].mxu0
      %v8200 = vadd.f32 %v8026, %v8199
      %v8201 = vpop.f32.mrb[0].mxu0
      %8202 = vmatprep.mubr.bf16.mxu0 0
      %8203 = vmatmul.mubr.bf16.gmra.mrb[0].mxu0 %v8089
      %v8204 = vpop.f32.mrb[0].mxu0
      %v8205 = vadd.f32 %v8026, %v8204
      %v8206 = vpop.f32.mrb[0].mxu0
      %v8207 = vpop.f32.mrb[0].mxu0
      %v8208 = vadd.f32 %v8026, %v8207
      %v8209 = vpop.f32.mrb[0].mxu0
      %8210 = vmatprep.mubr.bf16.mxu0 0
      %8211 = vmatmul.mubr.bf16.gmra.mrb[0].mxu0 %v8092
      %v8212 = vpop.f32.mrb[0].mxu0
      %v8213 = vadd.f32 %v8026, %v8212
      %v8214 = vpop.f32.mrb[0].mxu0
      %v8215 = vpop.f32.mrb[0].mxu0
      %v8216 = vadd.f32 %v8026, %v8215
      %v8217 = vpop.f32.mrb[0].mxu0
      %8218 = vmatprep.mubr.bf16.mxu0 0
      %8219 = vmatmul.mubr.bf16.gmra.mrb[0].mxu0 %v8095
      %v8220 = vpop.f32.mrb[0].mxu0
      %v8221 = vadd.f32 %v8026, %v8220
      %v8222 = vpop.f32.mrb[0].mxu0
      %v8223 = vpop.f32.mrb[0].mxu0
      %v8224 = vadd.f32 %v8026, %v8223
      %v8225 = vpop.f32.mrb[0].mxu0
      %8226 = vmatprep.mubr.bf16.mxu0 0
      %8227 = vmatmul.mubr.bf16.gmra.mrb[0].mxu0 %v8098
      %v8228 = vpop.f32.mrb[0].mxu0
      %v8229 = vadd.f32 %v8026, %v8228
      %v8230 = vpop.f32.mrb[0].mxu0
      %v8231 = vpop.f32.mrb[0].mxu0
      %v8232 = vadd.f32 %v8026, %v8231
      %v8233 = vpop.f32.mrb[0].mxu0
      %8234 = vmatprep.mubr.bf16.mxu0 0
      %8235 = vmatmul.mubr.bf16.gmra.mrb[0].mxu0 %v8101
      %v8236 = vpop.f32.mrb[0].mxu0
      %v8237 = vadd.f32 %v8026, %v8236
      %v8238 = vpop.f32.mrb[0].mxu0
      %v8239 = vpop.f32.mrb[0].mxu0
      %v8240 = vadd.f32 %v8026, %v8239
      %v8241 = vpop.f32.mrb[0].mxu0
      %8242 = vmatprep.mubr.bf16.mxu0 0
      %8243 = vmatmul.mubr.bf16.gmra.mrb[0].mxu0 %v8104
      %v8244 = vpop.f32.mrb[0].mxu0
      %v8245 = vadd.f32 %v8026, %v8244
      %v8246 = vpop.f32.mrb[0].mxu0
      %v8247 = vpop.f32.mrb[0].mxu0
      %v8248 = vadd.f32 %v8026, %v8247
      %v8249 = vpop.f32.mrb[0].mxu0
      %8250 = vmatprep.mubr.bf16.mxu0 0
      %8251 = vmatmul.mubr.bf16.gmra.mrb[0].mxu0 %v8107
      %v8252 = vpop.f32.mrb[0].mxu0
      %v8253 = vadd.f32 %v8026, %v8252
      %v8254 = vpop.f32.mrb[0].mxu0
      %v8255 = vpop.f32.mrb[0].mxu0
      %v8256 = vadd.f32 %v8026, %v8255
      %v8257 = vpop.f32.mrb[0].mxu0
      %8258 = vmatprep.mubr.bf16.mxu0 0
      %8259 = vmatmul.mubr.bf16.gmra.mrb[0].mxu0 %v8110
      %v8260 = vpop.f32.mrb[0].mxu0
      %v8261 = vadd.f32 %v8026, %v8260
      %v8262 = vpop.f32.mrb[0].mxu0
      %v8263 = vpop.f32.mrb[0].mxu0
      %v8264 = vadd.f32 %v8026, %v8263
      %v8265 = vpop.f32.mrb[0].mxu0
      %8266 = vmatprep.mubr.bf16.mxu0 0
      %8267 = vmatmul.mubr.bf16.gmra.mrb[0].mxu0 %v8113
      %v8268 = vpop.f32.mrb[0].mxu0
      %v8269 = vadd.f32 %v8026, %v8268
      %v8270 = vpop.f32.mrb[0].mxu0
      %v8271 = vpop.f32.mrb[0].mxu0
      %v8272 = vadd.f32 %v8026, %v8271
      %v8273 = vpop.f32.mrb[0].mxu0
      %8274 = vmatprep.mubr.bf16.mxu0 0
      %8275 = vmatmul.mubr.bf16.gmra.mrb[0].mxu0 %v8116
      %v8276 = vpop.f32.mrb[0].mxu0
      %v8277 = vadd.f32 %v8026, %v8276
      %v8278 = vpop.f32.mrb[0].mxu0
      %v8279 = vpop.f32.mrb[0].mxu0
      %v8280 = vadd.f32 %v8026, %v8279
      %v8281 = vpop.f32.mrb[0].mxu0
      %8282 = vdwg.mxu0
      %v8283 = vmax.f32 %v8157, 0.0
      %v8284 = vmax.f32 %v8160, 0.0
      %v8285 = vmax.f32 %v8165, 0.0
      %v8286 = vmax.f32 %v8168, 0.0
      %v8287 = vmax.f32 %v8173, 0.0
      %v8288 = vmax.f32 %v8176, 0.0
      %v8289 = vmax.f32 %v8181, 0.0
      %v8290 = vmax.f32 %v8184, 0.0
      %v8291 = vmax.f32 %v8189, 0.0
      %v8292 = vmax.f32 %v8192, 0.0
      %v8293 = vmax.f32 %v8197, 0.0
      %v8294 = vmax.f32 %v8200, 0.0
      %v8295 = vmax.f32 %v8205, 0.0
      %v8296 = vmax.f32 %v8208, 0.0
      %v8297 = vmax.f32 %v8213, 0.0
      %v8298 = vmax.f32 %v8216, 0.0
      %v8299 = vmax.f32 %v8221, 0.0
      %v8300 = vmax.f32 %v8224, 0.0
      %v8301 = vmax.f32 %v8229, 0.0
      %v8302 = vmax.f32 %v8232, 0.0
      %v8303 = vmax.f32 %v8237, 0.0
      %v8304 = vmax.f32 %v8240, 0.0
      %v8305 = vmax.f32 %v8245, 0.0
      %v8306 = vmax.f32 %v8248, 0.0
      %v8307 = vmax.f32 %v8253, 0.0
      %v8308 = vmax.f32 %v8256, 0.0
      %v8309 = vmax.f32 %v8261, 0.0
      %v8310 = vmax.f32 %v8264, 0.0
      %v8311 = vmax.f32 %v8269, 0.0
      %v8312 = vmax.f32 %v8272, 0.0
      %v8313 = vmax.f32 %v8277, 0.0
      %v8314 = vmax.f32 %v8280, 0.0
      %vm8315 = vcmask 64512
      %8316 = vst.msk [vmem:[%s224] sm:$0xff] %vm8315, %v8283
      %8317 = vst.msk [vmem:[%s224 + $0x8] sm:$0xff] %vm8315, %v8284
      %8318 = vst.msk [vmem:[%s224 + $0x10] sm:$0xff] %vm8315, %v8285
      %8319 = vst.msk [vmem:[%s224 + $0x18] sm:$0xff] %vm8315, %v8286
      %8320 = vst.msk [vmem:[%s224 + $0x20] sm:$0xff] %vm8315, %v8287
      %8321 = vst.msk [vmem:[%s224 + $0x28] sm:$0xff] %vm8315, %v8288
      %8322 = vst.msk [vmem:[%s224 + $0x30] sm:$0xff] %vm8315, %v8289
      %8323 = vst.msk [vmem:[%s224 + $0x38] sm:$0xff] %vm8315, %v8290
      %8324 = vst.msk [vmem:[%s224 + $0x40] sm:$0xff] %vm8315, %v8291
      %8325 = vst.msk [vmem:[%s224 + $0x48] sm:$0xff] %vm8315, %v8292
      %8326 = vst.msk [vmem:[%s224 + $0x50] sm:$0xff] %vm8315, %v8293
      %8327 = vst.msk [vmem:[%s224 + $0x58] sm:$0xff] %vm8315, %v8294
      %8328 = vst.msk [vmem:[%s224 + $0x60] sm:$0xff] %vm8315, %v8295
      %8329 = vst.msk [vmem:[%s224 + $0x68] sm:$0xff] %vm8315, %v8296
      %8330 = vst.msk [vmem:[%s224 + $0x70] sm:$0xff] %vm8315, %v8297
      %8331 = vst.msk [vmem:[%s224 + $0x78] sm:$0xff] %vm8315, %v8298
      %8332 = vst.msk [vmem:[%s224 + $0x80] sm:$0xff] %vm8315, %v8299
      %8333 = vst.msk [vmem:[%s224 + $0x88] sm:$0xff] %vm8315, %v8300
      %8334 = vst.msk [vmem:[%s224 + $0x90] sm:$0xff] %vm8315, %v8301
      %8335 = vst.msk [vmem:[%s224 + $0x98] sm:$0xff] %vm8315, %v8302
      %8336 = vst.msk [vmem:[%s224 + $0xa0] sm:$0xff] %vm8315, %v8303
      %8337 = vst.msk [vmem:[%s224 + $0xa8] sm:$0xff] %vm8315, %v8304
      %8338 = vst.msk [vmem:[%s224 + $0xb0] sm:$0xff] %vm8315, %v8305
      %8339 = vst.msk [vmem:[%s224 + $0xb8] sm:$0xff] %vm8315, %v8306
      %8340 = vst.msk [vmem:[%s224 + $0xc0] sm:$0xff] %vm8315, %v8307
      %8341 = vst.msk [vmem:[%s224 + $0xc8] sm:$0xff] %vm8315, %v8308
      %8342 = vst.msk [vmem:[%s224 + $0xd0] sm:$0xff] %vm8315, %v8309
      %8343 = vst.msk [vmem:[%s224 + $0xd8] sm:$0xff] %vm8315, %v8310
      %8344 = vst.msk [vmem:[%s224 + $0xe0] sm:$0xff] %vm8315, %v8311
      %8345 = vst.msk [vmem:[%s224 + $0xe8] sm:$0xff] %vm8315, %v8312
      %8346 = vst.msk [vmem:[%s224 + $0xf0] sm:$0xff] %vm8315, %v8313
      %8347 = vst.msk [vmem:[%s224 + $0xf8] sm:$0xff] %vm8315, %v8314
      %p8348 = scmp.lt.s32.totalorder %s16, 1
      %s8349 = scalar_select %p8348, %s16, 1
      %s8350 = smul.addr %s8349, 32
      %s8351 = smul.addr %s8350, 8
      %s8352 = scalar_lea.vmem %s5, %s8351
      // Predicated region
      $region41: #{hyper_residual_block_forward.1} parent=39 // pred_check
        %p8353 = pneg %p144
      $region42: #{hyper_residual_block_forward.1} parent=39 // pred_check_branch
        %8355 = sbr.rel (%p8353) target = $region44
      $region43: #{hyper_residual_block_forward.1} parent=39 // pred_region
        _
      $region44: #{hyper_residual_block_forward.1} parent=39 // pred_fallthru
        _
    $region40: #{hyper_residual_block_forward.1} parent=5 // pred_fallthru
      _
    %p8356 = scmp.le.s32.totalorder 2, %s11
    // Predicated region
    $region45: #{hyper_residual_block_forward.1} parent=5 // pred_check
      %p8357 = pneg %p8356
    $region46: #{hyper_residual_block_forward.1} parent=5 // pred_check_branch
      %8359 = sbr.rel (%p8357) target = $region48
    $region47: #{hyper_residual_block_forward.1} parent=5 // pred_region
      %s8360 = ssub.s32 %s11, 2
      // Predicated region
      $region49: #{hyper_residual_block_forward.1} parent=47 // pred_check
        %p8361 = pneg %p150
      $region50: #{hyper_residual_block_forward.1} parent=47 // pred_check_branch
        %8363 = sbr.rel (%p8361) target = $region52
      $region51: #{hyper_residual_block_forward.1} parent=47 // pred_region
        %p8364 = scmp.lt.s32.totalorder %s17, 1
        %s8365 = scalar_select %p8364, %s17, 1
        %s8366 = smul.addr %s8365, 32
        %s8367 = smul.addr %s8366, 8
        %s8368 = scalar_lea.vmem %s5, %s8367
      $region52: #{hyper_residual_block_forward.1} parent=47 // pred_fallthru
        _
    $region48: #{hyper_residual_block_forward.1} parent=5 // pred_fallthru
      _
  $region6: #{hyper_residual_block_forward.1} parent=0 // loop_footer
    %s15 = sadd.s32 1, %s11
  $region7: #{hyper_residual_block_forward.1} parent=0 // loop_footer_branch
    %10 = sbr.rel target = $region3
  $region8: #{hyper_residual_block_forward.1} parent=0 // loop_exit
    _

</llo_original>
